<compile_context>
chip_gen: v7x
topology: tpu7x:2x2x1
jax: 0.10.0
libtpu: 0.0.40
codegen_flags: <defaults>
</compile_context>

<pallas_src>
import math

import jax
import jax.numpy as jnp
from jax.experimental import pallas as pl
from jax.experimental.pallas import tpu as pltpu

# ----------------------------- model sizes (small, synthetic) ---------------
B_IMG        = 2          # image batch
C_IN         = 3          # image channels
RES          = 16         # image resolution
PATCH        = 8          # patch size -> 2x2 = 4 patches
N_PATCH      = (RES // PATCH) ** 2
VIS_WIDTH    = 64         # analog of ViT width 768
VIS_LAYERS   = 2
VIS_HEADS    = 4
TXT_WIDTH    = 32         # ctx_dim (analog of 512)
TXT_LAYERS   = 2
TXT_HEADS    = 4
CTX_LEN      = 8          # text sequence length (analog of 77)
EMBED_DIM    = 16         # joint CLIP embedding dim
N_CLS        = 3          # number of class names
N_CTX        = 2          # MaPLe context tokens
PROMPT_DEPTH = 2          # -> 1 compound prompt

_ARB1 = pltpu.CompilerParams(dimension_semantics=("arbitrary",))

BLOCK_KEYS = ("ln1_g", "ln1_b", "w_qkv", "b_qkv", "w_o", "b_o",
              "ln2_g", "ln2_b", "w_fc", "b_fc", "w_out", "b_out")
_MATRIX_KEYS = frozenset({"w_qkv", "w_o", "w_fc", "w_out"})


def _full_spec(shape):
    nd = len(shape)
    return pl.BlockSpec(shape, lambda *_: (0,) * nd)


# ----------------------------- small standalone kernels ---------------------
def _matmul_kernel(x_ref, w_ref, o_ref):
    o_ref[...] = jnp.dot(x_ref[...], w_ref[...],
                         preferred_element_type=jnp.float32).astype(o_ref.dtype)


def _matmul_bias_kernel(x_ref, w_ref, b_ref, o_ref):
    o_ref[...] = (jnp.dot(x_ref[...], w_ref[...],
                          preferred_element_type=jnp.float32)
                  + b_ref[...]).astype(o_ref.dtype)


def pallas_linear(x, w, b=None):
    """x:(M,K) @ w:(K,N) [+ b:(N,)] -> (M,N) float32 (no zero-bias DMA)."""
    M, K = x.shape
    N = w.shape[1]
    x = x.astype(jnp.float32)
    w = w.astype(jnp.float32)
    if b is None:
        return pl.pallas_call(
            _matmul_kernel,
            out_shape=jax.ShapeDtypeStruct((M, N), jnp.float32),
            grid=(1,),
            in_specs=[_full_spec((M, K)), _full_spec((K, N))],
            out_specs=_full_spec((M, N)),
            compiler_params=_ARB1,
        )(x, w)
    return pl.pallas_call(
        _matmul_bias_kernel,
        out_shape=jax.ShapeDtypeStruct((M, N), jnp.float32),
        grid=(1,),
        in_specs=[_full_spec((M, K)), _full_spec((K, N)), _full_spec((1, N))],
        out_specs=_full_spec((M, N)),
        compiler_params=_ARB1,
    )(x, w, b.reshape(1, N).astype(jnp.float32))


def _clip_logits_kernel(img_ref, txt_ref, s_ref, o_ref):
    img = img_ref[...].astype(jnp.float32)
    txt = txt_ref[...].astype(jnp.float32)
    img = img * jax.lax.rsqrt(jnp.maximum(
        jnp.sum(img * img, axis=-1, keepdims=True), 1e-12))
    txt = txt * jax.lax.rsqrt(jnp.maximum(
        jnp.sum(txt * txt, axis=-1, keepdims=True), 1e-12))
    scale = jnp.exp(s_ref[0, 0])
    o_ref[...] = (scale * jnp.dot(img, txt.T,
                                  preferred_element_type=jnp.float32)).astype(o_ref.dtype)


def pallas_clip_logits(img_feat, txt_feat, logit_scale):
    Bi, E = img_feat.shape
    Ct = txt_feat.shape[0]
    s = jnp.reshape(logit_scale.astype(jnp.float32), (1, 1))
    return pl.pallas_call(
        _clip_logits_kernel,
        out_shape=jax.ShapeDtypeStruct((Bi, Ct), jnp.float32),
        grid=(1,),
        in_specs=[_full_spec((Bi, E)), _full_spec((Ct, E)), _full_spec((1, 1))],
        out_specs=_full_spec((Bi, Ct)),
        compiler_params=_ARB1,
    )(img_feat, txt_feat, s)


# ----------------------------- fused transformer block (in-kernel helper) ---
def _layernorm(x, g, b, eps=1e-5):
    mu = jnp.mean(x, axis=-1, keepdims=True)
    xc = x - mu
    var = jnp.mean(xc * xc, axis=-1, keepdims=True)
    return xc * jax.lax.rsqrt(var + eps) * g + b


def _transformer_block(x, ln1g, ln1b, wqkv, bqkv, wo, bo,
                       ln2g, ln2b, wfc, bfc, wout, bout, *, n_head, causal):
    """Pre-LN CLIP ResidualAttentionBlock, fully in registers/VMEM.

    x: (B, T, D) f32.  Matmul weights are bf16 (cast activations at the MXU
    input, accumulate in f32); LN / softmax / residual math stays f32.
    """
    B, T, D = x.shape
    Dh = D // n_head
    scale = 1.0 / math.sqrt(Dh)

    # --- attention ---
    h = _layernorm(x, ln1g, ln1b).reshape(B * T, D)
    qkv = jnp.dot(h.astype(wqkv.dtype), wqkv,
                  preferred_element_type=jnp.float32) + bqkv      # (B*T, 3D)
    qkv = qkv.reshape(B, T, 3 * D)
    q = qkv[:, :, 0:D]
    k = qkv[:, :, D:2 * D]
    v = qkv[:, :, 2 * D:3 * D]

    if causal:
        row = jax.lax.broadcasted_iota(jnp.int32, (T, T), 0)
        col = jax.lax.broadcasted_iota(jnp.int32, (T, T), 1)
        masked = (col > row)[None]                                # (1, T, T)

    heads = []
    for hh in range(n_head):                                      # static unroll
        sl = slice(hh * Dh, (hh + 1) * Dh)
        qh, kh, vh = q[:, :, sl], k[:, :, sl], v[:, :, sl]
        s = jnp.einsum("bqd,bkd->bqk", qh, kh,
                       preferred_element_type=jnp.float32) * scale
        if causal:
            s = jnp.where(masked, -1e30, s)
        s = s - jnp.max(s, axis=-1, keepdims=True)
        p = jnp.exp(s)
        p = p * pl.reciprocal(jnp.sum(p, axis=-1, keepdims=True), approx=True)
        heads.append(jnp.einsum("bqk,bkd->bqd", p, vh,
                                preferred_element_type=jnp.float32))
    attn = jnp.concatenate(heads, axis=-1).reshape(B * T, D)
    attn = jnp.dot(attn.astype(wo.dtype), wo,
                   preferred_element_type=jnp.float32) + bo
    x = x + attn.reshape(B, T, D)

    # --- MLP (QuickGELU) ---
    h = _layernorm(x, ln2g, ln2b).reshape(B * T, D)
    h = jnp.dot(h.astype(wfc.dtype), wfc,
                preferred_element_type=jnp.float32) + bfc
    h = h * jax.nn.sigmoid(1.702 * h)
    h = jnp.dot(h.astype(wout.dtype), wout,
                preferred_element_type=jnp.float32) + bout
    x = x + h.reshape(B, T, D)
    return x


def _layer_weights(ln1g, ln1b, wqkv, bqkv, wo, bo, ln2g, ln2b, wfc, bfc, wout, bout):
    """Pull layer-local views out of the (1, ...)-blocked stacked refs."""
    return (ln1g[0], ln1b[0], wqkv[0], bqkv[0], wo[0], bo[0],
            ln2g[0], ln2b[0], wfc[0], bfc[0], wout[0], bout[0])


# ----------------------------- fused text encoder ----------------------------
def _text_encoder_kernel(eot_ref, x_ref, pos_ref, deep_ref,
                         ln1g, ln1b, wqkv, bqkv, wo, bo,
                         ln2g, ln2b, wfc, bfc, wout, bout,
                         lnfg, lnfb, tproj,
                         out_ref, x_sc):
    l = pl.program_id(0)
    n_layers = pl.num_programs(0)
    n_cls, T, D = x_sc.shape
    n_cp = deep_ref.shape[0]

    @pl.when(l == 0)
    def _():
        x_sc[...] = x_ref[...].astype(jnp.float32) + pos_ref[...].astype(jnp.float32)

    # MaPLe: splice compound text prompt into tokens 1 .. 1+n_ctx before block l
    @pl.when(jnp.logical_and(l >= 1, l <= n_cp))
    def _():
        ctx = deep_ref[jnp.maximum(l - 1, 0)].astype(jnp.float32)     # (N_CTX, D)
        x_sc[:, 1:1 + N_CTX, :] = jnp.broadcast_to(ctx[None], (n_cls, N_CTX, D))

    x = _transformer_block(
        x_sc[...],
        *_layer_weights(ln1g, ln1b, wqkv, bqkv, wo, bo,
                        ln2g, ln2b, wfc, bfc, wout, bout),
        n_head=TXT_HEADS, causal=True)
    x_sc[...] = x

    @pl.when(l == n_layers - 1)
    def _():
        # final LN applied only to the gathered EOT rows (LN is per-token).
        rows = [x_sc[c, pl.ds(eot_ref[c], 1), :] for c in range(n_cls)]
        feats = jnp.concatenate(rows, axis=0)                         # (n_cls, D)
        feats = _layernorm(feats, lnfg[...], lnfb[...])
        out_ref[...] = jnp.dot(feats, tproj[...],
                               preferred_element_type=jnp.float32).astype(out_ref.dtype)


def text_encoder_fused(prompts, pos_emb, deep_txt, stacked, lnf_g, lnf_b, tproj, eot):
    n_cls, T, D = prompts.shape
    L = stacked["w_qkv"].shape[0]

    layer_specs = [pl.BlockSpec((1,) + stacked[k].shape[1:], lambda l, *_: (l, 0, 0))
                   for k in BLOCK_KEYS]
    in_specs = ([pl.BlockSpec((n_cls, T, D), lambda l, *_: (0, 0, 0)),
                 pl.BlockSpec((1, T, D), lambda l, *_: (0, 0, 0)),
                 pl.BlockSpec(deep_txt.shape, lambda l, *_: (0, 0, 0))]
                + layer_specs
                + [pl.BlockSpec((1, D), lambda l, *_: (0, 0)),
                   pl.BlockSpec((1, D), lambda l, *_: (0, 0)),
                   pl.BlockSpec((D, EMBED_DIM), lambda l, *_: (0, 0))])

    gs = pltpu.PrefetchScalarGridSpec(
        num_scalar_prefetch=1,
        grid=(L,),
        in_specs=in_specs,
        out_specs=pl.BlockSpec((n_cls, EMBED_DIM), lambda l, *_: (0, 0)),
        scratch_shapes=[pltpu.VMEM((n_cls, T, D), jnp.float32)],
    )
    return pl.pallas_call(
        _text_encoder_kernel,
        out_shape=jax.ShapeDtypeStruct((n_cls, EMBED_DIM), jnp.float32),
        grid_spec=gs,
        compiler_params=_ARB1,
    )(eot,
      prompts.astype(jnp.float32),
      pos_emb.reshape(1, T, D).astype(jnp.float32),
      deep_txt.astype(jnp.float32),
      *[stacked[k] for k in BLOCK_KEYS],
      lnf_g.reshape(1, D), lnf_b.reshape(1, D), tproj.astype(jnp.float32))


# ----------------------------- fused image encoder ---------------------------
def _image_encoder_kernel(x_ref, deep_ref, lnpre_g, lnpre_b,
                          ln1g, ln1b, wqkv, bqkv, wo, bo,
                          ln2g, ln2b, wfc, bfc, wout, bout,
                          lnpost_g, lnpost_b, proj,
                          out_ref, x_sc):
    l = pl.program_id(0)
    n_layers = pl.num_programs(0)
    B, T, D = x_sc.shape
    n_cp = deep_ref.shape[0]

    @pl.when(l == 0)
    def _():
        x_sc[...] = _layernorm(x_ref[...].astype(jnp.float32),
                               lnpre_g[...], lnpre_b[...])

    # MaPLe: replace the trailing n_ctx visual-prompt tokens before block l
    @pl.when(jnp.logical_and(l >= 1, l <= n_cp))
    def _():
        ctx = deep_ref[jnp.maximum(l - 1, 0)].astype(jnp.float32)     # (N_CTX, D)
        x_sc[:, T - N_CTX:, :] = jnp.broadcast_to(ctx[None], (B, N_CTX, D))

    x = _transformer_block(
        x_sc[...],
        *_layer_weights(ln1g, ln1b, wqkv, bqkv, wo, bo,
                        ln2g, ln2b, wfc, bfc, wout, bout),
        n_head=VIS_HEADS, causal=False)
    x_sc[...] = x

    @pl.when(l == n_layers - 1)
    def _():
        cls = x_sc[:, 0, :]                                           # (B, D)
        cls = _layernorm(cls, lnpost_g[...], lnpost_b[...])
        out_ref[...] = jnp.dot(cls, proj[...],
                               preferred_element_type=jnp.float32).astype(out_ref.dtype)


def image_encoder_fused(x, deep_vis, stacked, vp):
    B, T, D = x.shape
    L = stacked["w_qkv"].shape[0]

    layer_specs = [pl.BlockSpec((1,) + stacked[k].shape[1:], lambda l, *_: (l, 0, 0))
                   for k in BLOCK_KEYS]
    in_specs = ([pl.BlockSpec((B, T, D), lambda l, *_: (0, 0, 0)),
                 pl.BlockSpec(deep_vis.shape, lambda l, *_: (0, 0, 0)),
                 pl.BlockSpec((1, D), lambda l, *_: (0, 0)),
                 pl.BlockSpec((1, D), lambda l, *_: (0, 0))]
                + layer_specs
                + [pl.BlockSpec((1, D), lambda l, *_: (0, 0)),
                   pl.BlockSpec((1, D), lambda l, *_: (0, 0)),
                   pl.BlockSpec((D, EMBED_DIM), lambda l, *_: (0, 0))])

    gs = pltpu.PrefetchScalarGridSpec(
        num_scalar_prefetch=0,
        grid=(L,),
        in_specs=in_specs,
        out_specs=pl.BlockSpec((B, EMBED_DIM), lambda l, *_: (0, 0)),
        scratch_shapes=[pltpu.VMEM((B, T, D), jnp.float32)],
    )
    return pl.pallas_call(
        _image_encoder_kernel,
        out_shape=jax.ShapeDtypeStruct((B, EMBED_DIM), jnp.float32),
        grid_spec=gs,
        compiler_params=_ARB1,
    )(x.astype(jnp.float32), deep_vis.astype(jnp.float32),
      vp["ln_pre_g"].reshape(1, D), vp["ln_pre_b"].reshape(1, D),
      *[stacked[k] for k in BLOCK_KEYS],
      vp["ln_post_g"].reshape(1, D), vp["ln_post_b"].reshape(1, D),
      vp["proj"].astype(jnp.float32))


# ----------------------------- image encoder (glue + kernels) ----------------
def image_encoder_forward(image, shared_ctx, deep_vis, vp, stacked_vis):
    B, C, H, W = image.shape
    gh, gw = H // PATCH, W // PATCH
    # im2col: NCHW -> (B, nP, C*P*P)   (conv1, stride=patch, bias=False)
    patches = image.reshape(B, C, gh, PATCH, gw, PATCH)
    patches = patches.transpose(0, 2, 4, 1, 3, 5).reshape(B, gh * gw, C * PATCH * PATCH)
    w_flat = vp["conv_w"].reshape(VIS_WIDTH, C * PATCH * PATCH).T
    x = pallas_linear(patches.reshape(B * gh * gw, -1), w_flat)
    x = x.reshape(B, gh * gw, VIS_WIDTH)

    cls_tok = jnp.broadcast_to(vp["class_emb"][None, None, :], (B, 1, VIS_WIDTH))
    x = jnp.concatenate([cls_tok, x], axis=1) + vp["pos_emb"][None]
    vis_ctx = jnp.broadcast_to(shared_ctx[None], (B, N_CTX, VIS_WIDTH))
    x = jnp.concatenate([x, vis_ctx], axis=1)        # (B, 1+nP+n_ctx, VIS_WIDTH)

    return image_encoder_fused(x, deep_vis, stacked_vis, vp)   # (B, EMBED_DIM)


# ----------------------------- parameter init --------------------------------
def _normal(key, shape, std=0.02):
    return std * jax.random.normal(key, shape, jnp.float32)


def init_block_params(key, D):
    ks = jax.random.split(key, 4)
    return dict(
        ln1_g=jnp.ones((D,), jnp.float32), ln1_b=jnp.zeros((D,), jnp.float32),
        w_qkv=_normal(ks[0], (D, 3 * D)), b_qkv=jnp.zeros((3 * D,), jnp.float32),
        w_o=_normal(ks[1], (D, D)),       b_o=jnp.zeros((D,), jnp.float32),
        ln2_g=jnp.ones((D,), jnp.float32), ln2_b=jnp.zeros((D,), jnp.float32),
        w_fc=_normal(ks[2], (D, 4 * D)),  b_fc=jnp.zeros((4 * D,), jnp.float32),
        w_out=_normal(ks[3], (4 * D, D)), b_out=jnp.zeros((D,), jnp.float32),
    )


def _stack_blocks(blocks):
    """Stack per-layer weights -> (L, ...) arrays for layer-indexed BlockSpecs.

    Matmul weights are stored bf16 (halves weight DMA, MXU-native); LN params
    and biases stay f32.  1-D params get a middle singleton axis so every
    stacked array is rank-3 and tiles as (1, d1, d2) with full last-two dims.
    """
    out = {}
    for k in BLOCK_KEYS:
        a = jnp.stack([blk[k] for blk in blocks])
        if a.ndim == 2:
            a = a[:, None, :]
        if k in _MATRIX_KEYS:
            a = a.astype(jnp.bfloat16)
        out[k] = a
    return out


def init_params(key):
    keys = jax.random.split(key, 16)
    n_cp = PROMPT_DEPTH - 1
    prompt_learner = dict(
        ctx=_normal(keys[0], (N_CTX, TXT_WIDTH)),
        token_prefix=_normal(keys[1], (N_CLS, 1, TXT_WIDTH)),               # SOS embedding
        token_suffix=_normal(keys[2], (N_CLS, CTX_LEN - 1 - N_CTX, TXT_WIDTH)),
        proj_w=_normal(keys[3], (TXT_WIDTH, VIS_WIDTH)),                    # nn.Linear(ctx_dim, 768)
        proj_b=jnp.zeros((VIS_WIDTH,), jnp.float32),
        compound_prompts_text=[_normal(keys[4], (N_CTX, TXT_WIDTH))] * n_cp,
        cpp_w=[_normal(keys[5], (TXT_WIDTH, VIS_WIDTH))] * n_cp,
        cpp_b=[jnp.zeros((VIS_WIDTH,), jnp.float32)] * n_cp,
    )
    text = dict(
        pos_emb=_normal(keys[6], (CTX_LEN, TXT_WIDTH)),
        blocks=[init_block_params(k, TXT_WIDTH)
                for k in jax.random.split(keys[7], TXT_LAYERS)],
        lnf_g=jnp.ones((TXT_WIDTH,), jnp.float32),
        lnf_b=jnp.zeros((TXT_WIDTH,), jnp.float32),
        text_projection=_normal(keys[8], (TXT_WIDTH, EMBED_DIM)),
    )
    visual = dict(
        conv_w=_normal(keys[9], (VIS_WIDTH, C_IN, PATCH, PATCH)),
        class_emb=_normal(keys[10], (VIS_WIDTH,)),
        pos_emb=_normal(keys[11], (1 + N_PATCH, VIS_WIDTH)),
        ln_pre_g=jnp.ones((VIS_WIDTH,), jnp.float32),
        ln_pre_b=jnp.zeros((VIS_WIDTH,), jnp.float32),
        blocks=[init_block_params(k, VIS_WIDTH)
                for k in jax.random.split(keys[12], VIS_LAYERS)],
        ln_post_g=jnp.ones((VIS_WIDTH,), jnp.float32),
        ln_post_b=jnp.zeros((VIS_WIDTH,), jnp.float32),
        proj=_normal(keys[13], (VIS_WIDTH, EMBED_DIM)),
    )
    # synthetic tokenized prompts: SOS at pos 0, EOT (largest id) at per-class position
    tok = jnp.zeros((N_CLS, CTX_LEN), jnp.int32)
    tok = tok.at[:, 0].set(49406)
    tok = tok.at[jnp.arange(N_CLS), jnp.array([4, 5, 6])].set(49407)
    logit_scale = jnp.asarray(math.log(1.0 / 0.07), jnp.float32)
    return dict(prompt_learner=prompt_learner, text=text, visual=visual,
                tokenized_prompts=tok, logit_scale=logit_scale)


# ----------------------------- CustomCLIP.forward ----------------------------
def make_custom_clip(params):
    plp = params["prompt_learner"]
    tp = params["text"]
    vp = params["visual"]

    # One-time preprocessing (outside the per-call hot path).
    stacked_txt = _stack_blocks(tp["blocks"])
    stacked_vis = _stack_blocks(vp["blocks"])
    deep_txt = jnp.stack(plp["compound_prompts_text"])          # (n_cp, n_ctx, ctx_dim)
    eot = jnp.argmax(params["tokenized_prompts"], axis=-1).astype(jnp.int32)

    def forward(image):
        # --- MultiModalPromptLearner.forward ---
        ctx = plp["ctx"]                                         # (n_ctx, ctx_dim)
        ctx_exp = jnp.broadcast_to(ctx[None], (N_CLS, N_CTX, TXT_WIDTH))
        prompts = jnp.concatenate([plp["token_prefix"], ctx_exp, plp["token_suffix"]], axis=1)
        shared_ctx = pallas_linear(ctx, plp["proj_w"], plp["proj_b"])        # (n_ctx, vis_width)
        deep_vis = jnp.stack([pallas_linear(deep_txt[i], plp["cpp_w"][i], plp["cpp_b"][i])
                              for i in range(deep_txt.shape[0])])            # (n_cp, n_ctx, vis_width)

        # --- fused encoders (one pallas_call each) ---
        text_features = text_encoder_fused(prompts, tp["pos_emb"], deep_txt,
                                           stacked_txt, tp["lnf_g"], tp["lnf_b"],
                                           tp["text_projection"], eot)       # (n_cls, E)
        image_features = image_encoder_forward(image.astype(jnp.float32),
                                               shared_ctx, deep_vis, vp,
                                               stacked_vis)                  # (B, E)

        # --- normalize + logit_scale.exp() * image @ text.T ---
        return pallas_clip_logits(image_features, text_features, params["logit_scale"])

    return forward


# ----------------------------- main ------------------------------------------
if __name__ == "__main__":
    key = jax.random.PRNGKey(0)
    pkey, ikey = jax.random.split(key)
    params = init_params(pkey)
    image = jax.random.normal(ikey, (B_IMG, C_IN, RES, RES), jnp.float32)  # NCHW

    forward = jax.jit(make_custom_clip(params))
    logits = forward(image)
    jax.block_until_ready(logits)

    assert logits.shape == (B_IMG, N_CLS), logits.shape
    assert bool(jnp.all(jnp.isfinite(logits)))
    print("KERNEL_OK")
</pallas_src>

<mosaic_0001>
module attributes {stable_mosaic.version = 11 : i64} {
  func.func @_matmul_bias_kernel(%arg0: i32, %arg1: memref<2x32xf32, #tpu.memory_space<vmem>>, %arg2: memref<32x64xf32, #tpu.memory_space<vmem>>, %arg3: memref<1x64xf32, #tpu.memory_space<vmem>>, %arg4: memref<2x64xf32, #tpu.memory_space<vmem>>) attributes {dimension_semantics = [#tpu.dimension_semantics<arbitrary>], iteration_bounds = array<i64: 1>, scalar_prefetch = 0 : i64, scratch_operands = 0 : i64, tpu.core_type = #tpu.core_type<tc>, window_params = [{pipeline_mode = #tpu.pipeline_mode<synchronous>, transform_indices = @transform_0, window_bounds = array<i64: 2, 32>}, {pipeline_mode = #tpu.pipeline_mode<synchronous>, transform_indices = @transform_1, window_bounds = array<i64: 32, 64>}, {pipeline_mode = #tpu.pipeline_mode<synchronous>, transform_indices = @transform_2, window_bounds = array<i64: 1, 64>}, {pipeline_mode = #tpu.pipeline_mode<synchronous>, transform_indices = @transform_3, window_bounds = array<i64: 2, 64>}]} {
    %c0 = arith.constant 0 : index
    %c0_0 = arith.constant 0 : index
    %0 = vector.load %arg1[%c0, %c0_0] : memref<2x32xf32, #tpu.memory_space<vmem>>, vector<2x32xf32>
    %c0_1 = arith.constant 0 : index
    %c0_2 = arith.constant 0 : index
    %1 = vector.load %arg2[%c0_1, %c0_2] : memref<32x64xf32, #tpu.memory_space<vmem>>, vector<32x64xf32>
    %cst = arith.constant dense<0.000000e+00> : vector<2x64xf32>
    %2 = tpu.matmul %0, %1, %cst {dimension_numbers = #tpu.dot_dimension_numbers<[1], [0], [0], [1], [0, 0, 1, 1], [], []>} : vector<2x32xf32>, vector<32x64xf32>, vector<2x64xf32> -> vector<2x64xf32>
    %c0_3 = arith.constant 0 : index
    %c0_4 = arith.constant 0 : index
    %3 = vector.load %arg3[%c0_3, %c0_4] : memref<1x64xf32, #tpu.memory_space<vmem>>, vector<1x64xf32>
    %4 = vector.broadcast %3 : vector<1x64xf32> to vector<2x64xf32>
    %5 = arith.addf %2, %4 : vector<2x64xf32>
    %c0_5 = arith.constant 0 : index
    %c0_6 = arith.constant 0 : index
    %6 = vector.load %arg4[%c0_5, %c0_6] : memref<2x64xf32, #tpu.memory_space<vmem>>, vector<2x64xf32>
    tpu.vector_store %arg4[%c0_5, %c0_6], %5 {strides = array<i32>} : memref<2x64xf32, #tpu.memory_space<vmem>>, vector<2x64xf32>,
    return
  }
  func.func @transform_0(%arg0: i32) -> (i32, i32) {
    %c0_i32 = arith.constant 0 : i32
    %c0_i32_0 = arith.constant 0 : i32
    %c0_i32_1 = arith.constant 0 : i32
    return %c0_i32, %c0_i32_0 : i32, i32
  }
  func.func @transform_1(%arg0: i32) -> (i32, i32) {
    %c0_i32 = arith.constant 0 : i32
    %c0_i32_0 = arith.constant 0 : i32
    %c0_i32_1 = arith.constant 0 : i32
    return %c0_i32, %c0_i32_0 : i32, i32
  }
  func.func @transform_2(%arg0: i32) -> (i32, i32) {
    %c0_i32 = arith.constant 0 : i32
    %c0_i32_0 = arith.constant 0 : i32
    %c0_i32_1 = arith.constant 0 : i32
    return %c0_i32, %c0_i32_0 : i32, i32
  }
  func.func @transform_3(%arg0: i32) -> (i32, i32) {
    %c0_i32 = arith.constant 0 : i32
    %c0_i32_0 = arith.constant 0 : i32
    %c0_i32_1 = arith.constant 0 : i32
    return %c0_i32, %c0_i32_0 : i32, i32
  }
}

module attributes {stable_mosaic.version = 11 : i64} {
  func.func @_matmul_kernel(%arg0: i32, %arg1: memref<8x192xf32, #tpu.memory_space<vmem>>, %arg2: memref<192x64xf32, #tpu.memory_space<vmem>>, %arg3: memref<8x64xf32, #tpu.memory_space<vmem>>) attributes {dimension_semantics = [#tpu.dimension_semantics<arbitrary>], iteration_bounds = array<i64: 1>, scalar_prefetch = 0 : i64, scratch_operands = 0 : i64, tpu.core_type = #tpu.core_type<tc>, window_params = [{pipeline_mode = #tpu.pipeline_mode<synchronous>, transform_indices = @transform_0, window_bounds = array<i64: 8, 192>}, {pipeline_mode = #tpu.pipeline_mode<synchronous>, transform_indices = @transform_1, window_bounds = array<i64: 192, 64>}, {pipeline_mode = #tpu.pipeline_mode<synchronous>, transform_indices = @transform_2, window_bounds = array<i64: 8, 64>}]} {
    %c0 = arith.constant 0 : index
    %c0_0 = arith.constant 0 : index
    %0 = vector.load %arg1[%c0, %c0_0] : memref<8x192xf32, #tpu.memory_space<vmem>>, vector<8x192xf32>
    %c0_1 = arith.constant 0 : index
    %c0_2 = arith.constant 0 : index
    %1 = vector.load %arg2[%c0_1, %c0_2] : memref<192x64xf32, #tpu.memory_space<vmem>>, vector<192x64xf32>
    %cst = arith.constant dense<0.000000e+00> : vector<8x64xf32>
    %2 = tpu.matmul %0, %1, %cst {dimension_numbers = #tpu.dot_dimension_numbers<[1], [0], [0], [1], [0, 0, 1, 1], [], []>} : vector<8x192xf32>, vector<192x64xf32>, vector<8x64xf32> -> vector<8x64xf32>
    %c0_3 = arith.constant 0 : index
    %c0_4 = arith.constant 0 : index
    %3 = vector.load %arg3[%c0_3, %c0_4] : memref<8x64xf32, #tpu.memory_space<vmem>>, vector<8x64xf32>
    tpu.vector_store %arg3[%c0_3, %c0_4], %2 {strides = array<i32>} : memref<8x64xf32, #tpu.memory_space<vmem>>, vector<8x64xf32>,
    return
  }
  func.func @transform_0(%arg0: i32) -> (i32, i32) {
    %c0_i32 = arith.constant 0 : i32
    %c0_i32_0 = arith.constant 0 : i32
    %c0_i32_1 = arith.constant 0 : i32
    return %c0_i32, %c0_i32_0 : i32, i32
  }
  func.func @transform_1(%arg0: i32) -> (i32, i32) {
    %c0_i32 = arith.constant 0 : i32
    %c0_i32_0 = arith.constant 0 : i32
    %c0_i32_1 = arith.constant 0 : i32
    return %c0_i32, %c0_i32_0 : i32, i32
  }
  func.func @transform_2(%arg0: i32) -> (i32, i32) {
    %c0_i32 = arith.constant 0 : i32
    %c0_i32_0 = arith.constant 0 : i32
    %c0_i32_1 = arith.constant 0 : i32
    return %c0_i32, %c0_i32_0 : i32, i32
  }
}

module attributes {stable_mosaic.version = 11 : i64} {
  func.func @_clip_logits_kernel(%arg0: i32, %arg1: memref<2x16xf32, #tpu.memory_space<vmem>>, %arg2: memref<3x16xf32, #tpu.memory_space<vmem>>, %arg3: memref<1x1xf32, #tpu.memory_space<vmem>>, %arg4: memref<2x3xf32, #tpu.memory_space<vmem>>) attributes {dimension_semantics = [#tpu.dimension_semantics<arbitrary>], iteration_bounds = array<i64: 1>, scalar_prefetch = 0 : i64, scratch_operands = 0 : i64, tpu.core_type = #tpu.core_type<tc>, window_params = [{pipeline_mode = #tpu.pipeline_mode<synchronous>, transform_indices = @transform_0, window_bounds = array<i64: 2, 16>}, {pipeline_mode = #tpu.pipeline_mode<synchronous>, transform_indices = @transform_1, window_bounds = array<i64: 3, 16>}, {pipeline_mode = #tpu.pipeline_mode<synchronous>, transform_indices = @transform_2, window_bounds = array<i64: 1, 1>}, {pipeline_mode = #tpu.pipeline_mode<synchronous>, transform_indices = @transform_3, window_bounds = array<i64: 2, 3>}]} {
    %c0 = arith.constant 0 : index
    %c0_0 = arith.constant 0 : index
    %0 = vector.load %arg1[%c0, %c0_0] : memref<2x16xf32, #tpu.memory_space<vmem>>, vector<2x16xf32>
    %c0_1 = arith.constant 0 : index
    %c0_2 = arith.constant 0 : index
    %1 = vector.load %arg2[%c0_1, %c0_2] : memref<3x16xf32, #tpu.memory_space<vmem>>, vector<3x16xf32>
    %2 = arith.mulf %0, %0 : vector<2x16xf32>
    %cst = arith.constant dense<0.000000e+00> : vector<2xf32>
    %3 = vector.multi_reduction <add>, %2, %cst [1] : vector<2x16xf32> to vector<2xf32>
    %4 = vector.shape_cast %3 : vector<2xf32> to vector<2x1xf32>
    %cst_3 = arith.constant 9.99999996E-13 : f32
    %5 = vector.broadcast %cst_3 : f32 to vector<2x1xf32>
    %6 = arith.maximumf %4, %5 : vector<2x1xf32>
    %7 = math.rsqrt %6 : vector<2x1xf32>
    %8 = vector.broadcast %7 : vector<2x1xf32> to vector<2x16xf32>
    %9 = arith.mulf %0, %8 : vector<2x16xf32>
    %10 = arith.mulf %1, %1 : vector<3x16xf32>
    %cst_4 = arith.constant dense<0.000000e+00> : vector<3xf32>
    %11 = vector.multi_reduction <add>, %10, %cst_4 [1] : vector<3x16xf32> to vector<3xf32>
    %12 = vector.shape_cast %11 : vector<3xf32> to vector<3x1xf32>
    %cst_5 = arith.constant 9.99999996E-13 : f32
    %13 = vector.broadcast %cst_5 : f32 to vector<3x1xf32>
    %14 = arith.maximumf %12, %13 : vector<3x1xf32>
    %15 = math.rsqrt %14 : vector<3x1xf32>
    %16 = vector.broadcast %15 : vector<3x1xf32> to vector<3x16xf32>
    %17 = arith.mulf %1, %16 : vector<3x16xf32>
    %c0_6 = arith.constant 0 : index
    %c0_7 = arith.constant 0 : index
    %18 = vector.load %arg3[%c0_6, %c0_7] : memref<1x1xf32, #tpu.memory_space<vmem>>, vector<1x1xf32>
    %19 = vector.extract %18[0, 0] : f32 from vector<1x1xf32>
    %20 = math.exp %19 : f32
    %21 = tpu.transpose %17, [1, 0] : vector<3x16xf32> -> vector<16x3xf32>
    %cst_8 = arith.constant dense<0.000000e+00> : vector<2x3xf32>
    %22 = tpu.matmul %9, %21, %cst_8 {dimension_numbers = #tpu.dot_dimension_numbers<[1], [0], [0], [1], [0, 0, 1, 1], [], []>} : vector<2x16xf32>, vector<16x3xf32>, vector<2x3xf32> -> vector<2x3xf32>
    %23 = vector.broadcast %20 : f32 to vector<2x3xf32>
    %24 = arith.mulf %23, %22 : vector<2x3xf32>
    %c0_9 = arith.constant 0 : index
    %c0_10 = arith.constant 0 : index
    %25 = vector.load %arg4[%c0_9, %c0_10] : memref<2x3xf32, #tpu.memory_space<vmem>>, vector<2x3xf32>
    tpu.vector_store %arg4[%c0_9, %c0_10], %24 {strides = array<i32>} : memref<2x3xf32, #tpu.memory_space<vmem>>, vector<2x3xf32>,
    return
  }
  func.func @transform_0(%arg0: i32) -> (i32, i32) {
    %c0_i32 = arith.constant 0 : i32
    %c0_i32_0 = arith.constant 0 : i32
    %c0_i32_1 = arith.constant 0 : i32
    return %c0_i32, %c0_i32_0 : i32, i32
  }
  func.func @transform_1(%arg0: i32) -> (i32, i32) {
    %c0_i32 = arith.constant 0 : i32
    %c0_i32_0 = arith.constant 0 : i32
    %c0_i32_1 = arith.constant 0 : i32
    return %c0_i32, %c0_i32_0 : i32, i32
  }
  func.func @transform_2(%arg0: i32) -> (i32, i32) {
    %c0_i32 = arith.constant 0 : i32
    %c0_i32_0 = arith.constant 0 : i32
    %c0_i32_1 = arith.constant 0 : i32
    return %c0_i32, %c0_i32_0 : i32, i32
  }
  func.func @transform_3(%arg0: i32) -> (i32, i32) {
    %c0_i32 = arith.constant 0 : i32
    %c0_i32_0 = arith.constant 0 : i32
    %c0_i32_1 = arith.constant 0 : i32
    return %c0_i32, %c0_i32_0 : i32, i32
  }
}

module attributes {stable_mosaic.version = 11 : i64} {
  func.func @_image_encoder_kernel(%arg0: i32, %arg1: memref<2x7x64xf32, #tpu.memory_space<vmem>>, %arg2: memref<1x2x64xf32, #tpu.memory_space<vmem>>, %arg3: memref<1x64xf32, #tpu.memory_space<vmem>>, %arg4: memref<1x64xf32, #tpu.memory_space<vmem>>, %arg5: memref<1x1x64xf32, #tpu.memory_space<vmem>>, %arg6: memref<1x1x64xf32, #tpu.memory_space<vmem>>, %arg7: memref<1x64x192xbf16, #tpu.memory_space<vmem>>, %arg8: memref<1x1x192xf32, #tpu.memory_space<vmem>>, %arg9: memref<1x64x64xbf16, #tpu.memory_space<vmem>>, %arg10: memref<1x1x64xf32, #tpu.memory_space<vmem>>, %arg11: memref<1x1x64xf32, #tpu.memory_space<vmem>>, %arg12: memref<1x1x64xf32, #tpu.memory_space<vmem>>, %arg13: memref<1x64x256xbf16, #tpu.memory_space<vmem>>, %arg14: memref<1x1x256xf32, #tpu.memory_space<vmem>>, %arg15: memref<1x256x64xbf16, #tpu.memory_space<vmem>>, %arg16: memref<1x1x64xf32, #tpu.memory_space<vmem>>, %arg17: memref<1x64xf32, #tpu.memory_space<vmem>>, %arg18: memref<1x64xf32, #tpu.memory_space<vmem>>, %arg19: memref<64x16xf32, #tpu.memory_space<vmem>>, %arg20: memref<2x16xf32, #tpu.memory_space<vmem>>, %arg21: memref<2x7x64xf32, #tpu.memory_space<vmem>>) attributes {dimension_semantics = [#tpu.dimension_semantics<arbitrary>], iteration_bounds = array<i64: 2>, scalar_prefetch = 0 : i64, scratch_operands = 1 : i64, tpu.core_type = #tpu.core_type<tc>, window_params = [{pipeline_mode = #tpu.pipeline_mode<synchronous>, transform_indices = @transform_0, window_bounds = array<i64: 2, 7, 64>}, {pipeline_mode = #tpu.pipeline_mode<synchronous>, transform_indices = @transform_1, window_bounds = array<i64: 1, 2, 64>}, {pipeline_mode = #tpu.pipeline_mode<synchronous>, transform_indices = @transform_2, window_bounds = array<i64: 1, 64>}, {pipeline_mode = #tpu.pipeline_mode<synchronous>, transform_indices = @transform_3, window_bounds = array<i64: 1, 64>}, {transform_indices = @transform_4, window_bounds = array<i64: 1, 1, 64>}, {transform_indices = @transform_5, window_bounds = array<i64: 1, 1, 64>}, {transform_indices = @transform_6, window_bounds = array<i64: 1, 64, 192>}, {transform_indices = @transform_7, window_bounds = array<i64: 1, 1, 192>}, {transform_indices = @transform_8, window_bounds = array<i64: 1, 64, 64>}, {transform_indices = @transform_9, window_bounds = array<i64: 1, 1, 64>}, {transform_indices = @transform_10, window_bounds = array<i64: 1, 1, 64>}, {transform_indices = @transform_11, window_bounds = array<i64: 1, 1, 64>}, {transform_indices = @transform_12, window_bounds = array<i64: 1, 64, 256>}, {transform_indices = @transform_13, window_bounds = array<i64: 1, 1, 256>}, {transform_indices = @transform_14, window_bounds = array<i64: 1, 256, 64>}, {transform_indices = @transform_15, window_bounds = array<i64: 1, 1, 64>}, {pipeline_mode = #tpu.pipeline_mode<synchronous>, transform_indices = @transform_16, window_bounds = array<i64: 1, 64>}, {pipeline_mode = #tpu.pipeline_mode<synchronous>, transform_indices = @transform_17, window_bounds = array<i64: 1, 64>}, {pipeline_mode = #tpu.pipeline_mode<synchronous>, transform_indices = @transform_18, window_bounds = array<i64: 64, 16>}, {pipeline_mode = #tpu.pipeline_mode<synchronous>, transform_indices = @transform_19, window_bounds = array<i64: 2, 16>}]} {
    %c0_i32 = arith.constant 0 : i32
    %0 = arith.cmpi eq, %arg0, %c0_i32 : i32
    %1 = arith.extui %0 : i1 to i32
    %c0_i32_0 = arith.constant 0 : i32
    %2 = arith.cmpi ne, %1, %c0_i32_0 : i32
    scf.if %2 {
      %c0_81 = arith.constant 0 : index
      %c0_82 = arith.constant 0 : index
      %c0_83 = arith.constant 0 : index
      %185 = vector.load %arg1[%c0_81, %c0_82, %c0_83] : memref<2x7x64xf32, #tpu.memory_space<vmem>>, vector<2x7x64xf32>
      %c0_84 = arith.constant 0 : index
      %c0_85 = arith.constant 0 : index
      %186 = vector.load %arg3[%c0_84, %c0_85] : memref<1x64xf32, #tpu.memory_space<vmem>>, vector<1x64xf32>
      %c0_86 = arith.constant 0 : index
      %c0_87 = arith.constant 0 : index
      %187 = vector.load %arg4[%c0_86, %c0_87] : memref<1x64xf32, #tpu.memory_space<vmem>>, vector<1x64xf32>
      %cst_88 = arith.constant dense<0.000000e+00> : vector<2x7xf32>
      %188 = vector.multi_reduction <add>, %185, %cst_88 [2] : vector<2x7x64xf32> to vector<2x7xf32>
      %189 = vector.shape_cast %188 : vector<2x7xf32> to vector<2x7x1xf32>
      %cst_89 = arith.constant 6.400000e+01 : f32
      %190 = vector.broadcast %cst_89 : f32 to vector<2x7x1xf32>
      %191 = arith.divf %189, %190 : vector<2x7x1xf32>
      %192 = vector.broadcast %191 : vector<2x7x1xf32> to vector<2x7x64xf32>
      %193 = arith.subf %185, %192 : vector<2x7x64xf32>
      %194 = arith.mulf %193, %193 : vector<2x7x64xf32>
      %cst_90 = arith.constant dense<0.000000e+00> : vector<2x7xf32>
      %195 = vector.multi_reduction <add>, %194, %cst_90 [2] : vector<2x7x64xf32> to vector<2x7xf32>
      %196 = vector.shape_cast %195 : vector<2x7xf32> to vector<2x7x1xf32>
      %cst_91 = arith.constant 6.400000e+01 : f32
      %197 = vector.broadcast %cst_91 : f32 to vector<2x7x1xf32>
      %198 = arith.divf %196, %197 : vector<2x7x1xf32>
      %cst_92 = arith.constant 9.99999974E-6 : f32
      %199 = vector.broadcast %cst_92 : f32 to vector<2x7x1xf32>
      %200 = arith.addf %198, %199 : vector<2x7x1xf32>
      %201 = math.rsqrt %200 : vector<2x7x1xf32>
      %202 = vector.broadcast %201 : vector<2x7x1xf32> to vector<2x7x64xf32>
      %203 = arith.mulf %193, %202 : vector<2x7x64xf32>
      %204 = vector.shape_cast %186 : vector<1x64xf32> to vector<1x1x64xf32>
      %205 = vector.broadcast %204 : vector<1x1x64xf32> to vector<2x7x64xf32>
      %206 = arith.mulf %203, %205 : vector<2x7x64xf32>
      %207 = vector.shape_cast %187 : vector<1x64xf32> to vector<1x1x64xf32>
      %208 = vector.broadcast %207 : vector<1x1x64xf32> to vector<2x7x64xf32>
      %209 = arith.addf %206, %208 : vector<2x7x64xf32>
      %c0_93 = arith.constant 0 : index
      %c0_94 = arith.constant 0 : index
      %c0_95 = arith.constant 0 : index
      %210 = vector.load %arg21[%c0_93, %c0_94, %c0_95] : memref<2x7x64xf32, #tpu.memory_space<vmem>>, vector<2x7x64xf32>
      tpu.vector_store %arg21[%c0_93, %c0_94, %c0_95], %209 {strides = array<i32>} : memref<2x7x64xf32, #tpu.memory_space<vmem>>, vector<2x7x64xf32>,
    } else {
    }
    %c1_i32 = arith.constant 1 : i32
    %3 = arith.cmpi sge, %arg0, %c1_i32 : i32
    %c1_i32_1 = arith.constant 1 : i32
    %4 = arith.cmpi sle, %arg0, %c1_i32_1 : i32
    %5 = arith.andi %3, %4 : i1
    %6 = arith.extui %5 : i1 to i32
    %c0_i32_2 = arith.constant 0 : i32
    %7 = arith.cmpi ne, %6, %c0_i32_2 : i32
    scf.if %7 {
      %c1_i32_81 = arith.constant 1 : i32
      %185 = arith.subi %arg0, %c1_i32_81 : i32
      %c0_i32_82 = arith.constant 0 : i32
      %186 = arith.maxsi %185, %c0_i32_82 : i32
      %187 = arith.index_cast %186 : i32 to index
      %c0_83 = arith.constant 0 : index
      %c0_84 = arith.constant 0 : index
      %188 = vector.load %arg2[%187, %c0_83, %c0_84] : memref<1x2x64xf32, #tpu.memory_space<vmem>>, vector<1x2x64xf32>
      %189 = vector.shape_cast %188 : vector<1x2x64xf32> to vector<2x64xf32>
      %190 = vector.shape_cast %189 : vector<2x64xf32> to vector<1x2x64xf32>
      %191 = vector.shape_cast %190 : vector<1x2x64xf32> to vector<1x2x64xf32>
      %192 = vector.broadcast %191 : vector<1x2x64xf32> to vector<2x2x64xf32>
      %c0_85 = arith.constant 0 : index
      %c5 = arith.constant 5 : index
      %c0_86 = arith.constant 0 : index
      %193 = vector.load %arg21[%c0_85, %c5, %c0_86] : memref<2x7x64xf32, #tpu.memory_space<vmem>>, vector<2x2x64xf32>
      tpu.vector_store %arg21[%c0_85, %c5, %c0_86], %192 {strides = array<i32>} : memref<2x7x64xf32, #tpu.memory_space<vmem>>, vector<2x2x64xf32>,
    } else {
    }
    %c0 = arith.constant 0 : index
    %c0_3 = arith.constant 0 : index
    %c0_4 = arith.constant 0 : index
    %8 = vector.load %arg21[%c0, %c0_3, %c0_4] : memref<2x7x64xf32, #tpu.memory_space<vmem>>, vector<2x7x64xf32>
    %c0_5 = arith.constant 0 : index
    %c0_6 = arith.constant 0 : index
    %c0_7 = arith.constant 0 : index
    %9 = vector.load %arg5[%c0_5, %c0_6, %c0_7] : memref<1x1x64xf32, #tpu.memory_space<vmem>>, vector<1x1x64xf32>
    %10 = vector.shape_cast %9 : vector<1x1x64xf32> to vector<1x64xf32>
    %c0_8 = arith.constant 0 : index
    %c0_9 = arith.constant 0 : index
    %c0_10 = arith.constant 0 : index
    %11 = vector.load %arg6[%c0_8, %c0_9, %c0_10] : memref<1x1x64xf32, #tpu.memory_space<vmem>>, vector<1x1x64xf32>
    %12 = vector.shape_cast %11 : vector<1x1x64xf32> to vector<1x64xf32>
    %c0_11 = arith.constant 0 : index
    %c0_12 = arith.constant 0 : index
    %c0_13 = arith.constant 0 : index
    %13 = vector.load %arg7[%c0_11, %c0_12, %c0_13] : memref<1x64x192xbf16, #tpu.memory_space<vmem>>, vector<1x64x192xbf16>
    %14 = vector.shape_cast %13 : vector<1x64x192xbf16> to vector<64x192xbf16>
    %c0_14 = arith.constant 0 : index
    %c0_15 = arith.constant 0 : index
    %c0_16 = arith.constant 0 : index
    %15 = vector.load %arg8[%c0_14, %c0_15, %c0_16] : memref<1x1x192xf32, #tpu.memory_space<vmem>>, vector<1x1x192xf32>
    %16 = vector.shape_cast %15 : vector<1x1x192xf32> to vector<1x192xf32>
    %c0_17 = arith.constant 0 : index
    %c0_18 = arith.constant 0 : index
    %c0_19 = arith.constant 0 : index
    %17 = vector.load %arg9[%c0_17, %c0_18, %c0_19] : memref<1x64x64xbf16, #tpu.memory_space<vmem>>, vector<1x64x64xbf16>
    %18 = vector.shape_cast %17 : vector<1x64x64xbf16> to vector<64x64xbf16>
    %c0_20 = arith.constant 0 : index
    %c0_21 = arith.constant 0 : index
    %c0_22 = arith.constant 0 : index
    %19 = vector.load %arg10[%c0_20, %c0_21, %c0_22] : memref<1x1x64xf32, #tpu.memory_space<vmem>>, vector<1x1x64xf32>
    %20 = vector.shape_cast %19 : vector<1x1x64xf32> to vector<1x64xf32>
    %c0_23 = arith.constant 0 : index
    %c0_24 = arith.constant 0 : index
    %c0_25 = arith.constant 0 : index
    %21 = vector.load %arg11[%c0_23, %c0_24, %c0_25] : memref<1x1x64xf32, #tpu.memory_space<vmem>>, vector<1x1x64xf32>
    %22 = vector.shape_cast %21 : vector<1x1x64xf32> to vector<1x64xf32>
    %c0_26 = arith.constant 0 : index
    %c0_27 = arith.constant 0 : index
    %c0_28 = arith.constant 0 : index
    %23 = vector.load %arg12[%c0_26, %c0_27, %c0_28] : memref<1x1x64xf32, #tpu.memory_space<vmem>>, vector<1x1x64xf32>
    %24 = vector.shape_cast %23 : vector<1x1x64xf32> to vector<1x64xf32>
    %c0_29 = arith.constant 0 : index
    %c0_30 = arith.constant 0 : index
    %c0_31 = arith.constant 0 : index
    %25 = vector.load %arg13[%c0_29, %c0_30, %c0_31] : memref<1x64x256xbf16, #tpu.memory_space<vmem>>, vector<1x64x256xbf16>
    %26 = vector.shape_cast %25 : vector<1x64x256xbf16> to vector<64x256xbf16>
    %c0_32 = arith.constant 0 : index
    %c0_33 = arith.constant 0 : index
    %c0_34 = arith.constant 0 : index
    %27 = vector.load %arg14[%c0_32, %c0_33, %c0_34] : memref<1x1x256xf32, #tpu.memory_space<vmem>>, vector<1x1x256xf32>
    %28 = vector.shape_cast %27 : vector<1x1x256xf32> to vector<1x256xf32>
    %c0_35 = arith.constant 0 : index
    %c0_36 = arith.constant 0 : index
    %c0_37 = arith.constant 0 : index
    %29 = vector.load %arg15[%c0_35, %c0_36, %c0_37] : memref<1x256x64xbf16, #tpu.memory_space<vmem>>, vector<1x256x64xbf16>
    %30 = vector.shape_cast %29 : vector<1x256x64xbf16> to vector<256x64xbf16>
    %c0_38 = arith.constant 0 : index
    %c0_39 = arith.constant 0 : index
    %c0_40 = arith.constant 0 : index
    %31 = vector.load %arg16[%c0_38, %c0_39, %c0_40] : memref<1x1x64xf32, #tpu.memory_space<vmem>>, vector<1x1x64xf32>
    %32 = vector.shape_cast %31 : vector<1x1x64xf32> to vector<1x64xf32>
    %cst = arith.constant dense<0.000000e+00> : vector<2x7xf32>
    %33 = vector.multi_reduction <add>, %8, %cst [2] : vector<2x7x64xf32> to vector<2x7xf32>
    %34 = vector.shape_cast %33 : vector<2x7xf32> to vector<2x7x1xf32>
    %cst_41 = arith.constant 6.400000e+01 : f32
    %35 = vector.broadcast %cst_41 : f32 to vector<2x7x1xf32>
    %36 = arith.divf %34, %35 : vector<2x7x1xf32>
    %37 = vector.broadcast %36 : vector<2x7x1xf32> to vector<2x7x64xf32>
    %38 = arith.subf %8, %37 : vector<2x7x64xf32>
    %39 = arith.mulf %38, %38 : vector<2x7x64xf32>
    %cst_42 = arith.constant dense<0.000000e+00> : vector<2x7xf32>
    %40 = vector.multi_reduction <add>, %39, %cst_42 [2] : vector<2x7x64xf32> to vector<2x7xf32>
    %41 = vector.shape_cast %40 : vector<2x7xf32> to vector<2x7x1xf32>
    %cst_43 = arith.constant 6.400000e+01 : f32
    %42 = vector.broadcast %cst_43 : f32 to vector<2x7x1xf32>
    %43 = arith.divf %41, %42 : vector<2x7x1xf32>
    %cst_44 = arith.constant 9.99999974E-6 : f32
    %44 = vector.broadcast %cst_44 : f32 to vector<2x7x1xf32>
    %45 = arith.addf %43, %44 : vector<2x7x1xf32>
    %46 = math.rsqrt %45 : vector<2x7x1xf32>
    %47 = vector.broadcast %46 : vector<2x7x1xf32> to vector<2x7x64xf32>
    %48 = arith.mulf %38, %47 : vector<2x7x64xf32>
    %49 = vector.shape_cast %10 : vector<1x64xf32> to vector<1x1x64xf32>
    %50 = vector.broadcast %49 : vector<1x1x64xf32> to vector<2x7x64xf32>
    %51 = arith.mulf %48, %50 : vector<2x7x64xf32>
    %52 = vector.shape_cast %12 : vector<1x64xf32> to vector<1x1x64xf32>
    %53 = vector.broadcast %52 : vector<1x1x64xf32> to vector<2x7x64xf32>
    %54 = arith.addf %51, %53 : vector<2x7x64xf32>
    %55 = vector.shape_cast %54 : vector<2x7x64xf32> to vector<14x64xf32>
    %56 = arith.truncf %55 : vector<14x64xf32> to vector<14x64xbf16>
    %cst_45 = arith.constant dense<0.000000e+00> : vector<14x192xf32>
    %57 = tpu.matmul %56, %14, %cst_45 {dimension_numbers = #tpu.dot_dimension_numbers<[1], [0], [0], [1], [0, 0, 1, 1], [], []>} : vector<14x64xbf16>, vector<64x192xbf16>, vector<14x192xf32> -> vector<14x192xf32>
    %58 = vector.broadcast %16 : vector<1x192xf32> to vector<14x192xf32>
    %59 = arith.addf %57, %58 : vector<14x192xf32>
    %60 = vector.shape_cast %59 : vector<14x192xf32> to vector<2x7x192xf32>
    %61 = vector.extract_strided_slice %60 {offsets = [0, 0, 0], sizes = [2, 7, 64], strides = [1, 1, 1]} : vector<2x7x192xf32> to vector<2x7x64xf32>
    %62 = vector.extract_strided_slice %60 {offsets = [0, 0, 64], sizes = [2, 7, 64], strides = [1, 1, 1]} : vector<2x7x192xf32> to vector<2x7x64xf32>
    %63 = vector.extract_strided_slice %60 {offsets = [0, 0, 128], sizes = [2, 7, 64], strides = [1, 1, 1]} : vector<2x7x192xf32> to vector<2x7x64xf32>
    %64 = vector.extract_strided_slice %61 {offsets = [0, 0, 0], sizes = [2, 7, 16], strides = [1, 1, 1]} : vector<2x7x64xf32> to vector<2x7x16xf32>
    %65 = vector.extract_strided_slice %62 {offsets = [0, 0, 0], sizes = [2, 7, 16], strides = [1, 1, 1]} : vector<2x7x64xf32> to vector<2x7x16xf32>
    %66 = vector.extract_strided_slice %63 {offsets = [0, 0, 0], sizes = [2, 7, 16], strides = [1, 1, 1]} : vector<2x7x64xf32> to vector<2x7x16xf32>
    "tpu.trace_start"() <{level = 10 : i32, message = "bqd,bkd->bqk"}> : () -> ()
    %cst_46 = arith.constant dense<0.000000e+00> : vector<2x7x7xf32>
    %67 = tpu.matmul %64, %65, %cst_46 {dimension_numbers = #tpu.dot_dimension_numbers<[2], [2], [1], [1], [0, 0, 0, 1, 1, 1], [0], [0]>} : vector<2x7x16xf32>, vector<2x7x16xf32>, vector<2x7x7xf32> -> vector<2x7x7xf32>
    "tpu.trace_stop"() : () -> ()
    %cst_47 = arith.constant 2.500000e-01 : f32
    %68 = vector.broadcast %cst_47 : f32 to vector<2x7x7xf32>
    %69 = arith.mulf %67, %68 : vector<2x7x7xf32>
    %cst_48 = arith.constant dense<0xFF800000> : vector<2x7xf32>
    %70 = vector.multi_reduction <maximumf>, %69, %cst_48 [2] : vector<2x7x7xf32> to vector<2x7xf32>
    %71 = vector.shape_cast %70 : vector<2x7xf32> to vector<2x7x1xf32>
    %72 = vector.broadcast %71 : vector<2x7x1xf32> to vector<2x7x7xf32>
    %73 = arith.subf %69, %72 : vector<2x7x7xf32>
    %74 = math.exp %73 : vector<2x7x7xf32>
    %cst_49 = arith.constant dense<0.000000e+00> : vector<2x7xf32>
    %75 = vector.multi_reduction <add>, %74, %cst_49 [2] : vector<2x7x7xf32> to vector<2x7xf32>
    %76 = vector.shape_cast %75 : vector<2x7xf32> to vector<2x7x1xf32>
    %77 = tpu.reciprocal %76 {approx = true} : vector<2x7x1xf32> -> vector<2x7x1xf32>
    %78 = vector.broadcast %77 : vector<2x7x1xf32> to vector<2x7x7xf32>
    %79 = arith.mulf %74, %78 : vector<2x7x7xf32>
    "tpu.trace_start"() <{level = 10 : i32, message = "bqk,bkd->bqd"}> : () -> ()
    %cst_50 = arith.constant dense<0.000000e+00> : vector<2x7x16xf32>
    %80 = tpu.matmul %79, %66, %cst_50 {dimension_numbers = #tpu.dot_dimension_numbers<[2], [1], [1], [2], [0, 0, 0, 1, 1, 2], [0], [0]>} : vector<2x7x7xf32>, vector<2x7x16xf32>, vector<2x7x16xf32> -> vector<2x7x16xf32>
    "tpu.trace_stop"() : () -> ()
    %81 = vector.extract_strided_slice %61 {offsets = [0, 0, 16], sizes = [2, 7, 16], strides = [1, 1, 1]} : vector<2x7x64xf32> to vector<2x7x16xf32>
    %82 = vector.extract_strided_slice %62 {offsets = [0, 0, 16], sizes = [2, 7, 16], strides = [1, 1, 1]} : vector<2x7x64xf32> to vector<2x7x16xf32>
    %83 = vector.extract_strided_slice %63 {offsets = [0, 0, 16], sizes = [2, 7, 16], strides = [1, 1, 1]} : vector<2x7x64xf32> to vector<2x7x16xf32>
    "tpu.trace_start"() <{level = 10 : i32, message = "bqd,bkd->bqk"}> : () -> ()
    %cst_51 = arith.constant dense<0.000000e+00> : vector<2x7x7xf32>
    %84 = tpu.matmul %81, %82, %cst_51 {dimension_numbers = #tpu.dot_dimension_numbers<[2], [2], [1], [1], [0, 0, 0, 1, 1, 1], [0], [0]>} : vector<2x7x16xf32>, vector<2x7x16xf32>, vector<2x7x7xf32> -> vector<2x7x7xf32>
    "tpu.trace_stop"() : () -> ()
    %cst_52 = arith.constant 2.500000e-01 : f32
    %85 = vector.broadcast %cst_52 : f32 to vector<2x7x7xf32>
    %86 = arith.mulf %84, %85 : vector<2x7x7xf32>
    %cst_53 = arith.constant dense<0xFF800000> : vector<2x7xf32>
    %87 = vector.multi_reduction <maximumf>, %86, %cst_53 [2] : vector<2x7x7xf32> to vector<2x7xf32>
    %88 = vector.shape_cast %87 : vector<2x7xf32> to vector<2x7x1xf32>
    %89 = vector.broadcast %88 : vector<2x7x1xf32> to vector<2x7x7xf32>
    %90 = arith.subf %86, %89 : vector<2x7x7xf32>
    %91 = math.exp %90 : vector<2x7x7xf32>
    %cst_54 = arith.constant dense<0.000000e+00> : vector<2x7xf32>
    %92 = vector.multi_reduction <add>, %91, %cst_54 [2] : vector<2x7x7xf32> to vector<2x7xf32>
    %93 = vector.shape_cast %92 : vector<2x7xf32> to vector<2x7x1xf32>
    %94 = tpu.reciprocal %93 {approx = true} : vector<2x7x1xf32> -> vector<2x7x1xf32>
    %95 = vector.broadcast %94 : vector<2x7x1xf32> to vector<2x7x7xf32>
    %96 = arith.mulf %91, %95 : vector<2x7x7xf32>
    "tpu.trace_start"() <{level = 10 : i32, message = "bqk,bkd->bqd"}> : () -> ()
    %cst_55 = arith.constant dense<0.000000e+00> : vector<2x7x16xf32>
    %97 = tpu.matmul %96, %83, %cst_55 {dimension_numbers = #tpu.dot_dimension_numbers<[2], [1], [1], [2], [0, 0, 0, 1, 1, 2], [0], [0]>} : vector<2x7x7xf32>, vector<2x7x16xf32>, vector<2x7x16xf32> -> vector<2x7x16xf32>
    "tpu.trace_stop"() : () -> ()
    %98 = vector.extract_strided_slice %61 {offsets = [0, 0, 32], sizes = [2, 7, 16], strides = [1, 1, 1]} : vector<2x7x64xf32> to vector<2x7x16xf32>
    %99 = vector.extract_strided_slice %62 {offsets = [0, 0, 32], sizes = [2, 7, 16], strides = [1, 1, 1]} : vector<2x7x64xf32> to vector<2x7x16xf32>
    %100 = vector.extract_strided_slice %63 {offsets = [0, 0, 32], sizes = [2, 7, 16], strides = [1, 1, 1]} : vector<2x7x64xf32> to vector<2x7x16xf32>
    "tpu.trace_start"() <{level = 10 : i32, message = "bqd,bkd->bqk"}> : () -> ()
    %cst_56 = arith.constant dense<0.000000e+00> : vector<2x7x7xf32>
    %101 = tpu.matmul %98, %99, %cst_56 {dimension_numbers = #tpu.dot_dimension_numbers<[2], [2], [1], [1], [0, 0, 0, 1, 1, 1], [0], [0]>} : vector<2x7x16xf32>, vector<2x7x16xf32>, vector<2x7x7xf32> -> vector<2x7x7xf32>
    "tpu.trace_stop"() : () -> ()
    %cst_57 = arith.constant 2.500000e-01 : f32
    %102 = vector.broadcast %cst_57 : f32 to vector<2x7x7xf32>
    %103 = arith.mulf %101, %102 : vector<2x7x7xf32>
    %cst_58 = arith.constant dense<0xFF800000> : vector<2x7xf32>
    %104 = vector.multi_reduction <maximumf>, %103, %cst_58 [2] : vector<2x7x7xf32> to vector<2x7xf32>
    %105 = vector.shape_cast %104 : vector<2x7xf32> to vector<2x7x1xf32>
    %106 = vector.broadcast %105 : vector<2x7x1xf32> to vector<2x7x7xf32>
    %107 = arith.subf %103, %106 : vector<2x7x7xf32>
    %108 = math.exp %107 : vector<2x7x7xf32>
    %cst_59 = arith.constant dense<0.000000e+00> : vector<2x7xf32>
    %109 = vector.multi_reduction <add>, %108, %cst_59 [2] : vector<2x7x7xf32> to vector<2x7xf32>
    %110 = vector.shape_cast %109 : vector<2x7xf32> to vector<2x7x1xf32>
    %111 = tpu.reciprocal %110 {approx = true} : vector<2x7x1xf32> -> vector<2x7x1xf32>
    %112 = vector.broadcast %111 : vector<2x7x1xf32> to vector<2x7x7xf32>
    %113 = arith.mulf %108, %112 : vector<2x7x7xf32>
    "tpu.trace_start"() <{level = 10 : i32, message = "bqk,bkd->bqd"}> : () -> ()
    %cst_60 = arith.constant dense<0.000000e+00> : vector<2x7x16xf32>
    %114 = tpu.matmul %113, %100, %cst_60 {dimension_numbers = #tpu.dot_dimension_numbers<[2], [1], [1], [2], [0, 0, 0, 1, 1, 2], [0], [0]>} : vector<2x7x7xf32>, vector<2x7x16xf32>, vector<2x7x16xf32> -> vector<2x7x16xf32>
    "tpu.trace_stop"() : () -> ()
    %115 = vector.extract_strided_slice %61 {offsets = [0, 0, 48], sizes = [2, 7, 16], strides = [1, 1, 1]} : vector<2x7x64xf32> to vector<2x7x16xf32>
    %116 = vector.extract_strided_slice %62 {offsets = [0, 0, 48], sizes = [2, 7, 16], strides = [1, 1, 1]} : vector<2x7x64xf32> to vector<2x7x16xf32>
    %117 = vector.extract_strided_slice %63 {offsets = [0, 0, 48], sizes = [2, 7, 16], strides = [1, 1, 1]} : vector<2x7x64xf32> to vector<2x7x16xf32>
    "tpu.trace_start"() <{level = 10 : i32, message = "bqd,bkd->bqk"}> : () -> ()
    %cst_61 = arith.constant dense<0.000000e+00> : vector<2x7x7xf32>
    %118 = tpu.matmul %115, %116, %cst_61 {dimension_numbers = #tpu.dot_dimension_numbers<[2], [2], [1], [1], [0, 0, 0, 1, 1, 1], [0], [0]>} : vector<2x7x16xf32>, vector<2x7x16xf32>, vector<2x7x7xf32> -> vector<2x7x7xf32>
    "tpu.trace_stop"() : () -> ()
    %cst_62 = arith.constant 2.500000e-01 : f32
    %119 = vector.broadcast %cst_62 : f32 to vector<2x7x7xf32>
    %120 = arith.mulf %118, %119 : vector<2x7x7xf32>
    %cst_63 = arith.constant dense<0xFF800000> : vector<2x7xf32>
    %121 = vector.multi_reduction <maximumf>, %120, %cst_63 [2] : vector<2x7x7xf32> to vector<2x7xf32>
    %122 = vector.shape_cast %121 : vector<2x7xf32> to vector<2x7x1xf32>
    %123 = vector.broadcast %122 : vector<2x7x1xf32> to vector<2x7x7xf32>
    %124 = arith.subf %120, %123 : vector<2x7x7xf32>
    %125 = math.exp %124 : vector<2x7x7xf32>
    %cst_64 = arith.constant dense<0.000000e+00> : vector<2x7xf32>
    %126 = vector.multi_reduction <add>, %125, %cst_64 [2] : vector<2x7x7xf32> to vector<2x7xf32>
    %127 = vector.shape_cast %126 : vector<2x7xf32> to vector<2x7x1xf32>
    %128 = tpu.reciprocal %127 {approx = true} : vector<2x7x1xf32> -> vector<2x7x1xf32>
    %129 = vector.broadcast %128 : vector<2x7x1xf32> to vector<2x7x7xf32>
    %130 = arith.mulf %125, %129 : vector<2x7x7xf32>
    "tpu.trace_start"() <{level = 10 : i32, message = "bqk,bkd->bqd"}> : () -> ()
    %cst_65 = arith.constant dense<0.000000e+00> : vector<2x7x16xf32>
    %131 = tpu.matmul %130, %117, %cst_65 {dimension_numbers = #tpu.dot_dimension_numbers<[2], [1], [1], [2], [0, 0, 0, 1, 1, 2], [0], [0]>} : vector<2x7x7xf32>, vector<2x7x16xf32>, vector<2x7x16xf32> -> vector<2x7x16xf32>
    "tpu.trace_stop"() : () -> ()
    %132 = tpu.concatenate %80, %97, %114, %131 in 2 : vector<2x7x16xf32>, vector<2x7x16xf32>, vector<2x7x16xf32>, vector<2x7x16xf32> -> vector<2x7x64xf32>
    %133 = vector.shape_cast %132 : vector<2x7x64xf32> to vector<14x64xf32>
    %134 = arith.truncf %133 : vector<14x64xf32> to vector<14x64xbf16>
    %cst_66 = arith.constant dense<0.000000e+00> : vector<14x64xf32>
    %135 = tpu.matmul %134, %18, %cst_66 {dimension_numbers = #tpu.dot_dimension_numbers<[1], [0], [0], [1], [0, 0, 1, 1], [], []>} : vector<14x64xbf16>, vector<64x64xbf16>, vector<14x64xf32> -> vector<14x64xf32>
    %136 = vector.broadcast %20 : vector<1x64xf32> to vector<14x64xf32>
    %137 = arith.addf %135, %136 : vector<14x64xf32>
    %138 = vector.shape_cast %137 : vector<14x64xf32> to vector<2x7x64xf32>
    %139 = arith.addf %8, %138 : vector<2x7x64xf32>
    %cst_67 = arith.constant dense<0.000000e+00> : vector<2x7xf32>
    %140 = vector.multi_reduction <add>, %139, %cst_67 [2] : vector<2x7x64xf32> to vector<2x7xf32>
    %141 = vector.shape_cast %140 : vector<2x7xf32> to vector<2x7x1xf32>
    %cst_68 = arith.constant 6.400000e+01 : f32
    %142 = vector.broadcast %cst_68 : f32 to vector<2x7x1xf32>
    %143 = arith.divf %141, %142 : vector<2x7x1xf32>
    %144 = vector.broadcast %143 : vector<2x7x1xf32> to vector<2x7x64xf32>
    %145 = arith.subf %139, %144 : vector<2x7x64xf32>
    %146 = arith.mulf %145, %145 : vector<2x7x64xf32>
    %cst_69 = arith.constant dense<0.000000e+00> : vector<2x7xf32>
    %147 = vector.multi_reduction <add>, %146, %cst_69 [2] : vector<2x7x64xf32> to vector<2x7xf32>
    %148 = vector.shape_cast %147 : vector<2x7xf32> to vector<2x7x1xf32>
    %cst_70 = arith.constant 6.400000e+01 : f32
    %149 = vector.broadcast %cst_70 : f32 to vector<2x7x1xf32>
    %150 = arith.divf %148, %149 : vector<2x7x1xf32>
    %cst_71 = arith.constant 9.99999974E-6 : f32
    %151 = vector.broadcast %cst_71 : f32 to vector<2x7x1xf32>
    %152 = arith.addf %150, %151 : vector<2x7x1xf32>
    %153 = math.rsqrt %152 : vector<2x7x1xf32>
    %154 = vector.broadcast %153 : vector<2x7x1xf32> to vector<2x7x64xf32>
    %155 = arith.mulf %145, %154 : vector<2x7x64xf32>
    %156 = vector.shape_cast %22 : vector<1x64xf32> to vector<1x1x64xf32>
    %157 = vector.broadcast %156 : vector<1x1x64xf32> to vector<2x7x64xf32>
    %158 = arith.mulf %155, %157 : vector<2x7x64xf32>
    %159 = vector.shape_cast %24 : vector<1x64xf32> to vector<1x1x64xf32>
    %160 = vector.broadcast %159 : vector<1x1x64xf32> to vector<2x7x64xf32>
    %161 = arith.addf %158, %160 : vector<2x7x64xf32>
    %162 = vector.shape_cast %161 : vector<2x7x64xf32> to vector<14x64xf32>
    %163 = arith.truncf %162 : vector<14x64xf32> to vector<14x64xbf16>
    %cst_72 = arith.constant dense<0.000000e+00> : vector<14x256xf32>
    %164 = tpu.matmul %163, %26, %cst_72 {dimension_numbers = #tpu.dot_dimension_numbers<[1], [0], [0], [1], [0, 0, 1, 1], [], []>} : vector<14x64xbf16>, vector<64x256xbf16>, vector<14x256xf32> -> vector<14x256xf32>
    %165 = vector.broadcast %28 : vector<1x256xf32> to vector<14x256xf32>
    %166 = arith.addf %164, %165 : vector<14x256xf32>
    %cst_73 = arith.constant 1.702000e+00 : f32
    %167 = vector.broadcast %cst_73 : f32 to vector<14x256xf32>
    %168 = arith.mulf %167, %166 : vector<14x256xf32>
    %169 = arith.negf %168 : vector<14x256xf32>
    %170 = math.exp %169 : vector<14x256xf32>
    %cst_74 = arith.constant 1.000000e+00 : f32
    %171 = vector.broadcast %cst_74 : f32 to vector<14x256xf32>
    %172 = arith.addf %171, %170 : vector<14x256xf32>
    %173 = arith.divf %171, %172 : vector<14x256xf32>
    %174 = arith.mulf %166, %173 : vector<14x256xf32>
    %175 = arith.truncf %174 : vector<14x256xf32> to vector<14x256xbf16>
    %cst_75 = arith.constant dense<0.000000e+00> : vector<14x64xf32>
    %176 = tpu.matmul %175, %30, %cst_75 {dimension_numbers = #tpu.dot_dimension_numbers<[1], [0], [0], [1], [0, 0, 1, 1], [], []>} : vector<14x256xbf16>, vector<256x64xbf16>, vector<14x64xf32> -> vector<14x64xf32>
    %177 = vector.broadcast %32 : vector<1x64xf32> to vector<14x64xf32>
    %178 = arith.addf %176, %177 : vector<14x64xf32>
    %179 = vector.shape_cast %178 : vector<14x64xf32> to vector<2x7x64xf32>
    %180 = arith.addf %139, %179 : vector<2x7x64xf32>
    %c0_76 = arith.constant 0 : index
    %c0_77 = arith.constant 0 : index
    %c0_78 = arith.constant 0 : index
    %181 = vector.load %arg21[%c0_76, %c0_77, %c0_78] : memref<2x7x64xf32, #tpu.memory_space<vmem>>, vector<2x7x64xf32>
    tpu.vector_store %arg21[%c0_76, %c0_77, %c0_78], %180 {strides = array<i32>} : memref<2x7x64xf32, #tpu.memory_space<vmem>>, vector<2x7x64xf32>,
    %c1_i32_79 = arith.constant 1 : i32
    %182 = arith.cmpi eq, %arg0, %c1_i32_79 : i32
    %183 = arith.extui %182 : i1 to i32
    %c0_i32_80 = arith.constant 0 : i32
    %184 = arith.cmpi ne, %183, %c0_i32_80 : i32
    scf.if %184 {
      %c0_81 = arith.constant 0 : index
      %c0_82 = arith.constant 0 : index
      %c0_83 = arith.constant 0 : index
      %185 = vector.load %arg21[%c0_81, %c0_82, %c0_83] : memref<2x7x64xf32, #tpu.memory_space<vmem>>, vector<2x1x64xf32>
      %186 = vector.shape_cast %185 : vector<2x1x64xf32> to vector<2x64xf32>
      %c0_84 = arith.constant 0 : index
      %c0_85 = arith.constant 0 : index
      %187 = vector.load %arg17[%c0_84, %c0_85] : memref<1x64xf32, #tpu.memory_space<vmem>>, vector<1x64xf32>
      %c0_86 = arith.constant 0 : index
      %c0_87 = arith.constant 0 : index
      %188 = vector.load %arg18[%c0_86, %c0_87] : memref<1x64xf32, #tpu.memory_space<vmem>>, vector<1x64xf32>
      %cst_88 = arith.constant dense<0.000000e+00> : vector<2xf32>
      %189 = vector.multi_reduction <add>, %186, %cst_88 [1] : vector<2x64xf32> to vector<2xf32>
      %190 = vector.shape_cast %189 : vector<2xf32> to vector<2x1xf32>
      %cst_89 = arith.constant 6.400000e+01 : f32
      %191 = vector.broadcast %cst_89 : f32 to vector<2x1xf32>
      %192 = arith.divf %190, %191 : vector<2x1xf32>
      %193 = vector.broadcast %192 : vector<2x1xf32> to vector<2x64xf32>
      %194 = arith.subf %186, %193 : vector<2x64xf32>
      %195 = arith.mulf %194, %194 : vector<2x64xf32>
      %cst_90 = arith.constant dense<0.000000e+00> : vector<2xf32>
      %196 = vector.multi_reduction <add>, %195, %cst_90 [1] : vector<2x64xf32> to vector<2xf32>
      %197 = vector.shape_cast %196 : vector<2xf32> to vector<2x1xf32>
      %cst_91 = arith.constant 6.400000e+01 : f32
      %198 = vector.broadcast %cst_91 : f32 to vector<2x1xf32>
      %199 = arith.divf %197, %198 : vector<2x1xf32>
      %cst_92 = arith.constant 9.99999974E-6 : f32
      %200 = vector.broadcast %cst_92 : f32 to vector<2x1xf32>
      %201 = arith.addf %199, %200 : vector<2x1xf32>
      %202 = math.rsqrt %201 : vector<2x1xf32>
      %203 = vector.broadcast %202 : vector<2x1xf32> to vector<2x64xf32>
      %204 = arith.mulf %194, %203 : vector<2x64xf32>
      %205 = vector.broadcast %187 : vector<1x64xf32> to vector<2x64xf32>
      %206 = arith.mulf %204, %205 : vector<2x64xf32>
      %207 = vector.broadcast %188 : vector<1x64xf32> to vector<2x64xf32>
      %208 = arith.addf %206, %207 : vector<2x64xf32>
      %c0_93 = arith.constant 0 : index
      %c0_94 = arith.constant 0 : index
      %209 = vector.load %arg19[%c0_93, %c0_94] : memref<64x16xf32, #tpu.memory_space<vmem>>, vector<64x16xf32>
      %cst_95 = arith.constant dense<0.000000e+00> : vector<2x16xf32>
      %210 = tpu.matmul %208, %209, %cst_95 {dimension_numbers = #tpu.dot_dimension_numbers<[1], [0], [0], [1], [0, 0, 1, 1], [], []>} : vector<2x64xf32>, vector<64x16xf32>, vector<2x16xf32> -> vector<2x16xf32>
      %c0_96 = arith.constant 0 : index
      %c0_97 = arith.constant 0 : index
      %211 = vector.load %arg20[%c0_96, %c0_97] : memref<2x16xf32, #tpu.memory_space<vmem>>, vector<2x16xf32>
      tpu.vector_store %arg20[%c0_96, %c0_97], %210 {strides = array<i32>} : memref<2x16xf32, #tpu.memory_space<vmem>>, vector<2x16xf32>,
    } else {
    }
    return
  }
  func.func @transform_0(%arg0: i32) -> (i32, i32, i32) {
    %c0_i32 = arith.constant 0 : i32
    %c0_i32_0 = arith.constant 0 : i32
    %c0_i32_1 = arith.constant 0 : i32
    %c0_i32_2 = arith.constant 0 : i32
    return %c0_i32, %c0_i32_0, %c0_i32_1 : i32, i32, i32
  }
  func.func @transform_1(%arg0: i32) -> (i32, i32, i32) {
    %c0_i32 = arith.constant 0 : i32
    %c0_i32_0 = arith.constant 0 : i32
    %c0_i32_1 = arith.constant 0 : i32
    %c0_i32_2 = arith.constant 0 : i32
    return %c0_i32, %c0_i32_0, %c0_i32_1 : i32, i32, i32
  }
  func.func @transform_2(%arg0: i32) -> (i32, i32) {
    %c0_i32 = arith.constant 0 : i32
    %c0_i32_0 = arith.constant 0 : i32
    %c0_i32_1 = arith.constant 0 : i32
    return %c0_i32, %c0_i32_0 : i32, i32
  }
  func.func @transform_3(%arg0: i32) -> (i32, i32) {
    %c0_i32 = arith.constant 0 : i32
    %c0_i32_0 = arith.constant 0 : i32
    %c0_i32_1 = arith.constant 0 : i32
    return %c0_i32, %c0_i32_0 : i32, i32
  }
  func.func @transform_4(%arg0: i32) -> (i32, i32, i32) {
    %c0_i32 = arith.constant 0 : i32
    %c0_i32_0 = arith.constant 0 : i32
    %c0_i32_1 = arith.constant 0 : i32
    return %arg0, %c0_i32, %c0_i32_0 : i32, i32, i32
  }
  func.func @transform_5(%arg0: i32) -> (i32, i32, i32) {
    %c0_i32 = arith.constant 0 : i32
    %c0_i32_0 = arith.constant 0 : i32
    %c0_i32_1 = arith.constant 0 : i32
    return %arg0, %c0_i32, %c0_i32_0 : i32, i32, i32
  }
  func.func @transform_6(%arg0: i32) -> (i32, i32, i32) {
    %c0_i32 = arith.constant 0 : i32
    %c0_i32_0 = arith.constant 0 : i32
    %c0_i32_1 = arith.constant 0 : i32
    return %arg0, %c0_i32, %c0_i32_0 : i32, i32, i32
  }
  func.func @transform_7(%arg0: i32) -> (i32, i32, i32) {
    %c0_i32 = arith.constant 0 : i32
    %c0_i32_0 = arith.constant 0 : i32
    %c0_i32_1 = arith.constant 0 : i32
    return %arg0, %c0_i32, %c0_i32_0 : i32, i32, i32
  }
  func.func @transform_8(%arg0: i32) -> (i32, i32, i32) {
    %c0_i32 = arith.constant 0 : i32
    %c0_i32_0 = arith.constant 0 : i32
    %c0_i32_1 = arith.constant 0 : i32
    return %arg0, %c0_i32, %c0_i32_0 : i32, i32, i32
  }
  func.func @transform_9(%arg0: i32) -> (i32, i32, i32) {
    %c0_i32 = arith.constant 0 : i32
    %c0_i32_0 = arith.constant 0 : i32
    %c0_i32_1 = arith.constant 0 : i32
    return %arg0, %c0_i32, %c0_i32_0 : i32, i32, i32
  }
  func.func @transform_10(%arg0: i32) -> (i32, i32, i32) {
    %c0_i32 = arith.constant 0 : i32
    %c0_i32_0 = arith.constant 0 : i32
    %c0_i32_1 = arith.constant 0 : i32
    return %arg0, %c0_i32, %c0_i32_0 : i32, i32, i32
  }
  func.func @transform_11(%arg0: i32) -> (i32, i32, i32) {
    %c0_i32 = arith.constant 0 : i32
    %c0_i32_0 = arith.constant 0 : i32
    %c0_i32_1 = arith.constant 0 : i32
    return %arg0, %c0_i32, %c0_i32_0 : i32, i32, i32
  }
  func.func @transform_12(%arg0: i32) -> (i32, i32, i32) {
    %c0_i32 = arith.constant 0 : i32
    %c0_i32_0 = arith.constant 0 : i32
    %c0_i32_1 = arith.constant 0 : i32
    return %arg0, %c0_i32, %c0_i32_0 : i32, i32, i32
  }
  func.func @transform_13(%arg0: i32) -> (i32, i32, i32) {
    %c0_i32 = arith.constant 0 : i32
    %c0_i32_0 = arith.constant 0 : i32
    %c0_i32_1 = arith.constant 0 : i32
    return %arg0, %c0_i32, %c0_i32_0 : i32, i32, i32
  }
  func.func @transform_14(%arg0: i32) -> (i32, i32, i32) {
    %c0_i32 = arith.constant 0 : i32
    %c0_i32_0 = arith.constant 0 : i32
    %c0_i32_1 = arith.constant 0 : i32
    return %arg0, %c0_i32, %c0_i32_0 : i32, i32, i32
  }
  func.func @transform_15(%arg0: i32) -> (i32, i32, i32) {
    %c0_i32 = arith.constant 0 : i32
    %c0_i32_0 = arith.constant 0 : i32
    %c0_i32_1 = arith.constant 0 : i32
    return %arg0, %c0_i32, %c0_i32_0 : i32, i32, i32
  }
  func.func @transform_16(%arg0: i32) -> (i32, i32) {
    %c0_i32 = arith.constant 0 : i32
    %c0_i32_0 = arith.constant 0 : i32
    %c0_i32_1 = arith.constant 0 : i32
    return %c0_i32, %c0_i32_0 : i32, i32
  }
  func.func @transform_17(%arg0: i32) -> (i32, i32) {
    %c0_i32 = arith.constant 0 : i32
    %c0_i32_0 = arith.constant 0 : i32
    %c0_i32_1 = arith.constant 0 : i32
    return %c0_i32, %c0_i32_0 : i32, i32
  }
  func.func @transform_18(%arg0: i32) -> (i32, i32) {
    %c0_i32 = arith.constant 0 : i32
    %c0_i32_0 = arith.constant 0 : i32
    %c0_i32_1 = arith.constant 0 : i32
    return %c0_i32, %c0_i32_0 : i32, i32
  }
  func.func @transform_19(%arg0: i32) -> (i32, i32) {
    %c0_i32 = arith.constant 0 : i32
    %c0_i32_0 = arith.constant 0 : i32
    %c0_i32_1 = arith.constant 0 : i32
    return %c0_i32, %c0_i32_0 : i32, i32
  }
}

module attributes {stable_mosaic.version = 11 : i64} {
  func.func @_text_encoder_kernel(%arg0: i32, %arg1: memref<3xi32, #tpu.memory_space<smem>>, %arg2: memref<3x8x32xf32, #tpu.memory_space<vmem>>, %arg3: memref<1x8x32xf32, #tpu.memory_space<vmem>>, %arg4: memref<1x2x32xf32, #tpu.memory_space<vmem>>, %arg5: memref<1x1x32xf32, #tpu.memory_space<vmem>>, %arg6: memref<1x1x32xf32, #tpu.memory_space<vmem>>, %arg7: memref<1x32x96xbf16, #tpu.memory_space<vmem>>, %arg8: memref<1x1x96xf32, #tpu.memory_space<vmem>>, %arg9: memref<1x32x32xbf16, #tpu.memory_space<vmem>>, %arg10: memref<1x1x32xf32, #tpu.memory_space<vmem>>, %arg11: memref<1x1x32xf32, #tpu.memory_space<vmem>>, %arg12: memref<1x1x32xf32, #tpu.memory_space<vmem>>, %arg13: memref<1x32x128xbf16, #tpu.memory_space<vmem>>, %arg14: memref<1x1x128xf32, #tpu.memory_space<vmem>>, %arg15: memref<1x128x32xbf16, #tpu.memory_space<vmem>>, %arg16: memref<1x1x32xf32, #tpu.memory_space<vmem>>, %arg17: memref<1x32xf32, #tpu.memory_space<vmem>>, %arg18: memref<1x32xf32, #tpu.memory_space<vmem>>, %arg19: memref<32x16xf32, #tpu.memory_space<vmem>>, %arg20: memref<3x16xf32, #tpu.memory_space<vmem>>, %arg21: memref<3x8x32xf32, #tpu.memory_space<vmem>>) attributes {dimension_semantics = [#tpu.dimension_semantics<arbitrary>], iteration_bounds = array<i64: 2>, scalar_prefetch = 1 : i64, scratch_operands = 1 : i64, tpu.core_type = #tpu.core_type<tc>, window_params = [{pipeline_mode = #tpu.pipeline_mode<synchronous>, transform_indices = @transform_0, window_bounds = array<i64: 3, 8, 32>}, {pipeline_mode = #tpu.pipeline_mode<synchronous>, transform_indices = @transform_1, window_bounds = array<i64: 1, 8, 32>}, {pipeline_mode = #tpu.pipeline_mode<synchronous>, transform_indices = @transform_2, window_bounds = array<i64: 1, 2, 32>}, {transform_indices = @transform_3, window_bounds = array<i64: 1, 1, 32>}, {transform_indices = @transform_4, window_bounds = array<i64: 1, 1, 32>}, {transform_indices = @transform_5, window_bounds = array<i64: 1, 32, 96>}, {transform_indices = @transform_6, window_bounds = array<i64: 1, 1, 96>}, {transform_indices = @transform_7, window_bounds = array<i64: 1, 32, 32>}, {transform_indices = @transform_8, window_bounds = array<i64: 1, 1, 32>}, {transform_indices = @transform_9, window_bounds = array<i64: 1, 1, 32>}, {transform_indices = @transform_10, window_bounds = array<i64: 1, 1, 32>}, {transform_indices = @transform_11, window_bounds = array<i64: 1, 32, 128>}, {transform_indices = @transform_12, window_bounds = array<i64: 1, 1, 128>}, {transform_indices = @transform_13, window_bounds = array<i64: 1, 128, 32>}, {transform_indices = @transform_14, window_bounds = array<i64: 1, 1, 32>}, {pipeline_mode = #tpu.pipeline_mode<synchronous>, transform_indices = @transform_15, window_bounds = array<i64: 1, 32>}, {pipeline_mode = #tpu.pipeline_mode<synchronous>, transform_indices = @transform_16, window_bounds = array<i64: 1, 32>}, {pipeline_mode = #tpu.pipeline_mode<synchronous>, transform_indices = @transform_17, window_bounds = array<i64: 32, 16>}, {pipeline_mode = #tpu.pipeline_mode<synchronous>, transform_indices = @transform_18, window_bounds = array<i64: 3, 16>}]} {
    %c0_i32 = arith.constant 0 : i32
    %0 = arith.cmpi eq, %arg0, %c0_i32 : i32
    %1 = arith.extui %0 : i1 to i32
    %c0_i32_0 = arith.constant 0 : i32
    %2 = arith.cmpi ne, %1, %c0_i32_0 : i32
    scf.if %2 {
      %c0_85 = arith.constant 0 : index
      %c0_86 = arith.constant 0 : index
      %c0_87 = arith.constant 0 : index
      %205 = vector.load %arg2[%c0_85, %c0_86, %c0_87] : memref<3x8x32xf32, #tpu.memory_space<vmem>>, vector<3x8x32xf32>
      %c0_88 = arith.constant 0 : index
      %c0_89 = arith.constant 0 : index
      %c0_90 = arith.constant 0 : index
      %206 = vector.load %arg3[%c0_88, %c0_89, %c0_90] : memref<1x8x32xf32, #tpu.memory_space<vmem>>, vector<1x8x32xf32>
      %207 = vector.broadcast %206 : vector<1x8x32xf32> to vector<3x8x32xf32>
      %208 = arith.addf %205, %207 : vector<3x8x32xf32>
      %c0_91 = arith.constant 0 : index
      %c0_92 = arith.constant 0 : index
      %c0_93 = arith.constant 0 : index
      %209 = vector.load %arg21[%c0_91, %c0_92, %c0_93] : memref<3x8x32xf32, #tpu.memory_space<vmem>>, vector<3x8x32xf32>
      tpu.vector_store %arg21[%c0_91, %c0_92, %c0_93], %208 {strides = array<i32>} : memref<3x8x32xf32, #tpu.memory_space<vmem>>, vector<3x8x32xf32>,
    } else {
    }
    %c1_i32 = arith.constant 1 : i32
    %3 = arith.cmpi sge, %arg0, %c1_i32 : i32
    %c1_i32_1 = arith.constant 1 : i32
    %4 = arith.cmpi sle, %arg0, %c1_i32_1 : i32
    %5 = arith.andi %3, %4 : i1
    %6 = arith.extui %5 : i1 to i32
    %c0_i32_2 = arith.constant 0 : i32
    %7 = arith.cmpi ne, %6, %c0_i32_2 : i32
    scf.if %7 {
      %c1_i32_85 = arith.constant 1 : i32
      %205 = arith.subi %arg0, %c1_i32_85 : i32
      %c0_i32_86 = arith.constant 0 : i32
      %206 = arith.maxsi %205, %c0_i32_86 : i32
      %207 = arith.index_cast %206 : i32 to index
      %c0_87 = arith.constant 0 : index
      %c0_88 = arith.constant 0 : index
      %208 = vector.load %arg4[%207, %c0_87, %c0_88] : memref<1x2x32xf32, #tpu.memory_space<vmem>>, vector<1x2x32xf32>
      %209 = vector.shape_cast %208 : vector<1x2x32xf32> to vector<2x32xf32>
      %210 = vector.shape_cast %209 : vector<2x32xf32> to vector<1x2x32xf32>
      %211 = vector.shape_cast %210 : vector<1x2x32xf32> to vector<1x2x32xf32>
      %212 = vector.broadcast %211 : vector<1x2x32xf32> to vector<3x2x32xf32>
      %c0_89 = arith.constant 0 : index
      %c1 = arith.constant 1 : index
      %c0_90 = arith.constant 0 : index
      %213 = vector.load %arg21[%c0_89, %c1, %c0_90] : memref<3x8x32xf32, #tpu.memory_space<vmem>>, vector<3x2x32xf32>
      tpu.vector_store %arg21[%c0_89, %c1, %c0_90], %212 {strides = array<i32>} : memref<3x8x32xf32, #tpu.memory_space<vmem>>, vector<3x2x32xf32>,
    } else {
    }
    %c0 = arith.constant 0 : index
    %c0_3 = arith.constant 0 : index
    %c0_4 = arith.constant 0 : index
    %8 = vector.load %arg21[%c0, %c0_3, %c0_4] : memref<3x8x32xf32, #tpu.memory_space<vmem>>, vector<3x8x32xf32>
    %c0_5 = arith.constant 0 : index
    %c0_6 = arith.constant 0 : index
    %c0_7 = arith.constant 0 : index
    %9 = vector.load %arg5[%c0_5, %c0_6, %c0_7] : memref<1x1x32xf32, #tpu.memory_space<vmem>>, vector<1x1x32xf32>
    %10 = vector.shape_cast %9 : vector<1x1x32xf32> to vector<1x32xf32>
    %c0_8 = arith.constant 0 : index
    %c0_9 = arith.constant 0 : index
    %c0_10 = arith.constant 0 : index
    %11 = vector.load %arg6[%c0_8, %c0_9, %c0_10] : memref<1x1x32xf32, #tpu.memory_space<vmem>>, vector<1x1x32xf32>
    %12 = vector.shape_cast %11 : vector<1x1x32xf32> to vector<1x32xf32>
    %c0_11 = arith.constant 0 : index
    %c0_12 = arith.constant 0 : index
    %c0_13 = arith.constant 0 : index
    %13 = vector.load %arg7[%c0_11, %c0_12, %c0_13] : memref<1x32x96xbf16, #tpu.memory_space<vmem>>, vector<1x32x96xbf16>
    %14 = vector.shape_cast %13 : vector<1x32x96xbf16> to vector<32x96xbf16>
    %c0_14 = arith.constant 0 : index
    %c0_15 = arith.constant 0 : index
    %c0_16 = arith.constant 0 : index
    %15 = vector.load %arg8[%c0_14, %c0_15, %c0_16] : memref<1x1x96xf32, #tpu.memory_space<vmem>>, vector<1x1x96xf32>
    %16 = vector.shape_cast %15 : vector<1x1x96xf32> to vector<1x96xf32>
    %c0_17 = arith.constant 0 : index
    %c0_18 = arith.constant 0 : index
    %c0_19 = arith.constant 0 : index
    %17 = vector.load %arg9[%c0_17, %c0_18, %c0_19] : memref<1x32x32xbf16, #tpu.memory_space<vmem>>, vector<1x32x32xbf16>
    %18 = vector.shape_cast %17 : vector<1x32x32xbf16> to vector<32x32xbf16>
    %c0_20 = arith.constant 0 : index
    %c0_21 = arith.constant 0 : index
    %c0_22 = arith.constant 0 : index
    %19 = vector.load %arg10[%c0_20, %c0_21, %c0_22] : memref<1x1x32xf32, #tpu.memory_space<vmem>>, vector<1x1x32xf32>
    %20 = vector.shape_cast %19 : vector<1x1x32xf32> to vector<1x32xf32>
    %c0_23 = arith.constant 0 : index
    %c0_24 = arith.constant 0 : index
    %c0_25 = arith.constant 0 : index
    %21 = vector.load %arg11[%c0_23, %c0_24, %c0_25] : memref<1x1x32xf32, #tpu.memory_space<vmem>>, vector<1x1x32xf32>
    %22 = vector.shape_cast %21 : vector<1x1x32xf32> to vector<1x32xf32>
    %c0_26 = arith.constant 0 : index
    %c0_27 = arith.constant 0 : index
    %c0_28 = arith.constant 0 : index
    %23 = vector.load %arg12[%c0_26, %c0_27, %c0_28] : memref<1x1x32xf32, #tpu.memory_space<vmem>>, vector<1x1x32xf32>
    %24 = vector.shape_cast %23 : vector<1x1x32xf32> to vector<1x32xf32>
    %c0_29 = arith.constant 0 : index
    %c0_30 = arith.constant 0 : index
    %c0_31 = arith.constant 0 : index
    %25 = vector.load %arg13[%c0_29, %c0_30, %c0_31] : memref<1x32x128xbf16, #tpu.memory_space<vmem>>, vector<1x32x128xbf16>
    %26 = vector.shape_cast %25 : vector<1x32x128xbf16> to vector<32x128xbf16>
    %c0_32 = arith.constant 0 : index
    %c0_33 = arith.constant 0 : index
    %c0_34 = arith.constant 0 : index
    %27 = vector.load %arg14[%c0_32, %c0_33, %c0_34] : memref<1x1x128xf32, #tpu.memory_space<vmem>>, vector<1x1x128xf32>
    %28 = vector.shape_cast %27 : vector<1x1x128xf32> to vector<1x128xf32>
    %c0_35 = arith.constant 0 : index
    %c0_36 = arith.constant 0 : index
    %c0_37 = arith.constant 0 : index
    %29 = vector.load %arg15[%c0_35, %c0_36, %c0_37] : memref<1x128x32xbf16, #tpu.memory_space<vmem>>, vector<1x128x32xbf16>
    %30 = vector.shape_cast %29 : vector<1x128x32xbf16> to vector<128x32xbf16>
    %c0_38 = arith.constant 0 : index
    %c0_39 = arith.constant 0 : index
    %c0_40 = arith.constant 0 : index
    %31 = vector.load %arg16[%c0_38, %c0_39, %c0_40] : memref<1x1x32xf32, #tpu.memory_space<vmem>>, vector<1x1x32xf32>
    %32 = vector.shape_cast %31 : vector<1x1x32xf32> to vector<1x32xf32>
    %cst = arith.constant dense<0.000000e+00> : vector<3x8xf32>
    %33 = vector.multi_reduction <add>, %8, %cst [2] : vector<3x8x32xf32> to vector<3x8xf32>
    %34 = vector.shape_cast %33 : vector<3x8xf32> to vector<3x8x1xf32>
    %cst_41 = arith.constant 3.200000e+01 : f32
    %35 = vector.broadcast %cst_41 : f32 to vector<3x8x1xf32>
    %36 = arith.divf %34, %35 : vector<3x8x1xf32>
    %37 = vector.broadcast %36 : vector<3x8x1xf32> to vector<3x8x32xf32>
    %38 = arith.subf %8, %37 : vector<3x8x32xf32>
    %39 = arith.mulf %38, %38 : vector<3x8x32xf32>
    %cst_42 = arith.constant dense<0.000000e+00> : vector<3x8xf32>
    %40 = vector.multi_reduction <add>, %39, %cst_42 [2] : vector<3x8x32xf32> to vector<3x8xf32>
    %41 = vector.shape_cast %40 : vector<3x8xf32> to vector<3x8x1xf32>
    %cst_43 = arith.constant 3.200000e+01 : f32
    %42 = vector.broadcast %cst_43 : f32 to vector<3x8x1xf32>
    %43 = arith.divf %41, %42 : vector<3x8x1xf32>
    %cst_44 = arith.constant 9.99999974E-6 : f32
    %44 = vector.broadcast %cst_44 : f32 to vector<3x8x1xf32>
    %45 = arith.addf %43, %44 : vector<3x8x1xf32>
    %46 = math.rsqrt %45 : vector<3x8x1xf32>
    %47 = vector.broadcast %46 : vector<3x8x1xf32> to vector<3x8x32xf32>
    %48 = arith.mulf %38, %47 : vector<3x8x32xf32>
    %49 = vector.shape_cast %10 : vector<1x32xf32> to vector<1x1x32xf32>
    %50 = vector.broadcast %49 : vector<1x1x32xf32> to vector<3x8x32xf32>
    %51 = arith.mulf %48, %50 : vector<3x8x32xf32>
    %52 = vector.shape_cast %12 : vector<1x32xf32> to vector<1x1x32xf32>
    %53 = vector.broadcast %52 : vector<1x1x32xf32> to vector<3x8x32xf32>
    %54 = arith.addf %51, %53 : vector<3x8x32xf32>
    %55 = vector.shape_cast %54 : vector<3x8x32xf32> to vector<24x32xf32>
    %56 = arith.truncf %55 : vector<24x32xf32> to vector<24x32xbf16>
    %cst_45 = arith.constant dense<0.000000e+00> : vector<24x96xf32>
    %57 = tpu.matmul %56, %14, %cst_45 {dimension_numbers = #tpu.dot_dimension_numbers<[1], [0], [0], [1], [0, 0, 1, 1], [], []>} : vector<24x32xbf16>, vector<32x96xbf16>, vector<24x96xf32> -> vector<24x96xf32>
    %58 = vector.broadcast %16 : vector<1x96xf32> to vector<24x96xf32>
    %59 = arith.addf %57, %58 : vector<24x96xf32>
    %60 = vector.shape_cast %59 : vector<24x96xf32> to vector<3x8x96xf32>
    %61 = vector.extract_strided_slice %60 {offsets = [0, 0, 0], sizes = [3, 8, 32], strides = [1, 1, 1]} : vector<3x8x96xf32> to vector<3x8x32xf32>
    %62 = vector.extract_strided_slice %60 {offsets = [0, 0, 32], sizes = [3, 8, 32], strides = [1, 1, 1]} : vector<3x8x96xf32> to vector<3x8x32xf32>
    %63 = vector.extract_strided_slice %60 {offsets = [0, 0, 64], sizes = [3, 8, 32], strides = [1, 1, 1]} : vector<3x8x96xf32> to vector<3x8x32xf32>
    %64 = tpu.iota {dimensions = array<i32: 0>} : vector<8x8xi32>
    %65 = tpu.iota {dimensions = array<i32: 1>} : vector<8x8xi32>
    %66 = arith.cmpi sgt, %65, %64 : vector<8x8xi32>
    %67 = vector.shape_cast %66 : vector<8x8xi1> to vector<1x8x8xi1>
    %68 = vector.extract_strided_slice %61 {offsets = [0, 0, 0], sizes = [3, 8, 8], strides = [1, 1, 1]} : vector<3x8x32xf32> to vector<3x8x8xf32>
    %69 = vector.extract_strided_slice %62 {offsets = [0, 0, 0], sizes = [3, 8, 8], strides = [1, 1, 1]} : vector<3x8x32xf32> to vector<3x8x8xf32>
    %70 = vector.extract_strided_slice %63 {offsets = [0, 0, 0], sizes = [3, 8, 8], strides = [1, 1, 1]} : vector<3x8x32xf32> to vector<3x8x8xf32>
    "tpu.trace_start"() <{level = 10 : i32, message = "bqd,bkd->bqk"}> : () -> ()
    %cst_46 = arith.constant dense<0.000000e+00> : vector<3x8x8xf32>
    %71 = tpu.matmul %68, %69, %cst_46 {dimension_numbers = #tpu.dot_dimension_numbers<[2], [2], [1], [1], [0, 0, 0, 1, 1, 1], [0], [0]>} : vector<3x8x8xf32>, vector<3x8x8xf32>, vector<3x8x8xf32> -> vector<3x8x8xf32>
    "tpu.trace_stop"() : () -> ()
    %cst_47 = arith.constant 0.353553385 : f32
    %72 = vector.broadcast %cst_47 : f32 to vector<3x8x8xf32>
    %73 = arith.mulf %71, %72 : vector<3x8x8xf32>
    %cst_48 = arith.constant -1.000000e+30 : f32
    %74 = vector.shape_cast %67 : vector<1x8x8xi1> to vector<1x8x8xi1>
    %75 = vector.broadcast %74 : vector<1x8x8xi1> to vector<3x8x8xi1>
    %76 = vector.broadcast %cst_48 : f32 to vector<3x8x8xf32>
    %77 = arith.select %75, %76, %73 : vector<3x8x8xi1>, vector<3x8x8xf32>
    %cst_49 = arith.constant dense<0xFF800000> : vector<3x8xf32>
    %78 = vector.multi_reduction <maximumf>, %77, %cst_49 [2] : vector<3x8x8xf32> to vector<3x8xf32>
    %79 = vector.shape_cast %78 : vector<3x8xf32> to vector<3x8x1xf32>
    %80 = vector.broadcast %79 : vector<3x8x1xf32> to vector<3x8x8xf32>
    %81 = arith.subf %77, %80 : vector<3x8x8xf32>
    %82 = math.exp %81 : vector<3x8x8xf32>
    %cst_50 = arith.constant dense<0.000000e+00> : vector<3x8xf32>
    %83 = vector.multi_reduction <add>, %82, %cst_50 [2] : vector<3x8x8xf32> to vector<3x8xf32>
    %84 = vector.shape_cast %83 : vector<3x8xf32> to vector<3x8x1xf32>
    %85 = tpu.reciprocal %84 {approx = true} : vector<3x8x1xf32> -> vector<3x8x1xf32>
    %86 = vector.broadcast %85 : vector<3x8x1xf32> to vector<3x8x8xf32>
    %87 = arith.mulf %82, %86 : vector<3x8x8xf32>
    "tpu.trace_start"() <{level = 10 : i32, message = "bqk,bkd->bqd"}> : () -> ()
    %cst_51 = arith.constant dense<0.000000e+00> : vector<3x8x8xf32>
    %88 = tpu.matmul %87, %70, %cst_51 {dimension_numbers = #tpu.dot_dimension_numbers<[2], [1], [1], [2], [0, 0, 0, 1, 1, 2], [0], [0]>} : vector<3x8x8xf32>, vector<3x8x8xf32>, vector<3x8x8xf32> -> vector<3x8x8xf32>
    "tpu.trace_stop"() : () -> ()
    %89 = vector.extract_strided_slice %61 {offsets = [0, 0, 8], sizes = [3, 8, 8], strides = [1, 1, 1]} : vector<3x8x32xf32> to vector<3x8x8xf32>
    %90 = vector.extract_strided_slice %62 {offsets = [0, 0, 8], sizes = [3, 8, 8], strides = [1, 1, 1]} : vector<3x8x32xf32> to vector<3x8x8xf32>
    %91 = vector.extract_strided_slice %63 {offsets = [0, 0, 8], sizes = [3, 8, 8], strides = [1, 1, 1]} : vector<3x8x32xf32> to vector<3x8x8xf32>
    "tpu.trace_start"() <{level = 10 : i32, message = "bqd,bkd->bqk"}> : () -> ()
    %cst_52 = arith.constant dense<0.000000e+00> : vector<3x8x8xf32>
    %92 = tpu.matmul %89, %90, %cst_52 {dimension_numbers = #tpu.dot_dimension_numbers<[2], [2], [1], [1], [0, 0, 0, 1, 1, 1], [0], [0]>} : vector<3x8x8xf32>, vector<3x8x8xf32>, vector<3x8x8xf32> -> vector<3x8x8xf32>
    "tpu.trace_stop"() : () -> ()
    %cst_53 = arith.constant 0.353553385 : f32
    %93 = vector.broadcast %cst_53 : f32 to vector<3x8x8xf32>
    %94 = arith.mulf %92, %93 : vector<3x8x8xf32>
    %cst_54 = arith.constant -1.000000e+30 : f32
    %95 = vector.shape_cast %67 : vector<1x8x8xi1> to vector<1x8x8xi1>
    %96 = vector.broadcast %95 : vector<1x8x8xi1> to vector<3x8x8xi1>
    %97 = vector.broadcast %cst_54 : f32 to vector<3x8x8xf32>
    %98 = arith.select %96, %97, %94 : vector<3x8x8xi1>, vector<3x8x8xf32>
    %cst_55 = arith.constant dense<0xFF800000> : vector<3x8xf32>
    %99 = vector.multi_reduction <maximumf>, %98, %cst_55 [2] : vector<3x8x8xf32> to vector<3x8xf32>
    %100 = vector.shape_cast %99 : vector<3x8xf32> to vector<3x8x1xf32>
    %101 = vector.broadcast %100 : vector<3x8x1xf32> to vector<3x8x8xf32>
    %102 = arith.subf %98, %101 : vector<3x8x8xf32>
    %103 = math.exp %102 : vector<3x8x8xf32>
    %cst_56 = arith.constant dense<0.000000e+00> : vector<3x8xf32>
    %104 = vector.multi_reduction <add>, %103, %cst_56 [2] : vector<3x8x8xf32> to vector<3x8xf32>
    %105 = vector.shape_cast %104 : vector<3x8xf32> to vector<3x8x1xf32>
    %106 = tpu.reciprocal %105 {approx = true} : vector<3x8x1xf32> -> vector<3x8x1xf32>
    %107 = vector.broadcast %106 : vector<3x8x1xf32> to vector<3x8x8xf32>
    %108 = arith.mulf %103, %107 : vector<3x8x8xf32>
    "tpu.trace_start"() <{level = 10 : i32, message = "bqk,bkd->bqd"}> : () -> ()
    %cst_57 = arith.constant dense<0.000000e+00> : vector<3x8x8xf32>
    %109 = tpu.matmul %108, %91, %cst_57 {dimension_numbers = #tpu.dot_dimension_numbers<[2], [1], [1], [2], [0, 0, 0, 1, 1, 2], [0], [0]>} : vector<3x8x8xf32>, vector<3x8x8xf32>, vector<3x8x8xf32> -> vector<3x8x8xf32>
    "tpu.trace_stop"() : () -> ()
    %110 = vector.extract_strided_slice %61 {offsets = [0, 0, 16], sizes = [3, 8, 8], strides = [1, 1, 1]} : vector<3x8x32xf32> to vector<3x8x8xf32>
    %111 = vector.extract_strided_slice %62 {offsets = [0, 0, 16], sizes = [3, 8, 8], strides = [1, 1, 1]} : vector<3x8x32xf32> to vector<3x8x8xf32>
    %112 = vector.extract_strided_slice %63 {offsets = [0, 0, 16], sizes = [3, 8, 8], strides = [1, 1, 1]} : vector<3x8x32xf32> to vector<3x8x8xf32>
    "tpu.trace_start"() <{level = 10 : i32, message = "bqd,bkd->bqk"}> : () -> ()
    %cst_58 = arith.constant dense<0.000000e+00> : vector<3x8x8xf32>
    %113 = tpu.matmul %110, %111, %cst_58 {dimension_numbers = #tpu.dot_dimension_numbers<[2], [2], [1], [1], [0, 0, 0, 1, 1, 1], [0], [0]>} : vector<3x8x8xf32>, vector<3x8x8xf32>, vector<3x8x8xf32> -> vector<3x8x8xf32>
    "tpu.trace_stop"() : () -> ()
    %cst_59 = arith.constant 0.353553385 : f32
    %114 = vector.broadcast %cst_59 : f32 to vector<3x8x8xf32>
    %115 = arith.mulf %113, %114 : vector<3x8x8xf32>
    %cst_60 = arith.constant -1.000000e+30 : f32
    %116 = vector.shape_cast %67 : vector<1x8x8xi1> to vector<1x8x8xi1>
    %117 = vector.broadcast %116 : vector<1x8x8xi1> to vector<3x8x8xi1>
    %118 = vector.broadcast %cst_60 : f32 to vector<3x8x8xf32>
    %119 = arith.select %117, %118, %115 : vector<3x8x8xi1>, vector<3x8x8xf32>
    %cst_61 = arith.constant dense<0xFF800000> : vector<3x8xf32>
    %120 = vector.multi_reduction <maximumf>, %119, %cst_61 [2] : vector<3x8x8xf32> to vector<3x8xf32>
    %121 = vector.shape_cast %120 : vector<3x8xf32> to vector<3x8x1xf32>
    %122 = vector.broadcast %121 : vector<3x8x1xf32> to vector<3x8x8xf32>
    %123 = arith.subf %119, %122 : vector<3x8x8xf32>
    %124 = math.exp %123 : vector<3x8x8xf32>
    %cst_62 = arith.constant dense<0.000000e+00> : vector<3x8xf32>
    %125 = vector.multi_reduction <add>, %124, %cst_62 [2] : vector<3x8x8xf32> to vector<3x8xf32>
    %126 = vector.shape_cast %125 : vector<3x8xf32> to vector<3x8x1xf32>
    %127 = tpu.reciprocal %126 {approx = true} : vector<3x8x1xf32> -> vector<3x8x1xf32>
    %128 = vector.broadcast %127 : vector<3x8x1xf32> to vector<3x8x8xf32>
    %129 = arith.mulf %124, %128 : vector<3x8x8xf32>
    "tpu.trace_start"() <{level = 10 : i32, message = "bqk,bkd->bqd"}> : () -> ()
    %cst_63 = arith.constant dense<0.000000e+00> : vector<3x8x8xf32>
    %130 = tpu.matmul %129, %112, %cst_63 {dimension_numbers = #tpu.dot_dimension_numbers<[2], [1], [1], [2], [0, 0, 0, 1, 1, 2], [0], [0]>} : vector<3x8x8xf32>, vector<3x8x8xf32>, vector<3x8x8xf32> -> vector<3x8x8xf32>
    "tpu.trace_stop"() : () -> ()
    %131 = vector.extract_strided_slice %61 {offsets = [0, 0, 24], sizes = [3, 8, 8], strides = [1, 1, 1]} : vector<3x8x32xf32> to vector<3x8x8xf32>
    %132 = vector.extract_strided_slice %62 {offsets = [0, 0, 24], sizes = [3, 8, 8], strides = [1, 1, 1]} : vector<3x8x32xf32> to vector<3x8x8xf32>
    %133 = vector.extract_strided_slice %63 {offsets = [0, 0, 24], sizes = [3, 8, 8], strides = [1, 1, 1]} : vector<3x8x32xf32> to vector<3x8x8xf32>
    "tpu.trace_start"() <{level = 10 : i32, message = "bqd,bkd->bqk"}> : () -> ()
    %cst_64 = arith.constant dense<0.000000e+00> : vector<3x8x8xf32>
    %134 = tpu.matmul %131, %132, %cst_64 {dimension_numbers = #tpu.dot_dimension_numbers<[2], [2], [1], [1], [0, 0, 0, 1, 1, 1], [0], [0]>} : vector<3x8x8xf32>, vector<3x8x8xf32>, vector<3x8x8xf32> -> vector<3x8x8xf32>
    "tpu.trace_stop"() : () -> ()
    %cst_65 = arith.constant 0.353553385 : f32
    %135 = vector.broadcast %cst_65 : f32 to vector<3x8x8xf32>
    %136 = arith.mulf %134, %135 : vector<3x8x8xf32>
    %cst_66 = arith.constant -1.000000e+30 : f32
    %137 = vector.shape_cast %67 : vector<1x8x8xi1> to vector<1x8x8xi1>
    %138 = vector.broadcast %137 : vector<1x8x8xi1> to vector<3x8x8xi1>
    %139 = vector.broadcast %cst_66 : f32 to vector<3x8x8xf32>
    %140 = arith.select %138, %139, %136 : vector<3x8x8xi1>, vector<3x8x8xf32>
    %cst_67 = arith.constant dense<0xFF800000> : vector<3x8xf32>
    %141 = vector.multi_reduction <maximumf>, %140, %cst_67 [2] : vector<3x8x8xf32> to vector<3x8xf32>
    %142 = vector.shape_cast %141 : vector<3x8xf32> to vector<3x8x1xf32>
    %143 = vector.broadcast %142 : vector<3x8x1xf32> to vector<3x8x8xf32>
    %144 = arith.subf %140, %143 : vector<3x8x8xf32>
    %145 = math.exp %144 : vector<3x8x8xf32>
    %cst_68 = arith.constant dense<0.000000e+00> : vector<3x8xf32>
    %146 = vector.multi_reduction <add>, %145, %cst_68 [2] : vector<3x8x8xf32> to vector<3x8xf32>
    %147 = vector.shape_cast %146 : vector<3x8xf32> to vector<3x8x1xf32>
    %148 = tpu.reciprocal %147 {approx = true} : vector<3x8x1xf32> -> vector<3x8x1xf32>
    %149 = vector.broadcast %148 : vector<3x8x1xf32> to vector<3x8x8xf32>
    %150 = arith.mulf %145, %149 : vector<3x8x8xf32>
    "tpu.trace_start"() <{level = 10 : i32, message = "bqk,bkd->bqd"}> : () -> ()
    %cst_69 = arith.constant dense<0.000000e+00> : vector<3x8x8xf32>
    %151 = tpu.matmul %150, %133, %cst_69 {dimension_numbers = #tpu.dot_dimension_numbers<[2], [1], [1], [2], [0, 0, 0, 1, 1, 2], [0], [0]>} : vector<3x8x8xf32>, vector<3x8x8xf32>, vector<3x8x8xf32> -> vector<3x8x8xf32>
    "tpu.trace_stop"() : () -> ()
    %152 = tpu.concatenate %88, %109, %130, %151 in 2 : vector<3x8x8xf32>, vector<3x8x8xf32>, vector<3x8x8xf32>, vector<3x8x8xf32> -> vector<3x8x32xf32>
    %153 = vector.shape_cast %152 : vector<3x8x32xf32> to vector<24x32xf32>
    %154 = arith.truncf %153 : vector<24x32xf32> to vector<24x32xbf16>
    %cst_70 = arith.constant dense<0.000000e+00> : vector<24x32xf32>
    %155 = tpu.matmul %154, %18, %cst_70 {dimension_numbers = #tpu.dot_dimension_numbers<[1], [0], [0], [1], [0, 0, 1, 1], [], []>} : vector<24x32xbf16>, vector<32x32xbf16>, vector<24x32xf32> -> vector<24x32xf32>
    %156 = vector.broadcast %20 : vector<1x32xf32> to vector<24x32xf32>
    %157 = arith.addf %155, %156 : vector<24x32xf32>
    %158 = vector.shape_cast %157 : vector<24x32xf32> to vector<3x8x32xf32>
    %159 = arith.addf %8, %158 : vector<3x8x32xf32>
    %cst_71 = arith.constant dense<0.000000e+00> : vector<3x8xf32>
    %160 = vector.multi_reduction <add>, %159, %cst_71 [2] : vector<3x8x32xf32> to vector<3x8xf32>
    %161 = vector.shape_cast %160 : vector<3x8xf32> to vector<3x8x1xf32>
    %cst_72 = arith.constant 3.200000e+01 : f32
    %162 = vector.broadcast %cst_72 : f32 to vector<3x8x1xf32>
    %163 = arith.divf %161, %162 : vector<3x8x1xf32>
    %164 = vector.broadcast %163 : vector<3x8x1xf32> to vector<3x8x32xf32>
    %165 = arith.subf %159, %164 : vector<3x8x32xf32>
    %166 = arith.mulf %165, %165 : vector<3x8x32xf32>
    %cst_73 = arith.constant dense<0.000000e+00> : vector<3x8xf32>
    %167 = vector.multi_reduction <add>, %166, %cst_73 [2] : vector<3x8x32xf32> to vector<3x8xf32>
    %168 = vector.shape_cast %167 : vector<3x8xf32> to vector<3x8x1xf32>
    %cst_74 = arith.constant 3.200000e+01 : f32
    %169 = vector.broadcast %cst_74 : f32 to vector<3x8x1xf32>
    %170 = arith.divf %168, %169 : vector<3x8x1xf32>
    %cst_75 = arith.constant 9.99999974E-6 : f32
    %171 = vector.broadcast %cst_75 : f32 to vector<3x8x1xf32>
    %172 = arith.addf %170, %171 : vector<3x8x1xf32>
    %173 = math.rsqrt %172 : vector<3x8x1xf32>
    %174 = vector.broadcast %173 : vector<3x8x1xf32> to vector<3x8x32xf32>
    %175 = arith.mulf %165, %174 : vector<3x8x32xf32>
    %176 = vector.shape_cast %22 : vector<1x32xf32> to vector<1x1x32xf32>
    %177 = vector.broadcast %176 : vector<1x1x32xf32> to vector<3x8x32xf32>
    %178 = arith.mulf %175, %177 : vector<3x8x32xf32>
    %179 = vector.shape_cast %24 : vector<1x32xf32> to vector<1x1x32xf32>
    %180 = vector.broadcast %179 : vector<1x1x32xf32> to vector<3x8x32xf32>
    %181 = arith.addf %178, %180 : vector<3x8x32xf32>
    %182 = vector.shape_cast %181 : vector<3x8x32xf32> to vector<24x32xf32>
    %183 = arith.truncf %182 : vector<24x32xf32> to vector<24x32xbf16>
    %cst_76 = arith.constant dense<0.000000e+00> : vector<24x128xf32>
    %184 = tpu.matmul %183, %26, %cst_76 {dimension_numbers = #tpu.dot_dimension_numbers<[1], [0], [0], [1], [0, 0, 1, 1], [], []>} : vector<24x32xbf16>, vector<32x128xbf16>, vector<24x128xf32> -> vector<24x128xf32>
    %185 = vector.broadcast %28 : vector<1x128xf32> to vector<24x128xf32>
    %186 = arith.addf %184, %185 : vector<24x128xf32>
    %cst_77 = arith.constant 1.702000e+00 : f32
    %187 = vector.broadcast %cst_77 : f32 to vector<24x128xf32>
    %188 = arith.mulf %187, %186 : vector<24x128xf32>
    %189 = arith.negf %188 : vector<24x128xf32>
    %190 = math.exp %189 : vector<24x128xf32>
    %cst_78 = arith.constant 1.000000e+00 : f32
    %191 = vector.broadcast %cst_78 : f32 to vector<24x128xf32>
    %192 = arith.addf %191, %190 : vector<24x128xf32>
    %193 = arith.divf %191, %192 : vector<24x128xf32>
    %194 = arith.mulf %186, %193 : vector<24x128xf32>
    %195 = arith.truncf %194 : vector<24x128xf32> to vector<24x128xbf16>
    %cst_79 = arith.constant dense<0.000000e+00> : vector<24x32xf32>
    %196 = tpu.matmul %195, %30, %cst_79 {dimension_numbers = #tpu.dot_dimension_numbers<[1], [0], [0], [1], [0, 0, 1, 1], [], []>} : vector<24x128xbf16>, vector<128x32xbf16>, vector<24x32xf32> -> vector<24x32xf32>
    %197 = vector.broadcast %32 : vector<1x32xf32> to vector<24x32xf32>
    %198 = arith.addf %196, %197 : vector<24x32xf32>
    %199 = vector.shape_cast %198 : vector<24x32xf32> to vector<3x8x32xf32>
    %200 = arith.addf %159, %199 : vector<3x8x32xf32>
    %c0_80 = arith.constant 0 : index
    %c0_81 = arith.constant 0 : index
    %c0_82 = arith.constant 0 : index
    %201 = vector.load %arg21[%c0_80, %c0_81, %c0_82] : memref<3x8x32xf32, #tpu.memory_space<vmem>>, vector<3x8x32xf32>
    tpu.vector_store %arg21[%c0_80, %c0_81, %c0_82], %200 {strides = array<i32>} : memref<3x8x32xf32, #tpu.memory_space<vmem>>, vector<3x8x32xf32>,
    %c1_i32_83 = arith.constant 1 : i32
    %202 = arith.cmpi eq, %arg0, %c1_i32_83 : i32
    %203 = arith.extui %202 : i1 to i32
    %c0_i32_84 = arith.constant 0 : i32
    %204 = arith.cmpi ne, %203, %c0_i32_84 : i32
    scf.if %204 {
      %c0_85 = arith.constant 0 : index
      %205 = memref.load %arg1[%c0_85] : memref<3xi32, #tpu.memory_space<smem>>
      %c0_86 = arith.constant 0 : index
      %206 = arith.index_cast %205 : i32 to index
      %c0_87 = arith.constant 0 : index
      %207 = vector.load %arg21[%c0_86, %206, %c0_87] : memref<3x8x32xf32, #tpu.memory_space<vmem>>, vector<1x1x32xf32>
      %208 = vector.shape_cast %207 : vector<1x1x32xf32> to vector<1x32xf32>
      %c1 = arith.constant 1 : index
      %209 = memref.load %arg1[%c1] : memref<3xi32, #tpu.memory_space<smem>>
      %c1_88 = arith.constant 1 : index
      %210 = arith.index_cast %209 : i32 to index
      %c0_89 = arith.constant 0 : index
      %211 = vector.load %arg21[%c1_88, %210, %c0_89] : memref<3x8x32xf32, #tpu.memory_space<vmem>>, vector<1x1x32xf32>
      %212 = vector.shape_cast %211 : vector<1x1x32xf32> to vector<1x32xf32>
      %c2 = arith.constant 2 : index
      %213 = memref.load %arg1[%c2] : memref<3xi32, #tpu.memory_space<smem>>
      %c2_90 = arith.constant 2 : index
      %214 = arith.index_cast %213 : i32 to index
      %c0_91 = arith.constant 0 : index
      %215 = vector.load %arg21[%c2_90, %214, %c0_91] : memref<3x8x32xf32, #tpu.memory_space<vmem>>, vector<1x1x32xf32>
      %216 = vector.shape_cast %215 : vector<1x1x32xf32> to vector<1x32xf32>
      %217 = tpu.concatenate %208, %212, %216 in 0 : vector<1x32xf32>, vector<1x32xf32>, vector<1x32xf32> -> vector<3x32xf32>
      %c0_92 = arith.constant 0 : index
      %c0_93 = arith.constant 0 : index
      %218 = vector.load %arg17[%c0_92, %c0_93] : memref<1x32xf32, #tpu.memory_space<vmem>>, vector<1x32xf32>
      %c0_94 = arith.constant 0 : index
      %c0_95 = arith.constant 0 : index
      %219 = vector.load %arg18[%c0_94, %c0_95] : memref<1x32xf32, #tpu.memory_space<vmem>>, vector<1x32xf32>
      %cst_96 = arith.constant dense<0.000000e+00> : vector<3xf32>
      %220 = vector.multi_reduction <add>, %217, %cst_96 [1] : vector<3x32xf32> to vector<3xf32>
      %221 = vector.shape_cast %220 : vector<3xf32> to vector<3x1xf32>
      %cst_97 = arith.constant 3.200000e+01 : f32
      %222 = vector.broadcast %cst_97 : f32 to vector<3x1xf32>
      %223 = arith.divf %221, %222 : vector<3x1xf32>
      %224 = vector.broadcast %223 : vector<3x1xf32> to vector<3x32xf32>
      %225 = arith.subf %217, %224 : vector<3x32xf32>
      %226 = arith.mulf %225, %225 : vector<3x32xf32>
      %cst_98 = arith.constant dense<0.000000e+00> : vector<3xf32>
      %227 = vector.multi_reduction <add>, %226, %cst_98 [1] : vector<3x32xf32> to vector<3xf32>
      %228 = vector.shape_cast %227 : vector<3xf32> to vector<3x1xf32>
      %cst_99 = arith.constant 3.200000e+01 : f32
      %229 = vector.broadcast %cst_99 : f32 to vector<3x1xf32>
      %230 = arith.divf %228, %229 : vector<3x1xf32>
      %cst_100 = arith.constant 9.99999974E-6 : f32
      %231 = vector.broadcast %cst_100 : f32 to vector<3x1xf32>
      %232 = arith.addf %230, %231 : vector<3x1xf32>
      %233 = math.rsqrt %232 : vector<3x1xf32>
      %234 = vector.broadcast %233 : vector<3x1xf32> to vector<3x32xf32>
      %235 = arith.mulf %225, %234 : vector<3x32xf32>
      %236 = vector.broadcast %218 : vector<1x32xf32> to vector<3x32xf32>
      %237 = arith.mulf %235, %236 : vector<3x32xf32>
      %238 = vector.broadcast %219 : vector<1x32xf32> to vector<3x32xf32>
      %239 = arith.addf %237, %238 : vector<3x32xf32>
      %c0_101 = arith.constant 0 : index
      %c0_102 = arith.constant 0 : index
      %240 = vector.load %arg19[%c0_101, %c0_102] : memref<32x16xf32, #tpu.memory_space<vmem>>, vector<32x16xf32>
      %cst_103 = arith.constant dense<0.000000e+00> : vector<3x16xf32>
      %241 = tpu.matmul %239, %240, %cst_103 {dimension_numbers = #tpu.dot_dimension_numbers<[1], [0], [0], [1], [0, 0, 1, 1], [], []>} : vector<3x32xf32>, vector<32x16xf32>, vector<3x16xf32> -> vector<3x16xf32>
      %c0_104 = arith.constant 0 : index
      %c0_105 = arith.constant 0 : index
      %242 = vector.load %arg20[%c0_104, %c0_105] : memref<3x16xf32, #tpu.memory_space<vmem>>, vector<3x16xf32>
      tpu.vector_store %arg20[%c0_104, %c0_105], %241 {strides = array<i32>} : memref<3x16xf32, #tpu.memory_space<vmem>>, vector<3x16xf32>,
    } else {
    }
    return
  }
  func.func @transform_0(%arg0: i32, %arg1: memref<3xi32, #tpu.memory_space<smem>>) -> (i32, i32, i32) {
    %c0_i32 = arith.constant 0 : i32
    %c0_i32_0 = arith.constant 0 : i32
    %c0_i32_1 = arith.constant 0 : i32
    %c0_i32_2 = arith.constant 0 : i32
    return %c0_i32, %c0_i32_0, %c0_i32_1 : i32, i32, i32
  }
  func.func @transform_1(%arg0: i32, %arg1: memref<3xi32, #tpu.memory_space<smem>>) -> (i32, i32, i32) {
    %c0_i32 = arith.constant 0 : i32
    %c0_i32_0 = arith.constant 0 : i32
    %c0_i32_1 = arith.constant 0 : i32
    %c0_i32_2 = arith.constant 0 : i32
    return %c0_i32, %c0_i32_0, %c0_i32_1 : i32, i32, i32
  }
  func.func @transform_2(%arg0: i32, %arg1: memref<3xi32, #tpu.memory_space<smem>>) -> (i32, i32, i32) {
    %c0_i32 = arith.constant 0 : i32
    %c0_i32_0 = arith.constant 0 : i32
    %c0_i32_1 = arith.constant 0 : i32
    %c0_i32_2 = arith.constant 0 : i32
    return %c0_i32, %c0_i32_0, %c0_i32_1 : i32, i32, i32
  }
  func.func @transform_3(%arg0: i32, %arg1: memref<3xi32, #tpu.memory_space<smem>>) -> (i32, i32, i32) {
    %c0_i32 = arith.constant 0 : i32
    %c0_i32_0 = arith.constant 0 : i32
    %c0_i32_1 = arith.constant 0 : i32
    return %arg0, %c0_i32, %c0_i32_0 : i32, i32, i32
  }
  func.func @transform_4(%arg0: i32, %arg1: memref<3xi32, #tpu.memory_space<smem>>) -> (i32, i32, i32) {
    %c0_i32 = arith.constant 0 : i32
    %c0_i32_0 = arith.constant 0 : i32
    %c0_i32_1 = arith.constant 0 : i32
    return %arg0, %c0_i32, %c0_i32_0 : i32, i32, i32
  }
  func.func @transform_5(%arg0: i32, %arg1: memref<3xi32, #tpu.memory_space<smem>>) -> (i32, i32, i32) {
    %c0_i32 = arith.constant 0 : i32
    %c0_i32_0 = arith.constant 0 : i32
    %c0_i32_1 = arith.constant 0 : i32
    return %arg0, %c0_i32, %c0_i32_0 : i32, i32, i32
  }
  func.func @transform_6(%arg0: i32, %arg1: memref<3xi32, #tpu.memory_space<smem>>) -> (i32, i32, i32) {
    %c0_i32 = arith.constant 0 : i32
    %c0_i32_0 = arith.constant 0 : i32
    %c0_i32_1 = arith.constant 0 : i32
    return %arg0, %c0_i32, %c0_i32_0 : i32, i32, i32
  }
  func.func @transform_7(%arg0: i32, %arg1: memref<3xi32, #tpu.memory_space<smem>>) -> (i32, i32, i32) {
    %c0_i32 = arith.constant 0 : i32
    %c0_i32_0 = arith.constant 0 : i32
    %c0_i32_1 = arith.constant 0 : i32
    return %arg0, %c0_i32, %c0_i32_0 : i32, i32, i32
  }
  func.func @transform_8(%arg0: i32, %arg1: memref<3xi32, #tpu.memory_space<smem>>) -> (i32, i32, i32) {
    %c0_i32 = arith.constant 0 : i32
    %c0_i32_0 = arith.constant 0 : i32
    %c0_i32_1 = arith.constant 0 : i32
    return %arg0, %c0_i32, %c0_i32_0 : i32, i32, i32
  }
  func.func @transform_9(%arg0: i32, %arg1: memref<3xi32, #tpu.memory_space<smem>>) -> (i32, i32, i32) {
    %c0_i32 = arith.constant 0 : i32
    %c0_i32_0 = arith.constant 0 : i32
    %c0_i32_1 = arith.constant 0 : i32
    return %arg0, %c0_i32, %c0_i32_0 : i32, i32, i32
  }
  func.func @transform_10(%arg0: i32, %arg1: memref<3xi32, #tpu.memory_space<smem>>) -> (i32, i32, i32) {
    %c0_i32 = arith.constant 0 : i32
    %c0_i32_0 = arith.constant 0 : i32
    %c0_i32_1 = arith.constant 0 : i32
    return %arg0, %c0_i32, %c0_i32_0 : i32, i32, i32
  }
  func.func @transform_11(%arg0: i32, %arg1: memref<3xi32, #tpu.memory_space<smem>>) -> (i32, i32, i32) {
    %c0_i32 = arith.constant 0 : i32
    %c0_i32_0 = arith.constant 0 : i32
    %c0_i32_1 = arith.constant 0 : i32
    return %arg0, %c0_i32, %c0_i32_0 : i32, i32, i32
  }
  func.func @transform_12(%arg0: i32, %arg1: memref<3xi32, #tpu.memory_space<smem>>) -> (i32, i32, i32) {
    %c0_i32 = arith.constant 0 : i32
    %c0_i32_0 = arith.constant 0 : i32
    %c0_i32_1 = arith.constant 0 : i32
    return %arg0, %c0_i32, %c0_i32_0 : i32, i32, i32
  }
  func.func @transform_13(%arg0: i32, %arg1: memref<3xi32, #tpu.memory_space<smem>>) -> (i32, i32, i32) {
    %c0_i32 = arith.constant 0 : i32
    %c0_i32_0 = arith.constant 0 : i32
    %c0_i32_1 = arith.constant 0 : i32
    return %arg0, %c0_i32, %c0_i32_0 : i32, i32, i32
  }
  func.func @transform_14(%arg0: i32, %arg1: memref<3xi32, #tpu.memory_space<smem>>) -> (i32, i32, i32) {
    %c0_i32 = arith.constant 0 : i32
    %c0_i32_0 = arith.constant 0 : i32
    %c0_i32_1 = arith.constant 0 : i32
    return %arg0, %c0_i32, %c0_i32_0 : i32, i32, i32
  }
  func.func @transform_15(%arg0: i32, %arg1: memref<3xi32, #tpu.memory_space<smem>>) -> (i32, i32) {
    %c0_i32 = arith.constant 0 : i32
    %c0_i32_0 = arith.constant 0 : i32
    %c0_i32_1 = arith.constant 0 : i32
    return %c0_i32, %c0_i32_0 : i32, i32
  }
  func.func @transform_16(%arg0: i32, %arg1: memref<3xi32, #tpu.memory_space<smem>>) -> (i32, i32) {
    %c0_i32 = arith.constant 0 : i32
    %c0_i32_0 = arith.constant 0 : i32
    %c0_i32_1 = arith.constant 0 : i32
    return %c0_i32, %c0_i32_0 : i32, i32
  }
  func.func @transform_17(%arg0: i32, %arg1: memref<3xi32, #tpu.memory_space<smem>>) -> (i32, i32) {
    %c0_i32 = arith.constant 0 : i32
    %c0_i32_0 = arith.constant 0 : i32
    %c0_i32_1 = arith.constant 0 : i32
    return %c0_i32, %c0_i32_0 : i32, i32
  }
  func.func @transform_18(%arg0: i32, %arg1: memref<3xi32, #tpu.memory_space<smem>>) -> (i32, i32) {
    %c0_i32 = arith.constant 0 : i32
    %c0_i32_0 = arith.constant 0 : i32
    %c0_i32_1 = arith.constant 0 : i32
    return %c0_i32, %c0_i32_0 : i32, i32
  }
}

</mosaic_0001>

<llo_original>
// kernel: forward.6
$region0: #{forward.6}
  #allocation0 [shape = 'u32[]', space=smem, size = 0x4, offset = 0x4, fixed_abs, tag = 'smem constant byte address 0x4 - core index']
  #allocation1 [shape = 'u32[144,128]{1,0:T(1,128)}', space=vmem, size = 0x12000, scoped, tag = 'internal scratch']
  %s0 = inlined_call_operand.vmem [shape: f32[2,32], index: 0, kind: input, shape index: {}]
  %s1 = inlined_call_operand.vmem [shape: f32[32,64], index: 1, kind: input, shape index: {}]
  %s2 = inlined_call_operand.vmem [shape: f32[1,64], index: 2, kind: input, shape index: {}]
  %s3 = inlined_call_operand.vmem [shape: f32[2,64], index: 3, kind: output, shape index: {}]
  %s4 = sld [smem:[#allocation0]]
  $region22: #{forward.6} parent=0
    _
  %s6 = ssub.s32 1, %s4
  %s7 = scalar_select 0, %s6, %s4
  // Predicated region
  $region2: #{forward.6} parent=0 // pred_check
    _
  $region3: #{forward.6} parent=0 // pred_check_branch
    %9 = sbr.rel (0) target = $region5
  $region4: #{forward.6} parent=0 // pred_region
    _
  $region5: #{forward.6} parent=0 // pred_fallthru
    _
  // Predicated region
  $region6: #{forward.6} parent=0 // pred_check
    _
  $region7: #{forward.6} parent=0 // pred_check_branch
    %11 = sbr.rel (0) target = $region9
  $region8: #{forward.6} parent=0 // pred_region
    _
  $region9: #{forward.6} parent=0 // pred_fallthru
    _
  // Predicated region
  $region10: #{forward.6} parent=0 // pred_check
    _
  $region11: #{forward.6} parent=0 // pred_check_branch
    %13 = sbr.rel (0) target = $region13
  $region12: #{forward.6} parent=0 // pred_region
    _
  $region13: #{forward.6} parent=0 // pred_fallthru
    _
  %v14 = vld [vmem:[%s0] sm:$0x3]
  %v15 = vld [vmem:[%s1] sm:$0xff]
  %v16 = vld [vmem:[%s1 + $0x8] sm:$0xff]
  %v17 = vld [vmem:[%s1 + $0x10] sm:$0xff]
  %v18 = vld [vmem:[%s1 + $0x18] sm:$0xff]
  %v19 = vld [vmem:[%s2] sm:$0x1]
  %v21 = vlaneseq
  %v22 = vshrl.u32 %v21, 7
  %v23 = vsub.s32 0, %v22
  %v24 = vrot.slane %v19, %v23
  %vm26 = vcmask 261120
  %v28 = vsel %vm26, %v14, 0
  %30 = vmatprep.subr.mxu0 0.0
  %31 = vmatpush1.msra.mxu0 %v15
  %32 = vmatprep.subr.mxu0 0.0
  %33 = vmatpush1.msra.mxu0 %v16
  %34 = vmatprep.subr.mxu0 0.0
  %35 = vmatpush1.msra.mxu0 %v17
  %36 = vmatprep.subr.mxu0 0.0
  %37 = vmatpush1.msra.mxu0 %v18
  %38 = vmatprep.subr.mxu0 0.0
  %39 = vmatpush1.msra.mxu0 0.0
  %40 = vmatprep.subr.mxu0 0.0
  %41 = vmatpush1.msra.mxu0 0.0
  %42 = vmatprep.subr.mxu0 0.0
  %43 = vmatpush1.msra.mxu0 0.0
  %44 = vmatprep.subr.mxu0 0.0
  %45 = vmatpush1.msra.mxu0 0.0
  %46 = vmatprep.subr.mxu0 0.0
  %47 = vmatpush1.msra.mxu0 0.0
  %48 = vmatprep.subr.mxu0 0.0
  %49 = vmatpush1.msra.mxu0 0.0
  %50 = vmatprep.subr.mxu0 0.0
  %51 = vmatpush1.msra.mxu0 0.0
  %52 = vmatprep.subr.mxu0 0.0
  %53 = vmatpush1.msra.mxu0 0.0
  %54 = vmatprep.subr.mxu0 0.0
  %55 = vmatpush1.msra.mxu0 0.0
  %56 = vmatprep.subr.mxu0 0.0
  %57 = vmatpush1.msra.mxu0 0.0
  %58 = vmatprep.subr.mxu0 0.0
  %59 = vmatpush1.msra.mxu0 0.0
  %60 = vmatprep.subr.mxu0 0.0
  %61 = vmatpush1.msra.mxu0 0.0
  %62 = vmatprep.subr.mxu0 0.0
  %63 = vmatpush1.msra.mxu0 0.0
  %64 = vmatprep.subr.mxu0 0.0
  %65 = vmatpush1.msra.mxu0 0.0
  %66 = vmatprep.subr.mxu0 0.0
  %67 = vmatpush1.msra.mxu0 0.0
  %68 = vmatprep.subr.mxu0 0.0
  %69 = vmatpush1.msra.mxu0 0.0
  %70 = vmatprep.subr.mxu0 0.0
  %71 = vmatpush1.msra.mxu0 0.0
  %72 = vmatprep.subr.mxu0 0.0
  %73 = vmatpush1.msra.mxu0 0.0
  %74 = vmatprep.subr.mxu0 0.0
  %75 = vmatpush1.msra.mxu0 0.0
  %76 = vmatprep.subr.mxu0 0.0
  %77 = vmatpush1.msra.mxu0 0.0
  %78 = vmatprep.subr.mxu0 0.0
  %79 = vmatpush1.msra.mxu0 0.0
  %80 = vmatprep.subr.mxu0 0.0
  %81 = vmatpush1.msra.mxu0 0.0
  %82 = vmatprep.subr.mxu0 0.0
  %83 = vmatpush1.msra.mxu0 0.0
  %84 = vmatprep.subr.mxu0 0.0
  %85 = vmatpush1.msra.mxu0 0.0
  %86 = vmatprep.subr.mxu0 0.0
  %87 = vmatpush1.msra.mxu0 0.0
  %88 = vmatprep.subr.mxu0 0.0
  %89 = vmatpush1.msra.mxu0 0.0
  %90 = vmatprep.subr.mxu0 0.0
  %91 = vmatpush1.msra.mxu0 0.0
  %92 = vmatprep.subr.mxu0 0.0
  %93 = vmatpush1.msra.mxu0 0.0
  %94 = vmatprep.mubr.f32.mxu0 0.0
  %95 = vmatmul.mubr.f32.gmra.mrb[0].mxu0 %v28
  %v96 = vpop.f32.mrb[0].mxu0
  %v97 = vadd.f32 %v24, %v96
  %v98 = vpop.f32.mrb[0].mxu0
  %99 = vdwg.mxu0
  %vm100 = vcmask 517120
  %101 = vst.msk [vmem:[%s3] sm:$0x3] %vm100, %v97
  // Predicated region
  $region14: #{forward.6} parent=0 // pred_check
    _
  $region15: #{forward.6} parent=0 // pred_check_branch
    %103 = sbr.rel (0) target = $region17
  $region16: #{forward.6} parent=0 // pred_region
    _
  $region17: #{forward.6} parent=0 // pred_fallthru
    _
  // Predicated region
  $region18: #{forward.6} parent=0 // pred_check
    _
  $region19: #{forward.6} parent=0 // pred_check_branch
    %105 = sbr.rel (0) target = $region21
  $region20: #{forward.6} parent=0 // pred_region
    _
  $region21: #{forward.6} parent=0 // pred_fallthru
    _

// kernel: forward.9
$region0: #{forward.9}
  #allocation0 [shape = 'u32[]', space=smem, size = 0x4, offset = 0x4, fixed_abs, tag = 'smem constant byte address 0x4 - core index']
  #allocation1 [shape = 'u32[144,128]{1,0:T(1,128)}', space=vmem, size = 0x12000, scoped, tag = 'internal scratch']
  %s0 = inlined_call_operand.vmem [shape: f32[8,192], index: 0, kind: input, shape index: {}]
  %s1 = inlined_call_operand.vmem [shape: f32[192,64], index: 1, kind: input, shape index: {}]
  %s2 = inlined_call_operand.vmem [shape: f32[8,64], index: 2, kind: output, shape index: {}]
  %s3 = sld [smem:[#allocation0]]
  $region18: #{forward.9} parent=0
    _
  %s5 = ssub.s32 1, %s3
  %s6 = scalar_select 0, %s5, %s3
  // Predicated region
  $region2: #{forward.9} parent=0 // pred_check
    _
  $region3: #{forward.9} parent=0 // pred_check_branch
    %8 = sbr.rel (0) target = $region5
  $region4: #{forward.9} parent=0 // pred_region
    _
  $region5: #{forward.9} parent=0 // pred_fallthru
    _
  // Predicated region
  $region6: #{forward.9} parent=0 // pred_check
    _
  $region7: #{forward.9} parent=0 // pred_check_branch
    %10 = sbr.rel (0) target = $region9
  $region8: #{forward.9} parent=0 // pred_region
    _
  $region9: #{forward.9} parent=0 // pred_fallthru
    _
  %v11 = vld [vmem:[%s0] sm:$0xff]
  %v12 = vld [vmem:[%s0 + $0x8] sm:$0xff]
  %v13 = vld [vmem:[%s1] sm:$0xff]
  %v14 = vld [vmem:[%s1 + $0x8] sm:$0xff]
  %v15 = vld [vmem:[%s1 + $0x10] sm:$0xff]
  %v16 = vld [vmem:[%s1 + $0x18] sm:$0xff]
  %v17 = vld [vmem:[%s1 + $0x20] sm:$0xff]
  %v18 = vld [vmem:[%s1 + $0x28] sm:$0xff]
  %v19 = vld [vmem:[%s1 + $0x30] sm:$0xff]
  %v20 = vld [vmem:[%s1 + $0x38] sm:$0xff]
  %v21 = vld [vmem:[%s1 + $0x40] sm:$0xff]
  %v22 = vld [vmem:[%s1 + $0x48] sm:$0xff]
  %v23 = vld [vmem:[%s1 + $0x50] sm:$0xff]
  %v24 = vld [vmem:[%s1 + $0x58] sm:$0xff]
  %v25 = vld [vmem:[%s1 + $0x60] sm:$0xff]
  %v26 = vld [vmem:[%s1 + $0x68] sm:$0xff]
  %v27 = vld [vmem:[%s1 + $0x70] sm:$0xff]
  %v28 = vld [vmem:[%s1 + $0x78] sm:$0xff]
  %v29 = vld [vmem:[%s1 + $0x80] sm:$0xff]
  %v30 = vld [vmem:[%s1 + $0x88] sm:$0xff]
  %v31 = vld [vmem:[%s1 + $0x90] sm:$0xff]
  %v32 = vld [vmem:[%s1 + $0x98] sm:$0xff]
  %v33 = vld [vmem:[%s1 + $0xa0] sm:$0xff]
  %v34 = vld [vmem:[%s1 + $0xa8] sm:$0xff]
  %v35 = vld [vmem:[%s1 + $0xb0] sm:$0xff]
  %v36 = vld [vmem:[%s1 + $0xb8] sm:$0xff]
  %vm37 = vcmask 523264
  %v39 = vsel %vm37, %v12, 0
  %41 = vmatprep.subr.mxu0 0.0
  %42 = vmatpush1.msra.mxu0 %v13
  %43 = vmatprep.subr.mxu0 0.0
  %44 = vmatpush1.msra.mxu0 %v14
  %45 = vmatprep.subr.mxu0 0.0
  %46 = vmatpush1.msra.mxu0 %v15
  %47 = vmatprep.subr.mxu0 0.0
  %48 = vmatpush1.msra.mxu0 %v16
  %49 = vmatprep.subr.mxu0 0.0
  %50 = vmatpush1.msra.mxu0 %v17
  %51 = vmatprep.subr.mxu0 0.0
  %52 = vmatpush1.msra.mxu0 %v18
  %53 = vmatprep.subr.mxu0 0.0
  %54 = vmatpush1.msra.mxu0 %v19
  %55 = vmatprep.subr.mxu0 0.0
  %56 = vmatpush1.msra.mxu0 %v20
  %57 = vmatprep.subr.mxu0 0.0
  %58 = vmatpush1.msra.mxu0 %v21
  %59 = vmatprep.subr.mxu0 0.0
  %60 = vmatpush1.msra.mxu0 %v22
  %61 = vmatprep.subr.mxu0 0.0
  %62 = vmatpush1.msra.mxu0 %v23
  %63 = vmatprep.subr.mxu0 0.0
  %64 = vmatpush1.msra.mxu0 %v24
  %65 = vmatprep.subr.mxu0 0.0
  %66 = vmatpush1.msra.mxu0 %v25
  %67 = vmatprep.subr.mxu0 0.0
  %68 = vmatpush1.msra.mxu0 %v26
  %69 = vmatprep.subr.mxu0 0.0
  %70 = vmatpush1.msra.mxu0 %v27
  %71 = vmatprep.subr.mxu0 0.0
  %72 = vmatpush1.msra.mxu0 %v28
  %73 = vmatprep.subr.mxu0 0.0
  %74 = vmatpush1.msra.mxu0 %v29
  %75 = vmatprep.subr.mxu0 0.0
  %76 = vmatpush1.msra.mxu0 %v30
  %77 = vmatprep.subr.mxu0 0.0
  %78 = vmatpush1.msra.mxu0 %v31
  %79 = vmatprep.subr.mxu0 0.0
  %80 = vmatpush1.msra.mxu0 %v32
  %81 = vmatprep.subr.mxu0 0.0
  %82 = vmatpush1.msra.mxu0 %v33
  %83 = vmatprep.subr.mxu0 0.0
  %84 = vmatpush1.msra.mxu0 %v34
  %85 = vmatprep.subr.mxu0 0.0
  %86 = vmatpush1.msra.mxu0 %v35
  %87 = vmatprep.subr.mxu0 0.0
  %88 = vmatpush1.msra.mxu0 %v36
  %89 = vmatprep.subr.mxu0 0.0
  %90 = vmatpush1.msra.mxu0 0.0
  %91 = vmatprep.subr.mxu0 0.0
  %92 = vmatpush1.msra.mxu0 0.0
  %93 = vmatprep.subr.mxu0 0.0
  %94 = vmatpush1.msra.mxu0 0.0
  %95 = vmatprep.subr.mxu0 0.0
  %96 = vmatpush1.msra.mxu0 0.0
  %97 = vmatprep.subr.mxu0 0.0
  %98 = vmatpush1.msra.mxu0 0.0
  %99 = vmatprep.subr.mxu0 0.0
  %100 = vmatpush1.msra.mxu0 0.0
  %101 = vmatprep.subr.mxu0 0.0
  %102 = vmatpush1.msra.mxu0 0.0
  %103 = vmatprep.subr.mxu0 0.0
  %104 = vmatpush1.msra.mxu0 0.0
  %105 = vmatprep.mubr.f32.mxu0 %v39
  %106 = vmatmul.mubr.f32.gmra.mrb[0].mxu0 %v11
  %v107 = vpop.f32.mrb[0].mxu0
  %v108 = vadd.f32 0.0, %v107
  %v109 = vpop.f32.mrb[0].mxu0
  %110 = vdwg.mxu0
  %111 = vst.msk [vmem:[%s2] sm:$0xff] %vm37, %v108
  // Predicated region
  $region10: #{forward.9} parent=0 // pred_check
    _
  $region11: #{forward.9} parent=0 // pred_check_branch
    %113 = sbr.rel (0) target = $region13
  $region12: #{forward.9} parent=0 // pred_region
    _
  $region13: #{forward.9} parent=0 // pred_fallthru
    _
  // Predicated region
  $region14: #{forward.9} parent=0 // pred_check
    _
  $region15: #{forward.9} parent=0 // pred_check_branch
    %115 = sbr.rel (0) target = $region17
  $region16: #{forward.9} parent=0 // pred_region
    _
  $region17: #{forward.9} parent=0 // pred_fallthru
    _

// kernel: forward.11
$region0: #{forward.11}
  #allocation0 [shape = 'u32[]', space=smem, size = 0x4, offset = 0x4, fixed_abs, tag = 'smem constant byte address 0x4 - core index']
  #allocation1 [shape = 'u32[144,128]{1,0:T(1,128)}', space=vmem, size = 0x12000, scoped, tag = 'internal scratch']
  #allocation2 [shape = 'f32[1,1]{1,0:T(1,128)S(1)}', space=vmem, size = 0x200, scoped, tag = 'scoped memory for forward.11']
  %s0 = inlined_call_operand.vmem [shape: f32[2,16], index: 0, kind: input, shape index: {}]
  %s1 = inlined_call_operand.vmem [shape: f32[3,16], index: 1, kind: input, shape index: {}]
  %s2 = inlined_call_operand.<no memory space> [shape: f32[1,1], index: 2, kind: input, shape index: {}]
  %s3 = inlined_call_operand.hbm [shape: f32[2,3], index: 3, kind: output, shape index: {}]
  %s4 = sld [smem:[#allocation0]]
  $region22: #{forward.11} parent=0
    _
  %s6 = ssub.s32 1, %s4
  %s7 = scalar_select 0, %s6, %s4
  %v8 = vstv %s2
  %9 = vst [vmem:[#allocation2] sm:$0x1] %v8
  $region1: #{forward.11} parent=0
    #allocation3 [shape = 'u8[1024]{0}', space=vmem, size = 0x400, scoped, tag = 'output window, operand 0, single buffered']
    #allocation4 [shape = 's32[1]{0}', space=sflag, size = 0x4, scoped, tag = 'scoped memory for forward.11']
    %10 = vsyncpa [#allocation4], 0
    // Predicated region
    $region2: #{forward.11} parent=1 // pred_check
      _
    $region3: #{forward.11} parent=1 // pred_check_branch
      %12 = sbr.rel (0) target = $region5
    $region4: #{forward.11} parent=1 // pred_region
      _
    $region5: #{forward.11} parent=1 // pred_fallthru
      _
    // Predicated region
    $region6: #{forward.11} parent=1 // pred_check
      _
    $region7: #{forward.11} parent=1 // pred_check_branch
      %14 = sbr.rel (0) target = $region9
    $region8: #{forward.11} parent=1 // pred_region
      _
    $region9: #{forward.11} parent=1 // pred_fallthru
      _
    // Predicated region
    $region10: #{forward.11} parent=1 // pred_check
      _
    $region11: #{forward.11} parent=1 // pred_check_branch
      %16 = sbr.rel (0) target = $region13
    $region12: #{forward.11} parent=1 // pred_region
      _
    $region13: #{forward.11} parent=1 // pred_fallthru
      _
    %v17 = vld [vmem:[%s0] sm:$0x3]
    %v18 = vld [vmem:[%s1] sm:$0x7]
    %v19 = vmul.f32 %v17, %v17
    %vm20 = vcmask 123904
    %v21 = vsel %vm20, %v19, 0.0
    %22 = vadd.xlane.f32.xlu0 %v21
    %v23 = vpop.xlane.xlu0 %22
    %v24 = vmax.f32 %v23, 1e-12
    %v25 = vrsqrt.pop %v24
    %v26 = vmul.f32 %v17, %v25
    %v27 = vmul.f32 %v18, %v18
    %vm28 = vcmask 124928
    %v29 = vsel %vm28, %v27, 0.0
    %30 = vadd.xlane.f32.xlu0 %v29
    %v31 = vpop.xlane.xlu0 %30
    %v32 = vmax.f32 %v31, 1e-12
    %v33 = vrsqrt.pop %v32
    %v34 = vmul.f32 %v18, %v33
    %v35 = vld [vmem:[#allocation2] sm:$0x1]
    %s36 = vtos %v35
    %v37 = vstv %s36
    %v38 = vmul.f32 %v37, 1.442695
    %v39 = vpow.pop %v38
    %s40 = vtos %v39
    %vm41 = vcmask 130048
    %v43 = vsel %vm41, %v26, 0
    %v46 = vsel %vm41, %v34, 0
    %48 = vmatprep.subr.mxu0 0.0
    %49 = vmatpush1.xpose.msra.mxu0 %v46
    %50 = vmatprep.subr.mxu0 0.0
    %51 = vmatpush1.xpose.msra.mxu0 0.0
    %52 = vmatprep.subr.mxu0 0.0
    %53 = vmatpush1.xpose.msra.mxu0 0.0
    %54 = vmatprep.subr.mxu0 0.0
    %55 = vmatpush1.xpose.msra.mxu0 0.0
    %56 = vmatprep.subr.mxu0 0.0
    %57 = vmatpush1.xpose.msra.mxu0 0.0
    %58 = vmatprep.subr.mxu0 0.0
    %59 = vmatpush1.xpose.msra.mxu0 0.0
    %60 = vmatprep.subr.mxu0 0.0
    %61 = vmatpush1.xpose.msra.mxu0 0.0
    %62 = vmatprep.subr.mxu0 0.0
    %63 = vmatpush1.xpose.msra.mxu0 0.0
    %64 = vmatprep.subr.mxu0 0.0
    %65 = vmatpush1.xpose.msra.mxu0 0.0
    %66 = vmatprep.subr.mxu0 0.0
    %67 = vmatpush1.xpose.msra.mxu0 0.0
    %68 = vmatprep.subr.mxu0 0.0
    %69 = vmatpush1.xpose.msra.mxu0 0.0
    %70 = vmatprep.subr.mxu0 0.0
    %71 = vmatpush1.xpose.msra.mxu0 0.0
    %72 = vmatprep.subr.mxu0 0.0
    %73 = vmatpush1.xpose.msra.mxu0 0.0
    %74 = vmatprep.subr.mxu0 0.0
    %75 = vmatpush1.xpose.msra.mxu0 0.0
    %76 = vmatprep.subr.mxu0 0.0
    %77 = vmatpush1.xpose.msra.mxu0 0.0
    %78 = vmatprep.subr.mxu0 0.0
    %79 = vmatpush1.xpose.msra.mxu0 0.0
    %80 = vmatprep.subr.mxu0 0.0
    %81 = vmatpush1.xpose.msra.mxu0 0.0
    %82 = vmatprep.subr.mxu0 0.0
    %83 = vmatpush1.xpose.msra.mxu0 0.0
    %84 = vmatprep.subr.mxu0 0.0
    %85 = vmatpush1.xpose.msra.mxu0 0.0
    %86 = vmatprep.subr.mxu0 0.0
    %87 = vmatpush1.xpose.msra.mxu0 0.0
    %88 = vmatprep.subr.mxu0 0.0
    %89 = vmatpush1.xpose.msra.mxu0 0.0
    %90 = vmatprep.subr.mxu0 0.0
    %91 = vmatpush1.xpose.msra.mxu0 0.0
    %92 = vmatprep.subr.mxu0 0.0
    %93 = vmatpush1.xpose.msra.mxu0 0.0
    %94 = vmatprep.subr.mxu0 0.0
    %95 = vmatpush1.xpose.msra.mxu0 0.0
    %96 = vmatprep.subr.mxu0 0.0
    %97 = vmatpush1.xpose.msra.mxu0 0.0
    %98 = vmatprep.subr.mxu0 0.0
    %99 = vmatpush1.xpose.msra.mxu0 0.0
    %100 = vmatprep.subr.mxu0 0.0
    %101 = vmatpush1.xpose.msra.mxu0 0.0
    %102 = vmatprep.subr.mxu0 0.0
    %103 = vmatpush1.xpose.msra.mxu0 0.0
    %104 = vmatprep.subr.mxu0 0.0
    %105 = vmatpush1.xpose.msra.mxu0 0.0
    %106 = vmatprep.subr.mxu0 0.0
    %107 = vmatpush1.xpose.msra.mxu0 0.0
    %108 = vmatprep.subr.mxu0 0.0
    %109 = vmatpush1.xpose.msra.mxu0 0.0
    %110 = vmatprep.subr.mxu0 0.0
    %111 = vmatpush1.xpose.msra.mxu0 0.0
    %112 = vmatprep.mubr.f32.mxu0 0.0
    %113 = vmatmul.mubr.f32.gmra.mrb[0].mxu0 %v43
    %v114 = vpop.f32.mrb[0].mxu0
    %v115 = vadd.f32 0.0, %v114
    %v116 = vpop.f32.mrb[0].mxu0
    %117 = vdwg.mxu0
    %v118 = vstv %s40
    %v119 = vmul.f32 %v118, %v115
    %vm120 = vcmask 17408
    %121 = vst.msk [vmem:[#allocation3] sm:$0x3] %vm120, %v119
    // Predicated region
    $region14: #{forward.11} parent=1 // pred_check
      _
    $region15: #{forward.11} parent=1 // pred_check_branch
      %123 = sbr.rel (0) target = $region17
    $region16: #{forward.11} parent=1 // pred_region
      %s125 = ssub.s32 32, 32
      %126 = vsyncadd [#allocation4], %s125
      %s128 = sshll.u32 [#allocation3], 4
      %s129 = int_to_ptr.vmem [resolvable:$true] %s128
      %131 = dma.vmem_to_hbm [thread:$0]  %s129, 32, %s3, [#allocation4]
    $region17: #{forward.11} parent=1 // pred_fallthru
      _
    // Predicated region
    $region18: #{forward.11} parent=1 // pred_check
      _
    $region19: #{forward.11} parent=1 // pred_check_branch
      %133 = sbr.rel (0) target = $region21
    $region20: #{forward.11} parent=1 // pred_region
      %134 = dma.done [#allocation4], 32
    $region21: #{forward.11} parent=1 // pred_fallthru
      _
    %135 = vsyncpa [#allocation4], 1

// kernel: forward.8
$region0: #{forward.8}
  #allocation0 [shape = 'u32[]', space=smem, size = 0x4, offset = 0x4, fixed_abs, tag = 'smem constant byte address 0x4 - core index']
  #allocation1 [shape = 'u32[144,128]{1,0:T(1,128)}', space=vmem, size = 0x12000, scoped, tag = 'internal scratch']
  #allocation2 [shape = 'f32[3,8,32]{2,1,0:T(8,128)}', space=vmem, size = 0x3000, scoped, tag = 'scratch operand']
  #allocation3 [shape = 's32[1]{0}', space=sflag, size = 0x4, scoped, tag = 'scoped memory for forward.8']
  #allocation4 [shape = 'u8[512]{0}', space=smem, size = 0x200, scoped, tag = 'prefetched SMEM operand 0']
  %s0 = inlined_call_operand.vmem [shape: s32[3], index: 0, kind: input, shape index: {}]
  %s1 = inlined_call_operand.vmem [shape: f32[3,8,32], index: 1, kind: input, shape index: {}]
  %s2 = inlined_call_operand.vmem [shape: f32[1,8,32], index: 2, kind: input, shape index: {}]
  %s3 = inlined_call_operand.vmem [shape: f32[1,2,32], index: 3, kind: input, shape index: {}]
  %s4 = inlined_call_operand.vmem [shape: f32[2,1,32], index: 4, kind: input, shape index: {}, may-alias: {4,10}]
  %s5 = inlined_call_operand.vmem [shape: f32[2,1,32], index: 5, kind: input, shape index: {}, may-alias: {5,9,11,15}]
  %s6 = inlined_call_operand.vmem [shape: bf16[2,32,96], index: 6, kind: input, shape index: {}]
  %s7 = inlined_call_operand.vmem [shape: f32[2,1,96], index: 7, kind: input, shape index: {}]
  %s8 = inlined_call_operand.vmem [shape: bf16[2,32,32], index: 8, kind: input, shape index: {}]
  %s9 = inlined_call_operand.vmem [shape: f32[2,1,32], index: 9, kind: input, shape index: {}, may-alias: {5,9,11,15}]
  %s10 = inlined_call_operand.vmem [shape: f32[2,1,32], index: 10, kind: input, shape index: {}, may-alias: {4,10}]
  %s11 = inlined_call_operand.vmem [shape: f32[2,1,32], index: 11, kind: input, shape index: {}, may-alias: {5,9,11,15}]
  %s12 = inlined_call_operand.vmem [shape: bf16[2,32,128], index: 12, kind: input, shape index: {}]
  %s13 = inlined_call_operand.vmem [shape: f32[2,1,128], index: 13, kind: input, shape index: {}]
  %s14 = inlined_call_operand.vmem [shape: bf16[2,128,32], index: 14, kind: input, shape index: {}]
  %s15 = inlined_call_operand.vmem [shape: f32[2,1,32], index: 15, kind: input, shape index: {}, may-alias: {5,9,11,15}]
  %s16 = inlined_call_operand.vmem [shape: f32[1,32], index: 16, kind: input, shape index: {}]
  %s17 = inlined_call_operand.vmem [shape: f32[1,32], index: 17, kind: input, shape index: {}]
  %s18 = inlined_call_operand.vmem [shape: f32[32,16], index: 18, kind: input, shape index: {}]
  %s19 = inlined_call_operand.vmem [shape: f32[3,16], index: 19, kind: output, shape index: {}]
  %s20 = sld [smem:[#allocation0]]
  $region117: #{forward.8} parent=0
    _
  %s22 = ssub.s32 1, %s20
  %s23 = scalar_select 0, %s22, %s20
  %s24 = sshll.u32 %s0, 4
  %s25 = int_to_ptr.vmem [resolvable:$true] %s24
  %27 = dma.vmem_to_smem %s25, 16, [#allocation4], [#allocation3]
  %28 = dma.done [#allocation3], 16
  %29 = sfence
  loop: start=0, step=1, limit=4
  $region2: #{forward.8} parent=0 // loop_pre_header
    _
  $region3: #{forward.8} parent=0 // loop_header
    %s31 = sphi 0, %s35
    %p32 = scmp.ge.s32.totalorder %s31, 4
    %s39 = sphi 0, %s39
    %s41 = sphi 0, %s39
    %s42 = sphi 0, %s41
    %s56 = sphi 0, %s42
    %s60 = sphi 0, %s60
    %s62 = sphi 0, %s60
    %s63 = sphi 0, %s62
    %s77 = sphi 0, %s63
    %s81 = sphi 0, %s81
    %s83 = sphi 0, %s81
    %s84 = sphi 0, %s83
    %s98 = sphi 0, %s84
    %s104 = sphi 0, %s106
    %s107 = sphi 0, %s104
    %s108 = sphi 0, %s107
    %s124 = sphi 0, %s108
    %s130 = sphi 0, %s132
    %s133 = sphi 0, %s130
    %s134 = sphi 0, %s133
    %s150 = sphi 0, %s134
    %s156 = sphi 0, %s158
    %s159 = sphi 0, %s156
    %s160 = sphi 0, %s159
    %s176 = sphi 0, %s160
    %s182 = sphi 0, %s184
    %s185 = sphi 0, %s182
    %s186 = sphi 0, %s185
    %s202 = sphi 0, %s186
    %s208 = sphi 0, %s210
    %s211 = sphi 0, %s208
    %s212 = sphi 0, %s211
    %s228 = sphi 0, %s212
    %s234 = sphi 0, %s236
    %s237 = sphi 0, %s234
    %s238 = sphi 0, %s237
    %s254 = sphi 0, %s238
    %s260 = sphi 0, %s262
    %s263 = sphi 0, %s260
    %s264 = sphi 0, %s263
    %s280 = sphi 0, %s264
    %s286 = sphi 0, %s288
    %s289 = sphi 0, %s286
    %s290 = sphi 0, %s289
    %s306 = sphi 0, %s290
    %s312 = sphi 0, %s314
    %s315 = sphi 0, %s312
    %s316 = sphi 0, %s315
    %s332 = sphi 0, %s316
    %s338 = sphi 0, %s340
    %s341 = sphi 0, %s338
    %s342 = sphi 0, %s341
    %s358 = sphi 0, %s342
    %s364 = sphi 0, %s366
    %s367 = sphi 0, %s364
    %s368 = sphi 0, %s367
    %s384 = sphi 0, %s368
    %s390 = sphi 0, %s392
    %s393 = sphi 0, %s390
    %s394 = sphi 0, %s393
    %s410 = sphi 0, %s394
    %s414 = sphi 0, %s414
    %s416 = sphi 0, %s414
    %s417 = sphi 0, %s416
    %s431 = sphi 0, %s417
    %s435 = sphi 0, %s435
    %s437 = sphi 0, %s435
    %s438 = sphi 0, %s437
    %s452 = sphi 0, %s438
    %s456 = sphi 0, %s456
    %s458 = sphi 0, %s456
    %s459 = sphi 0, %s458
    %s473 = sphi 0, %s459
    %s477 = sphi 0, %s477
    %s479 = sphi 0, %s477
    %s480 = sphi 0, %s479
    %s494 = sphi 0, %s480
  $region4: #{forward.8} parent=0 // loop_header_branch
    %34 = sbr.rel (%p32) target = $region8
  $region5: #{forward.8} parent=0 // loop_body
    %s36 = ssub.s32 %s31, 1
    %s37 = ssub.s32 %s31, 2
    %s38 = sadd.s32 %s31, 1
    %s40 = sadd.s32 %s39, 1
    %p43 = scmp.eq.s32.totalorder %s31, 1
    %p44 = scmp.ne.s32.totalorder %s39, %s41
    %p45 = scmp.eq.s32.totalorder %s31, 0
    %p46 = por %p44, %p45
    %p47 = scmp.ne.s32.totalorder %s39, %s41
    %p48 = scmp.eq.s32.totalorder %s36, 1
    %p49 = por %p47, %p48
    %p50 = scmp.ne.s32.totalorder %s41, %s42
    %p51 = scmp.eq.s32.totalorder %s36, 0
    %p52 = por %p50, %p51
    %p53 = scmp.ne.s32.totalorder %s41, %s42
    %p54 = scmp.eq.s32.totalorder %s37, 1
    %p55 = por %p53, %p54
    %p57 = scmp.ne.s32.totalorder %s42, %s56
    %p58 = scmp.eq.s32.totalorder %s37, 0
    %p59 = por %p57, %p58
    %s61 = sadd.s32 %s60, 1
    %p64 = scmp.eq.s32.totalorder %s31, 1
    %p65 = scmp.ne.s32.totalorder %s60, %s62
    %p66 = scmp.eq.s32.totalorder %s31, 0
    %p67 = por %p65, %p66
    %p68 = scmp.ne.s32.totalorder %s60, %s62
    %p69 = scmp.eq.s32.totalorder %s36, 1
    %p70 = por %p68, %p69
    %p71 = scmp.ne.s32.totalorder %s62, %s63
    %p72 = scmp.eq.s32.totalorder %s36, 0
    %p73 = por %p71, %p72
    %p74 = scmp.ne.s32.totalorder %s62, %s63
    %p75 = scmp.eq.s32.totalorder %s37, 1
    %p76 = por %p74, %p75
    %p78 = scmp.ne.s32.totalorder %s63, %s77
    %p79 = scmp.eq.s32.totalorder %s37, 0
    %p80 = por %p78, %p79
    %s82 = sadd.s32 %s81, 1
    %p85 = scmp.eq.s32.totalorder %s31, 1
    %p86 = scmp.ne.s32.totalorder %s81, %s83
    %p87 = scmp.eq.s32.totalorder %s31, 0
    %p88 = por %p86, %p87
    %p89 = scmp.ne.s32.totalorder %s81, %s83
    %p90 = scmp.eq.s32.totalorder %s36, 1
    %p91 = por %p89, %p90
    %p92 = scmp.ne.s32.totalorder %s83, %s84
    %p93 = scmp.eq.s32.totalorder %s36, 0
    %p94 = por %p92, %p93
    %p95 = scmp.ne.s32.totalorder %s83, %s84
    %p96 = scmp.eq.s32.totalorder %s37, 1
    %p97 = por %p95, %p96
    %p99 = scmp.ne.s32.totalorder %s84, %s98
    %p100 = scmp.eq.s32.totalorder %s37, 0
    %p101 = por %p99, %p100
    %s102 = ssub.s32 %s31, %s38
    %p103 = scmp.eq.s32.totalorder %s102, 0
    %s105 = sadd.s32 %s104, 1
    %s106 = scalar_select %p103, %s104, %s105
    %p109 = pneg %p103
    %p110 = scmp.eq.s32.totalorder %s31, 1
    %p111 = por %p109, %p110
    %p112 = scmp.ne.s32.totalorder %s104, %s107
    %p113 = scmp.eq.s32.totalorder %s31, 0
    %p114 = por %p112, %p113
    %p115 = scmp.ne.s32.totalorder %s104, %s107
    %p116 = scmp.eq.s32.totalorder %s36, 1
    %p117 = por %p115, %p116
    %p118 = scmp.ne.s32.totalorder %s107, %s108
    %p119 = scmp.eq.s32.totalorder %s36, 0
    %p120 = por %p118, %p119
    %p121 = scmp.ne.s32.totalorder %s107, %s108
    %p122 = scmp.eq.s32.totalorder %s37, 1
    %p123 = por %p121, %p122
    %p125 = scmp.ne.s32.totalorder %s108, %s124
    %p126 = scmp.eq.s32.totalorder %s37, 0
    %p127 = por %p125, %p126
    %s128 = ssub.s32 %s31, %s38
    %p129 = scmp.eq.s32.totalorder %s128, 0
    %s131 = sadd.s32 %s130, 1
    %s132 = scalar_select %p129, %s130, %s131
    %p135 = pneg %p129
    %p136 = scmp.eq.s32.totalorder %s31, 1
    %p137 = por %p135, %p136
    %p138 = scmp.ne.s32.totalorder %s130, %s133
    %p139 = scmp.eq.s32.totalorder %s31, 0
    %p140 = por %p138, %p139
    %p141 = scmp.ne.s32.totalorder %s130, %s133
    %p142 = scmp.eq.s32.totalorder %s36, 1
    %p143 = por %p141, %p142
    %p144 = scmp.ne.s32.totalorder %s133, %s134
    %p145 = scmp.eq.s32.totalorder %s36, 0
    %p146 = por %p144, %p145
    %p147 = scmp.ne.s32.totalorder %s133, %s134
    %p148 = scmp.eq.s32.totalorder %s37, 1
    %p149 = por %p147, %p148
    %p151 = scmp.ne.s32.totalorder %s134, %s150
    %p152 = scmp.eq.s32.totalorder %s37, 0
    %p153 = por %p151, %p152
    %s154 = ssub.s32 %s31, %s38
    %p155 = scmp.eq.s32.totalorder %s154, 0
    %s157 = sadd.s32 %s156, 1
    %s158 = scalar_select %p155, %s156, %s157
    %p161 = pneg %p155
    %p162 = scmp.eq.s32.totalorder %s31, 1
    %p163 = por %p161, %p162
    %p164 = scmp.ne.s32.totalorder %s156, %s159
    %p165 = scmp.eq.s32.totalorder %s31, 0
    %p166 = por %p164, %p165
    %p167 = scmp.ne.s32.totalorder %s156, %s159
    %p168 = scmp.eq.s32.totalorder %s36, 1
    %p169 = por %p167, %p168
    %p170 = scmp.ne.s32.totalorder %s159, %s160
    %p171 = scmp.eq.s32.totalorder %s36, 0
    %p172 = por %p170, %p171
    %p173 = scmp.ne.s32.totalorder %s159, %s160
    %p174 = scmp.eq.s32.totalorder %s37, 1
    %p175 = por %p173, %p174
    %p177 = scmp.ne.s32.totalorder %s160, %s176
    %p178 = scmp.eq.s32.totalorder %s37, 0
    %p179 = por %p177, %p178
    %s180 = ssub.s32 %s31, %s38
    %p181 = scmp.eq.s32.totalorder %s180, 0
    %s183 = sadd.s32 %s182, 1
    %s184 = scalar_select %p181, %s182, %s183
    %p187 = pneg %p181
    %p188 = scmp.eq.s32.totalorder %s31, 1
    %p189 = por %p187, %p188
    %p190 = scmp.ne.s32.totalorder %s182, %s185
    %p191 = scmp.eq.s32.totalorder %s31, 0
    %p192 = por %p190, %p191
    %p193 = scmp.ne.s32.totalorder %s182, %s185
    %p194 = scmp.eq.s32.totalorder %s36, 1
    %p195 = por %p193, %p194
    %p196 = scmp.ne.s32.totalorder %s185, %s186
    %p197 = scmp.eq.s32.totalorder %s36, 0
    %p198 = por %p196, %p197
    %p199 = scmp.ne.s32.totalorder %s185, %s186
    %p200 = scmp.eq.s32.totalorder %s37, 1
    %p201 = por %p199, %p200
    %p203 = scmp.ne.s32.totalorder %s186, %s202
    %p204 = scmp.eq.s32.totalorder %s37, 0
    %p205 = por %p203, %p204
    %s206 = ssub.s32 %s31, %s38
    %p207 = scmp.eq.s32.totalorder %s206, 0
    %s209 = sadd.s32 %s208, 1
    %s210 = scalar_select %p207, %s208, %s209
    %p213 = pneg %p207
    %p214 = scmp.eq.s32.totalorder %s31, 1
    %p215 = por %p213, %p214
    %p216 = scmp.ne.s32.totalorder %s208, %s211
    %p217 = scmp.eq.s32.totalorder %s31, 0
    %p218 = por %p216, %p217
    %p219 = scmp.ne.s32.totalorder %s208, %s211
    %p220 = scmp.eq.s32.totalorder %s36, 1
    %p221 = por %p219, %p220
    %p222 = scmp.ne.s32.totalorder %s211, %s212
    %p223 = scmp.eq.s32.totalorder %s36, 0
    %p224 = por %p222, %p223
    %p225 = scmp.ne.s32.totalorder %s211, %s212
    %p226 = scmp.eq.s32.totalorder %s37, 1
    %p227 = por %p225, %p226
    %p229 = scmp.ne.s32.totalorder %s212, %s228
    %p230 = scmp.eq.s32.totalorder %s37, 0
    %p231 = por %p229, %p230
    %s232 = ssub.s32 %s31, %s38
    %p233 = scmp.eq.s32.totalorder %s232, 0
    %s235 = sadd.s32 %s234, 1
    %s236 = scalar_select %p233, %s234, %s235
    %p239 = pneg %p233
    %p240 = scmp.eq.s32.totalorder %s31, 1
    %p241 = por %p239, %p240
    %p242 = scmp.ne.s32.totalorder %s234, %s237
    %p243 = scmp.eq.s32.totalorder %s31, 0
    %p244 = por %p242, %p243
    %p245 = scmp.ne.s32.totalorder %s234, %s237
    %p246 = scmp.eq.s32.totalorder %s36, 1
    %p247 = por %p245, %p246
    %p248 = scmp.ne.s32.totalorder %s237, %s238
    %p249 = scmp.eq.s32.totalorder %s36, 0
    %p250 = por %p248, %p249
    %p251 = scmp.ne.s32.totalorder %s237, %s238
    %p252 = scmp.eq.s32.totalorder %s37, 1
    %p253 = por %p251, %p252
    %p255 = scmp.ne.s32.totalorder %s238, %s254
    %p256 = scmp.eq.s32.totalorder %s37, 0
    %p257 = por %p255, %p256
    %s258 = ssub.s32 %s31, %s38
    %p259 = scmp.eq.s32.totalorder %s258, 0
    %s261 = sadd.s32 %s260, 1
    %s262 = scalar_select %p259, %s260, %s261
    %p265 = pneg %p259
    %p266 = scmp.eq.s32.totalorder %s31, 1
    %p267 = por %p265, %p266
    %p268 = scmp.ne.s32.totalorder %s260, %s263
    %p269 = scmp.eq.s32.totalorder %s31, 0
    %p270 = por %p268, %p269
    %p271 = scmp.ne.s32.totalorder %s260, %s263
    %p272 = scmp.eq.s32.totalorder %s36, 1
    %p273 = por %p271, %p272
    %p274 = scmp.ne.s32.totalorder %s263, %s264
    %p275 = scmp.eq.s32.totalorder %s36, 0
    %p276 = por %p274, %p275
    %p277 = scmp.ne.s32.totalorder %s263, %s264
    %p278 = scmp.eq.s32.totalorder %s37, 1
    %p279 = por %p277, %p278
    %p281 = scmp.ne.s32.totalorder %s264, %s280
    %p282 = scmp.eq.s32.totalorder %s37, 0
    %p283 = por %p281, %p282
    %s284 = ssub.s32 %s31, %s38
    %p285 = scmp.eq.s32.totalorder %s284, 0
    %s287 = sadd.s32 %s286, 1
    %s288 = scalar_select %p285, %s286, %s287
    %p291 = pneg %p285
    %p292 = scmp.eq.s32.totalorder %s31, 1
    %p293 = por %p291, %p292
    %p294 = scmp.ne.s32.totalorder %s286, %s289
    %p295 = scmp.eq.s32.totalorder %s31, 0
    %p296 = por %p294, %p295
    %p297 = scmp.ne.s32.totalorder %s286, %s289
    %p298 = scmp.eq.s32.totalorder %s36, 1
    %p299 = por %p297, %p298
    %p300 = scmp.ne.s32.totalorder %s289, %s290
    %p301 = scmp.eq.s32.totalorder %s36, 0
    %p302 = por %p300, %p301
    %p303 = scmp.ne.s32.totalorder %s289, %s290
    %p304 = scmp.eq.s32.totalorder %s37, 1
    %p305 = por %p303, %p304
    %p307 = scmp.ne.s32.totalorder %s290, %s306
    %p308 = scmp.eq.s32.totalorder %s37, 0
    %p309 = por %p307, %p308
    %s310 = ssub.s32 %s31, %s38
    %p311 = scmp.eq.s32.totalorder %s310, 0
    %s313 = sadd.s32 %s312, 1
    %s314 = scalar_select %p311, %s312, %s313
    %p317 = pneg %p311
    %p318 = scmp.eq.s32.totalorder %s31, 1
    %p319 = por %p317, %p318
    %p320 = scmp.ne.s32.totalorder %s312, %s315
    %p321 = scmp.eq.s32.totalorder %s31, 0
    %p322 = por %p320, %p321
    %p323 = scmp.ne.s32.totalorder %s312, %s315
    %p324 = scmp.eq.s32.totalorder %s36, 1
    %p325 = por %p323, %p324
    %p326 = scmp.ne.s32.totalorder %s315, %s316
    %p327 = scmp.eq.s32.totalorder %s36, 0
    %p328 = por %p326, %p327
    %p329 = scmp.ne.s32.totalorder %s315, %s316
    %p330 = scmp.eq.s32.totalorder %s37, 1
    %p331 = por %p329, %p330
    %p333 = scmp.ne.s32.totalorder %s316, %s332
    %p334 = scmp.eq.s32.totalorder %s37, 0
    %p335 = por %p333, %p334
    %s336 = ssub.s32 %s31, %s38
    %p337 = scmp.eq.s32.totalorder %s336, 0
    %s339 = sadd.s32 %s338, 1
    %s340 = scalar_select %p337, %s338, %s339
    %p343 = pneg %p337
    %p344 = scmp.eq.s32.totalorder %s31, 1
    %p345 = por %p343, %p344
    %p346 = scmp.ne.s32.totalorder %s338, %s341
    %p347 = scmp.eq.s32.totalorder %s31, 0
    %p348 = por %p346, %p347
    %p349 = scmp.ne.s32.totalorder %s338, %s341
    %p350 = scmp.eq.s32.totalorder %s36, 1
    %p351 = por %p349, %p350
    %p352 = scmp.ne.s32.totalorder %s341, %s342
    %p353 = scmp.eq.s32.totalorder %s36, 0
    %p354 = por %p352, %p353
    %p355 = scmp.ne.s32.totalorder %s341, %s342
    %p356 = scmp.eq.s32.totalorder %s37, 1
    %p357 = por %p355, %p356
    %p359 = scmp.ne.s32.totalorder %s342, %s358
    %p360 = scmp.eq.s32.totalorder %s37, 0
    %p361 = por %p359, %p360
    %s362 = ssub.s32 %s31, %s38
    %p363 = scmp.eq.s32.totalorder %s362, 0
    %s365 = sadd.s32 %s364, 1
    %s366 = scalar_select %p363, %s364, %s365
    %p369 = pneg %p363
    %p370 = scmp.eq.s32.totalorder %s31, 1
    %p371 = por %p369, %p370
    %p372 = scmp.ne.s32.totalorder %s364, %s367
    %p373 = scmp.eq.s32.totalorder %s31, 0
    %p374 = por %p372, %p373
    %p375 = scmp.ne.s32.totalorder %s364, %s367
    %p376 = scmp.eq.s32.totalorder %s36, 1
    %p377 = por %p375, %p376
    %p378 = scmp.ne.s32.totalorder %s367, %s368
    %p379 = scmp.eq.s32.totalorder %s36, 0
    %p380 = por %p378, %p379
    %p381 = scmp.ne.s32.totalorder %s367, %s368
    %p382 = scmp.eq.s32.totalorder %s37, 1
    %p383 = por %p381, %p382
    %p385 = scmp.ne.s32.totalorder %s368, %s384
    %p386 = scmp.eq.s32.totalorder %s37, 0
    %p387 = por %p385, %p386
    %s388 = ssub.s32 %s31, %s38
    %p389 = scmp.eq.s32.totalorder %s388, 0
    %s391 = sadd.s32 %s390, 1
    %s392 = scalar_select %p389, %s390, %s391
    %p395 = pneg %p389
    %p396 = scmp.eq.s32.totalorder %s31, 1
    %p397 = por %p395, %p396
    %p398 = scmp.ne.s32.totalorder %s390, %s393
    %p399 = scmp.eq.s32.totalorder %s31, 0
    %p400 = por %p398, %p399
    %p401 = scmp.ne.s32.totalorder %s390, %s393
    %p402 = scmp.eq.s32.totalorder %s36, 1
    %p403 = por %p401, %p402
    %p404 = scmp.ne.s32.totalorder %s393, %s394
    %p405 = scmp.eq.s32.totalorder %s36, 0
    %p406 = por %p404, %p405
    %p407 = scmp.ne.s32.totalorder %s393, %s394
    %p408 = scmp.eq.s32.totalorder %s37, 1
    %p409 = por %p407, %p408
    %p411 = scmp.ne.s32.totalorder %s394, %s410
    %p412 = scmp.eq.s32.totalorder %s37, 0
    %p413 = por %p411, %p412
    %s415 = sadd.s32 %s414, 1
    %p418 = scmp.eq.s32.totalorder %s31, 1
    %p419 = scmp.ne.s32.totalorder %s414, %s416
    %p420 = scmp.eq.s32.totalorder %s31, 0
    %p421 = por %p419, %p420
    %p422 = scmp.ne.s32.totalorder %s414, %s416
    %p423 = scmp.eq.s32.totalorder %s36, 1
    %p424 = por %p422, %p423
    %p425 = scmp.ne.s32.totalorder %s416, %s417
    %p426 = scmp.eq.s32.totalorder %s36, 0
    %p427 = por %p425, %p426
    %p428 = scmp.ne.s32.totalorder %s416, %s417
    %p429 = scmp.eq.s32.totalorder %s37, 1
    %p430 = por %p428, %p429
    %p432 = scmp.ne.s32.totalorder %s417, %s431
    %p433 = scmp.eq.s32.totalorder %s37, 0
    %p434 = por %p432, %p433
    %s436 = sadd.s32 %s435, 1
    %p439 = scmp.eq.s32.totalorder %s31, 1
    %p440 = scmp.ne.s32.totalorder %s435, %s437
    %p441 = scmp.eq.s32.totalorder %s31, 0
    %p442 = por %p440, %p441
    %p443 = scmp.ne.s32.totalorder %s435, %s437
    %p444 = scmp.eq.s32.totalorder %s36, 1
    %p445 = por %p443, %p444
    %p446 = scmp.ne.s32.totalorder %s437, %s438
    %p447 = scmp.eq.s32.totalorder %s36, 0
    %p448 = por %p446, %p447
    %p449 = scmp.ne.s32.totalorder %s437, %s438
    %p450 = scmp.eq.s32.totalorder %s37, 1
    %p451 = por %p449, %p450
    %p453 = scmp.ne.s32.totalorder %s438, %s452
    %p454 = scmp.eq.s32.totalorder %s37, 0
    %p455 = por %p453, %p454
    %s457 = sadd.s32 %s456, 1
    %p460 = scmp.eq.s32.totalorder %s31, 1
    %p461 = scmp.ne.s32.totalorder %s456, %s458
    %p462 = scmp.eq.s32.totalorder %s31, 0
    %p463 = por %p461, %p462
    %p464 = scmp.ne.s32.totalorder %s456, %s458
    %p465 = scmp.eq.s32.totalorder %s36, 1
    %p466 = por %p464, %p465
    %p467 = scmp.ne.s32.totalorder %s458, %s459
    %p468 = scmp.eq.s32.totalorder %s36, 0
    %p469 = por %p467, %p468
    %p470 = scmp.ne.s32.totalorder %s458, %s459
    %p471 = scmp.eq.s32.totalorder %s37, 1
    %p472 = por %p470, %p471
    %p474 = scmp.ne.s32.totalorder %s459, %s473
    %p475 = scmp.eq.s32.totalorder %s37, 0
    %p476 = por %p474, %p475
    %s478 = sadd.s32 %s477, 1
    %p481 = scmp.eq.s32.totalorder %s31, 1
    %p482 = scmp.ne.s32.totalorder %s477, %s479
    %p483 = scmp.eq.s32.totalorder %s31, 0
    %p484 = por %p482, %p483
    %p485 = scmp.ne.s32.totalorder %s477, %s479
    %p486 = scmp.eq.s32.totalorder %s36, 1
    %p487 = por %p485, %p486
    %p488 = scmp.ne.s32.totalorder %s479, %s480
    %p489 = scmp.eq.s32.totalorder %s36, 0
    %p490 = por %p488, %p489
    %p491 = scmp.ne.s32.totalorder %s479, %s480
    %p492 = scmp.eq.s32.totalorder %s37, 1
    %p493 = por %p491, %p492
    %p495 = scmp.ne.s32.totalorder %s480, %s494
    %p496 = scmp.eq.s32.totalorder %s37, 0
    %p497 = por %p495, %p496
    %p498 = scmp.le.s32.totalorder 1, %s31
    %p499 = scmp.lt.s32.totalorder %s31, 3
    %p500 = pnand %p498, %p499
    %p501 = pneg %p500
    // Predicated region
    $region9: #{forward.8} parent=5 // pred_check
      _
    $region10: #{forward.8} parent=5 // pred_check_branch
      %503 = sbr.rel (%p500) target = $region12
    $region11: #{forward.8} parent=5 // pred_region
      %s504 = ssub.s32 %s31, 1
      // Predicated region
      $region13: #{forward.8} parent=11 // pred_check
        %p505 = pneg %p52
      $region14: #{forward.8} parent=11 // pred_check_branch
        %507 = sbr.rel (%p505) target = $region16
      $region15: #{forward.8} parent=11 // pred_region
        _
      $region16: #{forward.8} parent=11 // pred_fallthru
        _
      // Predicated region
      $region17: #{forward.8} parent=11 // pred_check
        %p508 = pneg %p73
      $region18: #{forward.8} parent=11 // pred_check_branch
        %510 = sbr.rel (%p508) target = $region20
      $region19: #{forward.8} parent=11 // pred_region
        _
      $region20: #{forward.8} parent=11 // pred_fallthru
        _
      // Predicated region
      $region21: #{forward.8} parent=11 // pred_check
        %p511 = pneg %p94
      $region22: #{forward.8} parent=11 // pred_check_branch
        %513 = sbr.rel (%p511) target = $region24
      $region23: #{forward.8} parent=11 // pred_region
        _
      $region24: #{forward.8} parent=11 // pred_fallthru
        _
      // Predicated region
      $region25: #{forward.8} parent=11 // pred_check
        %p514 = pneg %p427
      $region26: #{forward.8} parent=11 // pred_check_branch
        %516 = sbr.rel (%p514) target = $region28
      $region27: #{forward.8} parent=11 // pred_region
        _
      $region28: #{forward.8} parent=11 // pred_fallthru
        _
      // Predicated region
      $region29: #{forward.8} parent=11 // pred_check
        %p517 = pneg %p448
      $region30: #{forward.8} parent=11 // pred_check_branch
        %519 = sbr.rel (%p517) target = $region32
      $region31: #{forward.8} parent=11 // pred_region
        _
      $region32: #{forward.8} parent=11 // pred_fallthru
        _
      // Predicated region
      $region33: #{forward.8} parent=11 // pred_check
        %p520 = pneg %p469
      $region34: #{forward.8} parent=11 // pred_check_branch
        %522 = sbr.rel (%p520) target = $region36
      $region35: #{forward.8} parent=11 // pred_region
        _
      $region36: #{forward.8} parent=11 // pred_fallthru
        _
    $region12: #{forward.8} parent=5 // pred_fallthru
      _
    %p523 = scmp.lt.s32.totalorder %s31, 2
    // Predicated region
    $region37: #{forward.8} parent=5 // pred_check
      %p524 = pneg %p523
    $region38: #{forward.8} parent=5 // pred_check_branch
      %526 = sbr.rel (%p524) target = $region40
    $region39: #{forward.8} parent=5 // pred_region
      // Predicated region
      $region41: #{forward.8} parent=39 // pred_check
        %p527 = pneg %p114
      $region42: #{forward.8} parent=39 // pred_check_branch
        %529 = sbr.rel (%p527) target = $region44
      $region43: #{forward.8} parent=39 // pred_region
        %p530 = scmp.lt.s32.totalorder %s31, 1
        %s531 = scalar_select %p530, %s31, 1
        %s532 = scalar_lea.vmem %s4, %s531
      $region44: #{forward.8} parent=39 // pred_fallthru
        _
      // Predicated region
      $region45: #{forward.8} parent=39 // pred_check
        %p533 = pneg %p140
      $region46: #{forward.8} parent=39 // pred_check_branch
        %535 = sbr.rel (%p533) target = $region48
      $region47: #{forward.8} parent=39 // pred_region
        %p536 = scmp.lt.s32.totalorder %s31, 1
        %s537 = scalar_select %p536, %s31, 1
        %s538 = scalar_lea.vmem %s5, %s537
      $region48: #{forward.8} parent=39 // pred_fallthru
        _
      // Predicated region
      $region49: #{forward.8} parent=39 // pred_check
        %p539 = pneg %p166
      $region50: #{forward.8} parent=39 // pred_check_branch
        %541 = sbr.rel (%p539) target = $region52
      $region51: #{forward.8} parent=39 // pred_region
        %p542 = scmp.lt.s32.totalorder %s31, 1
        %s543 = scalar_select %p542, %s31, 1
        %s544 = smul.addr %s543, 4
        %s545 = smul.addr %s544, 4
        %s546 = scalar_lea.vmem %s6, %s545
      $region52: #{forward.8} parent=39 // pred_fallthru
        _
      // Predicated region
      $region53: #{forward.8} parent=39 // pred_check
        %p547 = pneg %p192
      $region54: #{forward.8} parent=39 // pred_check_branch
        %549 = sbr.rel (%p547) target = $region56
      $region55: #{forward.8} parent=39 // pred_region
        %p550 = scmp.lt.s32.totalorder %s31, 1
        %s551 = scalar_select %p550, %s31, 1
        %s552 = scalar_lea.vmem %s7, %s551
      $region56: #{forward.8} parent=39 // pred_fallthru
        _
      // Predicated region
      $region57: #{forward.8} parent=39 // pred_check
        %p553 = pneg %p218
      $region58: #{forward.8} parent=39 // pred_check_branch
        %555 = sbr.rel (%p553) target = $region60
      $region59: #{forward.8} parent=39 // pred_region
        %p556 = scmp.lt.s32.totalorder %s31, 1
        %s557 = scalar_select %p556, %s31, 1
        %s558 = smul.addr %s557, 4
        %s559 = smul.addr %s558, 4
        %s560 = scalar_lea.vmem %s8, %s559
      $region60: #{forward.8} parent=39 // pred_fallthru
        _
      // Predicated region
      $region61: #{forward.8} parent=39 // pred_check
        %p561 = pneg %p244
      $region62: #{forward.8} parent=39 // pred_check_branch
        %563 = sbr.rel (%p561) target = $region64
      $region63: #{forward.8} parent=39 // pred_region
        %p564 = scmp.lt.s32.totalorder %s31, 1
        %s565 = scalar_select %p564, %s31, 1
        %s566 = scalar_lea.vmem %s9, %s565
      $region64: #{forward.8} parent=39 // pred_fallthru
        _
      // Predicated region
      $region65: #{forward.8} parent=39 // pred_check
        %p567 = pneg %p270
      $region66: #{forward.8} parent=39 // pred_check_branch
        %569 = sbr.rel (%p567) target = $region68
      $region67: #{forward.8} parent=39 // pred_region
        %p570 = scmp.lt.s32.totalorder %s31, 1
        %s571 = scalar_select %p570, %s31, 1
        %s572 = scalar_lea.vmem %s10, %s571
      $region68: #{forward.8} parent=39 // pred_fallthru
        _
      // Predicated region
      $region69: #{forward.8} parent=39 // pred_check
        %p573 = pneg %p296
      $region70: #{forward.8} parent=39 // pred_check_branch
        %575 = sbr.rel (%p573) target = $region72
      $region71: #{forward.8} parent=39 // pred_region
        %p576 = scmp.lt.s32.totalorder %s31, 1
        %s577 = scalar_select %p576, %s31, 1
        %s578 = scalar_lea.vmem %s11, %s577
      $region72: #{forward.8} parent=39 // pred_fallthru
        _
      // Predicated region
      $region73: #{forward.8} parent=39 // pred_check
        %p579 = pneg %p322
      $region74: #{forward.8} parent=39 // pred_check_branch
        %581 = sbr.rel (%p579) target = $region76
      $region75: #{forward.8} parent=39 // pred_region
        %p582 = scmp.lt.s32.totalorder %s31, 1
        %s583 = scalar_select %p582, %s31, 1
        %s584 = smul.addr %s583, 4
        %s585 = smul.addr %s584, 4
        %s586 = scalar_lea.vmem %s12, %s585
      $region76: #{forward.8} parent=39 // pred_fallthru
        _
      // Predicated region
      $region77: #{forward.8} parent=39 // pred_check
        %p587 = pneg %p348
      $region78: #{forward.8} parent=39 // pred_check_branch
        %589 = sbr.rel (%p587) target = $region80
      $region79: #{forward.8} parent=39 // pred_region
        %p590 = scmp.lt.s32.totalorder %s31, 1
        %s591 = scalar_select %p590, %s31, 1
        %s592 = scalar_lea.vmem %s13, %s591
      $region80: #{forward.8} parent=39 // pred_fallthru
        _
      // Predicated region
      $region81: #{forward.8} parent=39 // pred_check
        %p593 = pneg %p374
      $region82: #{forward.8} parent=39 // pred_check_branch
        %595 = sbr.rel (%p593) target = $region84
      $region83: #{forward.8} parent=39 // pred_region
        %p596 = scmp.lt.s32.totalorder %s31, 1
        %s597 = scalar_select %p596, %s31, 1
        %s598 = smul.addr %s597, 16
        %s599 = smul.addr %s598, 4
        %s600 = scalar_lea.vmem %s14, %s599
      $region84: #{forward.8} parent=39 // pred_fallthru
        _
      // Predicated region
      $region85: #{forward.8} parent=39 // pred_check
        %p601 = pneg %p400
      $region86: #{forward.8} parent=39 // pred_check_branch
        %603 = sbr.rel (%p601) target = $region88
      $region87: #{forward.8} parent=39 // pred_region
        %p604 = scmp.lt.s32.totalorder %s31, 1
        %s605 = scalar_select %p604, %s31, 1
        %s606 = scalar_lea.vmem %s15, %s605
      $region88: #{forward.8} parent=39 // pred_fallthru
        _
    $region40: #{forward.8} parent=5 // pred_fallthru
      _
    %p607 = scmp.le.s32.totalorder 1, %s31
    %p608 = scmp.lt.s32.totalorder %s31, 3
    %p609 = pnand %p607, %p608
    %p610 = pneg %p609
    // Predicated region
    $region89: #{forward.8} parent=5 // pred_check
      _
    $region90: #{forward.8} parent=5 // pred_check_branch
      %612 = sbr.rel (%p609) target = $region92
    $region91: #{forward.8} parent=5 // pred_region
      %s613 = ssub.s32 %s31, 1
      %p614 = pneg %p52
      %p615 = pneg %p49
      %p616 = pneg %p73
      %p617 = pneg %p70
      %p618 = pneg %p94
      %p619 = pneg %p91
      %p620 = scmp.lt.s32.totalorder %s36, 1
      %s621 = scalar_select %p620, %s36, 1
      %s622 = scalar_lea.vmem %s4, %s621
      %p623 = pneg %p120
      %p624 = pneg %p117
      %p625 = scmp.lt.s32.totalorder %s36, 1
      %s626 = scalar_select %p625, %s36, 1
      %s627 = scalar_lea.vmem %s5, %s626
      %p628 = pneg %p146
      %p629 = pneg %p143
      %p630 = scmp.lt.s32.totalorder %s36, 1
      %s631 = scalar_select %p630, %s36, 1
      %s632 = smul.addr %s631, 4
      %s633 = smul.addr %s632, 4
      %s634 = scalar_lea.vmem %s6, %s633
      %p635 = pneg %p172
      %p636 = pneg %p169
      %p637 = scmp.lt.s32.totalorder %s36, 1
      %s638 = scalar_select %p637, %s36, 1
      %s639 = scalar_lea.vmem %s7, %s638
      %p640 = pneg %p198
      %p641 = pneg %p195
      %p642 = scmp.lt.s32.totalorder %s36, 1
      %s643 = scalar_select %p642, %s36, 1
      %s644 = smul.addr %s643, 4
      %s645 = smul.addr %s644, 4
      %s646 = scalar_lea.vmem %s8, %s645
      %p647 = pneg %p224
      %p648 = pneg %p221
      %p649 = scmp.lt.s32.totalorder %s36, 1
      %s650 = scalar_select %p649, %s36, 1
      %s651 = scalar_lea.vmem %s9, %s650
      %p652 = pneg %p250
      %p653 = pneg %p247
      %p654 = scmp.lt.s32.totalorder %s36, 1
      %s655 = scalar_select %p654, %s36, 1
      %s656 = scalar_lea.vmem %s10, %s655
      %p657 = pneg %p276
      %p658 = pneg %p273
      %p659 = scmp.lt.s32.totalorder %s36, 1
      %s660 = scalar_select %p659, %s36, 1
      %s661 = scalar_lea.vmem %s11, %s660
      %p662 = pneg %p302
      %p663 = pneg %p299
      %p664 = scmp.lt.s32.totalorder %s36, 1
      %s665 = scalar_select %p664, %s36, 1
      %s666 = smul.addr %s665, 4
      %s667 = smul.addr %s666, 4
      %s668 = scalar_lea.vmem %s12, %s667
      %p669 = pneg %p328
      %p670 = pneg %p325
      %p671 = scmp.lt.s32.totalorder %s36, 1
      %s672 = scalar_select %p671, %s36, 1
      %s673 = scalar_lea.vmem %s13, %s672
      %p674 = pneg %p354
      %p675 = pneg %p351
      %p676 = scmp.lt.s32.totalorder %s36, 1
      %s677 = scalar_select %p676, %s36, 1
      %s678 = smul.addr %s677, 16
      %s679 = smul.addr %s678, 4
      %s680 = scalar_lea.vmem %s14, %s679
      %p681 = pneg %p380
      %p682 = pneg %p377
      %p683 = scmp.lt.s32.totalorder %s36, 1
      %s684 = scalar_select %p683, %s36, 1
      %s685 = scalar_lea.vmem %s15, %s684
      %p686 = pneg %p406
      %p687 = pneg %p403
      %p688 = pneg %p427
      %p689 = pneg %p424
      %p690 = pneg %p448
      %p691 = pneg %p445
      %p692 = pneg %p469
      %p693 = pneg %p466
      %p694 = pneg %p490
      %p695 = pneg %p487
      %p696 = scmp.lt.s32.totalorder %s36, 1
      %s697 = scalar_select %p696, %s36, 1
      %s698 = scalar_lea.vmem %s4, %s697
      %p699 = scmp.lt.s32.totalorder %s36, 1
      %s700 = scalar_select %p699, %s36, 1
      %s701 = scalar_lea.vmem %s5, %s700
      %p702 = scmp.lt.s32.totalorder %s36, 1
      %s703 = scalar_select %p702, %s36, 1
      %s704 = smul.addr %s703, 4
      %s705 = smul.addr %s704, 4
      %s706 = scalar_lea.vmem %s6, %s705
      %p707 = scmp.lt.s32.totalorder %s36, 1
      %s708 = scalar_select %p707, %s36, 1
      %s709 = scalar_lea.vmem %s7, %s708
      %p710 = scmp.lt.s32.totalorder %s36, 1
      %s711 = scalar_select %p710, %s36, 1
      %s712 = smul.addr %s711, 4
      %s713 = smul.addr %s712, 4
      %s714 = scalar_lea.vmem %s8, %s713
      %p715 = scmp.lt.s32.totalorder %s36, 1
      %s716 = scalar_select %p715, %s36, 1
      %s717 = scalar_lea.vmem %s9, %s716
      %p718 = scmp.lt.s32.totalorder %s36, 1
      %s719 = scalar_select %p718, %s36, 1
      %s720 = scalar_lea.vmem %s10, %s719
      %p721 = scmp.lt.s32.totalorder %s36, 1
      %s722 = scalar_select %p721, %s36, 1
      %s723 = scalar_lea.vmem %s11, %s722
      %p724 = scmp.lt.s32.totalorder %s36, 1
      %s725 = scalar_select %p724, %s36, 1
      %s726 = smul.addr %s725, 4
      %s727 = smul.addr %s726, 4
      %s728 = scalar_lea.vmem %s12, %s727
      %p729 = scmp.lt.s32.totalorder %s36, 1
      %s730 = scalar_select %p729, %s36, 1
      %s731 = scalar_lea.vmem %s13, %s730
      %p732 = scmp.lt.s32.totalorder %s36, 1
      %s733 = scalar_select %p732, %s36, 1
      %s734 = smul.addr %s733, 16
      %s735 = smul.addr %s734, 4
      %s736 = scalar_lea.vmem %s14, %s735
      %p737 = scmp.lt.s32.totalorder %s36, 1
      %s738 = scalar_select %p737, %s36, 1
      %s739 = scalar_lea.vmem %s15, %s738
      %p741 = scmp.eq.s32.totalorder %s36, 0
      // Predicated region
      $region93: #{forward.8} parent=91 // pred_check
        %p742 = pneg %p741
      $region94: #{forward.8} parent=91 // pred_check_branch
        %744 = sbr.rel (%p742) target = $region96
      $region95: #{forward.8} parent=91 // pred_region
        %v745 = vld [vmem:[%s1] sm:$0xff]
        %v746 = vld [vmem:[%s1 + $0x8] sm:$0xff]
        %v747 = vld [vmem:[%s1 + $0x10] sm:$0xff]
        %v748 = vld [vmem:[%s2] sm:$0xff]
        %v749 = vadd.f32 %v745, %v748
        %v750 = vadd.f32 %v746, %v748
        %v751 = vadd.f32 %v747, %v748
        %vm752 = vcmask 261120
        %753 = vst.msk [vmem:[#allocation2] sm:$0xff] %vm752, %v749
        %754 = vst.msk [vmem:[#allocation2 + $0x8] sm:$0xff] %vm752, %v750
        %755 = vst.msk [vmem:[#allocation2 + $0x10] sm:$0xff] %vm752, %v751
      $region96: #{forward.8} parent=91 // pred_fallthru
        _
      %p756 = scmp.ge.s32.totalorder %s36, 1
      %p757 = scmp.le.s32.totalorder %s36, 1
      %p758 = pnand %p756, %p757
      %p759 = pneg %p758
      // Predicated region
      $region97: #{forward.8} parent=91 // pred_check
        _
      $region98: #{forward.8} parent=91 // pred_check_branch
        %761 = sbr.rel (%p758) target = $region100
      $region99: #{forward.8} parent=91 // pred_region
        %s762 = ssub.s32 %s36, 1
        %p763 = scmp.gt.s32.totalorder %s762, 0
        %s764 = scalar_select %p763, %s762, 0
        %s765 = smul.u32 %s764, 2
        %s766 = scalar_lea.vmem %s3, %s765
        %v767 = vld [vmem:[%s766] sm:$0x3]
        %vm768 = vcmask 254976
        %769 = vst.msk [vmem:[#allocation2 + $0x1] sm:$0x3] %vm768, %v767
        %770 = vst.msk [vmem:[#allocation2 + $0x9] sm:$0x3] %vm768, %v767
        %771 = vst.msk [vmem:[#allocation2 + $0x11] sm:$0x3] %vm768, %v767
      $region100: #{forward.8} parent=91 // pred_fallthru
        _
      %v772 = vld [vmem:[#allocation2] sm:$0xff]
      %v773 = vld [vmem:[#allocation2 + $0x8] sm:$0xff]
      %v774 = vld [vmem:[#allocation2 + $0x10] sm:$0xff]
      %v775 = vld [vmem:[%s698] sm:$0x1]
      %v776 = vld [vmem:[%s701] sm:$0x1]
      %v777 = vld [vmem:[%s706] sm:$0xf]
      %v778 = vld [vmem:[%s706 + $0x4] sm:$0xf]
      %v779 = vld [vmem:[%s706 + $0x8] sm:$0xf]
      %v780 = vld [vmem:[%s706 + $0xc] sm:$0xf]
      %v781 = vld [vmem:[%s709] sm:$0x1]
      %v782 = vld [vmem:[%s714] sm:$0xf]
      %v783 = vld [vmem:[%s714 + $0x4] sm:$0xf]
      %v784 = vld [vmem:[%s714 + $0x8] sm:$0xf]
      %v785 = vld [vmem:[%s714 + $0xc] sm:$0xf]
      %v786 = vld [vmem:[%s717] sm:$0x1]
      %v787 = vld [vmem:[%s720] sm:$0x1]
      %v788 = vld [vmem:[%s723] sm:$0x1]
      %v789 = vld [vmem:[%s728] sm:$0xf]
      %v790 = vld [vmem:[%s728 + $0x4] sm:$0xf]
      %v791 = vld [vmem:[%s728 + $0x8] sm:$0xf]
      %v792 = vld [vmem:[%s728 + $0xc] sm:$0xf]
      %v793 = vld [vmem:[%s731] sm:$0x1]
      %v794 = vld [vmem:[%s736] sm:$0xf]
      %v795 = vld [vmem:[%s736 + $0x4] sm:$0xf]
      %v796 = vld [vmem:[%s736 + $0x8] sm:$0xf]
      %v797 = vld [vmem:[%s736 + $0xc] sm:$0xf]
      %v798 = vld [vmem:[%s736 + $0x10] sm:$0xf]
      %v799 = vld [vmem:[%s736 + $0x14] sm:$0xf]
      %v800 = vld [vmem:[%s736 + $0x18] sm:$0xf]
      %v801 = vld [vmem:[%s736 + $0x1c] sm:$0xf]
      %v802 = vld [vmem:[%s736 + $0x20] sm:$0xf]
      %v803 = vld [vmem:[%s736 + $0x24] sm:$0xf]
      %v804 = vld [vmem:[%s736 + $0x28] sm:$0xf]
      %v805 = vld [vmem:[%s736 + $0x2c] sm:$0xf]
      %v806 = vld [vmem:[%s736 + $0x30] sm:$0xf]
      %v807 = vld [vmem:[%s736 + $0x34] sm:$0xf]
      %v808 = vld [vmem:[%s736 + $0x38] sm:$0xf]
      %v809 = vld [vmem:[%s736 + $0x3c] sm:$0xf]
      %v810 = vld [vmem:[%s739] sm:$0x1]
      %vm811 = vcmask 261120
      %v812 = vsel %vm811, %v772, 0.0
      %813 = vadd.xlane.f32.xlu0 %v812
      %v814 = vpop.xlane.xlu0 %813
      %v815 = vsel %vm811, %v773, 0.0
      %816 = vadd.xlane.f32.xlu0 %v815
      %v817 = vpop.xlane.xlu0 %816
      %v818 = vsel %vm811, %v774, 0.0
      %819 = vadd.xlane.f32.xlu0 %v818
      %v820 = vpop.xlane.xlu0 %819
      %v821 = vrcp.pop 32.0
      %v822 = vmul.f32 %v814, %v821
      %v823 = vmul.f32 %v817, %v821
      %v824 = vmul.f32 %v820, %v821
      %v825 = vsub.f32 %v772, %v822
      %v826 = vsub.f32 %v773, %v823
      %v827 = vsub.f32 %v774, %v824
      %v828 = vmul.f32 %v825, %v825
      %v829 = vmul.f32 %v826, %v826
      %v830 = vmul.f32 %v827, %v827
      %v831 = vsel %vm811, %v828, 0.0
      %832 = vadd.xlane.f32.xlu0 %v831
      %v833 = vpop.xlane.xlu0 %832
      %v834 = vsel %vm811, %v829, 0.0
      %835 = vadd.xlane.f32.xlu0 %v834
      %v836 = vpop.xlane.xlu0 %835
      %v837 = vsel %vm811, %v830, 0.0
      %838 = vadd.xlane.f32.xlu0 %v837
      %v839 = vpop.xlane.xlu0 %838
      %v840 = vmul.f32 %v833, %v821
      %v841 = vmul.f32 %v836, %v821
      %v842 = vmul.f32 %v839, %v821
      %v843 = vadd.f32 %v840, 1e-05
      %v844 = vadd.f32 %v841, 1e-05
      %v845 = vadd.f32 %v842, 1e-05
      %v846 = vrsqrt.pop %v843
      %v847 = vrsqrt.pop %v844
      %v848 = vrsqrt.pop %v845
      %v849 = vmul.f32 %v825, %v846
      %v850 = vmul.f32 %v826, %v847
      %v851 = vmul.f32 %v827, %v848
      %v853 = vlaneseq
      %v854 = vshrl.u32 %v853, 7
      %v855 = vsub.s32 0, %v854
      %v856 = vrot.slane %v775, %v855
      %v858 = vmul.f32 %v849, %v856
      %v859 = vmul.f32 %v850, %v856
      %v860 = vmul.f32 %v851, %v856
      %v862 = vlaneseq
      %v863 = vshrl.u32 %v862, 7
      %v864 = vsub.s32 0, %v863
      %v865 = vrot.slane %v776, %v864
      %v867 = vadd.f32 %v858, %v865
      %v868 = vadd.f32 %v859, %v865
      %v869 = vadd.f32 %v860, %v865
      %v870 = vpack.c.bf16 %v868, %v867
      %v871 = vpack.c.bf16 %v869, %v869
      %v873 = vlaneseq
      %v874 = vshrl.u32 %v873, 7
      %v875 = vsub.s32 0, %v874
      %v876 = vrot.slane %v781, %v875
      %v882 = vunpack.c.l.b16 %v777
      %v883 = vunpack.c.l.b16 %v778
      %v884 = vunpack.c.l.b16 %v779
      %v885 = vunpack.c.l.b16 %v780
      %v886 = vpack.c.b16 %v883, %v882
      %v887 = vpack.c.b16 %v885, %v884
      %v891 = vsel %vm811, %v870, 0
      %v894 = vsel %vm811, %v871, 0
      %896 = vmatprep.subr.bf16.mxu0 0
      %897 = vmatpush1.bf16.msra.mxu0 %v886
      %898 = vmatprep.subr.bf16.mxu0 0
      %899 = vmatpush1.bf16.msra.mxu0 %v887
      %900 = vmatprep.subr.bf16.mxu0 0
      %901 = vmatpush1.bf16.msra.mxu0 0
      %902 = vmatprep.subr.bf16.mxu0 0
      %903 = vmatpush1.bf16.msra.mxu0 0
      %904 = vmatprep.subr.bf16.mxu0 0
      %905 = vmatpush1.bf16.msra.mxu0 0
      %906 = vmatprep.subr.bf16.mxu0 0
      %907 = vmatpush1.bf16.msra.mxu0 0
      %908 = vmatprep.subr.bf16.mxu0 0
      %909 = vmatpush1.bf16.msra.mxu0 0
      %910 = vmatprep.subr.bf16.mxu0 0
      %911 = vmatpush1.bf16.msra.mxu0 0
      %912 = vmatprep.subr.bf16.mxu0 0
      %913 = vmatpush1.bf16.msra.mxu0 0
      %914 = vmatprep.subr.bf16.mxu0 0
      %915 = vmatpush1.bf16.msra.mxu0 0
      %916 = vmatprep.subr.bf16.mxu0 0
      %917 = vmatpush1.bf16.msra.mxu0 0
      %918 = vmatprep.subr.bf16.mxu0 0
      %919 = vmatpush1.bf16.msra.mxu0 0
      %920 = vmatprep.subr.bf16.mxu0 0
      %921 = vmatpush1.bf16.msra.mxu0 0
      %922 = vmatprep.subr.bf16.mxu0 0
      %923 = vmatpush1.bf16.msra.mxu0 0
      %924 = vmatprep.subr.bf16.mxu0 0
      %925 = vmatpush1.bf16.msra.mxu0 0
      %926 = vmatprep.subr.bf16.mxu0 0
      %927 = vmatpush1.bf16.msra.mxu0 0
      %928 = vmatprep.mubr.bf16.mxu0 0
      %929 = vmatmul.mubr.bf16.gmra.mrb[0].mxu0 %v891
      %v930 = vpop.f32.mrb[0].mxu0
      %v931 = vadd.f32 %v876, %v930
      %v932 = vpop.f32.mrb[0].mxu0
      %v933 = vpop.f32.mrb[0].mxu0
      %v934 = vadd.f32 %v876, %v933
      %v935 = vpop.f32.mrb[0].mxu0
      %936 = vmatprep.mubr.bf16.mxu0 0
      %937 = vmatmul.mubr.bf16.gmra.mrb[0].mxu0 %v894
      %v938 = vpop.f32.mrb[0].mxu0
      %v939 = vadd.f32 %v876, %v938
      %v940 = vpop.f32.mrb[0].mxu0
      %v941 = vpop.f32.mrb[0].mxu0
      %v942 = vpop.f32.mrb[0].mxu0
      %943 = vdwg.mxu0
      %v944 = vlaneseq
      %v945 = vshrl.u32 %v944, 7
      %v946 = vlaneseq
      %v947 = vand.u32 %v946, 127
      %vm948 = vcmp.gt.s32.totalorder %v947, %v945
      %950 = vrot.lane.b32.xlu0 %v931, 96
      %v951 = vpop.permute.xlu0 %950
      %vm952 = vcmask 64512
      %v953 = vsel %vm952, %v931, 0
      %v955 = vsel %vm952, %v951, 0
      %957 = vmatprep.subr.mxu0 0.0
      %958 = vmatpush1.xpose.msra.mxu0 %v955
      %959 = vmatprep.subr.mxu0 0.0
      %960 = vmatpush1.xpose.msra.mxu0 0.0
      %961 = vmatprep.subr.mxu0 0.0
      %962 = vmatpush1.xpose.msra.mxu0 0.0
      %963 = vmatprep.subr.mxu0 0.0
      %964 = vmatpush1.xpose.msra.mxu0 0.0
      %965 = vmatprep.subr.mxu0 0.0
      %966 = vmatpush1.xpose.msra.mxu0 0.0
      %967 = vmatprep.subr.mxu0 0.0
      %968 = vmatpush1.xpose.msra.mxu0 0.0
      %969 = vmatprep.subr.mxu0 0.0
      %970 = vmatpush1.xpose.msra.mxu0 0.0
      %971 = vmatprep.subr.mxu0 0.0
      %972 = vmatpush1.xpose.msra.mxu0 0.0
      %973 = vmatprep.subr.mxu0 0.0
      %974 = vmatpush1.xpose.msra.mxu0 0.0
      %975 = vmatprep.subr.mxu0 0.0
      %976 = vmatpush1.xpose.msra.mxu0 0.0
      %977 = vmatprep.subr.mxu0 0.0
      %978 = vmatpush1.xpose.msra.mxu0 0.0
      %979 = vmatprep.subr.mxu0 0.0
      %980 = vmatpush1.xpose.msra.mxu0 0.0
      %981 = vmatprep.subr.mxu0 0.0
      %982 = vmatpush1.xpose.msra.mxu0 0.0
      %983 = vmatprep.subr.mxu0 0.0
      %984 = vmatpush1.xpose.msra.mxu0 0.0
      %985 = vmatprep.subr.mxu0 0.0
      %986 = vmatpush1.xpose.msra.mxu0 0.0
      %987 = vmatprep.subr.mxu0 0.0
      %988 = vmatpush1.xpose.msra.mxu0 0.0
      %989 = vmatprep.subr.mxu0 0.0
      %990 = vmatpush1.xpose.msra.mxu0 0.0
      %991 = vmatprep.subr.mxu0 0.0
      %992 = vmatpush1.xpose.msra.mxu0 0.0
      %993 = vmatprep.subr.mxu0 0.0
      %994 = vmatpush1.xpose.msra.mxu0 0.0
      %995 = vmatprep.subr.mxu0 0.0
      %996 = vmatpush1.xpose.msra.mxu0 0.0
      %997 = vmatprep.subr.mxu0 0.0
      %998 = vmatpush1.xpose.msra.mxu0 0.0
      %999 = vmatprep.subr.mxu0 0.0
      %1000 = vmatpush1.xpose.msra.mxu0 0.0
      %1001 = vmatprep.subr.mxu0 0.0
      %1002 = vmatpush1.xpose.msra.mxu0 0.0
      %1003 = vmatprep.subr.mxu0 0.0
      %1004 = vmatpush1.xpose.msra.mxu0 0.0
      %1005 = vmatprep.subr.mxu0 0.0
      %1006 = vmatpush1.xpose.msra.mxu0 0.0
      %1007 = vmatprep.subr.mxu0 0.0
      %1008 = vmatpush1.xpose.msra.mxu0 0.0
      %1009 = vmatprep.subr.mxu0 0.0
      %1010 = vmatpush1.xpose.msra.mxu0 0.0
      %1011 = vmatprep.subr.mxu0 0.0
      %1012 = vmatpush1.xpose.msra.mxu0 0.0
      %1013 = vmatprep.subr.mxu0 0.0
      %1014 = vmatpush1.xpose.msra.mxu0 0.0
      %1015 = vmatprep.subr.mxu0 0.0
      %1016 = vmatpush1.xpose.msra.mxu0 0.0
      %1017 = vmatprep.subr.mxu0 0.0
      %1018 = vmatpush1.xpose.msra.mxu0 0.0
      %1019 = vmatprep.subr.mxu0 0.0
      %1020 = vmatpush1.xpose.msra.mxu0 0.0
      %1021 = vmatprep.mubr.f32.mxu0 0.0
      %1022 = vmatmul.mubr.f32.gmra.mrb[0].mxu0 %v953
      %v1023 = vpop.f32.mrb[0].mxu0
      %v1024 = vadd.f32 0.0, %v1023
      %v1025 = vpop.f32.mrb[0].mxu0
      %1026 = vdwg.mxu0
      %1028 = vrot.lane.b32.xlu0 %v934, 96
      %v1029 = vpop.permute.xlu0 %1028
      %v1030 = vsel %vm952, %v934, 0
      %v1032 = vsel %vm952, %v1029, 0
      %1034 = vmatprep.subr.mxu0 0.0
      %1035 = vmatpush1.xpose.msra.mxu0 %v1032
      %1036 = vmatprep.subr.mxu0 0.0
      %1037 = vmatpush1.xpose.msra.mxu0 0.0
      %1038 = vmatprep.subr.mxu0 0.0
      %1039 = vmatpush1.xpose.msra.mxu0 0.0
      %1040 = vmatprep.subr.mxu0 0.0
      %1041 = vmatpush1.xpose.msra.mxu0 0.0
      %1042 = vmatprep.subr.mxu0 0.0
      %1043 = vmatpush1.xpose.msra.mxu0 0.0
      %1044 = vmatprep.subr.mxu0 0.0
      %1045 = vmatpush1.xpose.msra.mxu0 0.0
      %1046 = vmatprep.subr.mxu0 0.0
      %1047 = vmatpush1.xpose.msra.mxu0 0.0
      %1048 = vmatprep.subr.mxu0 0.0
      %1049 = vmatpush1.xpose.msra.mxu0 0.0
      %1050 = vmatprep.subr.mxu0 0.0
      %1051 = vmatpush1.xpose.msra.mxu0 0.0
      %1052 = vmatprep.subr.mxu0 0.0
      %1053 = vmatpush1.xpose.msra.mxu0 0.0
      %1054 = vmatprep.subr.mxu0 0.0
      %1055 = vmatpush1.xpose.msra.mxu0 0.0
      %1056 = vmatprep.subr.mxu0 0.0
      %1057 = vmatpush1.xpose.msra.mxu0 0.0
      %1058 = vmatprep.subr.mxu0 0.0
      %1059 = vmatpush1.xpose.msra.mxu0 0.0
      %1060 = vmatprep.subr.mxu0 0.0
      %1061 = vmatpush1.xpose.msra.mxu0 0.0
      %1062 = vmatprep.subr.mxu0 0.0
      %1063 = vmatpush1.xpose.msra.mxu0 0.0
      %1064 = vmatprep.subr.mxu0 0.0
      %1065 = vmatpush1.xpose.msra.mxu0 0.0
      %1066 = vmatprep.subr.mxu0 0.0
      %1067 = vmatpush1.xpose.msra.mxu0 0.0
      %1068 = vmatprep.subr.mxu0 0.0
      %1069 = vmatpush1.xpose.msra.mxu0 0.0
      %1070 = vmatprep.subr.mxu0 0.0
      %1071 = vmatpush1.xpose.msra.mxu0 0.0
      %1072 = vmatprep.subr.mxu0 0.0
      %1073 = vmatpush1.xpose.msra.mxu0 0.0
      %1074 = vmatprep.subr.mxu0 0.0
      %1075 = vmatpush1.xpose.msra.mxu0 0.0
      %1076 = vmatprep.subr.mxu0 0.0
      %1077 = vmatpush1.xpose.msra.mxu0 0.0
      %1078 = vmatprep.subr.mxu0 0.0
      %1079 = vmatpush1.xpose.msra.mxu0 0.0
      %1080 = vmatprep.subr.mxu0 0.0
      %1081 = vmatpush1.xpose.msra.mxu0 0.0
      %1082 = vmatprep.subr.mxu0 0.0
      %1083 = vmatpush1.xpose.msra.mxu0 0.0
      %1084 = vmatprep.subr.mxu0 0.0
      %1085 = vmatpush1.xpose.msra.mxu0 0.0
      %1086 = vmatprep.subr.mxu0 0.0
      %1087 = vmatpush1.xpose.msra.mxu0 0.0
      %1088 = vmatprep.subr.mxu0 0.0
      %1089 = vmatpush1.xpose.msra.mxu0 0.0
      %1090 = vmatprep.subr.mxu0 0.0
      %1091 = vmatpush1.xpose.msra.mxu0 0.0
      %1092 = vmatprep.subr.mxu0 0.0
      %1093 = vmatpush1.xpose.msra.mxu0 0.0
      %1094 = vmatprep.subr.mxu0 0.0
      %1095 = vmatpush1.xpose.msra.mxu0 0.0
      %1096 = vmatprep.subr.mxu0 0.0
      %1097 = vmatpush1.xpose.msra.mxu0 0.0
      %1098 = vmatprep.mubr.f32.mxu0 0.0
      %1099 = vmatmul.mubr.f32.gmra.mrb[0].mxu0 %v1030
      %v1100 = vpop.f32.mrb[0].mxu0
      %v1101 = vadd.f32 0.0, %v1100
      %v1102 = vpop.f32.mrb[0].mxu0
      %1103 = vdwg.mxu0
      %1105 = vrot.lane.b32.xlu0 %v939, 96
      %v1106 = vpop.permute.xlu0 %1105
      %v1107 = vsel %vm952, %v939, 0
      %v1109 = vsel %vm952, %v1106, 0
      %1111 = vmatprep.subr.mxu0 0.0
      %1112 = vmatpush1.xpose.msra.mxu0 %v1109
      %1113 = vmatprep.subr.mxu0 0.0
      %1114 = vmatpush1.xpose.msra.mxu0 0.0
      %1115 = vmatprep.subr.mxu0 0.0
      %1116 = vmatpush1.xpose.msra.mxu0 0.0
      %1117 = vmatprep.subr.mxu0 0.0
      %1118 = vmatpush1.xpose.msra.mxu0 0.0
      %1119 = vmatprep.subr.mxu0 0.0
      %1120 = vmatpush1.xpose.msra.mxu0 0.0
      %1121 = vmatprep.subr.mxu0 0.0
      %1122 = vmatpush1.xpose.msra.mxu0 0.0
      %1123 = vmatprep.subr.mxu0 0.0
      %1124 = vmatpush1.xpose.msra.mxu0 0.0
      %1125 = vmatprep.subr.mxu0 0.0
      %1126 = vmatpush1.xpose.msra.mxu0 0.0
      %1127 = vmatprep.subr.mxu0 0.0
      %1128 = vmatpush1.xpose.msra.mxu0 0.0
      %1129 = vmatprep.subr.mxu0 0.0
      %1130 = vmatpush1.xpose.msra.mxu0 0.0
      %1131 = vmatprep.subr.mxu0 0.0
      %1132 = vmatpush1.xpose.msra.mxu0 0.0
      %1133 = vmatprep.subr.mxu0 0.0
      %1134 = vmatpush1.xpose.msra.mxu0 0.0
      %1135 = vmatprep.subr.mxu0 0.0
      %1136 = vmatpush1.xpose.msra.mxu0 0.0
      %1137 = vmatprep.subr.mxu0 0.0
      %1138 = vmatpush1.xpose.msra.mxu0 0.0
      %1139 = vmatprep.subr.mxu0 0.0
      %1140 = vmatpush1.xpose.msra.mxu0 0.0
      %1141 = vmatprep.subr.mxu0 0.0
      %1142 = vmatpush1.xpose.msra.mxu0 0.0
      %1143 = vmatprep.subr.mxu0 0.0
      %1144 = vmatpush1.xpose.msra.mxu0 0.0
      %1145 = vmatprep.subr.mxu0 0.0
      %1146 = vmatpush1.xpose.msra.mxu0 0.0
      %1147 = vmatprep.subr.mxu0 0.0
      %1148 = vmatpush1.xpose.msra.mxu0 0.0
      %1149 = vmatprep.subr.mxu0 0.0
      %1150 = vmatpush1.xpose.msra.mxu0 0.0
      %1151 = vmatprep.subr.mxu0 0.0
      %1152 = vmatpush1.xpose.msra.mxu0 0.0
      %1153 = vmatprep.subr.mxu0 0.0
      %1154 = vmatpush1.xpose.msra.mxu0 0.0
      %1155 = vmatprep.subr.mxu0 0.0
      %1156 = vmatpush1.xpose.msra.mxu0 0.0
      %1157 = vmatprep.subr.mxu0 0.0
      %1158 = vmatpush1.xpose.msra.mxu0 0.0
      %1159 = vmatprep.subr.mxu0 0.0
      %1160 = vmatpush1.xpose.msra.mxu0 0.0
      %1161 = vmatprep.subr.mxu0 0.0
      %1162 = vmatpush1.xpose.msra.mxu0 0.0
      %1163 = vmatprep.subr.mxu0 0.0
      %1164 = vmatpush1.xpose.msra.mxu0 0.0
      %1165 = vmatprep.subr.mxu0 0.0
      %1166 = vmatpush1.xpose.msra.mxu0 0.0
      %1167 = vmatprep.subr.mxu0 0.0
      %1168 = vmatpush1.xpose.msra.mxu0 0.0
      %1169 = vmatprep.subr.mxu0 0.0
      %1170 = vmatpush1.xpose.msra.mxu0 0.0
      %1171 = vmatprep.subr.mxu0 0.0
      %1172 = vmatpush1.xpose.msra.mxu0 0.0
      %1173 = vmatprep.subr.mxu0 0.0
      %1174 = vmatpush1.xpose.msra.mxu0 0.0
      %1175 = vmatprep.mubr.f32.mxu0 0.0
      %1176 = vmatmul.mubr.f32.gmra.mrb[0].mxu0 %v1107
      %v1177 = vpop.f32.mrb[0].mxu0
      %v1178 = vadd.f32 0.0, %v1177
      %v1179 = vpop.f32.mrb[0].mxu0
      %1180 = vdwg.mxu0
      %v1181 = vmul.f32 %v1024, 0.35355338
      %v1182 = vmul.f32 %v1101, 0.35355338
      %v1183 = vmul.f32 %v1178, 0.35355338
      %v1184 = vsel %vm948, 1, 0
      %vm1185 = vcmp.eq.s32.totalorder %v1184, 1
      %v1186 = vsel %vm1185, -1e+30, %v1181
      %v1187 = vsel %vm1185, -1e+30, %v1182
      %v1188 = vsel %vm1185, -1e+30, %v1183
      %v1189 = vsel %vm952, %v1186, -inf
      %1190 = vmax.xlane.f32.xlu0 %v1189
      %v1191 = vpop.xlane.xlu0 %1190
      %v1192 = vsel %vm952, %v1187, -inf
      %1193 = vmax.xlane.f32.xlu0 %v1192
      %v1194 = vpop.xlane.xlu0 %1193
      %v1195 = vsel %vm952, %v1188, -inf
      %1196 = vmax.xlane.f32.xlu0 %v1195
      %v1197 = vpop.xlane.xlu0 %1196
      %v1198 = vsub.f32 %v1186, %v1191
      %v1199 = vsub.f32 %v1187, %v1194
      %v1200 = vsub.f32 %v1188, %v1197
      %v1201 = vmul.f32 %v1198, 1.442695
      %v1202 = vpow.pop %v1201
      %v1203 = vmul.f32 %v1199, 1.442695
      %v1204 = vpow.pop %v1203
      %v1205 = vmul.f32 %v1200, 1.442695
      %v1206 = vpow.pop %v1205
      %v1207 = vsel %vm952, %v1202, 0.0
      %1208 = vadd.xlane.f32.xlu0 %v1207
      %v1209 = vpop.xlane.xlu0 %1208
      %v1210 = vsel %vm952, %v1204, 0.0
      %1211 = vadd.xlane.f32.xlu0 %v1210
      %v1212 = vpop.xlane.xlu0 %1211
      %v1213 = vsel %vm952, %v1206, 0.0
      %1214 = vadd.xlane.f32.xlu0 %v1213
      %v1215 = vpop.xlane.xlu0 %1214
      %v1216 = vrcp.pop %v1209
      %v1217 = vrcp.pop %v1212
      %v1218 = vrcp.pop %v1215
      %v1219 = vmul.f32 %v1202, %v1216
      %v1220 = vmul.f32 %v1204, %v1217
      %v1221 = vmul.f32 %v1206, %v1218
      %1222 = vrot.lane.b32.xlu0 %v931, 64
      %v1223 = vpop.permute.xlu0 %1222
      %v1226 = vsel %vm952, %v1219, 0
      %1228 = vmatprep.subr.mxu0 0.0
      %1229 = vmatpush1.msra.mxu0 %v1223
      %1230 = vmatprep.subr.mxu0 0.0
      %1231 = vmatpush1.msra.mxu0 0.0
      %1232 = vmatprep.subr.mxu0 0.0
      %1233 = vmatpush1.msra.mxu0 0.0
      %1234 = vmatprep.subr.mxu0 0.0
      %1235 = vmatpush1.msra.mxu0 0.0
      %1236 = vmatprep.subr.mxu0 0.0
      %1237 = vmatpush1.msra.mxu0 0.0
      %1238 = vmatprep.subr.mxu0 0.0
      %1239 = vmatpush1.msra.mxu0 0.0
      %1240 = vmatprep.subr.mxu0 0.0
      %1241 = vmatpush1.msra.mxu0 0.0
      %1242 = vmatprep.subr.mxu0 0.0
      %1243 = vmatpush1.msra.mxu0 0.0
      %1244 = vmatprep.subr.mxu0 0.0
      %1245 = vmatpush1.msra.mxu0 0.0
      %1246 = vmatprep.subr.mxu0 0.0
      %1247 = vmatpush1.msra.mxu0 0.0
      %1248 = vmatprep.subr.mxu0 0.0
      %1249 = vmatpush1.msra.mxu0 0.0
      %1250 = vmatprep.subr.mxu0 0.0
      %1251 = vmatpush1.msra.mxu0 0.0
      %1252 = vmatprep.subr.mxu0 0.0
      %1253 = vmatpush1.msra.mxu0 0.0
      %1254 = vmatprep.subr.mxu0 0.0
      %1255 = vmatpush1.msra.mxu0 0.0
      %1256 = vmatprep.subr.mxu0 0.0
      %1257 = vmatpush1.msra.mxu0 0.0
      %1258 = vmatprep.subr.mxu0 0.0
      %1259 = vmatpush1.msra.mxu0 0.0
      %1260 = vmatprep.subr.mxu0 0.0
      %1261 = vmatpush1.msra.mxu0 0.0
      %1262 = vmatprep.subr.mxu0 0.0
      %1263 = vmatpush1.msra.mxu0 0.0
      %1264 = vmatprep.subr.mxu0 0.0
      %1265 = vmatpush1.msra.mxu0 0.0
      %1266 = vmatprep.subr.mxu0 0.0
      %1267 = vmatpush1.msra.mxu0 0.0
      %1268 = vmatprep.subr.mxu0 0.0
      %1269 = vmatpush1.msra.mxu0 0.0
      %1270 = vmatprep.subr.mxu0 0.0
      %1271 = vmatpush1.msra.mxu0 0.0
      %1272 = vmatprep.subr.mxu0 0.0
      %1273 = vmatpush1.msra.mxu0 0.0
      %1274 = vmatprep.subr.mxu0 0.0
      %1275 = vmatpush1.msra.mxu0 0.0
      %1276 = vmatprep.subr.mxu0 0.0
      %1277 = vmatpush1.msra.mxu0 0.0
      %1278 = vmatprep.subr.mxu0 0.0
      %1279 = vmatpush1.msra.mxu0 0.0
      %1280 = vmatprep.subr.mxu0 0.0
      %1281 = vmatpush1.msra.mxu0 0.0
      %1282 = vmatprep.subr.mxu0 0.0
      %1283 = vmatpush1.msra.mxu0 0.0
      %1284 = vmatprep.subr.mxu0 0.0
      %1285 = vmatpush1.msra.mxu0 0.0
      %1286 = vmatprep.subr.mxu0 0.0
      %1287 = vmatpush1.msra.mxu0 0.0
      %1288 = vmatprep.subr.mxu0 0.0
      %1289 = vmatpush1.msra.mxu0 0.0
      %1290 = vmatprep.subr.mxu0 0.0
      %1291 = vmatpush1.msra.mxu0 0.0
      %1292 = vmatprep.mubr.f32.mxu0 0.0
      %1293 = vmatmul.mubr.f32.gmra.mrb[0].mxu0 %v1226
      %v1294 = vpop.f32.mrb[0].mxu0
      %v1295 = vadd.f32 0.0, %v1294
      %v1296 = vpop.f32.mrb[0].mxu0
      %1297 = vdwg.mxu0
      %1298 = vrot.lane.b32.xlu0 %v934, 64
      %v1299 = vpop.permute.xlu0 %1298
      %v1302 = vsel %vm952, %v1220, 0
      %1304 = vmatprep.subr.mxu0 0.0
      %1305 = vmatpush1.msra.mxu0 %v1299
      %1306 = vmatprep.subr.mxu0 0.0
      %1307 = vmatpush1.msra.mxu0 0.0
      %1308 = vmatprep.subr.mxu0 0.0
      %1309 = vmatpush1.msra.mxu0 0.0
      %1310 = vmatprep.subr.mxu0 0.0
      %1311 = vmatpush1.msra.mxu0 0.0
      %1312 = vmatprep.subr.mxu0 0.0
      %1313 = vmatpush1.msra.mxu0 0.0
      %1314 = vmatprep.subr.mxu0 0.0
      %1315 = vmatpush1.msra.mxu0 0.0
      %1316 = vmatprep.subr.mxu0 0.0
      %1317 = vmatpush1.msra.mxu0 0.0
      %1318 = vmatprep.subr.mxu0 0.0
      %1319 = vmatpush1.msra.mxu0 0.0
      %1320 = vmatprep.subr.mxu0 0.0
      %1321 = vmatpush1.msra.mxu0 0.0
      %1322 = vmatprep.subr.mxu0 0.0
      %1323 = vmatpush1.msra.mxu0 0.0
      %1324 = vmatprep.subr.mxu0 0.0
      %1325 = vmatpush1.msra.mxu0 0.0
      %1326 = vmatprep.subr.mxu0 0.0
      %1327 = vmatpush1.msra.mxu0 0.0
      %1328 = vmatprep.subr.mxu0 0.0
      %1329 = vmatpush1.msra.mxu0 0.0
      %1330 = vmatprep.subr.mxu0 0.0
      %1331 = vmatpush1.msra.mxu0 0.0
      %1332 = vmatprep.subr.mxu0 0.0
      %1333 = vmatpush1.msra.mxu0 0.0
      %1334 = vmatprep.subr.mxu0 0.0
      %1335 = vmatpush1.msra.mxu0 0.0
      %1336 = vmatprep.subr.mxu0 0.0
      %1337 = vmatpush1.msra.mxu0 0.0
      %1338 = vmatprep.subr.mxu0 0.0
      %1339 = vmatpush1.msra.mxu0 0.0
      %1340 = vmatprep.subr.mxu0 0.0
      %1341 = vmatpush1.msra.mxu0 0.0
      %1342 = vmatprep.subr.mxu0 0.0
      %1343 = vmatpush1.msra.mxu0 0.0
      %1344 = vmatprep.subr.mxu0 0.0
      %1345 = vmatpush1.msra.mxu0 0.0
      %1346 = vmatprep.subr.mxu0 0.0
      %1347 = vmatpush1.msra.mxu0 0.0
      %1348 = vmatprep.subr.mxu0 0.0
      %1349 = vmatpush1.msra.mxu0 0.0
      %1350 = vmatprep.subr.mxu0 0.0
      %1351 = vmatpush1.msra.mxu0 0.0
      %1352 = vmatprep.subr.mxu0 0.0
      %1353 = vmatpush1.msra.mxu0 0.0
      %1354 = vmatprep.subr.mxu0 0.0
      %1355 = vmatpush1.msra.mxu0 0.0
      %1356 = vmatprep.subr.mxu0 0.0
      %1357 = vmatpush1.msra.mxu0 0.0
      %1358 = vmatprep.subr.mxu0 0.0
      %1359 = vmatpush1.msra.mxu0 0.0
      %1360 = vmatprep.subr.mxu0 0.0
      %1361 = vmatpush1.msra.mxu0 0.0
      %1362 = vmatprep.subr.mxu0 0.0
      %1363 = vmatpush1.msra.mxu0 0.0
      %1364 = vmatprep.subr.mxu0 0.0
      %1365 = vmatpush1.msra.mxu0 0.0
      %1366 = vmatprep.subr.mxu0 0.0
      %1367 = vmatpush1.msra.mxu0 0.0
      %1368 = vmatprep.mubr.f32.mxu0 0.0
      %1369 = vmatmul.mubr.f32.gmra.mrb[0].mxu0 %v1302
      %v1370 = vpop.f32.mrb[0].mxu0
      %v1371 = vadd.f32 0.0, %v1370
      %v1372 = vpop.f32.mrb[0].mxu0
      %1373 = vdwg.mxu0
      %1374 = vrot.lane.b32.xlu0 %v939, 64
      %v1375 = vpop.permute.xlu0 %1374
      %v1378 = vsel %vm952, %v1221, 0
      %1380 = vmatprep.subr.mxu0 0.0
      %1381 = vmatpush1.msra.mxu0 %v1375
      %1382 = vmatprep.subr.mxu0 0.0
      %1383 = vmatpush1.msra.mxu0 0.0
      %1384 = vmatprep.subr.mxu0 0.0
      %1385 = vmatpush1.msra.mxu0 0.0
      %1386 = vmatprep.subr.mxu0 0.0
      %1387 = vmatpush1.msra.mxu0 0.0
      %1388 = vmatprep.subr.mxu0 0.0
      %1389 = vmatpush1.msra.mxu0 0.0
      %1390 = vmatprep.subr.mxu0 0.0
      %1391 = vmatpush1.msra.mxu0 0.0
      %1392 = vmatprep.subr.mxu0 0.0
      %1393 = vmatpush1.msra.mxu0 0.0
      %1394 = vmatprep.subr.mxu0 0.0
      %1395 = vmatpush1.msra.mxu0 0.0
      %1396 = vmatprep.subr.mxu0 0.0
      %1397 = vmatpush1.msra.mxu0 0.0
      %1398 = vmatprep.subr.mxu0 0.0
      %1399 = vmatpush1.msra.mxu0 0.0
      %1400 = vmatprep.subr.mxu0 0.0
      %1401 = vmatpush1.msra.mxu0 0.0
      %1402 = vmatprep.subr.mxu0 0.0
      %1403 = vmatpush1.msra.mxu0 0.0
      %1404 = vmatprep.subr.mxu0 0.0
      %1405 = vmatpush1.msra.mxu0 0.0
      %1406 = vmatprep.subr.mxu0 0.0
      %1407 = vmatpush1.msra.mxu0 0.0
      %1408 = vmatprep.subr.mxu0 0.0
      %1409 = vmatpush1.msra.mxu0 0.0
      %1410 = vmatprep.subr.mxu0 0.0
      %1411 = vmatpush1.msra.mxu0 0.0
      %1412 = vmatprep.subr.mxu0 0.0
      %1413 = vmatpush1.msra.mxu0 0.0
      %1414 = vmatprep.subr.mxu0 0.0
      %1415 = vmatpush1.msra.mxu0 0.0
      %1416 = vmatprep.subr.mxu0 0.0
      %1417 = vmatpush1.msra.mxu0 0.0
      %1418 = vmatprep.subr.mxu0 0.0
      %1419 = vmatpush1.msra.mxu0 0.0
      %1420 = vmatprep.subr.mxu0 0.0
      %1421 = vmatpush1.msra.mxu0 0.0
      %1422 = vmatprep.subr.mxu0 0.0
      %1423 = vmatpush1.msra.mxu0 0.0
      %1424 = vmatprep.subr.mxu0 0.0
      %1425 = vmatpush1.msra.mxu0 0.0
      %1426 = vmatprep.subr.mxu0 0.0
      %1427 = vmatpush1.msra.mxu0 0.0
      %1428 = vmatprep.subr.mxu0 0.0
      %1429 = vmatpush1.msra.mxu0 0.0
      %1430 = vmatprep.subr.mxu0 0.0
      %1431 = vmatpush1.msra.mxu0 0.0
      %1432 = vmatprep.subr.mxu0 0.0
      %1433 = vmatpush1.msra.mxu0 0.0
      %1434 = vmatprep.subr.mxu0 0.0
      %1435 = vmatpush1.msra.mxu0 0.0
      %1436 = vmatprep.subr.mxu0 0.0
      %1437 = vmatpush1.msra.mxu0 0.0
      %1438 = vmatprep.subr.mxu0 0.0
      %1439 = vmatpush1.msra.mxu0 0.0
      %1440 = vmatprep.subr.mxu0 0.0
      %1441 = vmatpush1.msra.mxu0 0.0
      %1442 = vmatprep.subr.mxu0 0.0
      %1443 = vmatpush1.msra.mxu0 0.0
      %1444 = vmatprep.mubr.f32.mxu0 0.0
      %1445 = vmatmul.mubr.f32.gmra.mrb[0].mxu0 %v1378
      %v1446 = vpop.f32.mrb[0].mxu0
      %v1447 = vadd.f32 0.0, %v1446
      %v1448 = vpop.f32.mrb[0].mxu0
      %1449 = vdwg.mxu0
      %1450 = vrot.lane.b32.xlu0 %v931, 120
      %v1451 = vpop.permute.xlu0 %1450
      %1452 = vrot.lane.b32.xlu0 %v931, 88
      %v1453 = vpop.permute.xlu0 %1452
      %v1454 = vsel %vm952, %v1451, 0
      %v1456 = vsel %vm952, %v1453, 0
      %1458 = vmatprep.subr.mxu0 0.0
      %1459 = vmatpush1.xpose.msra.mxu0 %v1456
      %1460 = vmatprep.subr.mxu0 0.0
      %1461 = vmatpush1.xpose.msra.mxu0 0.0
      %1462 = vmatprep.subr.mxu0 0.0
      %1463 = vmatpush1.xpose.msra.mxu0 0.0
      %1464 = vmatprep.subr.mxu0 0.0
      %1465 = vmatpush1.xpose.msra.mxu0 0.0
      %1466 = vmatprep.subr.mxu0 0.0
      %1467 = vmatpush1.xpose.msra.mxu0 0.0
      %1468 = vmatprep.subr.mxu0 0.0
      %1469 = vmatpush1.xpose.msra.mxu0 0.0
      %1470 = vmatprep.subr.mxu0 0.0
      %1471 = vmatpush1.xpose.msra.mxu0 0.0
      %1472 = vmatprep.subr.mxu0 0.0
      %1473 = vmatpush1.xpose.msra.mxu0 0.0
      %1474 = vmatprep.subr.mxu0 0.0
      %1475 = vmatpush1.xpose.msra.mxu0 0.0
      %1476 = vmatprep.subr.mxu0 0.0
      %1477 = vmatpush1.xpose.msra.mxu0 0.0
      %1478 = vmatprep.subr.mxu0 0.0
      %1479 = vmatpush1.xpose.msra.mxu0 0.0
      %1480 = vmatprep.subr.mxu0 0.0
      %1481 = vmatpush1.xpose.msra.mxu0 0.0
      %1482 = vmatprep.subr.mxu0 0.0
      %1483 = vmatpush1.xpose.msra.mxu0 0.0
      %1484 = vmatprep.subr.mxu0 0.0
      %1485 = vmatpush1.xpose.msra.mxu0 0.0
      %1486 = vmatprep.subr.mxu0 0.0
      %1487 = vmatpush1.xpose.msra.mxu0 0.0
      %1488 = vmatprep.subr.mxu0 0.0
      %1489 = vmatpush1.xpose.msra.mxu0 0.0
      %1490 = vmatprep.subr.mxu0 0.0
      %1491 = vmatpush1.xpose.msra.mxu0 0.0
      %1492 = vmatprep.subr.mxu0 0.0
      %1493 = vmatpush1.xpose.msra.mxu0 0.0
      %1494 = vmatprep.subr.mxu0 0.0
      %1495 = vmatpush1.xpose.msra.mxu0 0.0
      %1496 = vmatprep.subr.mxu0 0.0
      %1497 = vmatpush1.xpose.msra.mxu0 0.0
      %1498 = vmatprep.subr.mxu0 0.0
      %1499 = vmatpush1.xpose.msra.mxu0 0.0
      %1500 = vmatprep.subr.mxu0 0.0
      %1501 = vmatpush1.xpose.msra.mxu0 0.0
      %1502 = vmatprep.subr.mxu0 0.0
      %1503 = vmatpush1.xpose.msra.mxu0 0.0
      %1504 = vmatprep.subr.mxu0 0.0
      %1505 = vmatpush1.xpose.msra.mxu0 0.0
      %1506 = vmatprep.subr.mxu0 0.0
      %1507 = vmatpush1.xpose.msra.mxu0 0.0
      %1508 = vmatprep.subr.mxu0 0.0
      %1509 = vmatpush1.xpose.msra.mxu0 0.0
      %1510 = vmatprep.subr.mxu0 0.0
      %1511 = vmatpush1.xpose.msra.mxu0 0.0
      %1512 = vmatprep.subr.mxu0 0.0
      %1513 = vmatpush1.xpose.msra.mxu0 0.0
      %1514 = vmatprep.subr.mxu0 0.0
      %1515 = vmatpush1.xpose.msra.mxu0 0.0
      %1516 = vmatprep.subr.mxu0 0.0
      %1517 = vmatpush1.xpose.msra.mxu0 0.0
      %1518 = vmatprep.subr.mxu0 0.0
      %1519 = vmatpush1.xpose.msra.mxu0 0.0
      %1520 = vmatprep.subr.mxu0 0.0
      %1521 = vmatpush1.xpose.msra.mxu0 0.0
      %1522 = vmatprep.mubr.f32.mxu0 0.0
      %1523 = vmatmul.mubr.f32.gmra.mrb[0].mxu0 %v1454
      %v1524 = vpop.f32.mrb[0].mxu0
      %v1525 = vadd.f32 0.0, %v1524
      %v1526 = vpop.f32.mrb[0].mxu0
      %1527 = vdwg.mxu0
      %1528 = vrot.lane.b32.xlu0 %v934, 120
      %v1529 = vpop.permute.xlu0 %1528
      %1530 = vrot.lane.b32.xlu0 %v934, 88
      %v1531 = vpop.permute.xlu0 %1530
      %v1532 = vsel %vm952, %v1529, 0
      %v1534 = vsel %vm952, %v1531, 0
      %1536 = vmatprep.subr.mxu0 0.0
      %1537 = vmatpush1.xpose.msra.mxu0 %v1534
      %1538 = vmatprep.subr.mxu0 0.0
      %1539 = vmatpush1.xpose.msra.mxu0 0.0
      %1540 = vmatprep.subr.mxu0 0.0
      %1541 = vmatpush1.xpose.msra.mxu0 0.0
      %1542 = vmatprep.subr.mxu0 0.0
      %1543 = vmatpush1.xpose.msra.mxu0 0.0
      %1544 = vmatprep.subr.mxu0 0.0
      %1545 = vmatpush1.xpose.msra.mxu0 0.0
      %1546 = vmatprep.subr.mxu0 0.0
      %1547 = vmatpush1.xpose.msra.mxu0 0.0
      %1548 = vmatprep.subr.mxu0 0.0
      %1549 = vmatpush1.xpose.msra.mxu0 0.0
      %1550 = vmatprep.subr.mxu0 0.0
      %1551 = vmatpush1.xpose.msra.mxu0 0.0
      %1552 = vmatprep.subr.mxu0 0.0
      %1553 = vmatpush1.xpose.msra.mxu0 0.0
      %1554 = vmatprep.subr.mxu0 0.0
      %1555 = vmatpush1.xpose.msra.mxu0 0.0
      %1556 = vmatprep.subr.mxu0 0.0
      %1557 = vmatpush1.xpose.msra.mxu0 0.0
      %1558 = vmatprep.subr.mxu0 0.0
      %1559 = vmatpush1.xpose.msra.mxu0 0.0
      %1560 = vmatprep.subr.mxu0 0.0
      %1561 = vmatpush1.xpose.msra.mxu0 0.0
      %1562 = vmatprep.subr.mxu0 0.0
      %1563 = vmatpush1.xpose.msra.mxu0 0.0
      %1564 = vmatprep.subr.mxu0 0.0
      %1565 = vmatpush1.xpose.msra.mxu0 0.0
      %1566 = vmatprep.subr.mxu0 0.0
      %1567 = vmatpush1.xpose.msra.mxu0 0.0
      %1568 = vmatprep.subr.mxu0 0.0
      %1569 = vmatpush1.xpose.msra.mxu0 0.0
      %1570 = vmatprep.subr.mxu0 0.0
      %1571 = vmatpush1.xpose.msra.mxu0 0.0
      %1572 = vmatprep.subr.mxu0 0.0
      %1573 = vmatpush1.xpose.msra.mxu0 0.0
      %1574 = vmatprep.subr.mxu0 0.0
      %1575 = vmatpush1.xpose.msra.mxu0 0.0
      %1576 = vmatprep.subr.mxu0 0.0
      %1577 = vmatpush1.xpose.msra.mxu0 0.0
      %1578 = vmatprep.subr.mxu0 0.0
      %1579 = vmatpush1.xpose.msra.mxu0 0.0
      %1580 = vmatprep.subr.mxu0 0.0
      %1581 = vmatpush1.xpose.msra.mxu0 0.0
      %1582 = vmatprep.subr.mxu0 0.0
      %1583 = vmatpush1.xpose.msra.mxu0 0.0
      %1584 = vmatprep.subr.mxu0 0.0
      %1585 = vmatpush1.xpose.msra.mxu0 0.0
      %1586 = vmatprep.subr.mxu0 0.0
      %1587 = vmatpush1.xpose.msra.mxu0 0.0
      %1588 = vmatprep.subr.mxu0 0.0
      %1589 = vmatpush1.xpose.msra.mxu0 0.0
      %1590 = vmatprep.subr.mxu0 0.0
      %1591 = vmatpush1.xpose.msra.mxu0 0.0
      %1592 = vmatprep.subr.mxu0 0.0
      %1593 = vmatpush1.xpose.msra.mxu0 0.0
      %1594 = vmatprep.subr.mxu0 0.0
      %1595 = vmatpush1.xpose.msra.mxu0 0.0
      %1596 = vmatprep.subr.mxu0 0.0
      %1597 = vmatpush1.xpose.msra.mxu0 0.0
      %1598 = vmatprep.subr.mxu0 0.0
      %1599 = vmatpush1.xpose.msra.mxu0 0.0
      %1600 = vmatprep.mubr.f32.mxu0 0.0
      %1601 = vmatmul.mubr.f32.gmra.mrb[0].mxu0 %v1532
      %v1602 = vpop.f32.mrb[0].mxu0
      %v1603 = vadd.f32 0.0, %v1602
      %v1604 = vpop.f32.mrb[0].mxu0
      %1605 = vdwg.mxu0
      %1606 = vrot.lane.b32.xlu0 %v939, 120
      %v1607 = vpop.permute.xlu0 %1606
      %1608 = vrot.lane.b32.xlu0 %v939, 88
      %v1609 = vpop.permute.xlu0 %1608
      %v1610 = vsel %vm952, %v1607, 0
      %v1612 = vsel %vm952, %v1609, 0
      %1614 = vmatprep.subr.mxu0 0.0
      %1615 = vmatpush1.xpose.msra.mxu0 %v1612
      %1616 = vmatprep.subr.mxu0 0.0
      %1617 = vmatpush1.xpose.msra.mxu0 0.0
      %1618 = vmatprep.subr.mxu0 0.0
      %1619 = vmatpush1.xpose.msra.mxu0 0.0
      %1620 = vmatprep.subr.mxu0 0.0
      %1621 = vmatpush1.xpose.msra.mxu0 0.0
      %1622 = vmatprep.subr.mxu0 0.0
      %1623 = vmatpush1.xpose.msra.mxu0 0.0
      %1624 = vmatprep.subr.mxu0 0.0
      %1625 = vmatpush1.xpose.msra.mxu0 0.0
      %1626 = vmatprep.subr.mxu0 0.0
      %1627 = vmatpush1.xpose.msra.mxu0 0.0
      %1628 = vmatprep.subr.mxu0 0.0
      %1629 = vmatpush1.xpose.msra.mxu0 0.0
      %1630 = vmatprep.subr.mxu0 0.0
      %1631 = vmatpush1.xpose.msra.mxu0 0.0
      %1632 = vmatprep.subr.mxu0 0.0
      %1633 = vmatpush1.xpose.msra.mxu0 0.0
      %1634 = vmatprep.subr.mxu0 0.0
      %1635 = vmatpush1.xpose.msra.mxu0 0.0
      %1636 = vmatprep.subr.mxu0 0.0
      %1637 = vmatpush1.xpose.msra.mxu0 0.0
      %1638 = vmatprep.subr.mxu0 0.0
      %1639 = vmatpush1.xpose.msra.mxu0 0.0
      %1640 = vmatprep.subr.mxu0 0.0
      %1641 = vmatpush1.xpose.msra.mxu0 0.0
      %1642 = vmatprep.subr.mxu0 0.0
      %1643 = vmatpush1.xpose.msra.mxu0 0.0
      %1644 = vmatprep.subr.mxu0 0.0
      %1645 = vmatpush1.xpose.msra.mxu0 0.0
      %1646 = vmatprep.subr.mxu0 0.0
      %1647 = vmatpush1.xpose.msra.mxu0 0.0
      %1648 = vmatprep.subr.mxu0 0.0
      %1649 = vmatpush1.xpose.msra.mxu0 0.0
      %1650 = vmatprep.subr.mxu0 0.0
      %1651 = vmatpush1.xpose.msra.mxu0 0.0
      %1652 = vmatprep.subr.mxu0 0.0
      %1653 = vmatpush1.xpose.msra.mxu0 0.0
      %1654 = vmatprep.subr.mxu0 0.0
      %1655 = vmatpush1.xpose.msra.mxu0 0.0
      %1656 = vmatprep.subr.mxu0 0.0
      %1657 = vmatpush1.xpose.msra.mxu0 0.0
      %1658 = vmatprep.subr.mxu0 0.0
      %1659 = vmatpush1.xpose.msra.mxu0 0.0
      %1660 = vmatprep.subr.mxu0 0.0
      %1661 = vmatpush1.xpose.msra.mxu0 0.0
      %1662 = vmatprep.subr.mxu0 0.0
      %1663 = vmatpush1.xpose.msra.mxu0 0.0
      %1664 = vmatprep.subr.mxu0 0.0
      %1665 = vmatpush1.xpose.msra.mxu0 0.0
      %1666 = vmatprep.subr.mxu0 0.0
      %1667 = vmatpush1.xpose.msra.mxu0 0.0
      %1668 = vmatprep.subr.mxu0 0.0
      %1669 = vmatpush1.xpose.msra.mxu0 0.0
      %1670 = vmatprep.subr.mxu0 0.0
      %1671 = vmatpush1.xpose.msra.mxu0 0.0
      %1672 = vmatprep.subr.mxu0 0.0
      %1673 = vmatpush1.xpose.msra.mxu0 0.0
      %1674 = vmatprep.subr.mxu0 0.0
      %1675 = vmatpush1.xpose.msra.mxu0 0.0
      %1676 = vmatprep.subr.mxu0 0.0
      %1677 = vmatpush1.xpose.msra.mxu0 0.0
      %1678 = vmatprep.mubr.f32.mxu0 0.0
      %1679 = vmatmul.mubr.f32.gmra.mrb[0].mxu0 %v1610
      %v1680 = vpop.f32.mrb[0].mxu0
      %v1681 = vadd.f32 0.0, %v1680
      %v1682 = vpop.f32.mrb[0].mxu0
      %1683 = vdwg.mxu0
      %v1684 = vmul.f32 %v1525, 0.35355338
      %v1685 = vmul.f32 %v1603, 0.35355338
      %v1686 = vmul.f32 %v1681, 0.35355338
      %v1687 = vsel %vm1185, -1e+30, %v1684
      %v1688 = vsel %vm1185, -1e+30, %v1685
      %v1689 = vsel %vm1185, -1e+30, %v1686
      %v1690 = vsel %vm952, %v1687, -inf
      %1691 = vmax.xlane.f32.xlu0 %v1690
      %v1692 = vpop.xlane.xlu0 %1691
      %v1693 = vsel %vm952, %v1688, -inf
      %1694 = vmax.xlane.f32.xlu0 %v1693
      %v1695 = vpop.xlane.xlu0 %1694
      %v1696 = vsel %vm952, %v1689, -inf
      %1697 = vmax.xlane.f32.xlu0 %v1696
      %v1698 = vpop.xlane.xlu0 %1697
      %v1699 = vsub.f32 %v1687, %v1692
      %v1700 = vsub.f32 %v1688, %v1695
      %v1701 = vsub.f32 %v1689, %v1698
      %v1702 = vmul.f32 %v1699, 1.442695
      %v1703 = vpow.pop %v1702
      %v1704 = vmul.f32 %v1700, 1.442695
      %v1705 = vpow.pop %v1704
      %v1706 = vmul.f32 %v1701, 1.442695
      %v1707 = vpow.pop %v1706
      %v1708 = vsel %vm952, %v1703, 0.0
      %1709 = vadd.xlane.f32.xlu0 %v1708
      %v1710 = vpop.xlane.xlu0 %1709
      %v1711 = vsel %vm952, %v1705, 0.0
      %1712 = vadd.xlane.f32.xlu0 %v1711
      %v1713 = vpop.xlane.xlu0 %1712
      %v1714 = vsel %vm952, %v1707, 0.0
      %1715 = vadd.xlane.f32.xlu0 %v1714
      %v1716 = vpop.xlane.xlu0 %1715
      %v1717 = vrcp.pop %v1710
      %v1718 = vrcp.pop %v1713
      %v1719 = vrcp.pop %v1716
      %v1720 = vmul.f32 %v1703, %v1717
      %v1721 = vmul.f32 %v1705, %v1718
      %v1722 = vmul.f32 %v1707, %v1719
      %1723 = vrot.lane.b32.xlu0 %v931, 56
      %v1724 = vpop.permute.xlu0 %1723
      %v1727 = vsel %vm952, %v1720, 0
      %1729 = vmatprep.subr.mxu0 0.0
      %1730 = vmatpush1.msra.mxu0 %v1724
      %1731 = vmatprep.subr.mxu0 0.0
      %1732 = vmatpush1.msra.mxu0 0.0
      %1733 = vmatprep.subr.mxu0 0.0
      %1734 = vmatpush1.msra.mxu0 0.0
      %1735 = vmatprep.subr.mxu0 0.0
      %1736 = vmatpush1.msra.mxu0 0.0
      %1737 = vmatprep.subr.mxu0 0.0
      %1738 = vmatpush1.msra.mxu0 0.0
      %1739 = vmatprep.subr.mxu0 0.0
      %1740 = vmatpush1.msra.mxu0 0.0
      %1741 = vmatprep.subr.mxu0 0.0
      %1742 = vmatpush1.msra.mxu0 0.0
      %1743 = vmatprep.subr.mxu0 0.0
      %1744 = vmatpush1.msra.mxu0 0.0
      %1745 = vmatprep.subr.mxu0 0.0
      %1746 = vmatpush1.msra.mxu0 0.0
      %1747 = vmatprep.subr.mxu0 0.0
      %1748 = vmatpush1.msra.mxu0 0.0
      %1749 = vmatprep.subr.mxu0 0.0
      %1750 = vmatpush1.msra.mxu0 0.0
      %1751 = vmatprep.subr.mxu0 0.0
      %1752 = vmatpush1.msra.mxu0 0.0
      %1753 = vmatprep.subr.mxu0 0.0
      %1754 = vmatpush1.msra.mxu0 0.0
      %1755 = vmatprep.subr.mxu0 0.0
      %1756 = vmatpush1.msra.mxu0 0.0
      %1757 = vmatprep.subr.mxu0 0.0
      %1758 = vmatpush1.msra.mxu0 0.0
      %1759 = vmatprep.subr.mxu0 0.0
      %1760 = vmatpush1.msra.mxu0 0.0
      %1761 = vmatprep.subr.mxu0 0.0
      %1762 = vmatpush1.msra.mxu0 0.0
      %1763 = vmatprep.subr.mxu0 0.0
      %1764 = vmatpush1.msra.mxu0 0.0
      %1765 = vmatprep.subr.mxu0 0.0
      %1766 = vmatpush1.msra.mxu0 0.0
      %1767 = vmatprep.subr.mxu0 0.0
      %1768 = vmatpush1.msra.mxu0 0.0
      %1769 = vmatprep.subr.mxu0 0.0
      %1770 = vmatpush1.msra.mxu0 0.0
      %1771 = vmatprep.subr.mxu0 0.0
      %1772 = vmatpush1.msra.mxu0 0.0
      %1773 = vmatprep.subr.mxu0 0.0
      %1774 = vmatpush1.msra.mxu0 0.0
      %1775 = vmatprep.subr.mxu0 0.0
      %1776 = vmatpush1.msra.mxu0 0.0
      %1777 = vmatprep.subr.mxu0 0.0
      %1778 = vmatpush1.msra.mxu0 0.0
      %1779 = vmatprep.subr.mxu0 0.0
      %1780 = vmatpush1.msra.mxu0 0.0
      %1781 = vmatprep.subr.mxu0 0.0
      %1782 = vmatpush1.msra.mxu0 0.0
      %1783 = vmatprep.subr.mxu0 0.0
      %1784 = vmatpush1.msra.mxu0 0.0
      %1785 = vmatprep.subr.mxu0 0.0
      %1786 = vmatpush1.msra.mxu0 0.0
      %1787 = vmatprep.subr.mxu0 0.0
      %1788 = vmatpush1.msra.mxu0 0.0
      %1789 = vmatprep.subr.mxu0 0.0
      %1790 = vmatpush1.msra.mxu0 0.0
      %1791 = vmatprep.subr.mxu0 0.0
      %1792 = vmatpush1.msra.mxu0 0.0
      %1793 = vmatprep.mubr.f32.mxu0 0.0
      %1794 = vmatmul.mubr.f32.gmra.mrb[0].mxu0 %v1727
      %v1795 = vpop.f32.mrb[0].mxu0
      %v1796 = vadd.f32 0.0, %v1795
      %v1797 = vpop.f32.mrb[0].mxu0
      %1798 = vdwg.mxu0
      %1799 = vrot.lane.b32.xlu0 %v934, 56
      %v1800 = vpop.permute.xlu0 %1799
      %v1803 = vsel %vm952, %v1721, 0
      %1805 = vmatprep.subr.mxu0 0.0
      %1806 = vmatpush1.msra.mxu0 %v1800
      %1807 = vmatprep.subr.mxu0 0.0
      %1808 = vmatpush1.msra.mxu0 0.0
      %1809 = vmatprep.subr.mxu0 0.0
      %1810 = vmatpush1.msra.mxu0 0.0
      %1811 = vmatprep.subr.mxu0 0.0
      %1812 = vmatpush1.msra.mxu0 0.0
      %1813 = vmatprep.subr.mxu0 0.0
      %1814 = vmatpush1.msra.mxu0 0.0
      %1815 = vmatprep.subr.mxu0 0.0
      %1816 = vmatpush1.msra.mxu0 0.0
      %1817 = vmatprep.subr.mxu0 0.0
      %1818 = vmatpush1.msra.mxu0 0.0
      %1819 = vmatprep.subr.mxu0 0.0
      %1820 = vmatpush1.msra.mxu0 0.0
      %1821 = vmatprep.subr.mxu0 0.0
      %1822 = vmatpush1.msra.mxu0 0.0
      %1823 = vmatprep.subr.mxu0 0.0
      %1824 = vmatpush1.msra.mxu0 0.0
      %1825 = vmatprep.subr.mxu0 0.0
      %1826 = vmatpush1.msra.mxu0 0.0
      %1827 = vmatprep.subr.mxu0 0.0
      %1828 = vmatpush1.msra.mxu0 0.0
      %1829 = vmatprep.subr.mxu0 0.0
      %1830 = vmatpush1.msra.mxu0 0.0
      %1831 = vmatprep.subr.mxu0 0.0
      %1832 = vmatpush1.msra.mxu0 0.0
      %1833 = vmatprep.subr.mxu0 0.0
      %1834 = vmatpush1.msra.mxu0 0.0
      %1835 = vmatprep.subr.mxu0 0.0
      %1836 = vmatpush1.msra.mxu0 0.0
      %1837 = vmatprep.subr.mxu0 0.0
      %1838 = vmatpush1.msra.mxu0 0.0
      %1839 = vmatprep.subr.mxu0 0.0
      %1840 = vmatpush1.msra.mxu0 0.0
      %1841 = vmatprep.subr.mxu0 0.0
      %1842 = vmatpush1.msra.mxu0 0.0
      %1843 = vmatprep.subr.mxu0 0.0
      %1844 = vmatpush1.msra.mxu0 0.0
      %1845 = vmatprep.subr.mxu0 0.0
      %1846 = vmatpush1.msra.mxu0 0.0
      %1847 = vmatprep.subr.mxu0 0.0
      %1848 = vmatpush1.msra.mxu0 0.0
      %1849 = vmatprep.subr.mxu0 0.0
      %1850 = vmatpush1.msra.mxu0 0.0
      %1851 = vmatprep.subr.mxu0 0.0
      %1852 = vmatpush1.msra.mxu0 0.0
      %1853 = vmatprep.subr.mxu0 0.0
      %1854 = vmatpush1.msra.mxu0 0.0
      %1855 = vmatprep.subr.mxu0 0.0
      %1856 = vmatpush1.msra.mxu0 0.0
      %1857 = vmatprep.subr.mxu0 0.0
      %1858 = vmatpush1.msra.mxu0 0.0
      %1859 = vmatprep.subr.mxu0 0.0
      %1860 = vmatpush1.msra.mxu0 0.0
      %1861 = vmatprep.subr.mxu0 0.0
      %1862 = vmatpush1.msra.mxu0 0.0
      %1863 = vmatprep.subr.mxu0 0.0
      %1864 = vmatpush1.msra.mxu0 0.0
      %1865 = vmatprep.subr.mxu0 0.0
      %1866 = vmatpush1.msra.mxu0 0.0
      %1867 = vmatprep.subr.mxu0 0.0
      %1868 = vmatpush1.msra.mxu0 0.0
      %1869 = vmatprep.mubr.f32.mxu0 0.0
      %1870 = vmatmul.mubr.f32.gmra.mrb[0].mxu0 %v1803
      %v1871 = vpop.f32.mrb[0].mxu0
      %v1872 = vadd.f32 0.0, %v1871
      %v1873 = vpop.f32.mrb[0].mxu0
      %1874 = vdwg.mxu0
      %1875 = vrot.lane.b32.xlu0 %v939, 56
      %v1876 = vpop.permute.xlu0 %1875
      %v1879 = vsel %vm952, %v1722, 0
      %1881 = vmatprep.subr.mxu0 0.0
      %1882 = vmatpush1.msra.mxu0 %v1876
      %1883 = vmatprep.subr.mxu0 0.0
      %1884 = vmatpush1.msra.mxu0 0.0
      %1885 = vmatprep.subr.mxu0 0.0
      %1886 = vmatpush1.msra.mxu0 0.0
      %1887 = vmatprep.subr.mxu0 0.0
      %1888 = vmatpush1.msra.mxu0 0.0
      %1889 = vmatprep.subr.mxu0 0.0
      %1890 = vmatpush1.msra.mxu0 0.0
      %1891 = vmatprep.subr.mxu0 0.0
      %1892 = vmatpush1.msra.mxu0 0.0
      %1893 = vmatprep.subr.mxu0 0.0
      %1894 = vmatpush1.msra.mxu0 0.0
      %1895 = vmatprep.subr.mxu0 0.0
      %1896 = vmatpush1.msra.mxu0 0.0
      %1897 = vmatprep.subr.mxu0 0.0
      %1898 = vmatpush1.msra.mxu0 0.0
      %1899 = vmatprep.subr.mxu0 0.0
      %1900 = vmatpush1.msra.mxu0 0.0
      %1901 = vmatprep.subr.mxu0 0.0
      %1902 = vmatpush1.msra.mxu0 0.0
      %1903 = vmatprep.subr.mxu0 0.0
      %1904 = vmatpush1.msra.mxu0 0.0
      %1905 = vmatprep.subr.mxu0 0.0
      %1906 = vmatpush1.msra.mxu0 0.0
      %1907 = vmatprep.subr.mxu0 0.0
      %1908 = vmatpush1.msra.mxu0 0.0
      %1909 = vmatprep.subr.mxu0 0.0
      %1910 = vmatpush1.msra.mxu0 0.0
      %1911 = vmatprep.subr.mxu0 0.0
      %1912 = vmatpush1.msra.mxu0 0.0
      %1913 = vmatprep.subr.mxu0 0.0
      %1914 = vmatpush1.msra.mxu0 0.0
      %1915 = vmatprep.subr.mxu0 0.0
      %1916 = vmatpush1.msra.mxu0 0.0
      %1917 = vmatprep.subr.mxu0 0.0
      %1918 = vmatpush1.msra.mxu0 0.0
      %1919 = vmatprep.subr.mxu0 0.0
      %1920 = vmatpush1.msra.mxu0 0.0
      %1921 = vmatprep.subr.mxu0 0.0
      %1922 = vmatpush1.msra.mxu0 0.0
      %1923 = vmatprep.subr.mxu0 0.0
      %1924 = vmatpush1.msra.mxu0 0.0
      %1925 = vmatprep.subr.mxu0 0.0
      %1926 = vmatpush1.msra.mxu0 0.0
      %1927 = vmatprep.subr.mxu0 0.0
      %1928 = vmatpush1.msra.mxu0 0.0
      %1929 = vmatprep.subr.mxu0 0.0
      %1930 = vmatpush1.msra.mxu0 0.0
      %1931 = vmatprep.subr.mxu0 0.0
      %1932 = vmatpush1.msra.mxu0 0.0
      %1933 = vmatprep.subr.mxu0 0.0
      %1934 = vmatpush1.msra.mxu0 0.0
      %1935 = vmatprep.subr.mxu0 0.0
      %1936 = vmatpush1.msra.mxu0 0.0
      %1937 = vmatprep.subr.mxu0 0.0
      %1938 = vmatpush1.msra.mxu0 0.0
      %1939 = vmatprep.subr.mxu0 0.0
      %1940 = vmatpush1.msra.mxu0 0.0
      %1941 = vmatprep.subr.mxu0 0.0
      %1942 = vmatpush1.msra.mxu0 0.0
      %1943 = vmatprep.subr.mxu0 0.0
      %1944 = vmatpush1.msra.mxu0 0.0
      %1945 = vmatprep.mubr.f32.mxu0 0.0
      %1946 = vmatmul.mubr.f32.gmra.mrb[0].mxu0 %v1879
      %v1947 = vpop.f32.mrb[0].mxu0
      %v1948 = vadd.f32 0.0, %v1947
      %v1949 = vpop.f32.mrb[0].mxu0
      %1950 = vdwg.mxu0
      %1951 = vrot.lane.b32.xlu0 %v931, 112
      %v1952 = vpop.permute.xlu0 %1951
      %1953 = vrot.lane.b32.xlu0 %v931, 80
      %v1954 = vpop.permute.xlu0 %1953
      %v1955 = vsel %vm952, %v1952, 0
      %v1957 = vsel %vm952, %v1954, 0
      %1959 = vmatprep.subr.mxu0 0.0
      %1960 = vmatpush1.xpose.msra.mxu0 %v1957
      %1961 = vmatprep.subr.mxu0 0.0
      %1962 = vmatpush1.xpose.msra.mxu0 0.0
      %1963 = vmatprep.subr.mxu0 0.0
      %1964 = vmatpush1.xpose.msra.mxu0 0.0
      %1965 = vmatprep.subr.mxu0 0.0
      %1966 = vmatpush1.xpose.msra.mxu0 0.0
      %1967 = vmatprep.subr.mxu0 0.0
      %1968 = vmatpush1.xpose.msra.mxu0 0.0
      %1969 = vmatprep.subr.mxu0 0.0
      %1970 = vmatpush1.xpose.msra.mxu0 0.0
      %1971 = vmatprep.subr.mxu0 0.0
      %1972 = vmatpush1.xpose.msra.mxu0 0.0
      %1973 = vmatprep.subr.mxu0 0.0
      %1974 = vmatpush1.xpose.msra.mxu0 0.0
      %1975 = vmatprep.subr.mxu0 0.0
      %1976 = vmatpush1.xpose.msra.mxu0 0.0
      %1977 = vmatprep.subr.mxu0 0.0
      %1978 = vmatpush1.xpose.msra.mxu0 0.0
      %1979 = vmatprep.subr.mxu0 0.0
      %1980 = vmatpush1.xpose.msra.mxu0 0.0
      %1981 = vmatprep.subr.mxu0 0.0
      %1982 = vmatpush1.xpose.msra.mxu0 0.0
      %1983 = vmatprep.subr.mxu0 0.0
      %1984 = vmatpush1.xpose.msra.mxu0 0.0
      %1985 = vmatprep.subr.mxu0 0.0
      %1986 = vmatpush1.xpose.msra.mxu0 0.0
      %1987 = vmatprep.subr.mxu0 0.0
      %1988 = vmatpush1.xpose.msra.mxu0 0.0
      %1989 = vmatprep.subr.mxu0 0.0
      %1990 = vmatpush1.xpose.msra.mxu0 0.0
      %1991 = vmatprep.subr.mxu0 0.0
      %1992 = vmatpush1.xpose.msra.mxu0 0.0
      %1993 = vmatprep.subr.mxu0 0.0
      %1994 = vmatpush1.xpose.msra.mxu0 0.0
      %1995 = vmatprep.subr.mxu0 0.0
      %1996 = vmatpush1.xpose.msra.mxu0 0.0
      %1997 = vmatprep.subr.mxu0 0.0
      %1998 = vmatpush1.xpose.msra.mxu0 0.0
      %1999 = vmatprep.subr.mxu0 0.0
      %2000 = vmatpush1.xpose.msra.mxu0 0.0
      %2001 = vmatprep.subr.mxu0 0.0
      %2002 = vmatpush1.xpose.msra.mxu0 0.0
      %2003 = vmatprep.subr.mxu0 0.0
      %2004 = vmatpush1.xpose.msra.mxu0 0.0
      %2005 = vmatprep.subr.mxu0 0.0
      %2006 = vmatpush1.xpose.msra.mxu0 0.0
      %2007 = vmatprep.subr.mxu0 0.0
      %2008 = vmatpush1.xpose.msra.mxu0 0.0
      %2009 = vmatprep.subr.mxu0 0.0
      %2010 = vmatpush1.xpose.msra.mxu0 0.0
      %2011 = vmatprep.subr.mxu0 0.0
      %2012 = vmatpush1.xpose.msra.mxu0 0.0
      %2013 = vmatprep.subr.mxu0 0.0
      %2014 = vmatpush1.xpose.msra.mxu0 0.0
      %2015 = vmatprep.subr.mxu0 0.0
      %2016 = vmatpush1.xpose.msra.mxu0 0.0
      %2017 = vmatprep.subr.mxu0 0.0
      %2018 = vmatpush1.xpose.msra.mxu0 0.0
      %2019 = vmatprep.subr.mxu0 0.0
      %2020 = vmatpush1.xpose.msra.mxu0 0.0
      %2021 = vmatprep.subr.mxu0 0.0
      %2022 = vmatpush1.xpose.msra.mxu0 0.0
      %2023 = vmatprep.mubr.f32.mxu0 0.0
      %2024 = vmatmul.mubr.f32.gmra.mrb[0].mxu0 %v1955
      %v2025 = vpop.f32.mrb[0].mxu0
      %v2026 = vadd.f32 0.0, %v2025
      %v2027 = vpop.f32.mrb[0].mxu0
      %2028 = vdwg.mxu0
      %2029 = vrot.lane.b32.xlu0 %v934, 112
      %v2030 = vpop.permute.xlu0 %2029
      %2031 = vrot.lane.b32.xlu0 %v934, 80
      %v2032 = vpop.permute.xlu0 %2031
      %v2033 = vsel %vm952, %v2030, 0
      %v2035 = vsel %vm952, %v2032, 0
      %2037 = vmatprep.subr.mxu0 0.0
      %2038 = vmatpush1.xpose.msra.mxu0 %v2035
      %2039 = vmatprep.subr.mxu0 0.0
      %2040 = vmatpush1.xpose.msra.mxu0 0.0
      %2041 = vmatprep.subr.mxu0 0.0
      %2042 = vmatpush1.xpose.msra.mxu0 0.0
      %2043 = vmatprep.subr.mxu0 0.0
      %2044 = vmatpush1.xpose.msra.mxu0 0.0
      %2045 = vmatprep.subr.mxu0 0.0
      %2046 = vmatpush1.xpose.msra.mxu0 0.0
      %2047 = vmatprep.subr.mxu0 0.0
      %2048 = vmatpush1.xpose.msra.mxu0 0.0
      %2049 = vmatprep.subr.mxu0 0.0
      %2050 = vmatpush1.xpose.msra.mxu0 0.0
      %2051 = vmatprep.subr.mxu0 0.0
      %2052 = vmatpush1.xpose.msra.mxu0 0.0
      %2053 = vmatprep.subr.mxu0 0.0
      %2054 = vmatpush1.xpose.msra.mxu0 0.0
      %2055 = vmatprep.subr.mxu0 0.0
      %2056 = vmatpush1.xpose.msra.mxu0 0.0
      %2057 = vmatprep.subr.mxu0 0.0
      %2058 = vmatpush1.xpose.msra.mxu0 0.0
      %2059 = vmatprep.subr.mxu0 0.0
      %2060 = vmatpush1.xpose.msra.mxu0 0.0
      %2061 = vmatprep.subr.mxu0 0.0
      %2062 = vmatpush1.xpose.msra.mxu0 0.0
      %2063 = vmatprep.subr.mxu0 0.0
      %2064 = vmatpush1.xpose.msra.mxu0 0.0
      %2065 = vmatprep.subr.mxu0 0.0
      %2066 = vmatpush1.xpose.msra.mxu0 0.0
      %2067 = vmatprep.subr.mxu0 0.0
      %2068 = vmatpush1.xpose.msra.mxu0 0.0
      %2069 = vmatprep.subr.mxu0 0.0
      %2070 = vmatpush1.xpose.msra.mxu0 0.0
      %2071 = vmatprep.subr.mxu0 0.0
      %2072 = vmatpush1.xpose.msra.mxu0 0.0
      %2073 = vmatprep.subr.mxu0 0.0
      %2074 = vmatpush1.xpose.msra.mxu0 0.0
      %2075 = vmatprep.subr.mxu0 0.0
      %2076 = vmatpush1.xpose.msra.mxu0 0.0
      %2077 = vmatprep.subr.mxu0 0.0
      %2078 = vmatpush1.xpose.msra.mxu0 0.0
      %2079 = vmatprep.subr.mxu0 0.0
      %2080 = vmatpush1.xpose.msra.mxu0 0.0
      %2081 = vmatprep.subr.mxu0 0.0
      %2082 = vmatpush1.xpose.msra.mxu0 0.0
      %2083 = vmatprep.subr.mxu0 0.0
      %2084 = vmatpush1.xpose.msra.mxu0 0.0
      %2085 = vmatprep.subr.mxu0 0.0
      %2086 = vmatpush1.xpose.msra.mxu0 0.0
      %2087 = vmatprep.subr.mxu0 0.0
      %2088 = vmatpush1.xpose.msra.mxu0 0.0
      %2089 = vmatprep.subr.mxu0 0.0
      %2090 = vmatpush1.xpose.msra.mxu0 0.0
      %2091 = vmatprep.subr.mxu0 0.0
      %2092 = vmatpush1.xpose.msra.mxu0 0.0
      %2093 = vmatprep.subr.mxu0 0.0
      %2094 = vmatpush1.xpose.msra.mxu0 0.0
      %2095 = vmatprep.subr.mxu0 0.0
      %2096 = vmatpush1.xpose.msra.mxu0 0.0
      %2097 = vmatprep.subr.mxu0 0.0
      %2098 = vmatpush1.xpose.msra.mxu0 0.0
      %2099 = vmatprep.subr.mxu0 0.0
      %2100 = vmatpush1.xpose.msra.mxu0 0.0
      %2101 = vmatprep.mubr.f32.mxu0 0.0
      %2102 = vmatmul.mubr.f32.gmra.mrb[0].mxu0 %v2033
      %v2103 = vpop.f32.mrb[0].mxu0
      %v2104 = vadd.f32 0.0, %v2103
      %v2105 = vpop.f32.mrb[0].mxu0
      %2106 = vdwg.mxu0
      %2107 = vrot.lane.b32.xlu0 %v939, 112
      %v2108 = vpop.permute.xlu0 %2107
      %2109 = vrot.lane.b32.xlu0 %v939, 80
      %v2110 = vpop.permute.xlu0 %2109
      %v2111 = vsel %vm952, %v2108, 0
      %v2113 = vsel %vm952, %v2110, 0
      %2115 = vmatprep.subr.mxu0 0.0
      %2116 = vmatpush1.xpose.msra.mxu0 %v2113
      %2117 = vmatprep.subr.mxu0 0.0
      %2118 = vmatpush1.xpose.msra.mxu0 0.0
      %2119 = vmatprep.subr.mxu0 0.0
      %2120 = vmatpush1.xpose.msra.mxu0 0.0
      %2121 = vmatprep.subr.mxu0 0.0
      %2122 = vmatpush1.xpose.msra.mxu0 0.0
      %2123 = vmatprep.subr.mxu0 0.0
      %2124 = vmatpush1.xpose.msra.mxu0 0.0
      %2125 = vmatprep.subr.mxu0 0.0
      %2126 = vmatpush1.xpose.msra.mxu0 0.0
      %2127 = vmatprep.subr.mxu0 0.0
      %2128 = vmatpush1.xpose.msra.mxu0 0.0
      %2129 = vmatprep.subr.mxu0 0.0
      %2130 = vmatpush1.xpose.msra.mxu0 0.0
      %2131 = vmatprep.subr.mxu0 0.0
      %2132 = vmatpush1.xpose.msra.mxu0 0.0
      %2133 = vmatprep.subr.mxu0 0.0
      %2134 = vmatpush1.xpose.msra.mxu0 0.0
      %2135 = vmatprep.subr.mxu0 0.0
      %2136 = vmatpush1.xpose.msra.mxu0 0.0
      %2137 = vmatprep.subr.mxu0 0.0
      %2138 = vmatpush1.xpose.msra.mxu0 0.0
      %2139 = vmatprep.subr.mxu0 0.0
      %2140 = vmatpush1.xpose.msra.mxu0 0.0
      %2141 = vmatprep.subr.mxu0 0.0
      %2142 = vmatpush1.xpose.msra.mxu0 0.0
      %2143 = vmatprep.subr.mxu0 0.0
      %2144 = vmatpush1.xpose.msra.mxu0 0.0
      %2145 = vmatprep.subr.mxu0 0.0
      %2146 = vmatpush1.xpose.msra.mxu0 0.0
      %2147 = vmatprep.subr.mxu0 0.0
      %2148 = vmatpush1.xpose.msra.mxu0 0.0
      %2149 = vmatprep.subr.mxu0 0.0
      %2150 = vmatpush1.xpose.msra.mxu0 0.0
      %2151 = vmatprep.subr.mxu0 0.0
      %2152 = vmatpush1.xpose.msra.mxu0 0.0
      %2153 = vmatprep.subr.mxu0 0.0
      %2154 = vmatpush1.xpose.msra.mxu0 0.0
      %2155 = vmatprep.subr.mxu0 0.0
      %2156 = vmatpush1.xpose.msra.mxu0 0.0
      %2157 = vmatprep.subr.mxu0 0.0
      %2158 = vmatpush1.xpose.msra.mxu0 0.0
      %2159 = vmatprep.subr.mxu0 0.0
      %2160 = vmatpush1.xpose.msra.mxu0 0.0
      %2161 = vmatprep.subr.mxu0 0.0
      %2162 = vmatpush1.xpose.msra.mxu0 0.0
      %2163 = vmatprep.subr.mxu0 0.0
      %2164 = vmatpush1.xpose.msra.mxu0 0.0
      %2165 = vmatprep.subr.mxu0 0.0
      %2166 = vmatpush1.xpose.msra.mxu0 0.0
      %2167 = vmatprep.subr.mxu0 0.0
      %2168 = vmatpush1.xpose.msra.mxu0 0.0
      %2169 = vmatprep.subr.mxu0 0.0
      %2170 = vmatpush1.xpose.msra.mxu0 0.0
      %2171 = vmatprep.subr.mxu0 0.0
      %2172 = vmatpush1.xpose.msra.mxu0 0.0
      %2173 = vmatprep.subr.mxu0 0.0
      %2174 = vmatpush1.xpose.msra.mxu0 0.0
      %2175 = vmatprep.subr.mxu0 0.0
      %2176 = vmatpush1.xpose.msra.mxu0 0.0
      %2177 = vmatprep.subr.mxu0 0.0
      %2178 = vmatpush1.xpose.msra.mxu0 0.0
      %2179 = vmatprep.mubr.f32.mxu0 0.0
      %2180 = vmatmul.mubr.f32.gmra.mrb[0].mxu0 %v2111
      %v2181 = vpop.f32.mrb[0].mxu0
      %v2182 = vadd.f32 0.0, %v2181
      %v2183 = vpop.f32.mrb[0].mxu0
      %2184 = vdwg.mxu0
      %v2185 = vmul.f32 %v2026, 0.35355338
      %v2186 = vmul.f32 %v2104, 0.35355338
      %v2187 = vmul.f32 %v2182, 0.35355338
      %v2188 = vsel %vm1185, -1e+30, %v2185
      %v2189 = vsel %vm1185, -1e+30, %v2186
      %v2190 = vsel %vm1185, -1e+30, %v2187
      %v2191 = vsel %vm952, %v2188, -inf
      %2192 = vmax.xlane.f32.xlu0 %v2191
      %v2193 = vpop.xlane.xlu0 %2192
      %v2194 = vsel %vm952, %v2189, -inf
      %2195 = vmax.xlane.f32.xlu0 %v2194
      %v2196 = vpop.xlane.xlu0 %2195
      %v2197 = vsel %vm952, %v2190, -inf
      %2198 = vmax.xlane.f32.xlu0 %v2197
      %v2199 = vpop.xlane.xlu0 %2198
      %v2200 = vsub.f32 %v2188, %v2193
      %v2201 = vsub.f32 %v2189, %v2196
      %v2202 = vsub.f32 %v2190, %v2199
      %v2203 = vmul.f32 %v2200, 1.442695
      %v2204 = vpow.pop %v2203
      %v2205 = vmul.f32 %v2201, 1.442695
      %v2206 = vpow.pop %v2205
      %v2207 = vmul.f32 %v2202, 1.442695
      %v2208 = vpow.pop %v2207
      %v2209 = vsel %vm952, %v2204, 0.0
      %2210 = vadd.xlane.f32.xlu0 %v2209
      %v2211 = vpop.xlane.xlu0 %2210
      %v2212 = vsel %vm952, %v2206, 0.0
      %2213 = vadd.xlane.f32.xlu0 %v2212
      %v2214 = vpop.xlane.xlu0 %2213
      %v2215 = vsel %vm952, %v2208, 0.0
      %2216 = vadd.xlane.f32.xlu0 %v2215
      %v2217 = vpop.xlane.xlu0 %2216
      %v2218 = vrcp.pop %v2211
      %v2219 = vrcp.pop %v2214
      %v2220 = vrcp.pop %v2217
      %v2221 = vmul.f32 %v2204, %v2218
      %v2222 = vmul.f32 %v2206, %v2219
      %v2223 = vmul.f32 %v2208, %v2220
      %2224 = vrot.lane.b32.xlu0 %v931, 48
      %v2225 = vpop.permute.xlu0 %2224
      %v2228 = vsel %vm952, %v2221, 0
      %2230 = vmatprep.subr.mxu0 0.0
      %2231 = vmatpush1.msra.mxu0 %v2225
      %2232 = vmatprep.subr.mxu0 0.0
      %2233 = vmatpush1.msra.mxu0 0.0
      %2234 = vmatprep.subr.mxu0 0.0
      %2235 = vmatpush1.msra.mxu0 0.0
      %2236 = vmatprep.subr.mxu0 0.0
      %2237 = vmatpush1.msra.mxu0 0.0
      %2238 = vmatprep.subr.mxu0 0.0
      %2239 = vmatpush1.msra.mxu0 0.0
      %2240 = vmatprep.subr.mxu0 0.0
      %2241 = vmatpush1.msra.mxu0 0.0
      %2242 = vmatprep.subr.mxu0 0.0
      %2243 = vmatpush1.msra.mxu0 0.0
      %2244 = vmatprep.subr.mxu0 0.0
      %2245 = vmatpush1.msra.mxu0 0.0
      %2246 = vmatprep.subr.mxu0 0.0
      %2247 = vmatpush1.msra.mxu0 0.0
      %2248 = vmatprep.subr.mxu0 0.0
      %2249 = vmatpush1.msra.mxu0 0.0
      %2250 = vmatprep.subr.mxu0 0.0
      %2251 = vmatpush1.msra.mxu0 0.0
      %2252 = vmatprep.subr.mxu0 0.0
      %2253 = vmatpush1.msra.mxu0 0.0
      %2254 = vmatprep.subr.mxu0 0.0
      %2255 = vmatpush1.msra.mxu0 0.0
      %2256 = vmatprep.subr.mxu0 0.0
      %2257 = vmatpush1.msra.mxu0 0.0
      %2258 = vmatprep.subr.mxu0 0.0
      %2259 = vmatpush1.msra.mxu0 0.0
      %2260 = vmatprep.subr.mxu0 0.0
      %2261 = vmatpush1.msra.mxu0 0.0
      %2262 = vmatprep.subr.mxu0 0.0
      %2263 = vmatpush1.msra.mxu0 0.0
      %2264 = vmatprep.subr.mxu0 0.0
      %2265 = vmatpush1.msra.mxu0 0.0
      %2266 = vmatprep.subr.mxu0 0.0
      %2267 = vmatpush1.msra.mxu0 0.0
      %2268 = vmatprep.subr.mxu0 0.0
      %2269 = vmatpush1.msra.mxu0 0.0
      %2270 = vmatprep.subr.mxu0 0.0
      %2271 = vmatpush1.msra.mxu0 0.0
      %2272 = vmatprep.subr.mxu0 0.0
      %2273 = vmatpush1.msra.mxu0 0.0
      %2274 = vmatprep.subr.mxu0 0.0
      %2275 = vmatpush1.msra.mxu0 0.0
      %2276 = vmatprep.subr.mxu0 0.0
      %2277 = vmatpush1.msra.mxu0 0.0
      %2278 = vmatprep.subr.mxu0 0.0
      %2279 = vmatpush1.msra.mxu0 0.0
      %2280 = vmatprep.subr.mxu0 0.0
      %2281 = vmatpush1.msra.mxu0 0.0
      %2282 = vmatprep.subr.mxu0 0.0
      %2283 = vmatpush1.msra.mxu0 0.0
      %2284 = vmatprep.subr.mxu0 0.0
      %2285 = vmatpush1.msra.mxu0 0.0
      %2286 = vmatprep.subr.mxu0 0.0
      %2287 = vmatpush1.msra.mxu0 0.0
      %2288 = vmatprep.subr.mxu0 0.0
      %2289 = vmatpush1.msra.mxu0 0.0
      %2290 = vmatprep.subr.mxu0 0.0
      %2291 = vmatpush1.msra.mxu0 0.0
      %2292 = vmatprep.subr.mxu0 0.0
      %2293 = vmatpush1.msra.mxu0 0.0
      %2294 = vmatprep.mubr.f32.mxu0 0.0
      %2295 = vmatmul.mubr.f32.gmra.mrb[0].mxu0 %v2228
      %v2296 = vpop.f32.mrb[0].mxu0
      %v2297 = vadd.f32 0.0, %v2296
      %v2298 = vpop.f32.mrb[0].mxu0
      %2299 = vdwg.mxu0
      %2300 = vrot.lane.b32.xlu0 %v934, 48
      %v2301 = vpop.permute.xlu0 %2300
      %v2304 = vsel %vm952, %v2222, 0
      %2306 = vmatprep.subr.mxu0 0.0
      %2307 = vmatpush1.msra.mxu0 %v2301
      %2308 = vmatprep.subr.mxu0 0.0
      %2309 = vmatpush1.msra.mxu0 0.0
      %2310 = vmatprep.subr.mxu0 0.0
      %2311 = vmatpush1.msra.mxu0 0.0
      %2312 = vmatprep.subr.mxu0 0.0
      %2313 = vmatpush1.msra.mxu0 0.0
      %2314 = vmatprep.subr.mxu0 0.0
      %2315 = vmatpush1.msra.mxu0 0.0
      %2316 = vmatprep.subr.mxu0 0.0
      %2317 = vmatpush1.msra.mxu0 0.0
      %2318 = vmatprep.subr.mxu0 0.0
      %2319 = vmatpush1.msra.mxu0 0.0
      %2320 = vmatprep.subr.mxu0 0.0
      %2321 = vmatpush1.msra.mxu0 0.0
      %2322 = vmatprep.subr.mxu0 0.0
      %2323 = vmatpush1.msra.mxu0 0.0
      %2324 = vmatprep.subr.mxu0 0.0
      %2325 = vmatpush1.msra.mxu0 0.0
      %2326 = vmatprep.subr.mxu0 0.0
      %2327 = vmatpush1.msra.mxu0 0.0
      %2328 = vmatprep.subr.mxu0 0.0
      %2329 = vmatpush1.msra.mxu0 0.0
      %2330 = vmatprep.subr.mxu0 0.0
      %2331 = vmatpush1.msra.mxu0 0.0
      %2332 = vmatprep.subr.mxu0 0.0
      %2333 = vmatpush1.msra.mxu0 0.0
      %2334 = vmatprep.subr.mxu0 0.0
      %2335 = vmatpush1.msra.mxu0 0.0
      %2336 = vmatprep.subr.mxu0 0.0
      %2337 = vmatpush1.msra.mxu0 0.0
      %2338 = vmatprep.subr.mxu0 0.0
      %2339 = vmatpush1.msra.mxu0 0.0
      %2340 = vmatprep.subr.mxu0 0.0
      %2341 = vmatpush1.msra.mxu0 0.0
      %2342 = vmatprep.subr.mxu0 0.0
      %2343 = vmatpush1.msra.mxu0 0.0
      %2344 = vmatprep.subr.mxu0 0.0
      %2345 = vmatpush1.msra.mxu0 0.0
      %2346 = vmatprep.subr.mxu0 0.0
      %2347 = vmatpush1.msra.mxu0 0.0
      %2348 = vmatprep.subr.mxu0 0.0
      %2349 = vmatpush1.msra.mxu0 0.0
      %2350 = vmatprep.subr.mxu0 0.0
      %2351 = vmatpush1.msra.mxu0 0.0
      %2352 = vmatprep.subr.mxu0 0.0
      %2353 = vmatpush1.msra.mxu0 0.0
      %2354 = vmatprep.subr.mxu0 0.0
      %2355 = vmatpush1.msra.mxu0 0.0
      %2356 = vmatprep.subr.mxu0 0.0
      %2357 = vmatpush1.msra.mxu0 0.0
      %2358 = vmatprep.subr.mxu0 0.0
      %2359 = vmatpush1.msra.mxu0 0.0
      %2360 = vmatprep.subr.mxu0 0.0
      %2361 = vmatpush1.msra.mxu0 0.0
      %2362 = vmatprep.subr.mxu0 0.0
      %2363 = vmatpush1.msra.mxu0 0.0
      %2364 = vmatprep.subr.mxu0 0.0
      %2365 = vmatpush1.msra.mxu0 0.0
      %2366 = vmatprep.subr.mxu0 0.0
      %2367 = vmatpush1.msra.mxu0 0.0
      %2368 = vmatprep.subr.mxu0 0.0
      %2369 = vmatpush1.msra.mxu0 0.0
      %2370 = vmatprep.mubr.f32.mxu0 0.0
      %2371 = vmatmul.mubr.f32.gmra.mrb[0].mxu0 %v2304
      %v2372 = vpop.f32.mrb[0].mxu0
      %v2373 = vadd.f32 0.0, %v2372
      %v2374 = vpop.f32.mrb[0].mxu0
      %2375 = vdwg.mxu0
      %2376 = vrot.lane.b32.xlu0 %v939, 48
      %v2377 = vpop.permute.xlu0 %2376
      %v2380 = vsel %vm952, %v2223, 0
      %2382 = vmatprep.subr.mxu0 0.0
      %2383 = vmatpush1.msra.mxu0 %v2377
      %2384 = vmatprep.subr.mxu0 0.0
      %2385 = vmatpush1.msra.mxu0 0.0
      %2386 = vmatprep.subr.mxu0 0.0
      %2387 = vmatpush1.msra.mxu0 0.0
      %2388 = vmatprep.subr.mxu0 0.0
      %2389 = vmatpush1.msra.mxu0 0.0
      %2390 = vmatprep.subr.mxu0 0.0
      %2391 = vmatpush1.msra.mxu0 0.0
      %2392 = vmatprep.subr.mxu0 0.0
      %2393 = vmatpush1.msra.mxu0 0.0
      %2394 = vmatprep.subr.mxu0 0.0
      %2395 = vmatpush1.msra.mxu0 0.0
      %2396 = vmatprep.subr.mxu0 0.0
      %2397 = vmatpush1.msra.mxu0 0.0
      %2398 = vmatprep.subr.mxu0 0.0
      %2399 = vmatpush1.msra.mxu0 0.0
      %2400 = vmatprep.subr.mxu0 0.0
      %2401 = vmatpush1.msra.mxu0 0.0
      %2402 = vmatprep.subr.mxu0 0.0
      %2403 = vmatpush1.msra.mxu0 0.0
      %2404 = vmatprep.subr.mxu0 0.0
      %2405 = vmatpush1.msra.mxu0 0.0
      %2406 = vmatprep.subr.mxu0 0.0
      %2407 = vmatpush1.msra.mxu0 0.0
      %2408 = vmatprep.subr.mxu0 0.0
      %2409 = vmatpush1.msra.mxu0 0.0
      %2410 = vmatprep.subr.mxu0 0.0
      %2411 = vmatpush1.msra.mxu0 0.0
      %2412 = vmatprep.subr.mxu0 0.0
      %2413 = vmatpush1.msra.mxu0 0.0
      %2414 = vmatprep.subr.mxu0 0.0
      %2415 = vmatpush1.msra.mxu0 0.0
      %2416 = vmatprep.subr.mxu0 0.0
      %2417 = vmatpush1.msra.mxu0 0.0
      %2418 = vmatprep.subr.mxu0 0.0
      %2419 = vmatpush1.msra.mxu0 0.0
      %2420 = vmatprep.subr.mxu0 0.0
      %2421 = vmatpush1.msra.mxu0 0.0
      %2422 = vmatprep.subr.mxu0 0.0
      %2423 = vmatpush1.msra.mxu0 0.0
      %2424 = vmatprep.subr.mxu0 0.0
      %2425 = vmatpush1.msra.mxu0 0.0
      %2426 = vmatprep.subr.mxu0 0.0
      %2427 = vmatpush1.msra.mxu0 0.0
      %2428 = vmatprep.subr.mxu0 0.0
      %2429 = vmatpush1.msra.mxu0 0.0
      %2430 = vmatprep.subr.mxu0 0.0
      %2431 = vmatpush1.msra.mxu0 0.0
      %2432 = vmatprep.subr.mxu0 0.0
      %2433 = vmatpush1.msra.mxu0 0.0
      %2434 = vmatprep.subr.mxu0 0.0
      %2435 = vmatpush1.msra.mxu0 0.0
      %2436 = vmatprep.subr.mxu0 0.0
      %2437 = vmatpush1.msra.mxu0 0.0
      %2438 = vmatprep.subr.mxu0 0.0
      %2439 = vmatpush1.msra.mxu0 0.0
      %2440 = vmatprep.subr.mxu0 0.0
      %2441 = vmatpush1.msra.mxu0 0.0
      %2442 = vmatprep.subr.mxu0 0.0
      %2443 = vmatpush1.msra.mxu0 0.0
      %2444 = vmatprep.subr.mxu0 0.0
      %2445 = vmatpush1.msra.mxu0 0.0
      %2446 = vmatprep.mubr.f32.mxu0 0.0
      %2447 = vmatmul.mubr.f32.gmra.mrb[0].mxu0 %v2380
      %v2448 = vpop.f32.mrb[0].mxu0
      %v2449 = vadd.f32 0.0, %v2448
      %v2450 = vpop.f32.mrb[0].mxu0
      %2451 = vdwg.mxu0
      %2452 = vrot.lane.b32.xlu0 %v931, 104
      %v2453 = vpop.permute.xlu0 %2452
      %2454 = vrot.lane.b32.xlu0 %v931, 72
      %v2455 = vpop.permute.xlu0 %2454
      %v2456 = vsel %vm952, %v2453, 0
      %v2458 = vsel %vm952, %v2455, 0
      %2460 = vmatprep.subr.mxu0 0.0
      %2461 = vmatpush1.xpose.msra.mxu0 %v2458
      %2462 = vmatprep.subr.mxu0 0.0
      %2463 = vmatpush1.xpose.msra.mxu0 0.0
      %2464 = vmatprep.subr.mxu0 0.0
      %2465 = vmatpush1.xpose.msra.mxu0 0.0
      %2466 = vmatprep.subr.mxu0 0.0
      %2467 = vmatpush1.xpose.msra.mxu0 0.0
      %2468 = vmatprep.subr.mxu0 0.0
      %2469 = vmatpush1.xpose.msra.mxu0 0.0
      %2470 = vmatprep.subr.mxu0 0.0
      %2471 = vmatpush1.xpose.msra.mxu0 0.0
      %2472 = vmatprep.subr.mxu0 0.0
      %2473 = vmatpush1.xpose.msra.mxu0 0.0
      %2474 = vmatprep.subr.mxu0 0.0
      %2475 = vmatpush1.xpose.msra.mxu0 0.0
      %2476 = vmatprep.subr.mxu0 0.0
      %2477 = vmatpush1.xpose.msra.mxu0 0.0
      %2478 = vmatprep.subr.mxu0 0.0
      %2479 = vmatpush1.xpose.msra.mxu0 0.0
      %2480 = vmatprep.subr.mxu0 0.0
      %2481 = vmatpush1.xpose.msra.mxu0 0.0
      %2482 = vmatprep.subr.mxu0 0.0
      %2483 = vmatpush1.xpose.msra.mxu0 0.0
      %2484 = vmatprep.subr.mxu0 0.0
      %2485 = vmatpush1.xpose.msra.mxu0 0.0
      %2486 = vmatprep.subr.mxu0 0.0
      %2487 = vmatpush1.xpose.msra.mxu0 0.0
      %2488 = vmatprep.subr.mxu0 0.0
      %2489 = vmatpush1.xpose.msra.mxu0 0.0
      %2490 = vmatprep.subr.mxu0 0.0
      %2491 = vmatpush1.xpose.msra.mxu0 0.0
      %2492 = vmatprep.subr.mxu0 0.0
      %2493 = vmatpush1.xpose.msra.mxu0 0.0
      %2494 = vmatprep.subr.mxu0 0.0
      %2495 = vmatpush1.xpose.msra.mxu0 0.0
      %2496 = vmatprep.subr.mxu0 0.0
      %2497 = vmatpush1.xpose.msra.mxu0 0.0
      %2498 = vmatprep.subr.mxu0 0.0
      %2499 = vmatpush1.xpose.msra.mxu0 0.0
      %2500 = vmatprep.subr.mxu0 0.0
      %2501 = vmatpush1.xpose.msra.mxu0 0.0
      %2502 = vmatprep.subr.mxu0 0.0
      %2503 = vmatpush1.xpose.msra.mxu0 0.0
      %2504 = vmatprep.subr.mxu0 0.0
      %2505 = vmatpush1.xpose.msra.mxu0 0.0
      %2506 = vmatprep.subr.mxu0 0.0
      %2507 = vmatpush1.xpose.msra.mxu0 0.0
      %2508 = vmatprep.subr.mxu0 0.0
      %2509 = vmatpush1.xpose.msra.mxu0 0.0
      %2510 = vmatprep.subr.mxu0 0.0
      %2511 = vmatpush1.xpose.msra.mxu0 0.0
      %2512 = vmatprep.subr.mxu0 0.0
      %2513 = vmatpush1.xpose.msra.mxu0 0.0
      %2514 = vmatprep.subr.mxu0 0.0
      %2515 = vmatpush1.xpose.msra.mxu0 0.0
      %2516 = vmatprep.subr.mxu0 0.0
      %2517 = vmatpush1.xpose.msra.mxu0 0.0
      %2518 = vmatprep.subr.mxu0 0.0
      %2519 = vmatpush1.xpose.msra.mxu0 0.0
      %2520 = vmatprep.subr.mxu0 0.0
      %2521 = vmatpush1.xpose.msra.mxu0 0.0
      %2522 = vmatprep.subr.mxu0 0.0
      %2523 = vmatpush1.xpose.msra.mxu0 0.0
      %2524 = vmatprep.mubr.f32.mxu0 0.0
      %2525 = vmatmul.mubr.f32.gmra.mrb[0].mxu0 %v2456
      %v2526 = vpop.f32.mrb[0].mxu0
      %v2527 = vadd.f32 0.0, %v2526
      %v2528 = vpop.f32.mrb[0].mxu0
      %2529 = vdwg.mxu0
      %2530 = vrot.lane.b32.xlu0 %v934, 104
      %v2531 = vpop.permute.xlu0 %2530
      %2532 = vrot.lane.b32.xlu0 %v934, 72
      %v2533 = vpop.permute.xlu0 %2532
      %v2534 = vsel %vm952, %v2531, 0
      %v2536 = vsel %vm952, %v2533, 0
      %2538 = vmatprep.subr.mxu0 0.0
      %2539 = vmatpush1.xpose.msra.mxu0 %v2536
      %2540 = vmatprep.subr.mxu0 0.0
      %2541 = vmatpush1.xpose.msra.mxu0 0.0
      %2542 = vmatprep.subr.mxu0 0.0
      %2543 = vmatpush1.xpose.msra.mxu0 0.0
      %2544 = vmatprep.subr.mxu0 0.0
      %2545 = vmatpush1.xpose.msra.mxu0 0.0
      %2546 = vmatprep.subr.mxu0 0.0
      %2547 = vmatpush1.xpose.msra.mxu0 0.0
      %2548 = vmatprep.subr.mxu0 0.0
      %2549 = vmatpush1.xpose.msra.mxu0 0.0
      %2550 = vmatprep.subr.mxu0 0.0
      %2551 = vmatpush1.xpose.msra.mxu0 0.0
      %2552 = vmatprep.subr.mxu0 0.0
      %2553 = vmatpush1.xpose.msra.mxu0 0.0
      %2554 = vmatprep.subr.mxu0 0.0
      %2555 = vmatpush1.xpose.msra.mxu0 0.0
      %2556 = vmatprep.subr.mxu0 0.0
      %2557 = vmatpush1.xpose.msra.mxu0 0.0
      %2558 = vmatprep.subr.mxu0 0.0
      %2559 = vmatpush1.xpose.msra.mxu0 0.0
      %2560 = vmatprep.subr.mxu0 0.0
      %2561 = vmatpush1.xpose.msra.mxu0 0.0
      %2562 = vmatprep.subr.mxu0 0.0
      %2563 = vmatpush1.xpose.msra.mxu0 0.0
      %2564 = vmatprep.subr.mxu0 0.0
      %2565 = vmatpush1.xpose.msra.mxu0 0.0
      %2566 = vmatprep.subr.mxu0 0.0
      %2567 = vmatpush1.xpose.msra.mxu0 0.0
      %2568 = vmatprep.subr.mxu0 0.0
      %2569 = vmatpush1.xpose.msra.mxu0 0.0
      %2570 = vmatprep.subr.mxu0 0.0
      %2571 = vmatpush1.xpose.msra.mxu0 0.0
      %2572 = vmatprep.subr.mxu0 0.0
      %2573 = vmatpush1.xpose.msra.mxu0 0.0
      %2574 = vmatprep.subr.mxu0 0.0
      %2575 = vmatpush1.xpose.msra.mxu0 0.0
      %2576 = vmatprep.subr.mxu0 0.0
      %2577 = vmatpush1.xpose.msra.mxu0 0.0
      %2578 = vmatprep.subr.mxu0 0.0
      %2579 = vmatpush1.xpose.msra.mxu0 0.0
      %2580 = vmatprep.subr.mxu0 0.0
      %2581 = vmatpush1.xpose.msra.mxu0 0.0
      %2582 = vmatprep.subr.mxu0 0.0
      %2583 = vmatpush1.xpose.msra.mxu0 0.0
      %2584 = vmatprep.subr.mxu0 0.0
      %2585 = vmatpush1.xpose.msra.mxu0 0.0
      %2586 = vmatprep.subr.mxu0 0.0
      %2587 = vmatpush1.xpose.msra.mxu0 0.0
      %2588 = vmatprep.subr.mxu0 0.0
      %2589 = vmatpush1.xpose.msra.mxu0 0.0
      %2590 = vmatprep.subr.mxu0 0.0
      %2591 = vmatpush1.xpose.msra.mxu0 0.0
      %2592 = vmatprep.subr.mxu0 0.0
      %2593 = vmatpush1.xpose.msra.mxu0 0.0
      %2594 = vmatprep.subr.mxu0 0.0
      %2595 = vmatpush1.xpose.msra.mxu0 0.0
      %2596 = vmatprep.subr.mxu0 0.0
      %2597 = vmatpush1.xpose.msra.mxu0 0.0
      %2598 = vmatprep.subr.mxu0 0.0
      %2599 = vmatpush1.xpose.msra.mxu0 0.0
      %2600 = vmatprep.subr.mxu0 0.0
      %2601 = vmatpush1.xpose.msra.mxu0 0.0
      %2602 = vmatprep.mubr.f32.mxu0 0.0
      %2603 = vmatmul.mubr.f32.gmra.mrb[0].mxu0 %v2534
      %v2604 = vpop.f32.mrb[0].mxu0
      %v2605 = vadd.f32 0.0, %v2604
      %v2606 = vpop.f32.mrb[0].mxu0
      %2607 = vdwg.mxu0
      %2608 = vrot.lane.b32.xlu0 %v939, 104
      %v2609 = vpop.permute.xlu0 %2608
      %2610 = vrot.lane.b32.xlu0 %v939, 72
      %v2611 = vpop.permute.xlu0 %2610
      %v2612 = vsel %vm952, %v2609, 0
      %v2614 = vsel %vm952, %v2611, 0
      %2616 = vmatprep.subr.mxu0 0.0
      %2617 = vmatpush1.xpose.msra.mxu0 %v2614
      %2618 = vmatprep.subr.mxu0 0.0
      %2619 = vmatpush1.xpose.msra.mxu0 0.0
      %2620 = vmatprep.subr.mxu0 0.0
      %2621 = vmatpush1.xpose.msra.mxu0 0.0
      %2622 = vmatprep.subr.mxu0 0.0
      %2623 = vmatpush1.xpose.msra.mxu0 0.0
      %2624 = vmatprep.subr.mxu0 0.0
      %2625 = vmatpush1.xpose.msra.mxu0 0.0
      %2626 = vmatprep.subr.mxu0 0.0
      %2627 = vmatpush1.xpose.msra.mxu0 0.0
      %2628 = vmatprep.subr.mxu0 0.0
      %2629 = vmatpush1.xpose.msra.mxu0 0.0
      %2630 = vmatprep.subr.mxu0 0.0
      %2631 = vmatpush1.xpose.msra.mxu0 0.0
      %2632 = vmatprep.subr.mxu0 0.0
      %2633 = vmatpush1.xpose.msra.mxu0 0.0
      %2634 = vmatprep.subr.mxu0 0.0
      %2635 = vmatpush1.xpose.msra.mxu0 0.0
      %2636 = vmatprep.subr.mxu0 0.0
      %2637 = vmatpush1.xpose.msra.mxu0 0.0
      %2638 = vmatprep.subr.mxu0 0.0
      %2639 = vmatpush1.xpose.msra.mxu0 0.0
      %2640 = vmatprep.subr.mxu0 0.0
      %2641 = vmatpush1.xpose.msra.mxu0 0.0
      %2642 = vmatprep.subr.mxu0 0.0
      %2643 = vmatpush1.xpose.msra.mxu0 0.0
      %2644 = vmatprep.subr.mxu0 0.0
      %2645 = vmatpush1.xpose.msra.mxu0 0.0
      %2646 = vmatprep.subr.mxu0 0.0
      %2647 = vmatpush1.xpose.msra.mxu0 0.0
      %2648 = vmatprep.subr.mxu0 0.0
      %2649 = vmatpush1.xpose.msra.mxu0 0.0
      %2650 = vmatprep.subr.mxu0 0.0
      %2651 = vmatpush1.xpose.msra.mxu0 0.0
      %2652 = vmatprep.subr.mxu0 0.0
      %2653 = vmatpush1.xpose.msra.mxu0 0.0
      %2654 = vmatprep.subr.mxu0 0.0
      %2655 = vmatpush1.xpose.msra.mxu0 0.0
      %2656 = vmatprep.subr.mxu0 0.0
      %2657 = vmatpush1.xpose.msra.mxu0 0.0
      %2658 = vmatprep.subr.mxu0 0.0
      %2659 = vmatpush1.xpose.msra.mxu0 0.0
      %2660 = vmatprep.subr.mxu0 0.0
      %2661 = vmatpush1.xpose.msra.mxu0 0.0
      %2662 = vmatprep.subr.mxu0 0.0
      %2663 = vmatpush1.xpose.msra.mxu0 0.0
      %2664 = vmatprep.subr.mxu0 0.0
      %2665 = vmatpush1.xpose.msra.mxu0 0.0
      %2666 = vmatprep.subr.mxu0 0.0
      %2667 = vmatpush1.xpose.msra.mxu0 0.0
      %2668 = vmatprep.subr.mxu0 0.0
      %2669 = vmatpush1.xpose.msra.mxu0 0.0
      %2670 = vmatprep.subr.mxu0 0.0
      %2671 = vmatpush1.xpose.msra.mxu0 0.0
      %2672 = vmatprep.subr.mxu0 0.0
      %2673 = vmatpush1.xpose.msra.mxu0 0.0
      %2674 = vmatprep.subr.mxu0 0.0
      %2675 = vmatpush1.xpose.msra.mxu0 0.0
      %2676 = vmatprep.subr.mxu0 0.0
      %2677 = vmatpush1.xpose.msra.mxu0 0.0
      %2678 = vmatprep.subr.mxu0 0.0
      %2679 = vmatpush1.xpose.msra.mxu0 0.0
      %2680 = vmatprep.mubr.f32.mxu0 0.0
      %2681 = vmatmul.mubr.f32.gmra.mrb[0].mxu0 %v2612
      %v2682 = vpop.f32.mrb[0].mxu0
      %v2683 = vadd.f32 0.0, %v2682
      %v2684 = vpop.f32.mrb[0].mxu0
      %2685 = vdwg.mxu0
      %v2686 = vmul.f32 %v2527, 0.35355338
      %v2687 = vmul.f32 %v2605, 0.35355338
      %v2688 = vmul.f32 %v2683, 0.35355338
      %v2689 = vsel %vm1185, -1e+30, %v2686
      %v2690 = vsel %vm1185, -1e+30, %v2687
      %v2691 = vsel %vm1185, -1e+30, %v2688
      %v2692 = vsel %vm952, %v2689, -inf
      %2693 = vmax.xlane.f32.xlu0 %v2692
      %v2694 = vpop.xlane.xlu0 %2693
      %v2695 = vsel %vm952, %v2690, -inf
      %2696 = vmax.xlane.f32.xlu0 %v2695
      %v2697 = vpop.xlane.xlu0 %2696
      %v2698 = vsel %vm952, %v2691, -inf
      %2699 = vmax.xlane.f32.xlu0 %v2698
      %v2700 = vpop.xlane.xlu0 %2699
      %v2701 = vsub.f32 %v2689, %v2694
      %v2702 = vsub.f32 %v2690, %v2697
      %v2703 = vsub.f32 %v2691, %v2700
      %v2704 = vmul.f32 %v2701, 1.442695
      %v2705 = vpow.pop %v2704
      %v2706 = vmul.f32 %v2702, 1.442695
      %v2707 = vpow.pop %v2706
      %v2708 = vmul.f32 %v2703, 1.442695
      %v2709 = vpow.pop %v2708
      %v2710 = vsel %vm952, %v2705, 0.0
      %2711 = vadd.xlane.f32.xlu0 %v2710
      %v2712 = vpop.xlane.xlu0 %2711
      %v2713 = vsel %vm952, %v2707, 0.0
      %2714 = vadd.xlane.f32.xlu0 %v2713
      %v2715 = vpop.xlane.xlu0 %2714
      %v2716 = vsel %vm952, %v2709, 0.0
      %2717 = vadd.xlane.f32.xlu0 %v2716
      %v2718 = vpop.xlane.xlu0 %2717
      %v2719 = vrcp.pop %v2712
      %v2720 = vrcp.pop %v2715
      %v2721 = vrcp.pop %v2718
      %v2722 = vmul.f32 %v2705, %v2719
      %v2723 = vmul.f32 %v2707, %v2720
      %v2724 = vmul.f32 %v2709, %v2721
      %2725 = vrot.lane.b32.xlu0 %v931, 40
      %v2726 = vpop.permute.xlu0 %2725
      %v2729 = vsel %vm952, %v2722, 0
      %2731 = vmatprep.subr.mxu0 0.0
      %2732 = vmatpush1.msra.mxu0 %v2726
      %2733 = vmatprep.subr.mxu0 0.0
      %2734 = vmatpush1.msra.mxu0 0.0
      %2735 = vmatprep.subr.mxu0 0.0
      %2736 = vmatpush1.msra.mxu0 0.0
      %2737 = vmatprep.subr.mxu0 0.0
      %2738 = vmatpush1.msra.mxu0 0.0
      %2739 = vmatprep.subr.mxu0 0.0
      %2740 = vmatpush1.msra.mxu0 0.0
      %2741 = vmatprep.subr.mxu0 0.0
      %2742 = vmatpush1.msra.mxu0 0.0
      %2743 = vmatprep.subr.mxu0 0.0
      %2744 = vmatpush1.msra.mxu0 0.0
      %2745 = vmatprep.subr.mxu0 0.0
      %2746 = vmatpush1.msra.mxu0 0.0
      %2747 = vmatprep.subr.mxu0 0.0
      %2748 = vmatpush1.msra.mxu0 0.0
      %2749 = vmatprep.subr.mxu0 0.0
      %2750 = vmatpush1.msra.mxu0 0.0
      %2751 = vmatprep.subr.mxu0 0.0
      %2752 = vmatpush1.msra.mxu0 0.0
      %2753 = vmatprep.subr.mxu0 0.0
      %2754 = vmatpush1.msra.mxu0 0.0
      %2755 = vmatprep.subr.mxu0 0.0
      %2756 = vmatpush1.msra.mxu0 0.0
      %2757 = vmatprep.subr.mxu0 0.0
      %2758 = vmatpush1.msra.mxu0 0.0
      %2759 = vmatprep.subr.mxu0 0.0
      %2760 = vmatpush1.msra.mxu0 0.0
      %2761 = vmatprep.subr.mxu0 0.0
      %2762 = vmatpush1.msra.mxu0 0.0
      %2763 = vmatprep.subr.mxu0 0.0
      %2764 = vmatpush1.msra.mxu0 0.0
      %2765 = vmatprep.subr.mxu0 0.0
      %2766 = vmatpush1.msra.mxu0 0.0
      %2767 = vmatprep.subr.mxu0 0.0
      %2768 = vmatpush1.msra.mxu0 0.0
      %2769 = vmatprep.subr.mxu0 0.0
      %2770 = vmatpush1.msra.mxu0 0.0
      %2771 = vmatprep.subr.mxu0 0.0
      %2772 = vmatpush1.msra.mxu0 0.0
      %2773 = vmatprep.subr.mxu0 0.0
      %2774 = vmatpush1.msra.mxu0 0.0
      %2775 = vmatprep.subr.mxu0 0.0
      %2776 = vmatpush1.msra.mxu0 0.0
      %2777 = vmatprep.subr.mxu0 0.0
      %2778 = vmatpush1.msra.mxu0 0.0
      %2779 = vmatprep.subr.mxu0 0.0
      %2780 = vmatpush1.msra.mxu0 0.0
      %2781 = vmatprep.subr.mxu0 0.0
      %2782 = vmatpush1.msra.mxu0 0.0
      %2783 = vmatprep.subr.mxu0 0.0
      %2784 = vmatpush1.msra.mxu0 0.0
      %2785 = vmatprep.subr.mxu0 0.0
      %2786 = vmatpush1.msra.mxu0 0.0
      %2787 = vmatprep.subr.mxu0 0.0
      %2788 = vmatpush1.msra.mxu0 0.0
      %2789 = vmatprep.subr.mxu0 0.0
      %2790 = vmatpush1.msra.mxu0 0.0
      %2791 = vmatprep.subr.mxu0 0.0
      %2792 = vmatpush1.msra.mxu0 0.0
      %2793 = vmatprep.subr.mxu0 0.0
      %2794 = vmatpush1.msra.mxu0 0.0
      %2795 = vmatprep.mubr.f32.mxu0 0.0
      %2796 = vmatmul.mubr.f32.gmra.mrb[0].mxu0 %v2729
      %v2797 = vpop.f32.mrb[0].mxu0
      %v2798 = vadd.f32 0.0, %v2797
      %v2799 = vpop.f32.mrb[0].mxu0
      %2800 = vdwg.mxu0
      %2801 = vrot.lane.b32.xlu0 %v934, 40
      %v2802 = vpop.permute.xlu0 %2801
      %v2805 = vsel %vm952, %v2723, 0
      %2807 = vmatprep.subr.mxu0 0.0
      %2808 = vmatpush1.msra.mxu0 %v2802
      %2809 = vmatprep.subr.mxu0 0.0
      %2810 = vmatpush1.msra.mxu0 0.0
      %2811 = vmatprep.subr.mxu0 0.0
      %2812 = vmatpush1.msra.mxu0 0.0
      %2813 = vmatprep.subr.mxu0 0.0
      %2814 = vmatpush1.msra.mxu0 0.0
      %2815 = vmatprep.subr.mxu0 0.0
      %2816 = vmatpush1.msra.mxu0 0.0
      %2817 = vmatprep.subr.mxu0 0.0
      %2818 = vmatpush1.msra.mxu0 0.0
      %2819 = vmatprep.subr.mxu0 0.0
      %2820 = vmatpush1.msra.mxu0 0.0
      %2821 = vmatprep.subr.mxu0 0.0
      %2822 = vmatpush1.msra.mxu0 0.0
      %2823 = vmatprep.subr.mxu0 0.0
      %2824 = vmatpush1.msra.mxu0 0.0
      %2825 = vmatprep.subr.mxu0 0.0
      %2826 = vmatpush1.msra.mxu0 0.0
      %2827 = vmatprep.subr.mxu0 0.0
      %2828 = vmatpush1.msra.mxu0 0.0
      %2829 = vmatprep.subr.mxu0 0.0
      %2830 = vmatpush1.msra.mxu0 0.0
      %2831 = vmatprep.subr.mxu0 0.0
      %2832 = vmatpush1.msra.mxu0 0.0
      %2833 = vmatprep.subr.mxu0 0.0
      %2834 = vmatpush1.msra.mxu0 0.0
      %2835 = vmatprep.subr.mxu0 0.0
      %2836 = vmatpush1.msra.mxu0 0.0
      %2837 = vmatprep.subr.mxu0 0.0
      %2838 = vmatpush1.msra.mxu0 0.0
      %2839 = vmatprep.subr.mxu0 0.0
      %2840 = vmatpush1.msra.mxu0 0.0
      %2841 = vmatprep.subr.mxu0 0.0
      %2842 = vmatpush1.msra.mxu0 0.0
      %2843 = vmatprep.subr.mxu0 0.0
      %2844 = vmatpush1.msra.mxu0 0.0
      %2845 = vmatprep.subr.mxu0 0.0
      %2846 = vmatpush1.msra.mxu0 0.0
      %2847 = vmatprep.subr.mxu0 0.0
      %2848 = vmatpush1.msra.mxu0 0.0
      %2849 = vmatprep.subr.mxu0 0.0
      %2850 = vmatpush1.msra.mxu0 0.0
      %2851 = vmatprep.subr.mxu0 0.0
      %2852 = vmatpush1.msra.mxu0 0.0
      %2853 = vmatprep.subr.mxu0 0.0
      %2854 = vmatpush1.msra.mxu0 0.0
      %2855 = vmatprep.subr.mxu0 0.0
      %2856 = vmatpush1.msra.mxu0 0.0
      %2857 = vmatprep.subr.mxu0 0.0
      %2858 = vmatpush1.msra.mxu0 0.0
      %2859 = vmatprep.subr.mxu0 0.0
      %2860 = vmatpush1.msra.mxu0 0.0
      %2861 = vmatprep.subr.mxu0 0.0
      %2862 = vmatpush1.msra.mxu0 0.0
      %2863 = vmatprep.subr.mxu0 0.0
      %2864 = vmatpush1.msra.mxu0 0.0
      %2865 = vmatprep.subr.mxu0 0.0
      %2866 = vmatpush1.msra.mxu0 0.0
      %2867 = vmatprep.subr.mxu0 0.0
      %2868 = vmatpush1.msra.mxu0 0.0
      %2869 = vmatprep.subr.mxu0 0.0
      %2870 = vmatpush1.msra.mxu0 0.0
      %2871 = vmatprep.mubr.f32.mxu0 0.0
      %2872 = vmatmul.mubr.f32.gmra.mrb[0].mxu0 %v2805
      %v2873 = vpop.f32.mrb[0].mxu0
      %v2874 = vadd.f32 0.0, %v2873
      %v2875 = vpop.f32.mrb[0].mxu0
      %2876 = vdwg.mxu0
      %2877 = vrot.lane.b32.xlu0 %v939, 40
      %v2878 = vpop.permute.xlu0 %2877
      %v2881 = vsel %vm952, %v2724, 0
      %2883 = vmatprep.subr.mxu0 0.0
      %2884 = vmatpush1.msra.mxu0 %v2878
      %2885 = vmatprep.subr.mxu0 0.0
      %2886 = vmatpush1.msra.mxu0 0.0
      %2887 = vmatprep.subr.mxu0 0.0
      %2888 = vmatpush1.msra.mxu0 0.0
      %2889 = vmatprep.subr.mxu0 0.0
      %2890 = vmatpush1.msra.mxu0 0.0
      %2891 = vmatprep.subr.mxu0 0.0
      %2892 = vmatpush1.msra.mxu0 0.0
      %2893 = vmatprep.subr.mxu0 0.0
      %2894 = vmatpush1.msra.mxu0 0.0
      %2895 = vmatprep.subr.mxu0 0.0
      %2896 = vmatpush1.msra.mxu0 0.0
      %2897 = vmatprep.subr.mxu0 0.0
      %2898 = vmatpush1.msra.mxu0 0.0
      %2899 = vmatprep.subr.mxu0 0.0
      %2900 = vmatpush1.msra.mxu0 0.0
      %2901 = vmatprep.subr.mxu0 0.0
      %2902 = vmatpush1.msra.mxu0 0.0
      %2903 = vmatprep.subr.mxu0 0.0
      %2904 = vmatpush1.msra.mxu0 0.0
      %2905 = vmatprep.subr.mxu0 0.0
      %2906 = vmatpush1.msra.mxu0 0.0
      %2907 = vmatprep.subr.mxu0 0.0
      %2908 = vmatpush1.msra.mxu0 0.0
      %2909 = vmatprep.subr.mxu0 0.0
      %2910 = vmatpush1.msra.mxu0 0.0
      %2911 = vmatprep.subr.mxu0 0.0
      %2912 = vmatpush1.msra.mxu0 0.0
      %2913 = vmatprep.subr.mxu0 0.0
      %2914 = vmatpush1.msra.mxu0 0.0
      %2915 = vmatprep.subr.mxu0 0.0
      %2916 = vmatpush1.msra.mxu0 0.0
      %2917 = vmatprep.subr.mxu0 0.0
      %2918 = vmatpush1.msra.mxu0 0.0
      %2919 = vmatprep.subr.mxu0 0.0
      %2920 = vmatpush1.msra.mxu0 0.0
      %2921 = vmatprep.subr.mxu0 0.0
      %2922 = vmatpush1.msra.mxu0 0.0
      %2923 = vmatprep.subr.mxu0 0.0
      %2924 = vmatpush1.msra.mxu0 0.0
      %2925 = vmatprep.subr.mxu0 0.0
      %2926 = vmatpush1.msra.mxu0 0.0
      %2927 = vmatprep.subr.mxu0 0.0
      %2928 = vmatpush1.msra.mxu0 0.0
      %2929 = vmatprep.subr.mxu0 0.0
      %2930 = vmatpush1.msra.mxu0 0.0
      %2931 = vmatprep.subr.mxu0 0.0
      %2932 = vmatpush1.msra.mxu0 0.0
      %2933 = vmatprep.subr.mxu0 0.0
      %2934 = vmatpush1.msra.mxu0 0.0
      %2935 = vmatprep.subr.mxu0 0.0
      %2936 = vmatpush1.msra.mxu0 0.0
      %2937 = vmatprep.subr.mxu0 0.0
      %2938 = vmatpush1.msra.mxu0 0.0
      %2939 = vmatprep.subr.mxu0 0.0
      %2940 = vmatpush1.msra.mxu0 0.0
      %2941 = vmatprep.subr.mxu0 0.0
      %2942 = vmatpush1.msra.mxu0 0.0
      %2943 = vmatprep.subr.mxu0 0.0
      %2944 = vmatpush1.msra.mxu0 0.0
      %2945 = vmatprep.subr.mxu0 0.0
      %2946 = vmatpush1.msra.mxu0 0.0
      %2947 = vmatprep.mubr.f32.mxu0 0.0
      %2948 = vmatmul.mubr.f32.gmra.mrb[0].mxu0 %v2881
      %v2949 = vpop.f32.mrb[0].mxu0
      %v2950 = vadd.f32 0.0, %v2949
      %v2951 = vpop.f32.mrb[0].mxu0
      %2952 = vdwg.mxu0
      %2956 = vrot.lane.b32.xlu0 %v1796, 8
      %v2957 = vpop.permute.xlu0 %2956
      %2958 = vrot.lane.b32.xlu0 %v1872, 8
      %v2959 = vpop.permute.xlu0 %2958
      %2960 = vrot.lane.b32.xlu0 %v1948, 8
      %v2961 = vpop.permute.xlu0 %2960
      %2968 = vrot.lane.b32.xlu0 %v2297, 16
      %v2969 = vpop.permute.xlu0 %2968
      %2970 = vrot.lane.b32.xlu0 %v2373, 16
      %v2971 = vpop.permute.xlu0 %2970
      %2972 = vrot.lane.b32.xlu0 %v2449, 16
      %v2973 = vpop.permute.xlu0 %2972
      %2980 = vrot.lane.b32.xlu0 %v2798, 24
      %v2981 = vpop.permute.xlu0 %2980
      %2982 = vrot.lane.b32.xlu0 %v2874, 24
      %v2983 = vpop.permute.xlu0 %2982
      %2984 = vrot.lane.b32.xlu0 %v2950, 24
      %v2985 = vpop.permute.xlu0 %2984
      %v2989 = vsel %vm952, %v1295, %v2957
      %v2990 = vsel %vm952, %v1371, %v2959
      %v2991 = vsel %vm952, %v1447, %v2961
      %vm2992 = vcmask 130048
      %v2993 = vsel %vm2992, %v2989, %v2969
      %v2994 = vsel %vm2992, %v2990, %v2971
      %v2995 = vsel %vm2992, %v2991, %v2973
      %vm2996 = vcmask 195584
      %v2997 = vsel %vm2996, %v2993, %v2981
      %v2998 = vsel %vm2996, %v2994, %v2983
      %v2999 = vsel %vm2996, %v2995, %v2985
      %v3000 = vpack.c.bf16 %v2998, %v2997
      %v3001 = vpack.c.bf16 %v2999, %v2999
      %v3003 = vlaneseq
      %v3004 = vshrl.u32 %v3003, 7
      %v3005 = vsub.s32 0, %v3004
      %v3006 = vrot.slane %v786, %v3005
      %v3012 = vunpack.c.l.b16 %v782
      %v3013 = vunpack.c.l.b16 %v783
      %v3014 = vunpack.c.l.b16 %v784
      %v3015 = vunpack.c.l.b16 %v785
      %v3016 = vpack.c.b16 %v3013, %v3012
      %v3017 = vpack.c.b16 %v3015, %v3014
      %v3021 = vsel %vm811, %v3000, 0
      %v3024 = vsel %vm811, %v3001, 0
      %3026 = vmatprep.subr.bf16.mxu0 0
      %3027 = vmatpush1.bf16.msra.mxu0 %v3016
      %3028 = vmatprep.subr.bf16.mxu0 0
      %3029 = vmatpush1.bf16.msra.mxu0 %v3017
      %3030 = vmatprep.subr.bf16.mxu0 0
      %3031 = vmatpush1.bf16.msra.mxu0 0
      %3032 = vmatprep.subr.bf16.mxu0 0
      %3033 = vmatpush1.bf16.msra.mxu0 0
      %3034 = vmatprep.subr.bf16.mxu0 0
      %3035 = vmatpush1.bf16.msra.mxu0 0
      %3036 = vmatprep.subr.bf16.mxu0 0
      %3037 = vmatpush1.bf16.msra.mxu0 0
      %3038 = vmatprep.subr.bf16.mxu0 0
      %3039 = vmatpush1.bf16.msra.mxu0 0
      %3040 = vmatprep.subr.bf16.mxu0 0
      %3041 = vmatpush1.bf16.msra.mxu0 0
      %3042 = vmatprep.subr.bf16.mxu0 0
      %3043 = vmatpush1.bf16.msra.mxu0 0
      %3044 = vmatprep.subr.bf16.mxu0 0
      %3045 = vmatpush1.bf16.msra.mxu0 0
      %3046 = vmatprep.subr.bf16.mxu0 0
      %3047 = vmatpush1.bf16.msra.mxu0 0
      %3048 = vmatprep.subr.bf16.mxu0 0
      %3049 = vmatpush1.bf16.msra.mxu0 0
      %3050 = vmatprep.subr.bf16.mxu0 0
      %3051 = vmatpush1.bf16.msra.mxu0 0
      %3052 = vmatprep.subr.bf16.mxu0 0
      %3053 = vmatpush1.bf16.msra.mxu0 0
      %3054 = vmatprep.subr.bf16.mxu0 0
      %3055 = vmatpush1.bf16.msra.mxu0 0
      %3056 = vmatprep.subr.bf16.mxu0 0
      %3057 = vmatpush1.bf16.msra.mxu0 0
      %3058 = vmatprep.mubr.bf16.mxu0 0
      %3059 = vmatmul.mubr.bf16.gmra.mrb[0].mxu0 %v3021
      %v3060 = vpop.f32.mrb[0].mxu0
      %v3061 = vadd.f32 %v3006, %v3060
      %v3062 = vpop.f32.mrb[0].mxu0
      %v3063 = vpop.f32.mrb[0].mxu0
      %v3064 = vadd.f32 %v3006, %v3063
      %v3065 = vpop.f32.mrb[0].mxu0
      %3066 = vmatprep.mubr.bf16.mxu0 0
      %3067 = vmatmul.mubr.bf16.gmra.mrb[0].mxu0 %v3024
      %v3068 = vpop.f32.mrb[0].mxu0
      %v3069 = vadd.f32 %v3006, %v3068
      %v3070 = vpop.f32.mrb[0].mxu0
      %v3071 = vpop.f32.mrb[0].mxu0
      %v3072 = vpop.f32.mrb[0].mxu0
      %3073 = vdwg.mxu0
      %v3074 = vadd.f32 %v772, %v3061
      %v3075 = vadd.f32 %v773, %v3064
      %v3076 = vadd.f32 %v774, %v3069
      %v3077 = vsel %vm811, %v3074, 0.0
      %3078 = vadd.xlane.f32.xlu0 %v3077
      %v3079 = vpop.xlane.xlu0 %3078
      %v3080 = vsel %vm811, %v3075, 0.0
      %3081 = vadd.xlane.f32.xlu0 %v3080
      %v3082 = vpop.xlane.xlu0 %3081
      %v3083 = vsel %vm811, %v3076, 0.0
      %3084 = vadd.xlane.f32.xlu0 %v3083
      %v3085 = vpop.xlane.xlu0 %3084
      %v3086 = vmul.f32 %v3079, %v821
      %v3087 = vmul.f32 %v3082, %v821
      %v3088 = vmul.f32 %v3085, %v821
      %v3089 = vsub.f32 %v3074, %v3086
      %v3090 = vsub.f32 %v3075, %v3087
      %v3091 = vsub.f32 %v3076, %v3088
      %v3092 = vmul.f32 %v3089, %v3089
      %v3093 = vmul.f32 %v3090, %v3090
      %v3094 = vmul.f32 %v3091, %v3091
      %v3095 = vsel %vm811, %v3092, 0.0
      %3096 = vadd.xlane.f32.xlu0 %v3095
      %v3097 = vpop.xlane.xlu0 %3096
      %v3098 = vsel %vm811, %v3093, 0.0
      %3099 = vadd.xlane.f32.xlu0 %v3098
      %v3100 = vpop.xlane.xlu0 %3099
      %v3101 = vsel %vm811, %v3094, 0.0
      %3102 = vadd.xlane.f32.xlu0 %v3101
      %v3103 = vpop.xlane.xlu0 %3102
      %v3104 = vmul.f32 %v3097, %v821
      %v3105 = vmul.f32 %v3100, %v821
      %v3106 = vmul.f32 %v3103, %v821
      %v3107 = vadd.f32 %v3104, 1e-05
      %v3108 = vadd.f32 %v3105, 1e-05
      %v3109 = vadd.f32 %v3106, 1e-05
      %v3110 = vrsqrt.pop %v3107
      %v3111 = vrsqrt.pop %v3108
      %v3112 = vrsqrt.pop %v3109
      %v3113 = vmul.f32 %v3089, %v3110
      %v3114 = vmul.f32 %v3090, %v3111
      %v3115 = vmul.f32 %v3091, %v3112
      %v3117 = vlaneseq
      %v3118 = vshrl.u32 %v3117, 7
      %v3119 = vsub.s32 0, %v3118
      %v3120 = vrot.slane %v787, %v3119
      %v3122 = vmul.f32 %v3113, %v3120
      %v3123 = vmul.f32 %v3114, %v3120
      %v3124 = vmul.f32 %v3115, %v3120
      %v3126 = vlaneseq
      %v3127 = vshrl.u32 %v3126, 7
      %v3128 = vsub.s32 0, %v3127
      %v3129 = vrot.slane %v788, %v3128
      %v3131 = vadd.f32 %v3122, %v3129
      %v3132 = vadd.f32 %v3123, %v3129
      %v3133 = vadd.f32 %v3124, %v3129
      %v3134 = vpack.c.bf16 %v3132, %v3131
      %v3135 = vpack.c.bf16 %v3133, %v3133
      %v3137 = vlaneseq
      %v3138 = vshrl.u32 %v3137, 7
      %v3139 = vsub.s32 0, %v3138
      %v3140 = vrot.slane %v793, %v3139
      %v3146 = vunpack.c.l.b16 %v789
      %v3147 = vunpack.c.l.b16 %v790
      %v3148 = vunpack.c.l.b16 %v791
      %v3149 = vunpack.c.l.b16 %v792
      %v3150 = vpack.c.b16 %v3147, %v3146
      %v3151 = vpack.c.b16 %v3149, %v3148
      %v3155 = vsel %vm811, %v3134, 0
      %v3158 = vsel %vm811, %v3135, 0
      %3160 = vmatprep.subr.bf16.mxu0 0
      %3161 = vmatpush1.bf16.msra.mxu0 %v3150
      %3162 = vmatprep.subr.bf16.mxu0 0
      %3163 = vmatpush1.bf16.msra.mxu0 %v3151
      %3164 = vmatprep.subr.bf16.mxu0 0
      %3165 = vmatpush1.bf16.msra.mxu0 0
      %3166 = vmatprep.subr.bf16.mxu0 0
      %3167 = vmatpush1.bf16.msra.mxu0 0
      %3168 = vmatprep.subr.bf16.mxu0 0
      %3169 = vmatpush1.bf16.msra.mxu0 0
      %3170 = vmatprep.subr.bf16.mxu0 0
      %3171 = vmatpush1.bf16.msra.mxu0 0
      %3172 = vmatprep.subr.bf16.mxu0 0
      %3173 = vmatpush1.bf16.msra.mxu0 0
      %3174 = vmatprep.subr.bf16.mxu0 0
      %3175 = vmatpush1.bf16.msra.mxu0 0
      %3176 = vmatprep.subr.bf16.mxu0 0
      %3177 = vmatpush1.bf16.msra.mxu0 0
      %3178 = vmatprep.subr.bf16.mxu0 0
      %3179 = vmatpush1.bf16.msra.mxu0 0
      %3180 = vmatprep.subr.bf16.mxu0 0
      %3181 = vmatpush1.bf16.msra.mxu0 0
      %3182 = vmatprep.subr.bf16.mxu0 0
      %3183 = vmatpush1.bf16.msra.mxu0 0
      %3184 = vmatprep.subr.bf16.mxu0 0
      %3185 = vmatpush1.bf16.msra.mxu0 0
      %3186 = vmatprep.subr.bf16.mxu0 0
      %3187 = vmatpush1.bf16.msra.mxu0 0
      %3188 = vmatprep.subr.bf16.mxu0 0
      %3189 = vmatpush1.bf16.msra.mxu0 0
      %3190 = vmatprep.subr.bf16.mxu0 0
      %3191 = vmatpush1.bf16.msra.mxu0 0
      %3192 = vmatprep.mubr.bf16.mxu0 0
      %3193 = vmatmul.mubr.bf16.gmra.mrb[0].mxu0 %v3155
      %v3194 = vpop.f32.mrb[0].mxu0
      %v3195 = vadd.f32 %v3140, %v3194
      %v3196 = vpop.f32.mrb[0].mxu0
      %v3197 = vpop.f32.mrb[0].mxu0
      %v3198 = vadd.f32 %v3140, %v3197
      %v3199 = vpop.f32.mrb[0].mxu0
      %3200 = vmatprep.mubr.bf16.mxu0 0
      %3201 = vmatmul.mubr.bf16.gmra.mrb[0].mxu0 %v3158
      %v3202 = vpop.f32.mrb[0].mxu0
      %v3203 = vadd.f32 %v3140, %v3202
      %v3204 = vpop.f32.mrb[0].mxu0
      %v3205 = vpop.f32.mrb[0].mxu0
      %v3206 = vpop.f32.mrb[0].mxu0
      %3207 = vdwg.mxu0
      %v3208 = vmul.f32 %v3195, 1.702
      %v3209 = vmul.f32 %v3198, 1.702
      %v3210 = vmul.f32 %v3203, 1.702
      %v3211 = vxor.u32 %v3208, 2147483648
      %v3212 = vxor.u32 %v3209, 2147483648
      %v3213 = vxor.u32 %v3210, 2147483648
      %v3214 = vmul.f32 %v3211, 1.442695
      %v3215 = vpow.pop %v3214
      %v3216 = vmul.f32 %v3212, 1.442695
      %v3217 = vpow.pop %v3216
      %v3218 = vmul.f32 %v3213, 1.442695
      %v3219 = vpow.pop %v3218
      %v3220 = vadd.f32 %v3215, 1.0
      %v3221 = vadd.f32 %v3217, 1.0
      %v3222 = vadd.f32 %v3219, 1.0
      %v3223 = vrcp.pop %v3220
      %v3224 = vmul.f32 1.0, %v3223
      %v3225 = vrcp.pop %v3221
      %v3226 = vmul.f32 1.0, %v3225
      %v3227 = vrcp.pop %v3222
      %v3228 = vmul.f32 1.0, %v3227
      %v3229 = vmul.f32 %v3195, %v3224
      %v3230 = vmul.f32 %v3198, %v3226
      %v3231 = vmul.f32 %v3203, %v3228
      %v3232 = vpack.c.bf16 %v3230, %v3229
      %v3233 = vpack.c.bf16 %v3231, %v3231
      %v3235 = vlaneseq
      %v3236 = vshrl.u32 %v3235, 7
      %v3237 = vsub.s32 0, %v3236
      %v3238 = vrot.slane %v810, %v3237
      %v3256 = vunpack.c.l.b16 %v794
      %v3257 = vunpack.c.l.b16 %v795
      %v3258 = vunpack.c.l.b16 %v796
      %v3259 = vunpack.c.l.b16 %v797
      %v3260 = vunpack.c.l.b16 %v798
      %v3261 = vunpack.c.l.b16 %v799
      %v3262 = vunpack.c.l.b16 %v800
      %v3263 = vunpack.c.l.b16 %v801
      %v3264 = vunpack.c.l.b16 %v802
      %v3265 = vunpack.c.l.b16 %v803
      %v3266 = vunpack.c.l.b16 %v804
      %v3267 = vunpack.c.l.b16 %v805
      %v3268 = vunpack.c.l.b16 %v806
      %v3269 = vunpack.c.l.b16 %v807
      %v3270 = vunpack.c.l.b16 %v808
      %v3271 = vunpack.c.l.b16 %v809
      %v3272 = vpack.c.b16 %v3257, %v3256
      %v3273 = vpack.c.b16 %v3259, %v3258
      %v3274 = vpack.c.b16 %v3261, %v3260
      %v3275 = vpack.c.b16 %v3263, %v3262
      %v3276 = vpack.c.b16 %v3265, %v3264
      %v3277 = vpack.c.b16 %v3267, %v3266
      %v3278 = vpack.c.b16 %v3269, %v3268
      %v3279 = vpack.c.b16 %v3271, %v3270
      %3288 = vmatprep.subr.bf16.mxu0 0
      %3289 = vmatpush1.bf16.msra.mxu0 %v3272
      %3290 = vmatprep.subr.bf16.mxu0 0
      %3291 = vmatpush1.bf16.msra.mxu0 %v3273
      %3292 = vmatprep.subr.bf16.mxu0 0
      %3293 = vmatpush1.bf16.msra.mxu0 %v3274
      %3294 = vmatprep.subr.bf16.mxu0 0
      %3295 = vmatpush1.bf16.msra.mxu0 %v3275
      %3296 = vmatprep.subr.bf16.mxu0 0
      %3297 = vmatpush1.bf16.msra.mxu0 %v3276
      %3298 = vmatprep.subr.bf16.mxu0 0
      %3299 = vmatpush1.bf16.msra.mxu0 %v3277
      %3300 = vmatprep.subr.bf16.mxu0 0
      %3301 = vmatpush1.bf16.msra.mxu0 %v3278
      %3302 = vmatprep.subr.bf16.mxu0 0
      %3303 = vmatpush1.bf16.msra.mxu0 %v3279
      %3304 = vmatprep.subr.bf16.mxu0 0
      %3305 = vmatpush1.bf16.msra.mxu0 0
      %3306 = vmatprep.subr.bf16.mxu0 0
      %3307 = vmatpush1.bf16.msra.mxu0 0
      %3308 = vmatprep.subr.bf16.mxu0 0
      %3309 = vmatpush1.bf16.msra.mxu0 0
      %3310 = vmatprep.subr.bf16.mxu0 0
      %3311 = vmatpush1.bf16.msra.mxu0 0
      %3312 = vmatprep.subr.bf16.mxu0 0
      %3313 = vmatpush1.bf16.msra.mxu0 0
      %3314 = vmatprep.subr.bf16.mxu0 0
      %3315 = vmatpush1.bf16.msra.mxu0 0
      %3316 = vmatprep.subr.bf16.mxu0 0
      %3317 = vmatpush1.bf16.msra.mxu0 0
      %3318 = vmatprep.subr.bf16.mxu0 0
      %3319 = vmatpush1.bf16.msra.mxu0 0
      %3320 = vmatprep.mubr.bf16.mxu0 0
      %3321 = vmatmul.mubr.bf16.gmra.mrb[0].mxu0 %v3232
      %v3322 = vpop.f32.mrb[0].mxu0
      %v3323 = vadd.f32 %v3238, %v3322
      %v3324 = vpop.f32.mrb[0].mxu0
      %v3325 = vpop.f32.mrb[0].mxu0
      %v3326 = vadd.f32 %v3238, %v3325
      %v3327 = vpop.f32.mrb[0].mxu0
      %3328 = vmatprep.mubr.bf16.mxu0 0
      %3329 = vmatmul.mubr.bf16.gmra.mrb[0].mxu0 %v3233
      %v3330 = vpop.f32.mrb[0].mxu0
      %v3331 = vadd.f32 %v3238, %v3330
      %v3332 = vpop.f32.mrb[0].mxu0
      %v3333 = vpop.f32.mrb[0].mxu0
      %v3334 = vpop.f32.mrb[0].mxu0
      %3335 = vdwg.mxu0
      %v3336 = vadd.f32 %v3074, %v3323
      %v3337 = vadd.f32 %v3075, %v3326
      %v3338 = vadd.f32 %v3076, %v3331
      %3339 = vst.msk [vmem:[#allocation2] sm:$0xff] %vm811, %v3336
      %3340 = vst.msk [vmem:[#allocation2 + $0x8] sm:$0xff] %vm811, %v3337
      %3341 = vst.msk [vmem:[#allocation2 + $0x10] sm:$0xff] %vm811, %v3338
      %p3342 = scmp.eq.s32.totalorder %s36, 1
      // Predicated region
      $region101: #{forward.8} parent=91 // pred_check
        %p3343 = pneg %p3342
      $region102: #{forward.8} parent=91 // pred_check_branch
        %3345 = sbr.rel (%p3343) target = $region104
      $region103: #{forward.8} parent=91 // pred_region
        %s3346 = sld [smem:[#allocation4]]
        %s3347 = scalar_lea.vmem [#allocation2], %s3346
        %v3348 = vld [vmem:[%s3347] sm:$0x1]
        %s3349 = sld [smem:[#allocation4 + $0x1]]
        %s3350 = sadd.s32 %s3349, 8
        %s3351 = scalar_lea.vmem [#allocation2], %s3350
        %v3352 = vld [vmem:[%s3351] sm:$0x1]
        %s3353 = sld [smem:[#allocation4 + $0x2]]
        %s3354 = sadd.s32 %s3353, 16
        %s3355 = scalar_lea.vmem [#allocation2], %s3354
        %v3356 = vld [vmem:[%s3355] sm:$0x1]
        %v3358 = vrot.slane %v3352, 7
        %v3361 = vrot.slane %v3356, 6
        %vm3363 = vcmask 1040384
        %v3364 = vsel %vm3363, %v3348, %v3358
        %vm3365 = vcmask 1041408
        %v3366 = vsel %vm3365, %v3364, %v3361
        %v3367 = vld [vmem:[%s16] sm:$0x1]
        %v3368 = vld [vmem:[%s17] sm:$0x1]
        %vm3369 = vcmask 256000
        %v3370 = vsel %vm3369, %v3366, 0.0
        %3371 = vadd.xlane.f32.xlu0 %v3370
        %v3372 = vpop.xlane.xlu0 %3371
        %v3373 = vmul.f32 %v3372, %v821
        %v3374 = vsub.f32 %v3366, %v3373
        %v3375 = vmul.f32 %v3374, %v3374
        %v3376 = vsel %vm3369, %v3375, 0.0
        %3377 = vadd.xlane.f32.xlu0 %v3376
        %v3378 = vpop.xlane.xlu0 %3377
        %v3379 = vmul.f32 %v3378, %v821
        %v3380 = vadd.f32 %v3379, 1e-05
        %v3381 = vrsqrt.pop %v3380
        %v3382 = vmul.f32 %v3374, %v3381
        %v3384 = vlaneseq
        %v3385 = vshrl.u32 %v3384, 7
        %v3386 = vsub.s32 0, %v3385
        %v3387 = vrot.slane %v3367, %v3386
        %v3389 = vmul.f32 %v3382, %v3387
        %v3391 = vlaneseq
        %v3392 = vshrl.u32 %v3391, 7
        %v3393 = vsub.s32 0, %v3392
        %v3394 = vrot.slane %v3368, %v3393
        %v3396 = vadd.f32 %v3389, %v3394
        %v3397 = vld [vmem:[%s18] sm:$0xff]
        %v3398 = vld [vmem:[%s18 + $0x8] sm:$0xff]
        %v3399 = vld [vmem:[%s18 + $0x10] sm:$0xff]
        %v3400 = vld [vmem:[%s18 + $0x18] sm:$0xff]
        %v3402 = vsel %vm811, %v3396, 0
        %3404 = vmatprep.subr.mxu0 0.0
        %3405 = vmatpush1.msra.mxu0 %v3397
        %3406 = vmatprep.subr.mxu0 0.0
        %3407 = vmatpush1.msra.mxu0 %v3398
        %3408 = vmatprep.subr.mxu0 0.0
        %3409 = vmatpush1.msra.mxu0 %v3399
        %3410 = vmatprep.subr.mxu0 0.0
        %3411 = vmatpush1.msra.mxu0 %v3400
        %3412 = vmatprep.subr.mxu0 0.0
        %3413 = vmatpush1.msra.mxu0 0.0
        %3414 = vmatprep.subr.mxu0 0.0
        %3415 = vmatpush1.msra.mxu0 0.0
        %3416 = vmatprep.subr.mxu0 0.0
        %3417 = vmatpush1.msra.mxu0 0.0
        %3418 = vmatprep.subr.mxu0 0.0
        %3419 = vmatpush1.msra.mxu0 0.0
        %3420 = vmatprep.subr.mxu0 0.0
        %3421 = vmatpush1.msra.mxu0 0.0
        %3422 = vmatprep.subr.mxu0 0.0
        %3423 = vmatpush1.msra.mxu0 0.0
        %3424 = vmatprep.subr.mxu0 0.0
        %3425 = vmatpush1.msra.mxu0 0.0
        %3426 = vmatprep.subr.mxu0 0.0
        %3427 = vmatpush1.msra.mxu0 0.0
        %3428 = vmatprep.subr.mxu0 0.0
        %3429 = vmatpush1.msra.mxu0 0.0
        %3430 = vmatprep.subr.mxu0 0.0
        %3431 = vmatpush1.msra.mxu0 0.0
        %3432 = vmatprep.subr.mxu0 0.0
        %3433 = vmatpush1.msra.mxu0 0.0
        %3434 = vmatprep.subr.mxu0 0.0
        %3435 = vmatpush1.msra.mxu0 0.0
        %3436 = vmatprep.subr.mxu0 0.0
        %3437 = vmatpush1.msra.mxu0 0.0
        %3438 = vmatprep.subr.mxu0 0.0
        %3439 = vmatpush1.msra.mxu0 0.0
        %3440 = vmatprep.subr.mxu0 0.0
        %3441 = vmatpush1.msra.mxu0 0.0
        %3442 = vmatprep.subr.mxu0 0.0
        %3443 = vmatpush1.msra.mxu0 0.0
        %3444 = vmatprep.subr.mxu0 0.0
        %3445 = vmatpush1.msra.mxu0 0.0
        %3446 = vmatprep.subr.mxu0 0.0
        %3447 = vmatpush1.msra.mxu0 0.0
        %3448 = vmatprep.subr.mxu0 0.0
        %3449 = vmatpush1.msra.mxu0 0.0
        %3450 = vmatprep.subr.mxu0 0.0
        %3451 = vmatpush1.msra.mxu0 0.0
        %3452 = vmatprep.subr.mxu0 0.0
        %3453 = vmatpush1.msra.mxu0 0.0
        %3454 = vmatprep.subr.mxu0 0.0
        %3455 = vmatpush1.msra.mxu0 0.0
        %3456 = vmatprep.subr.mxu0 0.0
        %3457 = vmatpush1.msra.mxu0 0.0
        %3458 = vmatprep.subr.mxu0 0.0
        %3459 = vmatpush1.msra.mxu0 0.0
        %3460 = vmatprep.subr.mxu0 0.0
        %3461 = vmatpush1.msra.mxu0 0.0
        %3462 = vmatprep.subr.mxu0 0.0
        %3463 = vmatpush1.msra.mxu0 0.0
        %3464 = vmatprep.subr.mxu0 0.0
        %3465 = vmatpush1.msra.mxu0 0.0
        %3466 = vmatprep.subr.mxu0 0.0
        %3467 = vmatpush1.msra.mxu0 0.0
        %3468 = vmatprep.mubr.f32.mxu0 0.0
        %3469 = vmatmul.mubr.f32.gmra.mrb[0].mxu0 %v3402
        %v3470 = vpop.f32.mrb[0].mxu0
        %v3471 = vadd.f32 0.0, %v3470
        %v3472 = vpop.f32.mrb[0].mxu0
        %3473 = vdwg.mxu0
        %vm3474 = vcmask 124928
        %3475 = vst.msk [vmem:[%s19] sm:$0x7] %vm3474, %v3471
      $region104: #{forward.8} parent=91 // pred_fallthru
        _
      // Predicated region
      $region105: #{forward.8} parent=91 // pred_check
        %p3476 = pneg %p487
      $region106: #{forward.8} parent=91 // pred_check_branch
        %3478 = sbr.rel (%p3476) target = $region108
      $region107: #{forward.8} parent=91 // pred_region
        _
      $region108: #{forward.8} parent=91 // pred_fallthru
        _
      // Predicated region
      $region109: #{forward.8} parent=91 // pred_check
        %p3479 = pneg %p487
      $region110: #{forward.8} parent=91 // pred_check_branch
        %3481 = sbr.rel (%p3479) target = $region112
      $region111: #{forward.8} parent=91 // pred_region
        _
      $region112: #{forward.8} parent=91 // pred_fallthru
        _
    $region92: #{forward.8} parent=5 // pred_fallthru
      _
    %p3482 = scmp.le.s32.totalorder 2, %s31
    // Predicated region
    $region113: #{forward.8} parent=5 // pred_check
      %p3483 = pneg %p3482
    $region114: #{forward.8} parent=5 // pred_check_branch
      %3485 = sbr.rel (%p3483) target = $region116
    $region115: #{forward.8} parent=5 // pred_region
      %s3486 = ssub.s32 %s31, 2
    $region116: #{forward.8} parent=5 // pred_fallthru
      _
  $region6: #{forward.8} parent=0 // loop_footer
    %s35 = sadd.s32 1, %s31
  $region7: #{forward.8} parent=0 // loop_footer_branch
    %30 = sbr.rel target = $region3
  $region8: #{forward.8} parent=0 // loop_exit
    _

// kernel: forward.10
$region0: #{forward.10}
  #allocation0 [shape = 'u32[]', space=smem, size = 0x4, offset = 0x4, fixed_abs, tag = 'smem constant byte address 0x4 - core index']
  #allocation1 [shape = 'u32[144,128]{1,0:T(1,128)}', space=vmem, size = 0x12000, scoped, tag = 'internal scratch']
  #allocation2 [shape = 'f32[2,7,64]{2,1,0:T(8,128)}', space=vmem, size = 0x2000, scoped, tag = 'scratch operand']
  %s0 = inlined_call_operand.vmem [shape: f32[2,7,64], index: 0, kind: input, shape index: {}]
  %s1 = inlined_call_operand.vmem [shape: f32[1,2,64], index: 1, kind: input, shape index: {}]
  %s2 = inlined_call_operand.vmem [shape: f32[1,64], index: 2, kind: input, shape index: {}, may-alias: {2,16}]
  %s3 = inlined_call_operand.vmem [shape: f32[1,64], index: 3, kind: input, shape index: {}, may-alias: {3,17}]
  %s4 = inlined_call_operand.vmem [shape: f32[2,1,64], index: 4, kind: input, shape index: {}, may-alias: {4,10}]
  %s5 = inlined_call_operand.vmem [shape: f32[2,1,64], index: 5, kind: input, shape index: {}, may-alias: {5,9,11,15}]
  %s6 = inlined_call_operand.vmem [shape: bf16[2,64,192], index: 6, kind: input, shape index: {}]
  %s7 = inlined_call_operand.vmem [shape: f32[2,1,192], index: 7, kind: input, shape index: {}]
  %s8 = inlined_call_operand.vmem [shape: bf16[2,64,64], index: 8, kind: input, shape index: {}]
  %s9 = inlined_call_operand.vmem [shape: f32[2,1,64], index: 9, kind: input, shape index: {}, may-alias: {5,9,11,15}]
  %s10 = inlined_call_operand.vmem [shape: f32[2,1,64], index: 10, kind: input, shape index: {}, may-alias: {4,10}]
  %s11 = inlined_call_operand.vmem [shape: f32[2,1,64], index: 11, kind: input, shape index: {}, may-alias: {5,9,11,15}]
  %s12 = inlined_call_operand.vmem [shape: bf16[2,64,256], index: 12, kind: input, shape index: {}]
  %s13 = inlined_call_operand.vmem [shape: f32[2,1,256], index: 13, kind: input, shape index: {}]
  %s14 = inlined_call_operand.vmem [shape: bf16[2,256,64], index: 14, kind: input, shape index: {}]
  %s15 = inlined_call_operand.vmem [shape: f32[2,1,64], index: 15, kind: input, shape index: {}, may-alias: {5,9,11,15}]
  %s16 = inlined_call_operand.vmem [shape: f32[1,64], index: 16, kind: input, shape index: {}, may-alias: {2,16}]
  %s17 = inlined_call_operand.vmem [shape: f32[1,64], index: 17, kind: input, shape index: {}, may-alias: {3,17}]
  %s18 = inlined_call_operand.vmem [shape: f32[64,16], index: 18, kind: input, shape index: {}]
  %s19 = inlined_call_operand.vmem [shape: f32[2,16], index: 19, kind: output, shape index: {}]
  %s20 = sld [smem:[#allocation0]]
  $region121: #{forward.10} parent=0
    _
  %s22 = ssub.s32 1, %s20
  %s23 = scalar_select 0, %s22, %s20
  loop: start=0, step=1, limit=4
  $region2: #{forward.10} parent=0 // loop_pre_header
    _
  $region3: #{forward.10} parent=0 // loop_header
    %s25 = sphi 0, %s29
    %p26 = scmp.ge.s32.totalorder %s25, 4
    %s33 = sphi 0, %s33
    %s35 = sphi 0, %s33
    %s36 = sphi 0, %s35
    %s50 = sphi 0, %s36
    %s54 = sphi 0, %s54
    %s56 = sphi 0, %s54
    %s57 = sphi 0, %s56
    %s71 = sphi 0, %s57
    %s75 = sphi 0, %s75
    %s77 = sphi 0, %s75
    %s78 = sphi 0, %s77
    %s92 = sphi 0, %s78
    %s96 = sphi 0, %s96
    %s98 = sphi 0, %s96
    %s99 = sphi 0, %s98
    %s113 = sphi 0, %s99
    %s119 = sphi 0, %s121
    %s122 = sphi 0, %s119
    %s123 = sphi 0, %s122
    %s139 = sphi 0, %s123
    %s145 = sphi 0, %s147
    %s148 = sphi 0, %s145
    %s149 = sphi 0, %s148
    %s165 = sphi 0, %s149
    %s171 = sphi 0, %s173
    %s174 = sphi 0, %s171
    %s175 = sphi 0, %s174
    %s191 = sphi 0, %s175
    %s197 = sphi 0, %s199
    %s200 = sphi 0, %s197
    %s201 = sphi 0, %s200
    %s217 = sphi 0, %s201
    %s223 = sphi 0, %s225
    %s226 = sphi 0, %s223
    %s227 = sphi 0, %s226
    %s243 = sphi 0, %s227
    %s249 = sphi 0, %s251
    %s252 = sphi 0, %s249
    %s253 = sphi 0, %s252
    %s269 = sphi 0, %s253
    %s275 = sphi 0, %s277
    %s278 = sphi 0, %s275
    %s279 = sphi 0, %s278
    %s295 = sphi 0, %s279
    %s301 = sphi 0, %s303
    %s304 = sphi 0, %s301
    %s305 = sphi 0, %s304
    %s321 = sphi 0, %s305
    %s327 = sphi 0, %s329
    %s330 = sphi 0, %s327
    %s331 = sphi 0, %s330
    %s347 = sphi 0, %s331
    %s353 = sphi 0, %s355
    %s356 = sphi 0, %s353
    %s357 = sphi 0, %s356
    %s373 = sphi 0, %s357
    %s379 = sphi 0, %s381
    %s382 = sphi 0, %s379
    %s383 = sphi 0, %s382
    %s399 = sphi 0, %s383
    %s405 = sphi 0, %s407
    %s408 = sphi 0, %s405
    %s409 = sphi 0, %s408
    %s425 = sphi 0, %s409
    %s429 = sphi 0, %s429
    %s431 = sphi 0, %s429
    %s432 = sphi 0, %s431
    %s446 = sphi 0, %s432
    %s450 = sphi 0, %s450
    %s452 = sphi 0, %s450
    %s453 = sphi 0, %s452
    %s467 = sphi 0, %s453
    %s471 = sphi 0, %s471
    %s473 = sphi 0, %s471
    %s474 = sphi 0, %s473
    %s488 = sphi 0, %s474
    %s492 = sphi 0, %s492
    %s494 = sphi 0, %s492
    %s495 = sphi 0, %s494
    %s509 = sphi 0, %s495
  $region4: #{forward.10} parent=0 // loop_header_branch
    %28 = sbr.rel (%p26) target = $region8
  $region5: #{forward.10} parent=0 // loop_body
    %s30 = ssub.s32 %s25, 1
    %s31 = ssub.s32 %s25, 2
    %s32 = sadd.s32 %s25, 1
    %s34 = sadd.s32 %s33, 1
    %p37 = scmp.eq.s32.totalorder %s25, 1
    %p38 = scmp.ne.s32.totalorder %s33, %s35
    %p39 = scmp.eq.s32.totalorder %s25, 0
    %p40 = por %p38, %p39
    %p41 = scmp.ne.s32.totalorder %s33, %s35
    %p42 = scmp.eq.s32.totalorder %s30, 1
    %p43 = por %p41, %p42
    %p44 = scmp.ne.s32.totalorder %s35, %s36
    %p45 = scmp.eq.s32.totalorder %s30, 0
    %p46 = por %p44, %p45
    %p47 = scmp.ne.s32.totalorder %s35, %s36
    %p48 = scmp.eq.s32.totalorder %s31, 1
    %p49 = por %p47, %p48
    %p51 = scmp.ne.s32.totalorder %s36, %s50
    %p52 = scmp.eq.s32.totalorder %s31, 0
    %p53 = por %p51, %p52
    %s55 = sadd.s32 %s54, 1
    %p58 = scmp.eq.s32.totalorder %s25, 1
    %p59 = scmp.ne.s32.totalorder %s54, %s56
    %p60 = scmp.eq.s32.totalorder %s25, 0
    %p61 = por %p59, %p60
    %p62 = scmp.ne.s32.totalorder %s54, %s56
    %p63 = scmp.eq.s32.totalorder %s30, 1
    %p64 = por %p62, %p63
    %p65 = scmp.ne.s32.totalorder %s56, %s57
    %p66 = scmp.eq.s32.totalorder %s30, 0
    %p67 = por %p65, %p66
    %p68 = scmp.ne.s32.totalorder %s56, %s57
    %p69 = scmp.eq.s32.totalorder %s31, 1
    %p70 = por %p68, %p69
    %p72 = scmp.ne.s32.totalorder %s57, %s71
    %p73 = scmp.eq.s32.totalorder %s31, 0
    %p74 = por %p72, %p73
    %s76 = sadd.s32 %s75, 1
    %p79 = scmp.eq.s32.totalorder %s25, 1
    %p80 = scmp.ne.s32.totalorder %s75, %s77
    %p81 = scmp.eq.s32.totalorder %s25, 0
    %p82 = por %p80, %p81
    %p83 = scmp.ne.s32.totalorder %s75, %s77
    %p84 = scmp.eq.s32.totalorder %s30, 1
    %p85 = por %p83, %p84
    %p86 = scmp.ne.s32.totalorder %s77, %s78
    %p87 = scmp.eq.s32.totalorder %s30, 0
    %p88 = por %p86, %p87
    %p89 = scmp.ne.s32.totalorder %s77, %s78
    %p90 = scmp.eq.s32.totalorder %s31, 1
    %p91 = por %p89, %p90
    %p93 = scmp.ne.s32.totalorder %s78, %s92
    %p94 = scmp.eq.s32.totalorder %s31, 0
    %p95 = por %p93, %p94
    %s97 = sadd.s32 %s96, 1
    %p100 = scmp.eq.s32.totalorder %s25, 1
    %p101 = scmp.ne.s32.totalorder %s96, %s98
    %p102 = scmp.eq.s32.totalorder %s25, 0
    %p103 = por %p101, %p102
    %p104 = scmp.ne.s32.totalorder %s96, %s98
    %p105 = scmp.eq.s32.totalorder %s30, 1
    %p106 = por %p104, %p105
    %p107 = scmp.ne.s32.totalorder %s98, %s99
    %p108 = scmp.eq.s32.totalorder %s30, 0
    %p109 = por %p107, %p108
    %p110 = scmp.ne.s32.totalorder %s98, %s99
    %p111 = scmp.eq.s32.totalorder %s31, 1
    %p112 = por %p110, %p111
    %p114 = scmp.ne.s32.totalorder %s99, %s113
    %p115 = scmp.eq.s32.totalorder %s31, 0
    %p116 = por %p114, %p115
    %s117 = ssub.s32 %s25, %s32
    %p118 = scmp.eq.s32.totalorder %s117, 0
    %s120 = sadd.s32 %s119, 1
    %s121 = scalar_select %p118, %s119, %s120
    %p124 = pneg %p118
    %p125 = scmp.eq.s32.totalorder %s25, 1
    %p126 = por %p124, %p125
    %p127 = scmp.ne.s32.totalorder %s119, %s122
    %p128 = scmp.eq.s32.totalorder %s25, 0
    %p129 = por %p127, %p128
    %p130 = scmp.ne.s32.totalorder %s119, %s122
    %p131 = scmp.eq.s32.totalorder %s30, 1
    %p132 = por %p130, %p131
    %p133 = scmp.ne.s32.totalorder %s122, %s123
    %p134 = scmp.eq.s32.totalorder %s30, 0
    %p135 = por %p133, %p134
    %p136 = scmp.ne.s32.totalorder %s122, %s123
    %p137 = scmp.eq.s32.totalorder %s31, 1
    %p138 = por %p136, %p137
    %p140 = scmp.ne.s32.totalorder %s123, %s139
    %p141 = scmp.eq.s32.totalorder %s31, 0
    %p142 = por %p140, %p141
    %s143 = ssub.s32 %s25, %s32
    %p144 = scmp.eq.s32.totalorder %s143, 0
    %s146 = sadd.s32 %s145, 1
    %s147 = scalar_select %p144, %s145, %s146
    %p150 = pneg %p144
    %p151 = scmp.eq.s32.totalorder %s25, 1
    %p152 = por %p150, %p151
    %p153 = scmp.ne.s32.totalorder %s145, %s148
    %p154 = scmp.eq.s32.totalorder %s25, 0
    %p155 = por %p153, %p154
    %p156 = scmp.ne.s32.totalorder %s145, %s148
    %p157 = scmp.eq.s32.totalorder %s30, 1
    %p158 = por %p156, %p157
    %p159 = scmp.ne.s32.totalorder %s148, %s149
    %p160 = scmp.eq.s32.totalorder %s30, 0
    %p161 = por %p159, %p160
    %p162 = scmp.ne.s32.totalorder %s148, %s149
    %p163 = scmp.eq.s32.totalorder %s31, 1
    %p164 = por %p162, %p163
    %p166 = scmp.ne.s32.totalorder %s149, %s165
    %p167 = scmp.eq.s32.totalorder %s31, 0
    %p168 = por %p166, %p167
    %s169 = ssub.s32 %s25, %s32
    %p170 = scmp.eq.s32.totalorder %s169, 0
    %s172 = sadd.s32 %s171, 1
    %s173 = scalar_select %p170, %s171, %s172
    %p176 = pneg %p170
    %p177 = scmp.eq.s32.totalorder %s25, 1
    %p178 = por %p176, %p177
    %p179 = scmp.ne.s32.totalorder %s171, %s174
    %p180 = scmp.eq.s32.totalorder %s25, 0
    %p181 = por %p179, %p180
    %p182 = scmp.ne.s32.totalorder %s171, %s174
    %p183 = scmp.eq.s32.totalorder %s30, 1
    %p184 = por %p182, %p183
    %p185 = scmp.ne.s32.totalorder %s174, %s175
    %p186 = scmp.eq.s32.totalorder %s30, 0
    %p187 = por %p185, %p186
    %p188 = scmp.ne.s32.totalorder %s174, %s175
    %p189 = scmp.eq.s32.totalorder %s31, 1
    %p190 = por %p188, %p189
    %p192 = scmp.ne.s32.totalorder %s175, %s191
    %p193 = scmp.eq.s32.totalorder %s31, 0
    %p194 = por %p192, %p193
    %s195 = ssub.s32 %s25, %s32
    %p196 = scmp.eq.s32.totalorder %s195, 0
    %s198 = sadd.s32 %s197, 1
    %s199 = scalar_select %p196, %s197, %s198
    %p202 = pneg %p196
    %p203 = scmp.eq.s32.totalorder %s25, 1
    %p204 = por %p202, %p203
    %p205 = scmp.ne.s32.totalorder %s197, %s200
    %p206 = scmp.eq.s32.totalorder %s25, 0
    %p207 = por %p205, %p206
    %p208 = scmp.ne.s32.totalorder %s197, %s200
    %p209 = scmp.eq.s32.totalorder %s30, 1
    %p210 = por %p208, %p209
    %p211 = scmp.ne.s32.totalorder %s200, %s201
    %p212 = scmp.eq.s32.totalorder %s30, 0
    %p213 = por %p211, %p212
    %p214 = scmp.ne.s32.totalorder %s200, %s201
    %p215 = scmp.eq.s32.totalorder %s31, 1
    %p216 = por %p214, %p215
    %p218 = scmp.ne.s32.totalorder %s201, %s217
    %p219 = scmp.eq.s32.totalorder %s31, 0
    %p220 = por %p218, %p219
    %s221 = ssub.s32 %s25, %s32
    %p222 = scmp.eq.s32.totalorder %s221, 0
    %s224 = sadd.s32 %s223, 1
    %s225 = scalar_select %p222, %s223, %s224
    %p228 = pneg %p222
    %p229 = scmp.eq.s32.totalorder %s25, 1
    %p230 = por %p228, %p229
    %p231 = scmp.ne.s32.totalorder %s223, %s226
    %p232 = scmp.eq.s32.totalorder %s25, 0
    %p233 = por %p231, %p232
    %p234 = scmp.ne.s32.totalorder %s223, %s226
    %p235 = scmp.eq.s32.totalorder %s30, 1
    %p236 = por %p234, %p235
    %p237 = scmp.ne.s32.totalorder %s226, %s227
    %p238 = scmp.eq.s32.totalorder %s30, 0
    %p239 = por %p237, %p238
    %p240 = scmp.ne.s32.totalorder %s226, %s227
    %p241 = scmp.eq.s32.totalorder %s31, 1
    %p242 = por %p240, %p241
    %p244 = scmp.ne.s32.totalorder %s227, %s243
    %p245 = scmp.eq.s32.totalorder %s31, 0
    %p246 = por %p244, %p245
    %s247 = ssub.s32 %s25, %s32
    %p248 = scmp.eq.s32.totalorder %s247, 0
    %s250 = sadd.s32 %s249, 1
    %s251 = scalar_select %p248, %s249, %s250
    %p254 = pneg %p248
    %p255 = scmp.eq.s32.totalorder %s25, 1
    %p256 = por %p254, %p255
    %p257 = scmp.ne.s32.totalorder %s249, %s252
    %p258 = scmp.eq.s32.totalorder %s25, 0
    %p259 = por %p257, %p258
    %p260 = scmp.ne.s32.totalorder %s249, %s252
    %p261 = scmp.eq.s32.totalorder %s30, 1
    %p262 = por %p260, %p261
    %p263 = scmp.ne.s32.totalorder %s252, %s253
    %p264 = scmp.eq.s32.totalorder %s30, 0
    %p265 = por %p263, %p264
    %p266 = scmp.ne.s32.totalorder %s252, %s253
    %p267 = scmp.eq.s32.totalorder %s31, 1
    %p268 = por %p266, %p267
    %p270 = scmp.ne.s32.totalorder %s253, %s269
    %p271 = scmp.eq.s32.totalorder %s31, 0
    %p272 = por %p270, %p271
    %s273 = ssub.s32 %s25, %s32
    %p274 = scmp.eq.s32.totalorder %s273, 0
    %s276 = sadd.s32 %s275, 1
    %s277 = scalar_select %p274, %s275, %s276
    %p280 = pneg %p274
    %p281 = scmp.eq.s32.totalorder %s25, 1
    %p282 = por %p280, %p281
    %p283 = scmp.ne.s32.totalorder %s275, %s278
    %p284 = scmp.eq.s32.totalorder %s25, 0
    %p285 = por %p283, %p284
    %p286 = scmp.ne.s32.totalorder %s275, %s278
    %p287 = scmp.eq.s32.totalorder %s30, 1
    %p288 = por %p286, %p287
    %p289 = scmp.ne.s32.totalorder %s278, %s279
    %p290 = scmp.eq.s32.totalorder %s30, 0
    %p291 = por %p289, %p290
    %p292 = scmp.ne.s32.totalorder %s278, %s279
    %p293 = scmp.eq.s32.totalorder %s31, 1
    %p294 = por %p292, %p293
    %p296 = scmp.ne.s32.totalorder %s279, %s295
    %p297 = scmp.eq.s32.totalorder %s31, 0
    %p298 = por %p296, %p297
    %s299 = ssub.s32 %s25, %s32
    %p300 = scmp.eq.s32.totalorder %s299, 0
    %s302 = sadd.s32 %s301, 1
    %s303 = scalar_select %p300, %s301, %s302
    %p306 = pneg %p300
    %p307 = scmp.eq.s32.totalorder %s25, 1
    %p308 = por %p306, %p307
    %p309 = scmp.ne.s32.totalorder %s301, %s304
    %p310 = scmp.eq.s32.totalorder %s25, 0
    %p311 = por %p309, %p310
    %p312 = scmp.ne.s32.totalorder %s301, %s304
    %p313 = scmp.eq.s32.totalorder %s30, 1
    %p314 = por %p312, %p313
    %p315 = scmp.ne.s32.totalorder %s304, %s305
    %p316 = scmp.eq.s32.totalorder %s30, 0
    %p317 = por %p315, %p316
    %p318 = scmp.ne.s32.totalorder %s304, %s305
    %p319 = scmp.eq.s32.totalorder %s31, 1
    %p320 = por %p318, %p319
    %p322 = scmp.ne.s32.totalorder %s305, %s321
    %p323 = scmp.eq.s32.totalorder %s31, 0
    %p324 = por %p322, %p323
    %s325 = ssub.s32 %s25, %s32
    %p326 = scmp.eq.s32.totalorder %s325, 0
    %s328 = sadd.s32 %s327, 1
    %s329 = scalar_select %p326, %s327, %s328
    %p332 = pneg %p326
    %p333 = scmp.eq.s32.totalorder %s25, 1
    %p334 = por %p332, %p333
    %p335 = scmp.ne.s32.totalorder %s327, %s330
    %p336 = scmp.eq.s32.totalorder %s25, 0
    %p337 = por %p335, %p336
    %p338 = scmp.ne.s32.totalorder %s327, %s330
    %p339 = scmp.eq.s32.totalorder %s30, 1
    %p340 = por %p338, %p339
    %p341 = scmp.ne.s32.totalorder %s330, %s331
    %p342 = scmp.eq.s32.totalorder %s30, 0
    %p343 = por %p341, %p342
    %p344 = scmp.ne.s32.totalorder %s330, %s331
    %p345 = scmp.eq.s32.totalorder %s31, 1
    %p346 = por %p344, %p345
    %p348 = scmp.ne.s32.totalorder %s331, %s347
    %p349 = scmp.eq.s32.totalorder %s31, 0
    %p350 = por %p348, %p349
    %s351 = ssub.s32 %s25, %s32
    %p352 = scmp.eq.s32.totalorder %s351, 0
    %s354 = sadd.s32 %s353, 1
    %s355 = scalar_select %p352, %s353, %s354
    %p358 = pneg %p352
    %p359 = scmp.eq.s32.totalorder %s25, 1
    %p360 = por %p358, %p359
    %p361 = scmp.ne.s32.totalorder %s353, %s356
    %p362 = scmp.eq.s32.totalorder %s25, 0
    %p363 = por %p361, %p362
    %p364 = scmp.ne.s32.totalorder %s353, %s356
    %p365 = scmp.eq.s32.totalorder %s30, 1
    %p366 = por %p364, %p365
    %p367 = scmp.ne.s32.totalorder %s356, %s357
    %p368 = scmp.eq.s32.totalorder %s30, 0
    %p369 = por %p367, %p368
    %p370 = scmp.ne.s32.totalorder %s356, %s357
    %p371 = scmp.eq.s32.totalorder %s31, 1
    %p372 = por %p370, %p371
    %p374 = scmp.ne.s32.totalorder %s357, %s373
    %p375 = scmp.eq.s32.totalorder %s31, 0
    %p376 = por %p374, %p375
    %s377 = ssub.s32 %s25, %s32
    %p378 = scmp.eq.s32.totalorder %s377, 0
    %s380 = sadd.s32 %s379, 1
    %s381 = scalar_select %p378, %s379, %s380
    %p384 = pneg %p378
    %p385 = scmp.eq.s32.totalorder %s25, 1
    %p386 = por %p384, %p385
    %p387 = scmp.ne.s32.totalorder %s379, %s382
    %p388 = scmp.eq.s32.totalorder %s25, 0
    %p389 = por %p387, %p388
    %p390 = scmp.ne.s32.totalorder %s379, %s382
    %p391 = scmp.eq.s32.totalorder %s30, 1
    %p392 = por %p390, %p391
    %p393 = scmp.ne.s32.totalorder %s382, %s383
    %p394 = scmp.eq.s32.totalorder %s30, 0
    %p395 = por %p393, %p394
    %p396 = scmp.ne.s32.totalorder %s382, %s383
    %p397 = scmp.eq.s32.totalorder %s31, 1
    %p398 = por %p396, %p397
    %p400 = scmp.ne.s32.totalorder %s383, %s399
    %p401 = scmp.eq.s32.totalorder %s31, 0
    %p402 = por %p400, %p401
    %s403 = ssub.s32 %s25, %s32
    %p404 = scmp.eq.s32.totalorder %s403, 0
    %s406 = sadd.s32 %s405, 1
    %s407 = scalar_select %p404, %s405, %s406
    %p410 = pneg %p404
    %p411 = scmp.eq.s32.totalorder %s25, 1
    %p412 = por %p410, %p411
    %p413 = scmp.ne.s32.totalorder %s405, %s408
    %p414 = scmp.eq.s32.totalorder %s25, 0
    %p415 = por %p413, %p414
    %p416 = scmp.ne.s32.totalorder %s405, %s408
    %p417 = scmp.eq.s32.totalorder %s30, 1
    %p418 = por %p416, %p417
    %p419 = scmp.ne.s32.totalorder %s408, %s409
    %p420 = scmp.eq.s32.totalorder %s30, 0
    %p421 = por %p419, %p420
    %p422 = scmp.ne.s32.totalorder %s408, %s409
    %p423 = scmp.eq.s32.totalorder %s31, 1
    %p424 = por %p422, %p423
    %p426 = scmp.ne.s32.totalorder %s409, %s425
    %p427 = scmp.eq.s32.totalorder %s31, 0
    %p428 = por %p426, %p427
    %s430 = sadd.s32 %s429, 1
    %p433 = scmp.eq.s32.totalorder %s25, 1
    %p434 = scmp.ne.s32.totalorder %s429, %s431
    %p435 = scmp.eq.s32.totalorder %s25, 0
    %p436 = por %p434, %p435
    %p437 = scmp.ne.s32.totalorder %s429, %s431
    %p438 = scmp.eq.s32.totalorder %s30, 1
    %p439 = por %p437, %p438
    %p440 = scmp.ne.s32.totalorder %s431, %s432
    %p441 = scmp.eq.s32.totalorder %s30, 0
    %p442 = por %p440, %p441
    %p443 = scmp.ne.s32.totalorder %s431, %s432
    %p444 = scmp.eq.s32.totalorder %s31, 1
    %p445 = por %p443, %p444
    %p447 = scmp.ne.s32.totalorder %s432, %s446
    %p448 = scmp.eq.s32.totalorder %s31, 0
    %p449 = por %p447, %p448
    %s451 = sadd.s32 %s450, 1
    %p454 = scmp.eq.s32.totalorder %s25, 1
    %p455 = scmp.ne.s32.totalorder %s450, %s452
    %p456 = scmp.eq.s32.totalorder %s25, 0
    %p457 = por %p455, %p456
    %p458 = scmp.ne.s32.totalorder %s450, %s452
    %p459 = scmp.eq.s32.totalorder %s30, 1
    %p460 = por %p458, %p459
    %p461 = scmp.ne.s32.totalorder %s452, %s453
    %p462 = scmp.eq.s32.totalorder %s30, 0
    %p463 = por %p461, %p462
    %p464 = scmp.ne.s32.totalorder %s452, %s453
    %p465 = scmp.eq.s32.totalorder %s31, 1
    %p466 = por %p464, %p465
    %p468 = scmp.ne.s32.totalorder %s453, %s467
    %p469 = scmp.eq.s32.totalorder %s31, 0
    %p470 = por %p468, %p469
    %s472 = sadd.s32 %s471, 1
    %p475 = scmp.eq.s32.totalorder %s25, 1
    %p476 = scmp.ne.s32.totalorder %s471, %s473
    %p477 = scmp.eq.s32.totalorder %s25, 0
    %p478 = por %p476, %p477
    %p479 = scmp.ne.s32.totalorder %s471, %s473
    %p480 = scmp.eq.s32.totalorder %s30, 1
    %p481 = por %p479, %p480
    %p482 = scmp.ne.s32.totalorder %s473, %s474
    %p483 = scmp.eq.s32.totalorder %s30, 0
    %p484 = por %p482, %p483
    %p485 = scmp.ne.s32.totalorder %s473, %s474
    %p486 = scmp.eq.s32.totalorder %s31, 1
    %p487 = por %p485, %p486
    %p489 = scmp.ne.s32.totalorder %s474, %s488
    %p490 = scmp.eq.s32.totalorder %s31, 0
    %p491 = por %p489, %p490
    %s493 = sadd.s32 %s492, 1
    %p496 = scmp.eq.s32.totalorder %s25, 1
    %p497 = scmp.ne.s32.totalorder %s492, %s494
    %p498 = scmp.eq.s32.totalorder %s25, 0
    %p499 = por %p497, %p498
    %p500 = scmp.ne.s32.totalorder %s492, %s494
    %p501 = scmp.eq.s32.totalorder %s30, 1
    %p502 = por %p500, %p501
    %p503 = scmp.ne.s32.totalorder %s494, %s495
    %p504 = scmp.eq.s32.totalorder %s30, 0
    %p505 = por %p503, %p504
    %p506 = scmp.ne.s32.totalorder %s494, %s495
    %p507 = scmp.eq.s32.totalorder %s31, 1
    %p508 = por %p506, %p507
    %p510 = scmp.ne.s32.totalorder %s495, %s509
    %p511 = scmp.eq.s32.totalorder %s31, 0
    %p512 = por %p510, %p511
    %p513 = scmp.le.s32.totalorder 1, %s25
    %p514 = scmp.lt.s32.totalorder %s25, 3
    %p515 = pnand %p513, %p514
    %p516 = pneg %p515
    // Predicated region
    $region9: #{forward.10} parent=5 // pred_check
      _
    $region10: #{forward.10} parent=5 // pred_check_branch
      %518 = sbr.rel (%p515) target = $region12
    $region11: #{forward.10} parent=5 // pred_region
      %s519 = ssub.s32 %s25, 1
      // Predicated region
      $region13: #{forward.10} parent=11 // pred_check
        %p520 = pneg %p46
      $region14: #{forward.10} parent=11 // pred_check_branch
        %522 = sbr.rel (%p520) target = $region16
      $region15: #{forward.10} parent=11 // pred_region
        _
      $region16: #{forward.10} parent=11 // pred_fallthru
        _
      // Predicated region
      $region17: #{forward.10} parent=11 // pred_check
        %p523 = pneg %p67
      $region18: #{forward.10} parent=11 // pred_check_branch
        %525 = sbr.rel (%p523) target = $region20
      $region19: #{forward.10} parent=11 // pred_region
        _
      $region20: #{forward.10} parent=11 // pred_fallthru
        _
      // Predicated region
      $region21: #{forward.10} parent=11 // pred_check
        %p526 = pneg %p88
      $region22: #{forward.10} parent=11 // pred_check_branch
        %528 = sbr.rel (%p526) target = $region24
      $region23: #{forward.10} parent=11 // pred_region
        _
      $region24: #{forward.10} parent=11 // pred_fallthru
        _
      // Predicated region
      $region25: #{forward.10} parent=11 // pred_check
        %p529 = pneg %p109
      $region26: #{forward.10} parent=11 // pred_check_branch
        %531 = sbr.rel (%p529) target = $region28
      $region27: #{forward.10} parent=11 // pred_region
        _
      $region28: #{forward.10} parent=11 // pred_fallthru
        _
      // Predicated region
      $region29: #{forward.10} parent=11 // pred_check
        %p532 = pneg %p442
      $region30: #{forward.10} parent=11 // pred_check_branch
        %534 = sbr.rel (%p532) target = $region32
      $region31: #{forward.10} parent=11 // pred_region
        _
      $region32: #{forward.10} parent=11 // pred_fallthru
        _
      // Predicated region
      $region33: #{forward.10} parent=11 // pred_check
        %p535 = pneg %p463
      $region34: #{forward.10} parent=11 // pred_check_branch
        %537 = sbr.rel (%p535) target = $region36
      $region35: #{forward.10} parent=11 // pred_region
        _
      $region36: #{forward.10} parent=11 // pred_fallthru
        _
      // Predicated region
      $region37: #{forward.10} parent=11 // pred_check
        %p538 = pneg %p484
      $region38: #{forward.10} parent=11 // pred_check_branch
        %540 = sbr.rel (%p538) target = $region40
      $region39: #{forward.10} parent=11 // pred_region
        _
      $region40: #{forward.10} parent=11 // pred_fallthru
        _
    $region12: #{forward.10} parent=5 // pred_fallthru
      _
    %p541 = scmp.lt.s32.totalorder %s25, 2
    // Predicated region
    $region41: #{forward.10} parent=5 // pred_check
      %p542 = pneg %p541
    $region42: #{forward.10} parent=5 // pred_check_branch
      %544 = sbr.rel (%p542) target = $region44
    $region43: #{forward.10} parent=5 // pred_region
      // Predicated region
      $region45: #{forward.10} parent=43 // pred_check
        %p545 = pneg %p129
      $region46: #{forward.10} parent=43 // pred_check_branch
        %547 = sbr.rel (%p545) target = $region48
      $region47: #{forward.10} parent=43 // pred_region
        %p548 = scmp.lt.s32.totalorder %s25, 1
        %s549 = scalar_select %p548, %s25, 1
        %s550 = scalar_lea.vmem %s4, %s549
      $region48: #{forward.10} parent=43 // pred_fallthru
        _
      // Predicated region
      $region49: #{forward.10} parent=43 // pred_check
        %p551 = pneg %p155
      $region50: #{forward.10} parent=43 // pred_check_branch
        %553 = sbr.rel (%p551) target = $region52
      $region51: #{forward.10} parent=43 // pred_region
        %p554 = scmp.lt.s32.totalorder %s25, 1
        %s555 = scalar_select %p554, %s25, 1
        %s556 = scalar_lea.vmem %s5, %s555
      $region52: #{forward.10} parent=43 // pred_fallthru
        _
      // Predicated region
      $region53: #{forward.10} parent=43 // pred_check
        %p557 = pneg %p181
      $region54: #{forward.10} parent=43 // pred_check_branch
        %559 = sbr.rel (%p557) target = $region56
      $region55: #{forward.10} parent=43 // pred_region
        %p560 = scmp.lt.s32.totalorder %s25, 1
        %s561 = scalar_select %p560, %s25, 1
        %s562 = smul.addr %s561, 16
        %s563 = smul.addr %s562, 4
        %s564 = scalar_lea.vmem %s6, %s563
      $region56: #{forward.10} parent=43 // pred_fallthru
        _
      // Predicated region
      $region57: #{forward.10} parent=43 // pred_check
        %p565 = pneg %p207
      $region58: #{forward.10} parent=43 // pred_check_branch
        %567 = sbr.rel (%p565) target = $region60
      $region59: #{forward.10} parent=43 // pred_region
        %p568 = scmp.lt.s32.totalorder %s25, 1
        %s569 = scalar_select %p568, %s25, 1
        %s570 = smul.addr %s569, 2
        %s571 = scalar_lea.vmem %s7, %s570
      $region60: #{forward.10} parent=43 // pred_fallthru
        _
      // Predicated region
      $region61: #{forward.10} parent=43 // pred_check
        %p572 = pneg %p233
      $region62: #{forward.10} parent=43 // pred_check_branch
        %574 = sbr.rel (%p572) target = $region64
      $region63: #{forward.10} parent=43 // pred_region
        %p575 = scmp.lt.s32.totalorder %s25, 1
        %s576 = scalar_select %p575, %s25, 1
        %s577 = smul.addr %s576, 8
        %s578 = smul.addr %s577, 4
        %s579 = scalar_lea.vmem %s8, %s578
      $region64: #{forward.10} parent=43 // pred_fallthru
        _
      // Predicated region
      $region65: #{forward.10} parent=43 // pred_check
        %p580 = pneg %p259
      $region66: #{forward.10} parent=43 // pred_check_branch
        %582 = sbr.rel (%p580) target = $region68
      $region67: #{forward.10} parent=43 // pred_region
        %p583 = scmp.lt.s32.totalorder %s25, 1
        %s584 = scalar_select %p583, %s25, 1
        %s585 = scalar_lea.vmem %s9, %s584
      $region68: #{forward.10} parent=43 // pred_fallthru
        _
      // Predicated region
      $region69: #{forward.10} parent=43 // pred_check
        %p586 = pneg %p285
      $region70: #{forward.10} parent=43 // pred_check_branch
        %588 = sbr.rel (%p586) target = $region72
      $region71: #{forward.10} parent=43 // pred_region
        %p589 = scmp.lt.s32.totalorder %s25, 1
        %s590 = scalar_select %p589, %s25, 1
        %s591 = scalar_lea.vmem %s10, %s590
      $region72: #{forward.10} parent=43 // pred_fallthru
        _
      // Predicated region
      $region73: #{forward.10} parent=43 // pred_check
        %p592 = pneg %p311
      $region74: #{forward.10} parent=43 // pred_check_branch
        %594 = sbr.rel (%p592) target = $region76
      $region75: #{forward.10} parent=43 // pred_region
        %p595 = scmp.lt.s32.totalorder %s25, 1
        %s596 = scalar_select %p595, %s25, 1
        %s597 = scalar_lea.vmem %s11, %s596
      $region76: #{forward.10} parent=43 // pred_fallthru
        _
      // Predicated region
      $region77: #{forward.10} parent=43 // pred_check
        %p598 = pneg %p337
      $region78: #{forward.10} parent=43 // pred_check_branch
        %600 = sbr.rel (%p598) target = $region80
      $region79: #{forward.10} parent=43 // pred_region
        %p601 = scmp.lt.s32.totalorder %s25, 1
        %s602 = scalar_select %p601, %s25, 1
        %s603 = smul.addr %s602, 16
        %s604 = smul.addr %s603, 4
        %s605 = scalar_lea.vmem %s12, %s604
      $region80: #{forward.10} parent=43 // pred_fallthru
        _
      // Predicated region
      $region81: #{forward.10} parent=43 // pred_check
        %p606 = pneg %p363
      $region82: #{forward.10} parent=43 // pred_check_branch
        %608 = sbr.rel (%p606) target = $region84
      $region83: #{forward.10} parent=43 // pred_region
        %p609 = scmp.lt.s32.totalorder %s25, 1
        %s610 = scalar_select %p609, %s25, 1
        %s611 = smul.addr %s610, 2
        %s612 = scalar_lea.vmem %s13, %s611
      $region84: #{forward.10} parent=43 // pred_fallthru
        _
      // Predicated region
      $region85: #{forward.10} parent=43 // pred_check
        %p613 = pneg %p389
      $region86: #{forward.10} parent=43 // pred_check_branch
        %615 = sbr.rel (%p613) target = $region88
      $region87: #{forward.10} parent=43 // pred_region
        %p616 = scmp.lt.s32.totalorder %s25, 1
        %s617 = scalar_select %p616, %s25, 1
        %s618 = smul.addr %s617, 32
        %s619 = smul.addr %s618, 4
        %s620 = scalar_lea.vmem %s14, %s619
      $region88: #{forward.10} parent=43 // pred_fallthru
        _
      // Predicated region
      $region89: #{forward.10} parent=43 // pred_check
        %p621 = pneg %p415
      $region90: #{forward.10} parent=43 // pred_check_branch
        %623 = sbr.rel (%p621) target = $region92
      $region91: #{forward.10} parent=43 // pred_region
        %p624 = scmp.lt.s32.totalorder %s25, 1
        %s625 = scalar_select %p624, %s25, 1
        %s626 = scalar_lea.vmem %s15, %s625
      $region92: #{forward.10} parent=43 // pred_fallthru
        _
    $region44: #{forward.10} parent=5 // pred_fallthru
      _
    %p627 = scmp.le.s32.totalorder 1, %s25
    %p628 = scmp.lt.s32.totalorder %s25, 3
    %p629 = pnand %p627, %p628
    %p630 = pneg %p629
    // Predicated region
    $region93: #{forward.10} parent=5 // pred_check
      _
    $region94: #{forward.10} parent=5 // pred_check_branch
      %632 = sbr.rel (%p629) target = $region96
    $region95: #{forward.10} parent=5 // pred_region
      %s633 = ssub.s32 %s25, 1
      %p634 = pneg %p46
      %p635 = pneg %p43
      %p636 = pneg %p67
      %p637 = pneg %p64
      %p638 = pneg %p88
      %p639 = pneg %p85
      %p640 = pneg %p109
      %p641 = pneg %p106
      %p642 = scmp.lt.s32.totalorder %s30, 1
      %s643 = scalar_select %p642, %s30, 1
      %s644 = scalar_lea.vmem %s4, %s643
      %p645 = pneg %p135
      %p646 = pneg %p132
      %p647 = scmp.lt.s32.totalorder %s30, 1
      %s648 = scalar_select %p647, %s30, 1
      %s649 = scalar_lea.vmem %s5, %s648
      %p650 = pneg %p161
      %p651 = pneg %p158
      %p652 = scmp.lt.s32.totalorder %s30, 1
      %s653 = scalar_select %p652, %s30, 1
      %s654 = smul.addr %s653, 16
      %s655 = smul.addr %s654, 4
      %s656 = scalar_lea.vmem %s6, %s655
      %p657 = pneg %p187
      %p658 = pneg %p184
      %p659 = scmp.lt.s32.totalorder %s30, 1
      %s660 = scalar_select %p659, %s30, 1
      %s661 = smul.addr %s660, 2
      %s662 = scalar_lea.vmem %s7, %s661
      %p663 = pneg %p213
      %p664 = pneg %p210
      %p665 = scmp.lt.s32.totalorder %s30, 1
      %s666 = scalar_select %p665, %s30, 1
      %s667 = smul.addr %s666, 8
      %s668 = smul.addr %s667, 4
      %s669 = scalar_lea.vmem %s8, %s668
      %p670 = pneg %p239
      %p671 = pneg %p236
      %p672 = scmp.lt.s32.totalorder %s30, 1
      %s673 = scalar_select %p672, %s30, 1
      %s674 = scalar_lea.vmem %s9, %s673
      %p675 = pneg %p265
      %p676 = pneg %p262
      %p677 = scmp.lt.s32.totalorder %s30, 1
      %s678 = scalar_select %p677, %s30, 1
      %s679 = scalar_lea.vmem %s10, %s678
      %p680 = pneg %p291
      %p681 = pneg %p288
      %p682 = scmp.lt.s32.totalorder %s30, 1
      %s683 = scalar_select %p682, %s30, 1
      %s684 = scalar_lea.vmem %s11, %s683
      %p685 = pneg %p317
      %p686 = pneg %p314
      %p687 = scmp.lt.s32.totalorder %s30, 1
      %s688 = scalar_select %p687, %s30, 1
      %s689 = smul.addr %s688, 16
      %s690 = smul.addr %s689, 4
      %s691 = scalar_lea.vmem %s12, %s690
      %p692 = pneg %p343
      %p693 = pneg %p340
      %p694 = scmp.lt.s32.totalorder %s30, 1
      %s695 = scalar_select %p694, %s30, 1
      %s696 = smul.addr %s695, 2
      %s697 = scalar_lea.vmem %s13, %s696
      %p698 = pneg %p369
      %p699 = pneg %p366
      %p700 = scmp.lt.s32.totalorder %s30, 1
      %s701 = scalar_select %p700, %s30, 1
      %s702 = smul.addr %s701, 32
      %s703 = smul.addr %s702, 4
      %s704 = scalar_lea.vmem %s14, %s703
      %p705 = pneg %p395
      %p706 = pneg %p392
      %p707 = scmp.lt.s32.totalorder %s30, 1
      %s708 = scalar_select %p707, %s30, 1
      %s709 = scalar_lea.vmem %s15, %s708
      %p710 = pneg %p421
      %p711 = pneg %p418
      %p712 = pneg %p442
      %p713 = pneg %p439
      %p714 = pneg %p463
      %p715 = pneg %p460
      %p716 = pneg %p484
      %p717 = pneg %p481
      %p718 = pneg %p505
      %p719 = pneg %p502
      %p720 = scmp.lt.s32.totalorder %s30, 1
      %s721 = scalar_select %p720, %s30, 1
      %s722 = scalar_lea.vmem %s4, %s721
      %p723 = scmp.lt.s32.totalorder %s30, 1
      %s724 = scalar_select %p723, %s30, 1
      %s725 = scalar_lea.vmem %s5, %s724
      %p726 = scmp.lt.s32.totalorder %s30, 1
      %s727 = scalar_select %p726, %s30, 1
      %s728 = smul.addr %s727, 16
      %s729 = smul.addr %s728, 4
      %s730 = scalar_lea.vmem %s6, %s729
      %p731 = scmp.lt.s32.totalorder %s30, 1
      %s732 = scalar_select %p731, %s30, 1
      %s733 = smul.addr %s732, 2
      %s734 = scalar_lea.vmem %s7, %s733
      %p735 = scmp.lt.s32.totalorder %s30, 1
      %s736 = scalar_select %p735, %s30, 1
      %s737 = smul.addr %s736, 8
      %s738 = smul.addr %s737, 4
      %s739 = scalar_lea.vmem %s8, %s738
      %p740 = scmp.lt.s32.totalorder %s30, 1
      %s741 = scalar_select %p740, %s30, 1
      %s742 = scalar_lea.vmem %s9, %s741
      %p743 = scmp.lt.s32.totalorder %s30, 1
      %s744 = scalar_select %p743, %s30, 1
      %s745 = scalar_lea.vmem %s10, %s744
      %p746 = scmp.lt.s32.totalorder %s30, 1
      %s747 = scalar_select %p746, %s30, 1
      %s748 = scalar_lea.vmem %s11, %s747
      %p749 = scmp.lt.s32.totalorder %s30, 1
      %s750 = scalar_select %p749, %s30, 1
      %s751 = smul.addr %s750, 16
      %s752 = smul.addr %s751, 4
      %s753 = scalar_lea.vmem %s12, %s752
      %p754 = scmp.lt.s32.totalorder %s30, 1
      %s755 = scalar_select %p754, %s30, 1
      %s756 = smul.addr %s755, 2
      %s757 = scalar_lea.vmem %s13, %s756
      %p758 = scmp.lt.s32.totalorder %s30, 1
      %s759 = scalar_select %p758, %s30, 1
      %s760 = smul.addr %s759, 32
      %s761 = smul.addr %s760, 4
      %s762 = scalar_lea.vmem %s14, %s761
      %p763 = scmp.lt.s32.totalorder %s30, 1
      %s764 = scalar_select %p763, %s30, 1
      %s765 = scalar_lea.vmem %s15, %s764
      %p767 = scmp.eq.s32.totalorder %s30, 0
      // Predicated region
      $region97: #{forward.10} parent=95 // pred_check
        %p768 = pneg %p767
      $region98: #{forward.10} parent=95 // pred_check_branch
        %770 = sbr.rel (%p768) target = $region100
      $region99: #{forward.10} parent=95 // pred_region
        %v771 = vld [vmem:[%s0] sm:$0x7f]
        %v772 = vld [vmem:[%s0 + $0x8] sm:$0x7f]
        %v773 = vld [vmem:[%s2] sm:$0x1]
        %v774 = vld [vmem:[%s3] sm:$0x1]
        %vm775 = vcmask 522240
        %v776 = vsel %vm775, %v771, 0.0
        %777 = vadd.xlane.f32.xlu0 %v776
        %v778 = vpop.xlane.xlu0 %777
        %v779 = vsel %vm775, %v772, 0.0
        %780 = vadd.xlane.f32.xlu0 %v779
        %v781 = vpop.xlane.xlu0 %780
        %v782 = vrcp.pop 64.0
        %v783 = vmul.f32 %v778, %v782
        %v784 = vmul.f32 %v781, %v782
        %v785 = vsub.f32 %v771, %v783
        %v786 = vsub.f32 %v772, %v784
        %v787 = vmul.f32 %v785, %v785
        %v788 = vmul.f32 %v786, %v786
        %v789 = vsel %vm775, %v787, 0.0
        %790 = vadd.xlane.f32.xlu0 %v789
        %v791 = vpop.xlane.xlu0 %790
        %v792 = vsel %vm775, %v788, 0.0
        %793 = vadd.xlane.f32.xlu0 %v792
        %v794 = vpop.xlane.xlu0 %793
        %v795 = vmul.f32 %v791, %v782
        %v796 = vmul.f32 %v794, %v782
        %v797 = vadd.f32 %v795, 1e-05
        %v798 = vadd.f32 %v796, 1e-05
        %v799 = vrsqrt.pop %v797
        %v800 = vrsqrt.pop %v798
        %v801 = vmul.f32 %v785, %v799
        %v802 = vmul.f32 %v786, %v800
        %v804 = vlaneseq
        %v805 = vshrl.u32 %v804, 7
        %v806 = vsub.s32 0, %v805
        %v807 = vrot.slane %v773, %v806
        %v809 = vmul.f32 %v801, %v807
        %v810 = vmul.f32 %v802, %v807
        %v812 = vlaneseq
        %v813 = vshrl.u32 %v812, 7
        %v814 = vsub.s32 0, %v813
        %v815 = vrot.slane %v774, %v814
        %v817 = vadd.f32 %v809, %v815
        %v818 = vadd.f32 %v810, %v815
        %819 = vst.msk [vmem:[#allocation2] sm:$0x7f] %vm775, %v817
        %820 = vst.msk [vmem:[#allocation2 + $0x8] sm:$0x7f] %vm775, %v818
      $region100: #{forward.10} parent=95 // pred_fallthru
        _
      %p821 = scmp.ge.s32.totalorder %s30, 1
      %p822 = scmp.le.s32.totalorder %s30, 1
      %p823 = pnand %p821, %p822
      %p824 = pneg %p823
      // Predicated region
      $region101: #{forward.10} parent=95 // pred_check
        _
      $region102: #{forward.10} parent=95 // pred_check_branch
        %826 = sbr.rel (%p823) target = $region104
      $region103: #{forward.10} parent=95 // pred_region
        %s827 = ssub.s32 %s30, 1
        %p828 = scmp.gt.s32.totalorder %s827, 0
        %s829 = scalar_select %p828, %s827, 0
        %s830 = smul.u32 %s829, 2
        %s831 = scalar_lea.vmem %s1, %s830
        %v832 = vld [vmem:[%s831] sm:$0x3]
        %vm833 = vcmask 517120
        %834 = vst.msk [vmem:[#allocation2 + $0x5] sm:$0x3] %vm833, %v832
        %835 = vst.msk [vmem:[#allocation2 + $0xd] sm:$0x3] %vm833, %v832
      $region104: #{forward.10} parent=95 // pred_fallthru
        _
      %v836 = vld [vmem:[#allocation2] sm:$0x7f]
      %v837 = vld [vmem:[#allocation2 + $0x8] sm:$0x7f]
      %v838 = vld [vmem:[%s722] sm:$0x1]
      %v839 = vld [vmem:[%s725] sm:$0x1]
      %v840 = vld [vmem:[%s730] sm:$0xff]
      %v841 = vld [vmem:[%s730 + $0x8] sm:$0xff]
      %v842 = vld [vmem:[%s730 + $0x10] sm:$0xff]
      %v843 = vld [vmem:[%s730 + $0x18] sm:$0xff]
      %v844 = vld [vmem:[%s730 + $0x20] sm:$0xff]
      %v845 = vld [vmem:[%s730 + $0x28] sm:$0xff]
      %v846 = vld [vmem:[%s730 + $0x30] sm:$0xff]
      %v847 = vld [vmem:[%s730 + $0x38] sm:$0xff]
      %v848 = vld [vmem:[%s734] sm:$0x3]
      %v849 = vld [vmem:[%s739] sm:$0xf]
      %v850 = vld [vmem:[%s739 + $0x4] sm:$0xf]
      %v851 = vld [vmem:[%s739 + $0x8] sm:$0xf]
      %v852 = vld [vmem:[%s739 + $0xc] sm:$0xf]
      %v853 = vld [vmem:[%s739 + $0x10] sm:$0xf]
      %v854 = vld [vmem:[%s739 + $0x14] sm:$0xf]
      %v855 = vld [vmem:[%s739 + $0x18] sm:$0xf]
      %v856 = vld [vmem:[%s739 + $0x1c] sm:$0xf]
      %v857 = vld [vmem:[%s742] sm:$0x1]
      %v858 = vld [vmem:[%s745] sm:$0x1]
      %v859 = vld [vmem:[%s748] sm:$0x1]
      %v860 = vld [vmem:[%s753] sm:$0xff]
      %v861 = vld [vmem:[%s753 + $0x8] sm:$0xff]
      %v862 = vld [vmem:[%s753 + $0x10] sm:$0xff]
      %v863 = vld [vmem:[%s753 + $0x18] sm:$0xff]
      %v864 = vld [vmem:[%s753 + $0x20] sm:$0xff]
      %v865 = vld [vmem:[%s753 + $0x28] sm:$0xff]
      %v866 = vld [vmem:[%s753 + $0x30] sm:$0xff]
      %v867 = vld [vmem:[%s753 + $0x38] sm:$0xff]
      %v868 = vld [vmem:[%s757] sm:$0x3]
      %v869 = vld [vmem:[%s762] sm:$0xf]
      %v870 = vld [vmem:[%s762 + $0x4] sm:$0xf]
      %v871 = vld [vmem:[%s762 + $0x8] sm:$0xf]
      %v872 = vld [vmem:[%s762 + $0xc] sm:$0xf]
      %v873 = vld [vmem:[%s762 + $0x10] sm:$0xf]
      %v874 = vld [vmem:[%s762 + $0x14] sm:$0xf]
      %v875 = vld [vmem:[%s762 + $0x18] sm:$0xf]
      %v876 = vld [vmem:[%s762 + $0x1c] sm:$0xf]
      %v877 = vld [vmem:[%s762 + $0x20] sm:$0xf]
      %v878 = vld [vmem:[%s762 + $0x24] sm:$0xf]
      %v879 = vld [vmem:[%s762 + $0x28] sm:$0xf]
      %v880 = vld [vmem:[%s762 + $0x2c] sm:$0xf]
      %v881 = vld [vmem:[%s762 + $0x30] sm:$0xf]
      %v882 = vld [vmem:[%s762 + $0x34] sm:$0xf]
      %v883 = vld [vmem:[%s762 + $0x38] sm:$0xf]
      %v884 = vld [vmem:[%s762 + $0x3c] sm:$0xf]
      %v885 = vld [vmem:[%s762 + $0x40] sm:$0xf]
      %v886 = vld [vmem:[%s762 + $0x44] sm:$0xf]
      %v887 = vld [vmem:[%s762 + $0x48] sm:$0xf]
      %v888 = vld [vmem:[%s762 + $0x4c] sm:$0xf]
      %v889 = vld [vmem:[%s762 + $0x50] sm:$0xf]
      %v890 = vld [vmem:[%s762 + $0x54] sm:$0xf]
      %v891 = vld [vmem:[%s762 + $0x58] sm:$0xf]
      %v892 = vld [vmem:[%s762 + $0x5c] sm:$0xf]
      %v893 = vld [vmem:[%s762 + $0x60] sm:$0xf]
      %v894 = vld [vmem:[%s762 + $0x64] sm:$0xf]
      %v895 = vld [vmem:[%s762 + $0x68] sm:$0xf]
      %v896 = vld [vmem:[%s762 + $0x6c] sm:$0xf]
      %v897 = vld [vmem:[%s762 + $0x70] sm:$0xf]
      %v898 = vld [vmem:[%s762 + $0x74] sm:$0xf]
      %v899 = vld [vmem:[%s762 + $0x78] sm:$0xf]
      %v900 = vld [vmem:[%s762 + $0x7c] sm:$0xf]
      %v901 = vld [vmem:[%s765] sm:$0x1]
      %vm902 = vcmask 522240
      %v903 = vsel %vm902, %v836, 0.0
      %904 = vadd.xlane.f32.xlu0 %v903
      %v905 = vpop.xlane.xlu0 %904
      %v906 = vsel %vm902, %v837, 0.0
      %907 = vadd.xlane.f32.xlu0 %v906
      %v908 = vpop.xlane.xlu0 %907
      %v909 = vrcp.pop 64.0
      %v910 = vmul.f32 %v905, %v909
      %v911 = vmul.f32 %v908, %v909
      %v912 = vsub.f32 %v836, %v910
      %v913 = vsub.f32 %v837, %v911
      %v914 = vmul.f32 %v912, %v912
      %v915 = vmul.f32 %v913, %v913
      %v916 = vsel %vm902, %v914, 0.0
      %917 = vadd.xlane.f32.xlu0 %v916
      %v918 = vpop.xlane.xlu0 %917
      %v919 = vsel %vm902, %v915, 0.0
      %920 = vadd.xlane.f32.xlu0 %v919
      %v921 = vpop.xlane.xlu0 %920
      %v922 = vmul.f32 %v918, %v909
      %v923 = vmul.f32 %v921, %v909
      %v924 = vadd.f32 %v922, 1e-05
      %v925 = vadd.f32 %v923, 1e-05
      %v926 = vrsqrt.pop %v924
      %v927 = vrsqrt.pop %v925
      %v928 = vmul.f32 %v912, %v926
      %v929 = vmul.f32 %v913, %v927
      %v931 = vlaneseq
      %v932 = vshrl.u32 %v931, 7
      %v933 = vsub.s32 0, %v932
      %v934 = vrot.slane %v838, %v933
      %v936 = vmul.f32 %v928, %v934
      %v937 = vmul.f32 %v929, %v934
      %v939 = vlaneseq
      %v940 = vshrl.u32 %v939, 7
      %v941 = vsub.s32 0, %v940
      %v942 = vrot.slane %v839, %v941
      %v944 = vadd.f32 %v936, %v942
      %v945 = vadd.f32 %v937, %v942
      %v948 = vcombine.high %v944, %v944
      %v950 = vunpack.c.l.s4 1966171168
      %v951 = vunpack.c.0.s8 %v950
      %v952 = vlaneseq
      %v953 = vshrl.u32 %v952, 7
      %v954 = vsub.s32 %v951, %v953
      %v955 = vrot.slane %v944, %v954
      %v957 = vunpack.c.l.s4 1966171168
      %v958 = vunpack.c.0.s8 %v957
      %v959 = vlaneseq
      %v960 = vshrl.u32 %v959, 7
      %v961 = vsub.s32 %v958, %v960
      %v962 = vrot.slane %v948, %v961
      %v963 = vcombine.high %v955, %v955
      %v964 = vcombine.high %v962, %v962
      %v966 = vunpack.c.l.s4 1966171168
      %v967 = vunpack.c.0.s8 %v966
      %v968 = vlaneseq
      %v969 = vshrl.u32 %v968, 7
      %v970 = vsub.s32 %v967, %v969
      %v971 = vrot.slane %v955, %v970
      %v973 = vunpack.c.l.s4 1966171168
      %v974 = vunpack.c.0.s8 %v973
      %v975 = vlaneseq
      %v976 = vshrl.u32 %v975, 7
      %v977 = vsub.s32 %v974, %v976
      %v978 = vrot.slane %v962, %v977
      %v980 = vunpack.c.l.s4 1966171168
      %v981 = vunpack.c.0.s8 %v980
      %v982 = vlaneseq
      %v983 = vshrl.u32 %v982, 7
      %v984 = vsub.s32 %v981, %v983
      %v985 = vrot.slane %v963, %v984
      %v987 = vunpack.c.l.s4 1966171168
      %v988 = vunpack.c.0.s8 %v987
      %v989 = vlaneseq
      %v990 = vshrl.u32 %v989, 7
      %v991 = vsub.s32 %v988, %v990
      %v992 = vrot.slane %v964, %v991
      %v993 = vcombine.high %v971, %v971
      %v994 = vcombine.high %v978, %v978
      %v995 = vcombine.high %v985, %v985
      %v996 = vcombine.high %v945, %v945
      %v998 = vunpack.c.l.s4 1966171168
      %v999 = vunpack.c.0.s8 %v998
      %v1000 = vlaneseq
      %v1001 = vshrl.u32 %v1000, 7
      %v1002 = vsub.s32 %v999, %v1001
      %v1003 = vrot.slane %v945, %v1002
      %v1005 = vunpack.c.l.s4 1966171168
      %v1006 = vunpack.c.0.s8 %v1005
      %v1007 = vlaneseq
      %v1008 = vshrl.u32 %v1007, 7
      %v1009 = vsub.s32 %v1006, %v1008
      %v1010 = vrot.slane %v996, %v1009
      %v1011 = vcombine.high %v1003, %v1003
      %v1012 = vcombine.high %v1010, %v1010
      %v1014 = vunpack.c.l.s4 1966171168
      %v1015 = vunpack.c.0.s8 %v1014
      %v1016 = vlaneseq
      %v1017 = vshrl.u32 %v1016, 7
      %v1018 = vsub.s32 %v1015, %v1017
      %v1019 = vrot.slane %v1003, %v1018
      %v1021 = vunpack.c.l.s4 1966171168
      %v1022 = vunpack.c.0.s8 %v1021
      %v1023 = vlaneseq
      %v1024 = vshrl.u32 %v1023, 7
      %v1025 = vsub.s32 %v1022, %v1024
      %v1026 = vrot.slane %v1010, %v1025
      %v1028 = vunpack.c.l.s4 1966171168
      %v1029 = vunpack.c.0.s8 %v1028
      %v1030 = vlaneseq
      %v1031 = vshrl.u32 %v1030, 7
      %v1032 = vsub.s32 %v1029, %v1031
      %v1033 = vrot.slane %v1011, %v1032
      %v1035 = vunpack.c.l.s4 1966171168
      %v1036 = vunpack.c.0.s8 %v1035
      %v1037 = vlaneseq
      %v1038 = vshrl.u32 %v1037, 7
      %v1039 = vsub.s32 %v1036, %v1038
      %v1040 = vrot.slane %v1012, %v1039
      %v1041 = vcombine.high %v1019, %v1019
      %v1042 = vcombine.high %v1026, %v1026
      %v1043 = vcombine.high %v1033, %v1033
      %v1044 = vcombine.low %v971, %v985
      %v1045 = vcombine.low %v993, %v995
      %v1046 = vcombine.low %v978, %v992
      %v1047 = vcombine.low %v994, %v1019
      %v1049 = vunpack.c.l.s4 1966171168
      %v1050 = vunpack.c.0.s8 %v1049
      %v1051 = vlaneseq
      %v1052 = vshrl.u32 %v1051, 7
      %v1053 = vsub.s32 %v1050, %v1052
      %v1054 = vrot.slane %v1044, %v1053
      %v1056 = vunpack.c.l.s4 1966171168
      %v1057 = vunpack.c.0.s8 %v1056
      %v1058 = vlaneseq
      %v1059 = vshrl.u32 %v1058, 7
      %v1060 = vsub.s32 %v1057, %v1059
      %v1061 = vrot.slane %v1045, %v1060
      %v1063 = vunpack.c.l.s4 1966171168
      %v1064 = vunpack.c.0.s8 %v1063
      %v1065 = vlaneseq
      %v1066 = vshrl.u32 %v1065, 7
      %v1067 = vsub.s32 %v1064, %v1066
      %v1068 = vrot.slane %v1046, %v1067
      %v1070 = vunpack.c.l.s4 1966171168
      %v1071 = vunpack.c.0.s8 %v1070
      %v1072 = vlaneseq
      %v1073 = vshrl.u32 %v1072, 7
      %v1074 = vsub.s32 %v1071, %v1073
      %v1075 = vrot.slane %v1047, %v1074
      %v1076 = vcombine.low %v1054, %v1061
      %v1077 = vcombine.low %v1068, %v1075
      %v1079 = vunpack.c.l.s4 1966171168
      %v1080 = vunpack.c.0.s8 %v1079
      %v1081 = vlaneseq
      %v1082 = vshrl.u32 %v1081, 7
      %v1083 = vsub.s32 %v1080, %v1082
      %v1084 = vrot.slane %v1076, %v1083
      %v1086 = vunpack.c.l.s4 1966171168
      %v1087 = vunpack.c.0.s8 %v1086
      %v1088 = vlaneseq
      %v1089 = vshrl.u32 %v1088, 7
      %v1090 = vsub.s32 %v1087, %v1089
      %v1091 = vrot.slane %v1077, %v1090
      %v1092 = vcombine.low %v1084, %v1091
      %v1093 = vcombine.low %v1033, %v1041
      %v1094 = vcombine.low %v1043, %v1026
      %v1095 = vcombine.low %v1040, %v1042
      %v1097 = vunpack.c.l.s4 1966171168
      %v1098 = vunpack.c.0.s8 %v1097
      %v1099 = vlaneseq
      %v1100 = vshrl.u32 %v1099, 7
      %v1101 = vsub.s32 %v1098, %v1100
      %v1102 = vrot.slane %v1093, %v1101
      %v1104 = vunpack.c.l.s4 1966171168
      %v1105 = vunpack.c.0.s8 %v1104
      %v1106 = vlaneseq
      %v1107 = vshrl.u32 %v1106, 7
      %v1108 = vsub.s32 %v1105, %v1107
      %v1109 = vrot.slane %v1094, %v1108
      %v1111 = vunpack.c.l.s4 1966171168
      %v1112 = vunpack.c.0.s8 %v1111
      %v1113 = vlaneseq
      %v1114 = vshrl.u32 %v1113, 7
      %v1115 = vsub.s32 %v1112, %v1114
      %v1116 = vrot.slane %v1095, %v1115
      %v1117 = vcombine.low %v1102, %v1109
      %v1119 = vunpack.c.l.s4 1966171168
      %v1120 = vunpack.c.0.s8 %v1119
      %v1121 = vlaneseq
      %v1122 = vshrl.u32 %v1121, 7
      %v1123 = vsub.s32 %v1120, %v1122
      %v1124 = vrot.slane %v1117, %v1123
      %v1126 = vunpack.c.l.s4 1966171168
      %v1127 = vunpack.c.0.s8 %v1126
      %v1128 = vlaneseq
      %v1129 = vshrl.u32 %v1128, 7
      %v1130 = vsub.s32 %v1127, %v1129
      %v1131 = vrot.slane %v1116, %v1130
      %v1132 = vcombine.low %v1124, %v1131
      %v1135 = vpack.c.bf16 %v1132, %v1092
      %v1137 = vlaneseq
      %v1138 = vshrl.u32 %v1137, 7
      %v1139 = vsub.s32 0, %v1138
      %v1140 = vrot.slane %v848, %v1139
      %v1141 = vlaneseq
      %v1142 = vshrl.u32 %v1141, 7
      %v1143 = vsub.s32 1, %v1142
      %v1144 = vrot.slane %v848, %v1143
      %v1155 = vunpack.c.l.b16 %v840
      %v1156 = vunpack.c.h.b16 %v840
      %v1157 = vunpack.c.l.b16 %v841
      %v1158 = vunpack.c.h.b16 %v841
      %v1159 = vunpack.c.l.b16 %v842
      %v1160 = vunpack.c.h.b16 %v842
      %v1161 = vunpack.c.l.b16 %v843
      %v1162 = vunpack.c.h.b16 %v843
      %v1163 = vunpack.c.l.b16 %v844
      %v1164 = vunpack.c.h.b16 %v844
      %v1165 = vunpack.c.l.b16 %v845
      %v1166 = vunpack.c.h.b16 %v845
      %v1167 = vunpack.c.l.b16 %v846
      %v1168 = vunpack.c.h.b16 %v846
      %v1169 = vunpack.c.l.b16 %v847
      %v1170 = vunpack.c.h.b16 %v847
      %v1171 = vpack.c.b16 %v1157, %v1155
      %v1172 = vpack.c.b16 %v1158, %v1156
      %v1173 = vpack.c.b16 %v1161, %v1159
      %v1174 = vpack.c.b16 %v1162, %v1160
      %v1175 = vpack.c.b16 %v1165, %v1163
      %v1176 = vpack.c.b16 %v1166, %v1164
      %v1177 = vpack.c.b16 %v1169, %v1167
      %v1178 = vpack.c.b16 %v1170, %v1168
      %vm1187 = vcmask 523264
      %v1189 = vsel %vm1187, %v1135, 0
      %1191 = vmatprep.subr.bf16.mxu0 %v1172
      %1192 = vmatpush1.bf16.msra.mxu0 %v1171
      %1193 = vmatprep.subr.bf16.mxu0 %v1174
      %1194 = vmatpush1.bf16.msra.mxu0 %v1173
      %1195 = vmatprep.subr.bf16.mxu0 %v1176
      %1196 = vmatpush1.bf16.msra.mxu0 %v1175
      %1197 = vmatprep.subr.bf16.mxu0 %v1178
      %1198 = vmatpush1.bf16.msra.mxu0 %v1177
      %1199 = vmatprep.subr.bf16.mxu0 0
      %1200 = vmatpush1.bf16.msra.mxu0 0
      %1201 = vmatprep.subr.bf16.mxu0 0
      %1202 = vmatpush1.bf16.msra.mxu0 0
      %1203 = vmatprep.subr.bf16.mxu0 0
      %1204 = vmatpush1.bf16.msra.mxu0 0
      %1205 = vmatprep.subr.bf16.mxu0 0
      %1206 = vmatpush1.bf16.msra.mxu0 0
      %1207 = vmatprep.subr.bf16.mxu0 0
      %1208 = vmatpush1.bf16.msra.mxu0 0
      %1209 = vmatprep.subr.bf16.mxu0 0
      %1210 = vmatpush1.bf16.msra.mxu0 0
      %1211 = vmatprep.subr.bf16.mxu0 0
      %1212 = vmatpush1.bf16.msra.mxu0 0
      %1213 = vmatprep.subr.bf16.mxu0 0
      %1214 = vmatpush1.bf16.msra.mxu0 0
      %1215 = vmatprep.subr.bf16.mxu0 0
      %1216 = vmatpush1.bf16.msra.mxu0 0
      %1217 = vmatprep.subr.bf16.mxu0 0
      %1218 = vmatpush1.bf16.msra.mxu0 0
      %1219 = vmatprep.subr.bf16.mxu0 0
      %1220 = vmatpush1.bf16.msra.mxu0 0
      %1221 = vmatprep.subr.bf16.mxu0 0
      %1222 = vmatpush1.bf16.msra.mxu0 0
      %1223 = vmatprep.mubr.bf16.mxu0 0
      %1224 = vmatmul.mubr.bf16.gmra.mrb[0].mxu0 %v1189
      %v1225 = vpop.f32.mrb[0].mxu0
      %v1226 = vadd.f32 %v1140, %v1225
      %v1227 = vpop.f32.mrb[0].mxu0
      %v1228 = vadd.f32 %v1144, %v1227
      %v1229 = vpop.f32.mrb[0].mxu0
      %v1230 = vadd.f32 %v1140, %v1229
      %v1231 = vpop.f32.mrb[0].mxu0
      %v1232 = vadd.f32 %v1144, %v1231
      %1233 = vdwg.mxu0
      %v1238 = vcombine.low %v1226, %v1228
      %v1239 = vcombine.high %v1226, %v1228
      %v1241 = vunpack.c.l.s4 1966171168
      %v1242 = vunpack.c.0.s8 %v1241
      %v1243 = vlaneseq
      %v1244 = vshrl.u32 %v1243, 7
      %v1245 = vsub.s32 %v1242, %v1244
      %v1246 = vrot.slane %v1238, %v1245
      %v1248 = vunpack.c.l.s4 1966171168
      %v1249 = vunpack.c.0.s8 %v1248
      %v1250 = vlaneseq
      %v1251 = vshrl.u32 %v1250, 7
      %v1252 = vsub.s32 %v1249, %v1251
      %v1253 = vrot.slane %v1239, %v1252
      %v1254 = vcombine.high %v1246, %v1246
      %v1255 = vcombine.high %v1253, %v1253
      %v1257 = vunpack.c.l.s4 1966171168
      %v1258 = vunpack.c.0.s8 %v1257
      %v1259 = vlaneseq
      %v1260 = vshrl.u32 %v1259, 7
      %v1261 = vsub.s32 %v1258, %v1260
      %v1262 = vrot.slane %v1246, %v1261
      %v1264 = vunpack.c.l.s4 1966171168
      %v1265 = vunpack.c.0.s8 %v1264
      %v1266 = vlaneseq
      %v1267 = vshrl.u32 %v1266, 7
      %v1268 = vsub.s32 %v1265, %v1267
      %v1269 = vrot.slane %v1253, %v1268
      %v1271 = vunpack.c.l.s4 1966171168
      %v1272 = vunpack.c.0.s8 %v1271
      %v1273 = vlaneseq
      %v1274 = vshrl.u32 %v1273, 7
      %v1275 = vsub.s32 %v1272, %v1274
      %v1276 = vrot.slane %v1254, %v1275
      %v1278 = vunpack.c.l.s4 1966171168
      %v1279 = vunpack.c.0.s8 %v1278
      %v1280 = vlaneseq
      %v1281 = vshrl.u32 %v1280, 7
      %v1282 = vsub.s32 %v1279, %v1281
      %v1283 = vrot.slane %v1255, %v1282
      %v1284 = vcombine.high %v1262, %v1262
      %v1285 = vcombine.high %v1269, %v1269
      %v1286 = vcombine.high %v1276, %v1276
      %v1287 = vcombine.high %v1283, %v1283
      %v1288 = vcombine.low %v1230, %v1232
      %v1289 = vcombine.high %v1230, %v1232
      %v1291 = vunpack.c.l.s4 1966171168
      %v1292 = vunpack.c.0.s8 %v1291
      %v1293 = vlaneseq
      %v1294 = vshrl.u32 %v1293, 7
      %v1295 = vsub.s32 %v1292, %v1294
      %v1296 = vrot.slane %v1288, %v1295
      %v1298 = vunpack.c.l.s4 1966171168
      %v1299 = vunpack.c.0.s8 %v1298
      %v1300 = vlaneseq
      %v1301 = vshrl.u32 %v1300, 7
      %v1302 = vsub.s32 %v1299, %v1301
      %v1303 = vrot.slane %v1289, %v1302
      %v1304 = vcombine.high %v1296, %v1296
      %v1305 = vcombine.high %v1303, %v1303
      %v1307 = vunpack.c.l.s4 1966171168
      %v1308 = vunpack.c.0.s8 %v1307
      %v1309 = vlaneseq
      %v1310 = vshrl.u32 %v1309, 7
      %v1311 = vsub.s32 %v1308, %v1310
      %v1312 = vrot.slane %v1296, %v1311
      %v1314 = vunpack.c.l.s4 1966171168
      %v1315 = vunpack.c.0.s8 %v1314
      %v1316 = vlaneseq
      %v1317 = vshrl.u32 %v1316, 7
      %v1318 = vsub.s32 %v1315, %v1317
      %v1319 = vrot.slane %v1303, %v1318
      %v1321 = vunpack.c.l.s4 1966171168
      %v1322 = vunpack.c.0.s8 %v1321
      %v1323 = vlaneseq
      %v1324 = vshrl.u32 %v1323, 7
      %v1325 = vsub.s32 %v1322, %v1324
      %v1326 = vrot.slane %v1304, %v1325
      %v1328 = vunpack.c.l.s4 1966171168
      %v1329 = vunpack.c.0.s8 %v1328
      %v1330 = vlaneseq
      %v1331 = vshrl.u32 %v1330, 7
      %v1332 = vsub.s32 %v1329, %v1331
      %v1333 = vrot.slane %v1305, %v1332
      %v1334 = vcombine.high %v1312, %v1312
      %v1335 = vcombine.high %v1326, %v1326
      %v1336 = vcombine.low %v1262, %v1276
      %v1337 = vcombine.low %v1284, %v1286
      %v1338 = vcombine.low %v1269, %v1283
      %v1340 = vunpack.c.l.s4 1966171168
      %v1341 = vunpack.c.0.s8 %v1340
      %v1342 = vlaneseq
      %v1343 = vshrl.u32 %v1342, 7
      %v1344 = vsub.s32 %v1341, %v1343
      %v1345 = vrot.slane %v1336, %v1344
      %v1347 = vunpack.c.l.s4 1966171168
      %v1348 = vunpack.c.0.s8 %v1347
      %v1349 = vlaneseq
      %v1350 = vshrl.u32 %v1349, 7
      %v1351 = vsub.s32 %v1348, %v1350
      %v1352 = vrot.slane %v1337, %v1351
      %v1354 = vunpack.c.l.s4 1966171168
      %v1355 = vunpack.c.0.s8 %v1354
      %v1356 = vlaneseq
      %v1357 = vshrl.u32 %v1356, 7
      %v1358 = vsub.s32 %v1355, %v1357
      %v1359 = vrot.slane %v1338, %v1358
      %v1361 = vunpack.c.l.s4 1966171168
      %v1362 = vunpack.c.0.s8 %v1361
      %v1363 = vlaneseq
      %v1364 = vshrl.u32 %v1363, 7
      %v1365 = vsub.s32 %v1362, %v1364
      %v1366 = vrot.slane %v1285, %v1365
      %v1367 = vcombine.low %v1345, %v1352
      %v1368 = vcombine.low %v1359, %v1366
      %v1370 = vunpack.c.l.s4 1966171168
      %v1371 = vunpack.c.0.s8 %v1370
      %v1372 = vlaneseq
      %v1373 = vshrl.u32 %v1372, 7
      %v1374 = vsub.s32 %v1371, %v1373
      %v1375 = vrot.slane %v1367, %v1374
      %v1377 = vunpack.c.l.s4 1966171168
      %v1378 = vunpack.c.0.s8 %v1377
      %v1379 = vlaneseq
      %v1380 = vshrl.u32 %v1379, 7
      %v1381 = vsub.s32 %v1378, %v1380
      %v1382 = vrot.slane %v1368, %v1381
      %v1383 = vcombine.low %v1375, %v1382
      %1384 = vrot.lane.b32.xlu0 %v1383, 64
      %v1385 = vpop.permute.xlu0 %1384
      %vm1386 = vcmask 130048
      %v1387 = vsel %vm1386, %v1383, 0
      %v1389 = vsel %vm1386, %v1385, 0
      %1391 = vmatprep.subr.mxu0 0.0
      %1392 = vmatpush1.xpose.msra.mxu0 %v1389
      %1393 = vmatprep.subr.mxu0 0.0
      %1394 = vmatpush1.xpose.msra.mxu0 0.0
      %1395 = vmatprep.subr.mxu0 0.0
      %1396 = vmatpush1.xpose.msra.mxu0 0.0
      %1397 = vmatprep.subr.mxu0 0.0
      %1398 = vmatpush1.xpose.msra.mxu0 0.0
      %1399 = vmatprep.subr.mxu0 0.0
      %1400 = vmatpush1.xpose.msra.mxu0 0.0
      %1401 = vmatprep.subr.mxu0 0.0
      %1402 = vmatpush1.xpose.msra.mxu0 0.0
      %1403 = vmatprep.subr.mxu0 0.0
      %1404 = vmatpush1.xpose.msra.mxu0 0.0
      %1405 = vmatprep.subr.mxu0 0.0
      %1406 = vmatpush1.xpose.msra.mxu0 0.0
      %1407 = vmatprep.subr.mxu0 0.0
      %1408 = vmatpush1.xpose.msra.mxu0 0.0
      %1409 = vmatprep.subr.mxu0 0.0
      %1410 = vmatpush1.xpose.msra.mxu0 0.0
      %1411 = vmatprep.subr.mxu0 0.0
      %1412 = vmatpush1.xpose.msra.mxu0 0.0
      %1413 = vmatprep.subr.mxu0 0.0
      %1414 = vmatpush1.xpose.msra.mxu0 0.0
      %1415 = vmatprep.subr.mxu0 0.0
      %1416 = vmatpush1.xpose.msra.mxu0 0.0
      %1417 = vmatprep.subr.mxu0 0.0
      %1418 = vmatpush1.xpose.msra.mxu0 0.0
      %1419 = vmatprep.subr.mxu0 0.0
      %1420 = vmatpush1.xpose.msra.mxu0 0.0
      %1421 = vmatprep.subr.mxu0 0.0
      %1422 = vmatpush1.xpose.msra.mxu0 0.0
      %1423 = vmatprep.subr.mxu0 0.0
      %1424 = vmatpush1.xpose.msra.mxu0 0.0
      %1425 = vmatprep.subr.mxu0 0.0
      %1426 = vmatpush1.xpose.msra.mxu0 0.0
      %1427 = vmatprep.subr.mxu0 0.0
      %1428 = vmatpush1.xpose.msra.mxu0 0.0
      %1429 = vmatprep.subr.mxu0 0.0
      %1430 = vmatpush1.xpose.msra.mxu0 0.0
      %1431 = vmatprep.subr.mxu0 0.0
      %1432 = vmatpush1.xpose.msra.mxu0 0.0
      %1433 = vmatprep.subr.mxu0 0.0
      %1434 = vmatpush1.xpose.msra.mxu0 0.0
      %1435 = vmatprep.subr.mxu0 0.0
      %1436 = vmatpush1.xpose.msra.mxu0 0.0
      %1437 = vmatprep.subr.mxu0 0.0
      %1438 = vmatpush1.xpose.msra.mxu0 0.0
      %1439 = vmatprep.subr.mxu0 0.0
      %1440 = vmatpush1.xpose.msra.mxu0 0.0
      %1441 = vmatprep.subr.mxu0 0.0
      %1442 = vmatpush1.xpose.msra.mxu0 0.0
      %1443 = vmatprep.subr.mxu0 0.0
      %1444 = vmatpush1.xpose.msra.mxu0 0.0
      %1445 = vmatprep.subr.mxu0 0.0
      %1446 = vmatpush1.xpose.msra.mxu0 0.0
      %1447 = vmatprep.subr.mxu0 0.0
      %1448 = vmatpush1.xpose.msra.mxu0 0.0
      %1449 = vmatprep.subr.mxu0 0.0
      %1450 = vmatpush1.xpose.msra.mxu0 0.0
      %1451 = vmatprep.subr.mxu0 0.0
      %1452 = vmatpush1.xpose.msra.mxu0 0.0
      %1453 = vmatprep.subr.mxu0 0.0
      %1454 = vmatpush1.xpose.msra.mxu0 0.0
      %1455 = vmatprep.mubr.f32.mxu0 0.0
      %1456 = vmatmul.mubr.f32.gmra.mrb[0].mxu0 %v1387
      %v1457 = vpop.f32.mrb[0].mxu0
      %v1458 = vadd.f32 0.0, %v1457
      %v1459 = vpop.f32.mrb[0].mxu0
      %1460 = vdwg.mxu0
      %v1461 = vcombine.low %v1287, %v1312
      %v1462 = vcombine.low %v1326, %v1334
      %v1463 = vcombine.low %v1335, %v1319
      %v1465 = vunpack.c.l.s4 1966171168
      %v1466 = vunpack.c.0.s8 %v1465
      %v1467 = vlaneseq
      %v1468 = vshrl.u32 %v1467, 7
      %v1469 = vsub.s32 %v1466, %v1468
      %v1470 = vrot.slane %v1461, %v1469
      %v1472 = vunpack.c.l.s4 1966171168
      %v1473 = vunpack.c.0.s8 %v1472
      %v1474 = vlaneseq
      %v1475 = vshrl.u32 %v1474, 7
      %v1476 = vsub.s32 %v1473, %v1475
      %v1477 = vrot.slane %v1462, %v1476
      %v1479 = vunpack.c.l.s4 1966171168
      %v1480 = vunpack.c.0.s8 %v1479
      %v1481 = vlaneseq
      %v1482 = vshrl.u32 %v1481, 7
      %v1483 = vsub.s32 %v1480, %v1482
      %v1484 = vrot.slane %v1463, %v1483
      %v1486 = vunpack.c.l.s4 1966171168
      %v1487 = vunpack.c.0.s8 %v1486
      %v1488 = vlaneseq
      %v1489 = vshrl.u32 %v1488, 7
      %v1490 = vsub.s32 %v1487, %v1489
      %v1491 = vrot.slane %v1333, %v1490
      %v1492 = vcombine.low %v1470, %v1477
      %v1493 = vcombine.low %v1484, %v1491
      %v1495 = vunpack.c.l.s4 1966171168
      %v1496 = vunpack.c.0.s8 %v1495
      %v1497 = vlaneseq
      %v1498 = vshrl.u32 %v1497, 7
      %v1499 = vsub.s32 %v1496, %v1498
      %v1500 = vrot.slane %v1492, %v1499
      %v1502 = vunpack.c.l.s4 1966171168
      %v1503 = vunpack.c.0.s8 %v1502
      %v1504 = vlaneseq
      %v1505 = vshrl.u32 %v1504, 7
      %v1506 = vsub.s32 %v1503, %v1505
      %v1507 = vrot.slane %v1493, %v1506
      %v1508 = vcombine.low %v1500, %v1507
      %1509 = vrot.lane.b32.xlu0 %v1508, 64
      %v1510 = vpop.permute.xlu0 %1509
      %v1511 = vsel %vm1386, %v1508, 0
      %v1513 = vsel %vm1386, %v1510, 0
      %1515 = vmatprep.subr.mxu0 0.0
      %1516 = vmatpush1.xpose.msra.mxu0 %v1513
      %1517 = vmatprep.subr.mxu0 0.0
      %1518 = vmatpush1.xpose.msra.mxu0 0.0
      %1519 = vmatprep.subr.mxu0 0.0
      %1520 = vmatpush1.xpose.msra.mxu0 0.0
      %1521 = vmatprep.subr.mxu0 0.0
      %1522 = vmatpush1.xpose.msra.mxu0 0.0
      %1523 = vmatprep.subr.mxu0 0.0
      %1524 = vmatpush1.xpose.msra.mxu0 0.0
      %1525 = vmatprep.subr.mxu0 0.0
      %1526 = vmatpush1.xpose.msra.mxu0 0.0
      %1527 = vmatprep.subr.mxu0 0.0
      %1528 = vmatpush1.xpose.msra.mxu0 0.0
      %1529 = vmatprep.subr.mxu0 0.0
      %1530 = vmatpush1.xpose.msra.mxu0 0.0
      %1531 = vmatprep.subr.mxu0 0.0
      %1532 = vmatpush1.xpose.msra.mxu0 0.0
      %1533 = vmatprep.subr.mxu0 0.0
      %1534 = vmatpush1.xpose.msra.mxu0 0.0
      %1535 = vmatprep.subr.mxu0 0.0
      %1536 = vmatpush1.xpose.msra.mxu0 0.0
      %1537 = vmatprep.subr.mxu0 0.0
      %1538 = vmatpush1.xpose.msra.mxu0 0.0
      %1539 = vmatprep.subr.mxu0 0.0
      %1540 = vmatpush1.xpose.msra.mxu0 0.0
      %1541 = vmatprep.subr.mxu0 0.0
      %1542 = vmatpush1.xpose.msra.mxu0 0.0
      %1543 = vmatprep.subr.mxu0 0.0
      %1544 = vmatpush1.xpose.msra.mxu0 0.0
      %1545 = vmatprep.subr.mxu0 0.0
      %1546 = vmatpush1.xpose.msra.mxu0 0.0
      %1547 = vmatprep.subr.mxu0 0.0
      %1548 = vmatpush1.xpose.msra.mxu0 0.0
      %1549 = vmatprep.subr.mxu0 0.0
      %1550 = vmatpush1.xpose.msra.mxu0 0.0
      %1551 = vmatprep.subr.mxu0 0.0
      %1552 = vmatpush1.xpose.msra.mxu0 0.0
      %1553 = vmatprep.subr.mxu0 0.0
      %1554 = vmatpush1.xpose.msra.mxu0 0.0
      %1555 = vmatprep.subr.mxu0 0.0
      %1556 = vmatpush1.xpose.msra.mxu0 0.0
      %1557 = vmatprep.subr.mxu0 0.0
      %1558 = vmatpush1.xpose.msra.mxu0 0.0
      %1559 = vmatprep.subr.mxu0 0.0
      %1560 = vmatpush1.xpose.msra.mxu0 0.0
      %1561 = vmatprep.subr.mxu0 0.0
      %1562 = vmatpush1.xpose.msra.mxu0 0.0
      %1563 = vmatprep.subr.mxu0 0.0
      %1564 = vmatpush1.xpose.msra.mxu0 0.0
      %1565 = vmatprep.subr.mxu0 0.0
      %1566 = vmatpush1.xpose.msra.mxu0 0.0
      %1567 = vmatprep.subr.mxu0 0.0
      %1568 = vmatpush1.xpose.msra.mxu0 0.0
      %1569 = vmatprep.subr.mxu0 0.0
      %1570 = vmatpush1.xpose.msra.mxu0 0.0
      %1571 = vmatprep.subr.mxu0 0.0
      %1572 = vmatpush1.xpose.msra.mxu0 0.0
      %1573 = vmatprep.subr.mxu0 0.0
      %1574 = vmatpush1.xpose.msra.mxu0 0.0
      %1575 = vmatprep.subr.mxu0 0.0
      %1576 = vmatpush1.xpose.msra.mxu0 0.0
      %1577 = vmatprep.subr.mxu0 0.0
      %1578 = vmatpush1.xpose.msra.mxu0 0.0
      %1579 = vmatprep.mubr.f32.mxu0 0.0
      %1580 = vmatmul.mubr.f32.gmra.mrb[0].mxu0 %v1511
      %v1581 = vpop.f32.mrb[0].mxu0
      %v1582 = vadd.f32 0.0, %v1581
      %v1583 = vpop.f32.mrb[0].mxu0
      %1584 = vdwg.mxu0
      %v1585 = vmul.f32 %v1458, 0.25
      %v1586 = vmul.f32 %v1582, 0.25
      %vm1587 = vcmask 55296
      %v1588 = vsel %vm1587, %v1585, -inf
      %1589 = vmax.xlane.f32.xlu0 %v1588
      %v1590 = vpop.xlane.xlu0 %1589
      %v1591 = vsel %vm1587, %v1586, -inf
      %1592 = vmax.xlane.f32.xlu0 %v1591
      %v1593 = vpop.xlane.xlu0 %1592
      %v1594 = vsub.f32 %v1585, %v1590
      %v1595 = vsub.f32 %v1586, %v1593
      %v1596 = vmul.f32 %v1594, 1.442695
      %v1597 = vpow.pop %v1596
      %v1598 = vmul.f32 %v1595, 1.442695
      %v1599 = vpow.pop %v1598
      %v1600 = vsel %vm1587, %v1597, 0.0
      %1601 = vadd.xlane.f32.xlu0 %v1600
      %v1602 = vpop.xlane.xlu0 %1601
      %v1603 = vsel %vm1587, %v1599, 0.0
      %1604 = vadd.xlane.f32.xlu0 %v1603
      %v1605 = vpop.xlane.xlu0 %1604
      %v1606 = vrcp.pop %v1602
      %v1607 = vrcp.pop %v1605
      %v1608 = vmul.f32 %v1597, %v1606
      %v1609 = vmul.f32 %v1599, %v1607
      %v1610 = vrot.slane %v1262, 1
      %v1611 = vrot.slane %v1276, 1
      %v1612 = vrot.slane %v1284, 1
      %v1613 = vrot.slane %v1286, 1
      %v1614 = vrot.slane %v1269, 1
      %v1615 = vrot.slane %v1283, 1
      %v1616 = vrot.slane %v1285, 1
      %v1617 = vcombine.low %v1610, %v1611
      %v1618 = vcombine.low %v1612, %v1613
      %v1619 = vcombine.low %v1614, %v1615
      %v1621 = vunpack.c.l.s4 1966171168
      %v1622 = vunpack.c.0.s8 %v1621
      %v1623 = vlaneseq
      %v1624 = vshrl.u32 %v1623, 7
      %v1625 = vsub.s32 %v1622, %v1624
      %v1626 = vrot.slane %v1617, %v1625
      %v1628 = vunpack.c.l.s4 1966171168
      %v1629 = vunpack.c.0.s8 %v1628
      %v1630 = vlaneseq
      %v1631 = vshrl.u32 %v1630, 7
      %v1632 = vsub.s32 %v1629, %v1631
      %v1633 = vrot.slane %v1618, %v1632
      %v1635 = vunpack.c.l.s4 1966171168
      %v1636 = vunpack.c.0.s8 %v1635
      %v1637 = vlaneseq
      %v1638 = vshrl.u32 %v1637, 7
      %v1639 = vsub.s32 %v1636, %v1638
      %v1640 = vrot.slane %v1619, %v1639
      %v1642 = vunpack.c.l.s4 1966171168
      %v1643 = vunpack.c.0.s8 %v1642
      %v1644 = vlaneseq
      %v1645 = vshrl.u32 %v1644, 7
      %v1646 = vsub.s32 %v1643, %v1645
      %v1647 = vrot.slane %v1616, %v1646
      %v1648 = vcombine.low %v1626, %v1633
      %v1649 = vcombine.low %v1640, %v1647
      %v1651 = vunpack.c.l.s4 1966171168
      %v1652 = vunpack.c.0.s8 %v1651
      %v1653 = vlaneseq
      %v1654 = vshrl.u32 %v1653, 7
      %v1655 = vsub.s32 %v1652, %v1654
      %v1656 = vrot.slane %v1648, %v1655
      %v1658 = vunpack.c.l.s4 1966171168
      %v1659 = vunpack.c.0.s8 %v1658
      %v1660 = vlaneseq
      %v1661 = vshrl.u32 %v1660, 7
      %v1662 = vsub.s32 %v1659, %v1661
      %v1663 = vrot.slane %v1649, %v1662
      %v1664 = vcombine.low %v1656, %v1663
      %vm1665 = vcmask 56320
      %v1667 = vsel %vm1665, %v1608, 0
      %vm1669 = vcmask 1046528
      %v1670 = vsel %vm1669, %v1664, 0
      %1672 = vmatprep.subr.mxu0 0.0
      %1673 = vmatpush1.msra.mxu0 %v1670
      %1674 = vmatprep.subr.mxu0 0.0
      %1675 = vmatpush1.msra.mxu0 0.0
      %1676 = vmatprep.subr.mxu0 0.0
      %1677 = vmatpush1.msra.mxu0 0.0
      %1678 = vmatprep.subr.mxu0 0.0
      %1679 = vmatpush1.msra.mxu0 0.0
      %1680 = vmatprep.subr.mxu0 0.0
      %1681 = vmatpush1.msra.mxu0 0.0
      %1682 = vmatprep.subr.mxu0 0.0
      %1683 = vmatpush1.msra.mxu0 0.0
      %1684 = vmatprep.subr.mxu0 0.0
      %1685 = vmatpush1.msra.mxu0 0.0
      %1686 = vmatprep.subr.mxu0 0.0
      %1687 = vmatpush1.msra.mxu0 0.0
      %1688 = vmatprep.subr.mxu0 0.0
      %1689 = vmatpush1.msra.mxu0 0.0
      %1690 = vmatprep.subr.mxu0 0.0
      %1691 = vmatpush1.msra.mxu0 0.0
      %1692 = vmatprep.subr.mxu0 0.0
      %1693 = vmatpush1.msra.mxu0 0.0
      %1694 = vmatprep.subr.mxu0 0.0
      %1695 = vmatpush1.msra.mxu0 0.0
      %1696 = vmatprep.subr.mxu0 0.0
      %1697 = vmatpush1.msra.mxu0 0.0
      %1698 = vmatprep.subr.mxu0 0.0
      %1699 = vmatpush1.msra.mxu0 0.0
      %1700 = vmatprep.subr.mxu0 0.0
      %1701 = vmatpush1.msra.mxu0 0.0
      %1702 = vmatprep.subr.mxu0 0.0
      %1703 = vmatpush1.msra.mxu0 0.0
      %1704 = vmatprep.subr.mxu0 0.0
      %1705 = vmatpush1.msra.mxu0 0.0
      %1706 = vmatprep.subr.mxu0 0.0
      %1707 = vmatpush1.msra.mxu0 0.0
      %1708 = vmatprep.subr.mxu0 0.0
      %1709 = vmatpush1.msra.mxu0 0.0
      %1710 = vmatprep.subr.mxu0 0.0
      %1711 = vmatpush1.msra.mxu0 0.0
      %1712 = vmatprep.subr.mxu0 0.0
      %1713 = vmatpush1.msra.mxu0 0.0
      %1714 = vmatprep.subr.mxu0 0.0
      %1715 = vmatpush1.msra.mxu0 0.0
      %1716 = vmatprep.subr.mxu0 0.0
      %1717 = vmatpush1.msra.mxu0 0.0
      %1718 = vmatprep.subr.mxu0 0.0
      %1719 = vmatpush1.msra.mxu0 0.0
      %1720 = vmatprep.subr.mxu0 0.0
      %1721 = vmatpush1.msra.mxu0 0.0
      %1722 = vmatprep.subr.mxu0 0.0
      %1723 = vmatpush1.msra.mxu0 0.0
      %1724 = vmatprep.subr.mxu0 0.0
      %1725 = vmatpush1.msra.mxu0 0.0
      %1726 = vmatprep.subr.mxu0 0.0
      %1727 = vmatpush1.msra.mxu0 0.0
      %1728 = vmatprep.subr.mxu0 0.0
      %1729 = vmatpush1.msra.mxu0 0.0
      %1730 = vmatprep.subr.mxu0 0.0
      %1731 = vmatpush1.msra.mxu0 0.0
      %1732 = vmatprep.subr.mxu0 0.0
      %1733 = vmatpush1.msra.mxu0 0.0
      %1734 = vmatprep.subr.mxu0 0.0
      %1735 = vmatpush1.msra.mxu0 0.0
      %1736 = vmatprep.mubr.f32.mxu0 0.0
      %1737 = vmatmul.mubr.f32.gmra.mrb[0].mxu0 %v1667
      %v1738 = vpop.f32.mrb[0].mxu0
      %v1739 = vadd.f32 0.0, %v1738
      %v1740 = vpop.f32.mrb[0].mxu0
      %1741 = vdwg.mxu0
      %v1742 = vrot.slane %v1287, 1
      %v1743 = vrot.slane %v1312, 1
      %v1744 = vrot.slane %v1326, 1
      %v1745 = vrot.slane %v1334, 1
      %v1746 = vrot.slane %v1335, 1
      %v1747 = vrot.slane %v1319, 1
      %v1748 = vrot.slane %v1333, 1
      %v1749 = vcombine.low %v1742, %v1743
      %v1750 = vcombine.low %v1744, %v1745
      %v1751 = vcombine.low %v1746, %v1747
      %v1753 = vunpack.c.l.s4 1966171168
      %v1754 = vunpack.c.0.s8 %v1753
      %v1755 = vlaneseq
      %v1756 = vshrl.u32 %v1755, 7
      %v1757 = vsub.s32 %v1754, %v1756
      %v1758 = vrot.slane %v1749, %v1757
      %v1760 = vunpack.c.l.s4 1966171168
      %v1761 = vunpack.c.0.s8 %v1760
      %v1762 = vlaneseq
      %v1763 = vshrl.u32 %v1762, 7
      %v1764 = vsub.s32 %v1761, %v1763
      %v1765 = vrot.slane %v1750, %v1764
      %v1767 = vunpack.c.l.s4 1966171168
      %v1768 = vunpack.c.0.s8 %v1767
      %v1769 = vlaneseq
      %v1770 = vshrl.u32 %v1769, 7
      %v1771 = vsub.s32 %v1768, %v1770
      %v1772 = vrot.slane %v1751, %v1771
      %v1774 = vunpack.c.l.s4 1966171168
      %v1775 = vunpack.c.0.s8 %v1774
      %v1776 = vlaneseq
      %v1777 = vshrl.u32 %v1776, 7
      %v1778 = vsub.s32 %v1775, %v1777
      %v1779 = vrot.slane %v1748, %v1778
      %v1780 = vcombine.low %v1758, %v1765
      %v1781 = vcombine.low %v1772, %v1779
      %v1783 = vunpack.c.l.s4 1966171168
      %v1784 = vunpack.c.0.s8 %v1783
      %v1785 = vlaneseq
      %v1786 = vshrl.u32 %v1785, 7
      %v1787 = vsub.s32 %v1784, %v1786
      %v1788 = vrot.slane %v1780, %v1787
      %v1790 = vunpack.c.l.s4 1966171168
      %v1791 = vunpack.c.0.s8 %v1790
      %v1792 = vlaneseq
      %v1793 = vshrl.u32 %v1792, 7
      %v1794 = vsub.s32 %v1791, %v1793
      %v1795 = vrot.slane %v1781, %v1794
      %v1796 = vcombine.low %v1788, %v1795
      %v1798 = vsel %vm1665, %v1609, 0
      %v1800 = vsel %vm1669, %v1796, 0
      %1802 = vmatprep.subr.mxu0 0.0
      %1803 = vmatpush1.msra.mxu0 %v1800
      %1804 = vmatprep.subr.mxu0 0.0
      %1805 = vmatpush1.msra.mxu0 0.0
      %1806 = vmatprep.subr.mxu0 0.0
      %1807 = vmatpush1.msra.mxu0 0.0
      %1808 = vmatprep.subr.mxu0 0.0
      %1809 = vmatpush1.msra.mxu0 0.0
      %1810 = vmatprep.subr.mxu0 0.0
      %1811 = vmatpush1.msra.mxu0 0.0
      %1812 = vmatprep.subr.mxu0 0.0
      %1813 = vmatpush1.msra.mxu0 0.0
      %1814 = vmatprep.subr.mxu0 0.0
      %1815 = vmatpush1.msra.mxu0 0.0
      %1816 = vmatprep.subr.mxu0 0.0
      %1817 = vmatpush1.msra.mxu0 0.0
      %1818 = vmatprep.subr.mxu0 0.0
      %1819 = vmatpush1.msra.mxu0 0.0
      %1820 = vmatprep.subr.mxu0 0.0
      %1821 = vmatpush1.msra.mxu0 0.0
      %1822 = vmatprep.subr.mxu0 0.0
      %1823 = vmatpush1.msra.mxu0 0.0
      %1824 = vmatprep.subr.mxu0 0.0
      %1825 = vmatpush1.msra.mxu0 0.0
      %1826 = vmatprep.subr.mxu0 0.0
      %1827 = vmatpush1.msra.mxu0 0.0
      %1828 = vmatprep.subr.mxu0 0.0
      %1829 = vmatpush1.msra.mxu0 0.0
      %1830 = vmatprep.subr.mxu0 0.0
      %1831 = vmatpush1.msra.mxu0 0.0
      %1832 = vmatprep.subr.mxu0 0.0
      %1833 = vmatpush1.msra.mxu0 0.0
      %1834 = vmatprep.subr.mxu0 0.0
      %1835 = vmatpush1.msra.mxu0 0.0
      %1836 = vmatprep.subr.mxu0 0.0
      %1837 = vmatpush1.msra.mxu0 0.0
      %1838 = vmatprep.subr.mxu0 0.0
      %1839 = vmatpush1.msra.mxu0 0.0
      %1840 = vmatprep.subr.mxu0 0.0
      %1841 = vmatpush1.msra.mxu0 0.0
      %1842 = vmatprep.subr.mxu0 0.0
      %1843 = vmatpush1.msra.mxu0 0.0
      %1844 = vmatprep.subr.mxu0 0.0
      %1845 = vmatpush1.msra.mxu0 0.0
      %1846 = vmatprep.subr.mxu0 0.0
      %1847 = vmatpush1.msra.mxu0 0.0
      %1848 = vmatprep.subr.mxu0 0.0
      %1849 = vmatpush1.msra.mxu0 0.0
      %1850 = vmatprep.subr.mxu0 0.0
      %1851 = vmatpush1.msra.mxu0 0.0
      %1852 = vmatprep.subr.mxu0 0.0
      %1853 = vmatpush1.msra.mxu0 0.0
      %1854 = vmatprep.subr.mxu0 0.0
      %1855 = vmatpush1.msra.mxu0 0.0
      %1856 = vmatprep.subr.mxu0 0.0
      %1857 = vmatpush1.msra.mxu0 0.0
      %1858 = vmatprep.subr.mxu0 0.0
      %1859 = vmatpush1.msra.mxu0 0.0
      %1860 = vmatprep.subr.mxu0 0.0
      %1861 = vmatpush1.msra.mxu0 0.0
      %1862 = vmatprep.subr.mxu0 0.0
      %1863 = vmatpush1.msra.mxu0 0.0
      %1864 = vmatprep.subr.mxu0 0.0
      %1865 = vmatpush1.msra.mxu0 0.0
      %1866 = vmatprep.mubr.f32.mxu0 0.0
      %1867 = vmatmul.mubr.f32.gmra.mrb[0].mxu0 %v1798
      %v1868 = vpop.f32.mrb[0].mxu0
      %v1869 = vadd.f32 0.0, %v1868
      %v1870 = vpop.f32.mrb[0].mxu0
      %1871 = vdwg.mxu0
      %1872 = vrot.lane.b32.xlu0 %v1383, 112
      %v1873 = vpop.permute.xlu0 %1872
      %1874 = vrot.lane.b32.xlu0 %v1383, 48
      %v1875 = vpop.permute.xlu0 %1874
      %v1876 = vsel %vm1386, %v1873, 0
      %v1878 = vsel %vm1386, %v1875, 0
      %1880 = vmatprep.subr.mxu0 0.0
      %1881 = vmatpush1.xpose.msra.mxu0 %v1878
      %1882 = vmatprep.subr.mxu0 0.0
      %1883 = vmatpush1.xpose.msra.mxu0 0.0
      %1884 = vmatprep.subr.mxu0 0.0
      %1885 = vmatpush1.xpose.msra.mxu0 0.0
      %1886 = vmatprep.subr.mxu0 0.0
      %1887 = vmatpush1.xpose.msra.mxu0 0.0
      %1888 = vmatprep.subr.mxu0 0.0
      %1889 = vmatpush1.xpose.msra.mxu0 0.0
      %1890 = vmatprep.subr.mxu0 0.0
      %1891 = vmatpush1.xpose.msra.mxu0 0.0
      %1892 = vmatprep.subr.mxu0 0.0
      %1893 = vmatpush1.xpose.msra.mxu0 0.0
      %1894 = vmatprep.subr.mxu0 0.0
      %1895 = vmatpush1.xpose.msra.mxu0 0.0
      %1896 = vmatprep.subr.mxu0 0.0
      %1897 = vmatpush1.xpose.msra.mxu0 0.0
      %1898 = vmatprep.subr.mxu0 0.0
      %1899 = vmatpush1.xpose.msra.mxu0 0.0
      %1900 = vmatprep.subr.mxu0 0.0
      %1901 = vmatpush1.xpose.msra.mxu0 0.0
      %1902 = vmatprep.subr.mxu0 0.0
      %1903 = vmatpush1.xpose.msra.mxu0 0.0
      %1904 = vmatprep.subr.mxu0 0.0
      %1905 = vmatpush1.xpose.msra.mxu0 0.0
      %1906 = vmatprep.subr.mxu0 0.0
      %1907 = vmatpush1.xpose.msra.mxu0 0.0
      %1908 = vmatprep.subr.mxu0 0.0
      %1909 = vmatpush1.xpose.msra.mxu0 0.0
      %1910 = vmatprep.subr.mxu0 0.0
      %1911 = vmatpush1.xpose.msra.mxu0 0.0
      %1912 = vmatprep.subr.mxu0 0.0
      %1913 = vmatpush1.xpose.msra.mxu0 0.0
      %1914 = vmatprep.subr.mxu0 0.0
      %1915 = vmatpush1.xpose.msra.mxu0 0.0
      %1916 = vmatprep.subr.mxu0 0.0
      %1917 = vmatpush1.xpose.msra.mxu0 0.0
      %1918 = vmatprep.subr.mxu0 0.0
      %1919 = vmatpush1.xpose.msra.mxu0 0.0
      %1920 = vmatprep.subr.mxu0 0.0
      %1921 = vmatpush1.xpose.msra.mxu0 0.0
      %1922 = vmatprep.subr.mxu0 0.0
      %1923 = vmatpush1.xpose.msra.mxu0 0.0
      %1924 = vmatprep.subr.mxu0 0.0
      %1925 = vmatpush1.xpose.msra.mxu0 0.0
      %1926 = vmatprep.subr.mxu0 0.0
      %1927 = vmatpush1.xpose.msra.mxu0 0.0
      %1928 = vmatprep.subr.mxu0 0.0
      %1929 = vmatpush1.xpose.msra.mxu0 0.0
      %1930 = vmatprep.subr.mxu0 0.0
      %1931 = vmatpush1.xpose.msra.mxu0 0.0
      %1932 = vmatprep.subr.mxu0 0.0
      %1933 = vmatpush1.xpose.msra.mxu0 0.0
      %1934 = vmatprep.subr.mxu0 0.0
      %1935 = vmatpush1.xpose.msra.mxu0 0.0
      %1936 = vmatprep.subr.mxu0 0.0
      %1937 = vmatpush1.xpose.msra.mxu0 0.0
      %1938 = vmatprep.subr.mxu0 0.0
      %1939 = vmatpush1.xpose.msra.mxu0 0.0
      %1940 = vmatprep.subr.mxu0 0.0
      %1941 = vmatpush1.xpose.msra.mxu0 0.0
      %1942 = vmatprep.subr.mxu0 0.0
      %1943 = vmatpush1.xpose.msra.mxu0 0.0
      %1944 = vmatprep.mubr.f32.mxu0 0.0
      %1945 = vmatmul.mubr.f32.gmra.mrb[0].mxu0 %v1876
      %v1946 = vpop.f32.mrb[0].mxu0
      %v1947 = vadd.f32 0.0, %v1946
      %v1948 = vpop.f32.mrb[0].mxu0
      %1949 = vdwg.mxu0
      %1950 = vrot.lane.b32.xlu0 %v1508, 112
      %v1951 = vpop.permute.xlu0 %1950
      %1952 = vrot.lane.b32.xlu0 %v1508, 48
      %v1953 = vpop.permute.xlu0 %1952
      %v1954 = vsel %vm1386, %v1951, 0
      %v1956 = vsel %vm1386, %v1953, 0
      %1958 = vmatprep.subr.mxu0 0.0
      %1959 = vmatpush1.xpose.msra.mxu0 %v1956
      %1960 = vmatprep.subr.mxu0 0.0
      %1961 = vmatpush1.xpose.msra.mxu0 0.0
      %1962 = vmatprep.subr.mxu0 0.0
      %1963 = vmatpush1.xpose.msra.mxu0 0.0
      %1964 = vmatprep.subr.mxu0 0.0
      %1965 = vmatpush1.xpose.msra.mxu0 0.0
      %1966 = vmatprep.subr.mxu0 0.0
      %1967 = vmatpush1.xpose.msra.mxu0 0.0
      %1968 = vmatprep.subr.mxu0 0.0
      %1969 = vmatpush1.xpose.msra.mxu0 0.0
      %1970 = vmatprep.subr.mxu0 0.0
      %1971 = vmatpush1.xpose.msra.mxu0 0.0
      %1972 = vmatprep.subr.mxu0 0.0
      %1973 = vmatpush1.xpose.msra.mxu0 0.0
      %1974 = vmatprep.subr.mxu0 0.0
      %1975 = vmatpush1.xpose.msra.mxu0 0.0
      %1976 = vmatprep.subr.mxu0 0.0
      %1977 = vmatpush1.xpose.msra.mxu0 0.0
      %1978 = vmatprep.subr.mxu0 0.0
      %1979 = vmatpush1.xpose.msra.mxu0 0.0
      %1980 = vmatprep.subr.mxu0 0.0
      %1981 = vmatpush1.xpose.msra.mxu0 0.0
      %1982 = vmatprep.subr.mxu0 0.0
      %1983 = vmatpush1.xpose.msra.mxu0 0.0
      %1984 = vmatprep.subr.mxu0 0.0
      %1985 = vmatpush1.xpose.msra.mxu0 0.0
      %1986 = vmatprep.subr.mxu0 0.0
      %1987 = vmatpush1.xpose.msra.mxu0 0.0
      %1988 = vmatprep.subr.mxu0 0.0
      %1989 = vmatpush1.xpose.msra.mxu0 0.0
      %1990 = vmatprep.subr.mxu0 0.0
      %1991 = vmatpush1.xpose.msra.mxu0 0.0
      %1992 = vmatprep.subr.mxu0 0.0
      %1993 = vmatpush1.xpose.msra.mxu0 0.0
      %1994 = vmatprep.subr.mxu0 0.0
      %1995 = vmatpush1.xpose.msra.mxu0 0.0
      %1996 = vmatprep.subr.mxu0 0.0
      %1997 = vmatpush1.xpose.msra.mxu0 0.0
      %1998 = vmatprep.subr.mxu0 0.0
      %1999 = vmatpush1.xpose.msra.mxu0 0.0
      %2000 = vmatprep.subr.mxu0 0.0
      %2001 = vmatpush1.xpose.msra.mxu0 0.0
      %2002 = vmatprep.subr.mxu0 0.0
      %2003 = vmatpush1.xpose.msra.mxu0 0.0
      %2004 = vmatprep.subr.mxu0 0.0
      %2005 = vmatpush1.xpose.msra.mxu0 0.0
      %2006 = vmatprep.subr.mxu0 0.0
      %2007 = vmatpush1.xpose.msra.mxu0 0.0
      %2008 = vmatprep.subr.mxu0 0.0
      %2009 = vmatpush1.xpose.msra.mxu0 0.0
      %2010 = vmatprep.subr.mxu0 0.0
      %2011 = vmatpush1.xpose.msra.mxu0 0.0
      %2012 = vmatprep.subr.mxu0 0.0
      %2013 = vmatpush1.xpose.msra.mxu0 0.0
      %2014 = vmatprep.subr.mxu0 0.0
      %2015 = vmatpush1.xpose.msra.mxu0 0.0
      %2016 = vmatprep.subr.mxu0 0.0
      %2017 = vmatpush1.xpose.msra.mxu0 0.0
      %2018 = vmatprep.subr.mxu0 0.0
      %2019 = vmatpush1.xpose.msra.mxu0 0.0
      %2020 = vmatprep.subr.mxu0 0.0
      %2021 = vmatpush1.xpose.msra.mxu0 0.0
      %2022 = vmatprep.mubr.f32.mxu0 0.0
      %2023 = vmatmul.mubr.f32.gmra.mrb[0].mxu0 %v1954
      %v2024 = vpop.f32.mrb[0].mxu0
      %v2025 = vadd.f32 0.0, %v2024
      %v2026 = vpop.f32.mrb[0].mxu0
      %2027 = vdwg.mxu0
      %v2028 = vmul.f32 %v1947, 0.25
      %v2029 = vmul.f32 %v2025, 0.25
      %v2030 = vsel %vm1587, %v2028, -inf
      %2031 = vmax.xlane.f32.xlu0 %v2030
      %v2032 = vpop.xlane.xlu0 %2031
      %v2033 = vsel %vm1587, %v2029, -inf
      %2034 = vmax.xlane.f32.xlu0 %v2033
      %v2035 = vpop.xlane.xlu0 %2034
      %v2036 = vsub.f32 %v2028, %v2032
      %v2037 = vsub.f32 %v2029, %v2035
      %v2038 = vmul.f32 %v2036, 1.442695
      %v2039 = vpow.pop %v2038
      %v2040 = vmul.f32 %v2037, 1.442695
      %v2041 = vpow.pop %v2040
      %v2042 = vsel %vm1587, %v2039, 0.0
      %2043 = vadd.xlane.f32.xlu0 %v2042
      %v2044 = vpop.xlane.xlu0 %2043
      %v2045 = vsel %vm1587, %v2041, 0.0
      %2046 = vadd.xlane.f32.xlu0 %v2045
      %v2047 = vpop.xlane.xlu0 %2046
      %v2048 = vrcp.pop %v2044
      %v2049 = vrcp.pop %v2047
      %v2050 = vmul.f32 %v2039, %v2048
      %v2051 = vmul.f32 %v2041, %v2049
      %2052 = vrot.lane.b32.xlu0 %v1262, 112
      %v2053 = vpop.permute.xlu0 %2052
      %2054 = vrot.lane.b32.xlu0 %v1276, 112
      %v2055 = vpop.permute.xlu0 %2054
      %2056 = vrot.lane.b32.xlu0 %v1284, 112
      %v2057 = vpop.permute.xlu0 %2056
      %2058 = vrot.lane.b32.xlu0 %v1286, 112
      %v2059 = vpop.permute.xlu0 %2058
      %2060 = vrot.lane.b32.xlu0 %v1269, 112
      %v2061 = vpop.permute.xlu0 %2060
      %2062 = vrot.lane.b32.xlu0 %v1283, 112
      %v2063 = vpop.permute.xlu0 %2062
      %2064 = vrot.lane.b32.xlu0 %v1285, 112
      %v2065 = vpop.permute.xlu0 %2064
      %v2066 = vrot.slane %v2053, 1
      %v2067 = vrot.slane %v2055, 1
      %v2068 = vrot.slane %v2057, 1
      %v2069 = vrot.slane %v2059, 1
      %v2070 = vrot.slane %v2061, 1
      %v2071 = vrot.slane %v2063, 1
      %v2072 = vrot.slane %v2065, 1
      %v2073 = vcombine.low %v2066, %v2067
      %v2074 = vcombine.low %v2068, %v2069
      %v2075 = vcombine.low %v2070, %v2071
      %v2077 = vunpack.c.l.s4 1966171168
      %v2078 = vunpack.c.0.s8 %v2077
      %v2079 = vlaneseq
      %v2080 = vshrl.u32 %v2079, 7
      %v2081 = vsub.s32 %v2078, %v2080
      %v2082 = vrot.slane %v2073, %v2081
      %v2084 = vunpack.c.l.s4 1966171168
      %v2085 = vunpack.c.0.s8 %v2084
      %v2086 = vlaneseq
      %v2087 = vshrl.u32 %v2086, 7
      %v2088 = vsub.s32 %v2085, %v2087
      %v2089 = vrot.slane %v2074, %v2088
      %v2091 = vunpack.c.l.s4 1966171168
      %v2092 = vunpack.c.0.s8 %v2091
      %v2093 = vlaneseq
      %v2094 = vshrl.u32 %v2093, 7
      %v2095 = vsub.s32 %v2092, %v2094
      %v2096 = vrot.slane %v2075, %v2095
      %v2098 = vunpack.c.l.s4 1966171168
      %v2099 = vunpack.c.0.s8 %v2098
      %v2100 = vlaneseq
      %v2101 = vshrl.u32 %v2100, 7
      %v2102 = vsub.s32 %v2099, %v2101
      %v2103 = vrot.slane %v2072, %v2102
      %v2104 = vcombine.low %v2082, %v2089
      %v2105 = vcombine.low %v2096, %v2103
      %v2107 = vunpack.c.l.s4 1966171168
      %v2108 = vunpack.c.0.s8 %v2107
      %v2109 = vlaneseq
      %v2110 = vshrl.u32 %v2109, 7
      %v2111 = vsub.s32 %v2108, %v2110
      %v2112 = vrot.slane %v2104, %v2111
      %v2114 = vunpack.c.l.s4 1966171168
      %v2115 = vunpack.c.0.s8 %v2114
      %v2116 = vlaneseq
      %v2117 = vshrl.u32 %v2116, 7
      %v2118 = vsub.s32 %v2115, %v2117
      %v2119 = vrot.slane %v2105, %v2118
      %v2120 = vcombine.low %v2112, %v2119
      %v2122 = vsel %vm1665, %v2050, 0
      %v2124 = vsel %vm1669, %v2120, 0
      %2126 = vmatprep.subr.mxu0 0.0
      %2127 = vmatpush1.msra.mxu0 %v2124
      %2128 = vmatprep.subr.mxu0 0.0
      %2129 = vmatpush1.msra.mxu0 0.0
      %2130 = vmatprep.subr.mxu0 0.0
      %2131 = vmatpush1.msra.mxu0 0.0
      %2132 = vmatprep.subr.mxu0 0.0
      %2133 = vmatpush1.msra.mxu0 0.0
      %2134 = vmatprep.subr.mxu0 0.0
      %2135 = vmatpush1.msra.mxu0 0.0
      %2136 = vmatprep.subr.mxu0 0.0
      %2137 = vmatpush1.msra.mxu0 0.0
      %2138 = vmatprep.subr.mxu0 0.0
      %2139 = vmatpush1.msra.mxu0 0.0
      %2140 = vmatprep.subr.mxu0 0.0
      %2141 = vmatpush1.msra.mxu0 0.0
      %2142 = vmatprep.subr.mxu0 0.0
      %2143 = vmatpush1.msra.mxu0 0.0
      %2144 = vmatprep.subr.mxu0 0.0
      %2145 = vmatpush1.msra.mxu0 0.0
      %2146 = vmatprep.subr.mxu0 0.0
      %2147 = vmatpush1.msra.mxu0 0.0
      %2148 = vmatprep.subr.mxu0 0.0
      %2149 = vmatpush1.msra.mxu0 0.0
      %2150 = vmatprep.subr.mxu0 0.0
      %2151 = vmatpush1.msra.mxu0 0.0
      %2152 = vmatprep.subr.mxu0 0.0
      %2153 = vmatpush1.msra.mxu0 0.0
      %2154 = vmatprep.subr.mxu0 0.0
      %2155 = vmatpush1.msra.mxu0 0.0
      %2156 = vmatprep.subr.mxu0 0.0
      %2157 = vmatpush1.msra.mxu0 0.0
      %2158 = vmatprep.subr.mxu0 0.0
      %2159 = vmatpush1.msra.mxu0 0.0
      %2160 = vmatprep.subr.mxu0 0.0
      %2161 = vmatpush1.msra.mxu0 0.0
      %2162 = vmatprep.subr.mxu0 0.0
      %2163 = vmatpush1.msra.mxu0 0.0
      %2164 = vmatprep.subr.mxu0 0.0
      %2165 = vmatpush1.msra.mxu0 0.0
      %2166 = vmatprep.subr.mxu0 0.0
      %2167 = vmatpush1.msra.mxu0 0.0
      %2168 = vmatprep.subr.mxu0 0.0
      %2169 = vmatpush1.msra.mxu0 0.0
      %2170 = vmatprep.subr.mxu0 0.0
      %2171 = vmatpush1.msra.mxu0 0.0
      %2172 = vmatprep.subr.mxu0 0.0
      %2173 = vmatpush1.msra.mxu0 0.0
      %2174 = vmatprep.subr.mxu0 0.0
      %2175 = vmatpush1.msra.mxu0 0.0
      %2176 = vmatprep.subr.mxu0 0.0
      %2177 = vmatpush1.msra.mxu0 0.0
      %2178 = vmatprep.subr.mxu0 0.0
      %2179 = vmatpush1.msra.mxu0 0.0
      %2180 = vmatprep.subr.mxu0 0.0
      %2181 = vmatpush1.msra.mxu0 0.0
      %2182 = vmatprep.subr.mxu0 0.0
      %2183 = vmatpush1.msra.mxu0 0.0
      %2184 = vmatprep.subr.mxu0 0.0
      %2185 = vmatpush1.msra.mxu0 0.0
      %2186 = vmatprep.subr.mxu0 0.0
      %2187 = vmatpush1.msra.mxu0 0.0
      %2188 = vmatprep.subr.mxu0 0.0
      %2189 = vmatpush1.msra.mxu0 0.0
      %2190 = vmatprep.mubr.f32.mxu0 0.0
      %2191 = vmatmul.mubr.f32.gmra.mrb[0].mxu0 %v2122
      %v2192 = vpop.f32.mrb[0].mxu0
      %v2193 = vadd.f32 0.0, %v2192
      %v2194 = vpop.f32.mrb[0].mxu0
      %2195 = vdwg.mxu0
      %2196 = vrot.lane.b32.xlu0 %v1287, 112
      %v2197 = vpop.permute.xlu0 %2196
      %2198 = vrot.lane.b32.xlu0 %v1312, 112
      %v2199 = vpop.permute.xlu0 %2198
      %2200 = vrot.lane.b32.xlu0 %v1326, 112
      %v2201 = vpop.permute.xlu0 %2200
      %2202 = vrot.lane.b32.xlu0 %v1334, 112
      %v2203 = vpop.permute.xlu0 %2202
      %2204 = vrot.lane.b32.xlu0 %v1335, 112
      %v2205 = vpop.permute.xlu0 %2204
      %2206 = vrot.lane.b32.xlu0 %v1319, 112
      %v2207 = vpop.permute.xlu0 %2206
      %2208 = vrot.lane.b32.xlu0 %v1333, 112
      %v2209 = vpop.permute.xlu0 %2208
      %v2210 = vrot.slane %v2197, 1
      %v2211 = vrot.slane %v2199, 1
      %v2212 = vrot.slane %v2201, 1
      %v2213 = vrot.slane %v2203, 1
      %v2214 = vrot.slane %v2205, 1
      %v2215 = vrot.slane %v2207, 1
      %v2216 = vrot.slane %v2209, 1
      %v2217 = vcombine.low %v2210, %v2211
      %v2218 = vcombine.low %v2212, %v2213
      %v2219 = vcombine.low %v2214, %v2215
      %v2221 = vunpack.c.l.s4 1966171168
      %v2222 = vunpack.c.0.s8 %v2221
      %v2223 = vlaneseq
      %v2224 = vshrl.u32 %v2223, 7
      %v2225 = vsub.s32 %v2222, %v2224
      %v2226 = vrot.slane %v2217, %v2225
      %v2228 = vunpack.c.l.s4 1966171168
      %v2229 = vunpack.c.0.s8 %v2228
      %v2230 = vlaneseq
      %v2231 = vshrl.u32 %v2230, 7
      %v2232 = vsub.s32 %v2229, %v2231
      %v2233 = vrot.slane %v2218, %v2232
      %v2235 = vunpack.c.l.s4 1966171168
      %v2236 = vunpack.c.0.s8 %v2235
      %v2237 = vlaneseq
      %v2238 = vshrl.u32 %v2237, 7
      %v2239 = vsub.s32 %v2236, %v2238
      %v2240 = vrot.slane %v2219, %v2239
      %v2242 = vunpack.c.l.s4 1966171168
      %v2243 = vunpack.c.0.s8 %v2242
      %v2244 = vlaneseq
      %v2245 = vshrl.u32 %v2244, 7
      %v2246 = vsub.s32 %v2243, %v2245
      %v2247 = vrot.slane %v2216, %v2246
      %v2248 = vcombine.low %v2226, %v2233
      %v2249 = vcombine.low %v2240, %v2247
      %v2251 = vunpack.c.l.s4 1966171168
      %v2252 = vunpack.c.0.s8 %v2251
      %v2253 = vlaneseq
      %v2254 = vshrl.u32 %v2253, 7
      %v2255 = vsub.s32 %v2252, %v2254
      %v2256 = vrot.slane %v2248, %v2255
      %v2258 = vunpack.c.l.s4 1966171168
      %v2259 = vunpack.c.0.s8 %v2258
      %v2260 = vlaneseq
      %v2261 = vshrl.u32 %v2260, 7
      %v2262 = vsub.s32 %v2259, %v2261
      %v2263 = vrot.slane %v2249, %v2262
      %v2264 = vcombine.low %v2256, %v2263
      %v2266 = vsel %vm1665, %v2051, 0
      %v2268 = vsel %vm1669, %v2264, 0
      %2270 = vmatprep.subr.mxu0 0.0
      %2271 = vmatpush1.msra.mxu0 %v2268
      %2272 = vmatprep.subr.mxu0 0.0
      %2273 = vmatpush1.msra.mxu0 0.0
      %2274 = vmatprep.subr.mxu0 0.0
      %2275 = vmatpush1.msra.mxu0 0.0
      %2276 = vmatprep.subr.mxu0 0.0
      %2277 = vmatpush1.msra.mxu0 0.0
      %2278 = vmatprep.subr.mxu0 0.0
      %2279 = vmatpush1.msra.mxu0 0.0
      %2280 = vmatprep.subr.mxu0 0.0
      %2281 = vmatpush1.msra.mxu0 0.0
      %2282 = vmatprep.subr.mxu0 0.0
      %2283 = vmatpush1.msra.mxu0 0.0
      %2284 = vmatprep.subr.mxu0 0.0
      %2285 = vmatpush1.msra.mxu0 0.0
      %2286 = vmatprep.subr.mxu0 0.0
      %2287 = vmatpush1.msra.mxu0 0.0
      %2288 = vmatprep.subr.mxu0 0.0
      %2289 = vmatpush1.msra.mxu0 0.0
      %2290 = vmatprep.subr.mxu0 0.0
      %2291 = vmatpush1.msra.mxu0 0.0
      %2292 = vmatprep.subr.mxu0 0.0
      %2293 = vmatpush1.msra.mxu0 0.0
      %2294 = vmatprep.subr.mxu0 0.0
      %2295 = vmatpush1.msra.mxu0 0.0
      %2296 = vmatprep.subr.mxu0 0.0
      %2297 = vmatpush1.msra.mxu0 0.0
      %2298 = vmatprep.subr.mxu0 0.0
      %2299 = vmatpush1.msra.mxu0 0.0
      %2300 = vmatprep.subr.mxu0 0.0
      %2301 = vmatpush1.msra.mxu0 0.0
      %2302 = vmatprep.subr.mxu0 0.0
      %2303 = vmatpush1.msra.mxu0 0.0
      %2304 = vmatprep.subr.mxu0 0.0
      %2305 = vmatpush1.msra.mxu0 0.0
      %2306 = vmatprep.subr.mxu0 0.0
      %2307 = vmatpush1.msra.mxu0 0.0
      %2308 = vmatprep.subr.mxu0 0.0
      %2309 = vmatpush1.msra.mxu0 0.0
      %2310 = vmatprep.subr.mxu0 0.0
      %2311 = vmatpush1.msra.mxu0 0.0
      %2312 = vmatprep.subr.mxu0 0.0
      %2313 = vmatpush1.msra.mxu0 0.0
      %2314 = vmatprep.subr.mxu0 0.0
      %2315 = vmatpush1.msra.mxu0 0.0
      %2316 = vmatprep.subr.mxu0 0.0
      %2317 = vmatpush1.msra.mxu0 0.0
      %2318 = vmatprep.subr.mxu0 0.0
      %2319 = vmatpush1.msra.mxu0 0.0
      %2320 = vmatprep.subr.mxu0 0.0
      %2321 = vmatpush1.msra.mxu0 0.0
      %2322 = vmatprep.subr.mxu0 0.0
      %2323 = vmatpush1.msra.mxu0 0.0
      %2324 = vmatprep.subr.mxu0 0.0
      %2325 = vmatpush1.msra.mxu0 0.0
      %2326 = vmatprep.subr.mxu0 0.0
      %2327 = vmatpush1.msra.mxu0 0.0
      %2328 = vmatprep.subr.mxu0 0.0
      %2329 = vmatpush1.msra.mxu0 0.0
      %2330 = vmatprep.subr.mxu0 0.0
      %2331 = vmatpush1.msra.mxu0 0.0
      %2332 = vmatprep.subr.mxu0 0.0
      %2333 = vmatpush1.msra.mxu0 0.0
      %2334 = vmatprep.mubr.f32.mxu0 0.0
      %2335 = vmatmul.mubr.f32.gmra.mrb[0].mxu0 %v2266
      %v2336 = vpop.f32.mrb[0].mxu0
      %v2337 = vadd.f32 0.0, %v2336
      %v2338 = vpop.f32.mrb[0].mxu0
      %2339 = vdwg.mxu0
      %2340 = vrot.lane.b32.xlu0 %v1383, 96
      %v2341 = vpop.permute.xlu0 %2340
      %2342 = vrot.lane.b32.xlu0 %v1383, 32
      %v2343 = vpop.permute.xlu0 %2342
      %v2344 = vsel %vm1386, %v2341, 0
      %v2346 = vsel %vm1386, %v2343, 0
      %2348 = vmatprep.subr.mxu0 0.0
      %2349 = vmatpush1.xpose.msra.mxu0 %v2346
      %2350 = vmatprep.subr.mxu0 0.0
      %2351 = vmatpush1.xpose.msra.mxu0 0.0
      %2352 = vmatprep.subr.mxu0 0.0
      %2353 = vmatpush1.xpose.msra.mxu0 0.0
      %2354 = vmatprep.subr.mxu0 0.0
      %2355 = vmatpush1.xpose.msra.mxu0 0.0
      %2356 = vmatprep.subr.mxu0 0.0
      %2357 = vmatpush1.xpose.msra.mxu0 0.0
      %2358 = vmatprep.subr.mxu0 0.0
      %2359 = vmatpush1.xpose.msra.mxu0 0.0
      %2360 = vmatprep.subr.mxu0 0.0
      %2361 = vmatpush1.xpose.msra.mxu0 0.0
      %2362 = vmatprep.subr.mxu0 0.0
      %2363 = vmatpush1.xpose.msra.mxu0 0.0
      %2364 = vmatprep.subr.mxu0 0.0
      %2365 = vmatpush1.xpose.msra.mxu0 0.0
      %2366 = vmatprep.subr.mxu0 0.0
      %2367 = vmatpush1.xpose.msra.mxu0 0.0
      %2368 = vmatprep.subr.mxu0 0.0
      %2369 = vmatpush1.xpose.msra.mxu0 0.0
      %2370 = vmatprep.subr.mxu0 0.0
      %2371 = vmatpush1.xpose.msra.mxu0 0.0
      %2372 = vmatprep.subr.mxu0 0.0
      %2373 = vmatpush1.xpose.msra.mxu0 0.0
      %2374 = vmatprep.subr.mxu0 0.0
      %2375 = vmatpush1.xpose.msra.mxu0 0.0
      %2376 = vmatprep.subr.mxu0 0.0
      %2377 = vmatpush1.xpose.msra.mxu0 0.0
      %2378 = vmatprep.subr.mxu0 0.0
      %2379 = vmatpush1.xpose.msra.mxu0 0.0
      %2380 = vmatprep.subr.mxu0 0.0
      %2381 = vmatpush1.xpose.msra.mxu0 0.0
      %2382 = vmatprep.subr.mxu0 0.0
      %2383 = vmatpush1.xpose.msra.mxu0 0.0
      %2384 = vmatprep.subr.mxu0 0.0
      %2385 = vmatpush1.xpose.msra.mxu0 0.0
      %2386 = vmatprep.subr.mxu0 0.0
      %2387 = vmatpush1.xpose.msra.mxu0 0.0
      %2388 = vmatprep.subr.mxu0 0.0
      %2389 = vmatpush1.xpose.msra.mxu0 0.0
      %2390 = vmatprep.subr.mxu0 0.0
      %2391 = vmatpush1.xpose.msra.mxu0 0.0
      %2392 = vmatprep.subr.mxu0 0.0
      %2393 = vmatpush1.xpose.msra.mxu0 0.0
      %2394 = vmatprep.subr.mxu0 0.0
      %2395 = vmatpush1.xpose.msra.mxu0 0.0
      %2396 = vmatprep.subr.mxu0 0.0
      %2397 = vmatpush1.xpose.msra.mxu0 0.0
      %2398 = vmatprep.subr.mxu0 0.0
      %2399 = vmatpush1.xpose.msra.mxu0 0.0
      %2400 = vmatprep.subr.mxu0 0.0
      %2401 = vmatpush1.xpose.msra.mxu0 0.0
      %2402 = vmatprep.subr.mxu0 0.0
      %2403 = vmatpush1.xpose.msra.mxu0 0.0
      %2404 = vmatprep.subr.mxu0 0.0
      %2405 = vmatpush1.xpose.msra.mxu0 0.0
      %2406 = vmatprep.subr.mxu0 0.0
      %2407 = vmatpush1.xpose.msra.mxu0 0.0
      %2408 = vmatprep.subr.mxu0 0.0
      %2409 = vmatpush1.xpose.msra.mxu0 0.0
      %2410 = vmatprep.subr.mxu0 0.0
      %2411 = vmatpush1.xpose.msra.mxu0 0.0
      %2412 = vmatprep.mubr.f32.mxu0 0.0
      %2413 = vmatmul.mubr.f32.gmra.mrb[0].mxu0 %v2344
      %v2414 = vpop.f32.mrb[0].mxu0
      %v2415 = vadd.f32 0.0, %v2414
      %v2416 = vpop.f32.mrb[0].mxu0
      %2417 = vdwg.mxu0
      %2418 = vrot.lane.b32.xlu0 %v1508, 96
      %v2419 = vpop.permute.xlu0 %2418
      %2420 = vrot.lane.b32.xlu0 %v1508, 32
      %v2421 = vpop.permute.xlu0 %2420
      %v2422 = vsel %vm1386, %v2419, 0
      %v2424 = vsel %vm1386, %v2421, 0
      %2426 = vmatprep.subr.mxu0 0.0
      %2427 = vmatpush1.xpose.msra.mxu0 %v2424
      %2428 = vmatprep.subr.mxu0 0.0
      %2429 = vmatpush1.xpose.msra.mxu0 0.0
      %2430 = vmatprep.subr.mxu0 0.0
      %2431 = vmatpush1.xpose.msra.mxu0 0.0
      %2432 = vmatprep.subr.mxu0 0.0
      %2433 = vmatpush1.xpose.msra.mxu0 0.0
      %2434 = vmatprep.subr.mxu0 0.0
      %2435 = vmatpush1.xpose.msra.mxu0 0.0
      %2436 = vmatprep.subr.mxu0 0.0
      %2437 = vmatpush1.xpose.msra.mxu0 0.0
      %2438 = vmatprep.subr.mxu0 0.0
      %2439 = vmatpush1.xpose.msra.mxu0 0.0
      %2440 = vmatprep.subr.mxu0 0.0
      %2441 = vmatpush1.xpose.msra.mxu0 0.0
      %2442 = vmatprep.subr.mxu0 0.0
      %2443 = vmatpush1.xpose.msra.mxu0 0.0
      %2444 = vmatprep.subr.mxu0 0.0
      %2445 = vmatpush1.xpose.msra.mxu0 0.0
      %2446 = vmatprep.subr.mxu0 0.0
      %2447 = vmatpush1.xpose.msra.mxu0 0.0
      %2448 = vmatprep.subr.mxu0 0.0
      %2449 = vmatpush1.xpose.msra.mxu0 0.0
      %2450 = vmatprep.subr.mxu0 0.0
      %2451 = vmatpush1.xpose.msra.mxu0 0.0
      %2452 = vmatprep.subr.mxu0 0.0
      %2453 = vmatpush1.xpose.msra.mxu0 0.0
      %2454 = vmatprep.subr.mxu0 0.0
      %2455 = vmatpush1.xpose.msra.mxu0 0.0
      %2456 = vmatprep.subr.mxu0 0.0
      %2457 = vmatpush1.xpose.msra.mxu0 0.0
      %2458 = vmatprep.subr.mxu0 0.0
      %2459 = vmatpush1.xpose.msra.mxu0 0.0
      %2460 = vmatprep.subr.mxu0 0.0
      %2461 = vmatpush1.xpose.msra.mxu0 0.0
      %2462 = vmatprep.subr.mxu0 0.0
      %2463 = vmatpush1.xpose.msra.mxu0 0.0
      %2464 = vmatprep.subr.mxu0 0.0
      %2465 = vmatpush1.xpose.msra.mxu0 0.0
      %2466 = vmatprep.subr.mxu0 0.0
      %2467 = vmatpush1.xpose.msra.mxu0 0.0
      %2468 = vmatprep.subr.mxu0 0.0
      %2469 = vmatpush1.xpose.msra.mxu0 0.0
      %2470 = vmatprep.subr.mxu0 0.0
      %2471 = vmatpush1.xpose.msra.mxu0 0.0
      %2472 = vmatprep.subr.mxu0 0.0
      %2473 = vmatpush1.xpose.msra.mxu0 0.0
      %2474 = vmatprep.subr.mxu0 0.0
      %2475 = vmatpush1.xpose.msra.mxu0 0.0
      %2476 = vmatprep.subr.mxu0 0.0
      %2477 = vmatpush1.xpose.msra.mxu0 0.0
      %2478 = vmatprep.subr.mxu0 0.0
      %2479 = vmatpush1.xpose.msra.mxu0 0.0
      %2480 = vmatprep.subr.mxu0 0.0
      %2481 = vmatpush1.xpose.msra.mxu0 0.0
      %2482 = vmatprep.subr.mxu0 0.0
      %2483 = vmatpush1.xpose.msra.mxu0 0.0
      %2484 = vmatprep.subr.mxu0 0.0
      %2485 = vmatpush1.xpose.msra.mxu0 0.0
      %2486 = vmatprep.subr.mxu0 0.0
      %2487 = vmatpush1.xpose.msra.mxu0 0.0
      %2488 = vmatprep.subr.mxu0 0.0
      %2489 = vmatpush1.xpose.msra.mxu0 0.0
      %2490 = vmatprep.mubr.f32.mxu0 0.0
      %2491 = vmatmul.mubr.f32.gmra.mrb[0].mxu0 %v2422
      %v2492 = vpop.f32.mrb[0].mxu0
      %v2493 = vadd.f32 0.0, %v2492
      %v2494 = vpop.f32.mrb[0].mxu0
      %2495 = vdwg.mxu0
      %v2496 = vmul.f32 %v2415, 0.25
      %v2497 = vmul.f32 %v2493, 0.25
      %v2498 = vsel %vm1587, %v2496, -inf
      %2499 = vmax.xlane.f32.xlu0 %v2498
      %v2500 = vpop.xlane.xlu0 %2499
      %v2501 = vsel %vm1587, %v2497, -inf
      %2502 = vmax.xlane.f32.xlu0 %v2501
      %v2503 = vpop.xlane.xlu0 %2502
      %v2504 = vsub.f32 %v2496, %v2500
      %v2505 = vsub.f32 %v2497, %v2503
      %v2506 = vmul.f32 %v2504, 1.442695
      %v2507 = vpow.pop %v2506
      %v2508 = vmul.f32 %v2505, 1.442695
      %v2509 = vpow.pop %v2508
      %v2510 = vsel %vm1587, %v2507, 0.0
      %2511 = vadd.xlane.f32.xlu0 %v2510
      %v2512 = vpop.xlane.xlu0 %2511
      %v2513 = vsel %vm1587, %v2509, 0.0
      %2514 = vadd.xlane.f32.xlu0 %v2513
      %v2515 = vpop.xlane.xlu0 %2514
      %v2516 = vrcp.pop %v2512
      %v2517 = vrcp.pop %v2515
      %v2518 = vmul.f32 %v2507, %v2516
      %v2519 = vmul.f32 %v2509, %v2517
      %2520 = vrot.lane.b32.xlu0 %v1262, 96
      %v2521 = vpop.permute.xlu0 %2520
      %2522 = vrot.lane.b32.xlu0 %v1276, 96
      %v2523 = vpop.permute.xlu0 %2522
      %2524 = vrot.lane.b32.xlu0 %v1284, 96
      %v2525 = vpop.permute.xlu0 %2524
      %2526 = vrot.lane.b32.xlu0 %v1286, 96
      %v2527 = vpop.permute.xlu0 %2526
      %2528 = vrot.lane.b32.xlu0 %v1269, 96
      %v2529 = vpop.permute.xlu0 %2528
      %2530 = vrot.lane.b32.xlu0 %v1283, 96
      %v2531 = vpop.permute.xlu0 %2530
      %2532 = vrot.lane.b32.xlu0 %v1285, 96
      %v2533 = vpop.permute.xlu0 %2532
      %v2534 = vrot.slane %v2521, 1
      %v2535 = vrot.slane %v2523, 1
      %v2536 = vrot.slane %v2525, 1
      %v2537 = vrot.slane %v2527, 1
      %v2538 = vrot.slane %v2529, 1
      %v2539 = vrot.slane %v2531, 1
      %v2540 = vrot.slane %v2533, 1
      %v2541 = vcombine.low %v2534, %v2535
      %v2542 = vcombine.low %v2536, %v2537
      %v2543 = vcombine.low %v2538, %v2539
      %v2545 = vunpack.c.l.s4 1966171168
      %v2546 = vunpack.c.0.s8 %v2545
      %v2547 = vlaneseq
      %v2548 = vshrl.u32 %v2547, 7
      %v2549 = vsub.s32 %v2546, %v2548
      %v2550 = vrot.slane %v2541, %v2549
      %v2552 = vunpack.c.l.s4 1966171168
      %v2553 = vunpack.c.0.s8 %v2552
      %v2554 = vlaneseq
      %v2555 = vshrl.u32 %v2554, 7
      %v2556 = vsub.s32 %v2553, %v2555
      %v2557 = vrot.slane %v2542, %v2556
      %v2559 = vunpack.c.l.s4 1966171168
      %v2560 = vunpack.c.0.s8 %v2559
      %v2561 = vlaneseq
      %v2562 = vshrl.u32 %v2561, 7
      %v2563 = vsub.s32 %v2560, %v2562
      %v2564 = vrot.slane %v2543, %v2563
      %v2566 = vunpack.c.l.s4 1966171168
      %v2567 = vunpack.c.0.s8 %v2566
      %v2568 = vlaneseq
      %v2569 = vshrl.u32 %v2568, 7
      %v2570 = vsub.s32 %v2567, %v2569
      %v2571 = vrot.slane %v2540, %v2570
      %v2572 = vcombine.low %v2550, %v2557
      %v2573 = vcombine.low %v2564, %v2571
      %v2575 = vunpack.c.l.s4 1966171168
      %v2576 = vunpack.c.0.s8 %v2575
      %v2577 = vlaneseq
      %v2578 = vshrl.u32 %v2577, 7
      %v2579 = vsub.s32 %v2576, %v2578
      %v2580 = vrot.slane %v2572, %v2579
      %v2582 = vunpack.c.l.s4 1966171168
      %v2583 = vunpack.c.0.s8 %v2582
      %v2584 = vlaneseq
      %v2585 = vshrl.u32 %v2584, 7
      %v2586 = vsub.s32 %v2583, %v2585
      %v2587 = vrot.slane %v2573, %v2586
      %v2588 = vcombine.low %v2580, %v2587
      %v2590 = vsel %vm1665, %v2518, 0
      %v2592 = vsel %vm1669, %v2588, 0
      %2594 = vmatprep.subr.mxu0 0.0
      %2595 = vmatpush1.msra.mxu0 %v2592
      %2596 = vmatprep.subr.mxu0 0.0
      %2597 = vmatpush1.msra.mxu0 0.0
      %2598 = vmatprep.subr.mxu0 0.0
      %2599 = vmatpush1.msra.mxu0 0.0
      %2600 = vmatprep.subr.mxu0 0.0
      %2601 = vmatpush1.msra.mxu0 0.0
      %2602 = vmatprep.subr.mxu0 0.0
      %2603 = vmatpush1.msra.mxu0 0.0
      %2604 = vmatprep.subr.mxu0 0.0
      %2605 = vmatpush1.msra.mxu0 0.0
      %2606 = vmatprep.subr.mxu0 0.0
      %2607 = vmatpush1.msra.mxu0 0.0
      %2608 = vmatprep.subr.mxu0 0.0
      %2609 = vmatpush1.msra.mxu0 0.0
      %2610 = vmatprep.subr.mxu0 0.0
      %2611 = vmatpush1.msra.mxu0 0.0
      %2612 = vmatprep.subr.mxu0 0.0
      %2613 = vmatpush1.msra.mxu0 0.0
      %2614 = vmatprep.subr.mxu0 0.0
      %2615 = vmatpush1.msra.mxu0 0.0
      %2616 = vmatprep.subr.mxu0 0.0
      %2617 = vmatpush1.msra.mxu0 0.0
      %2618 = vmatprep.subr.mxu0 0.0
      %2619 = vmatpush1.msra.mxu0 0.0
      %2620 = vmatprep.subr.mxu0 0.0
      %2621 = vmatpush1.msra.mxu0 0.0
      %2622 = vmatprep.subr.mxu0 0.0
      %2623 = vmatpush1.msra.mxu0 0.0
      %2624 = vmatprep.subr.mxu0 0.0
      %2625 = vmatpush1.msra.mxu0 0.0
      %2626 = vmatprep.subr.mxu0 0.0
      %2627 = vmatpush1.msra.mxu0 0.0
      %2628 = vmatprep.subr.mxu0 0.0
      %2629 = vmatpush1.msra.mxu0 0.0
      %2630 = vmatprep.subr.mxu0 0.0
      %2631 = vmatpush1.msra.mxu0 0.0
      %2632 = vmatprep.subr.mxu0 0.0
      %2633 = vmatpush1.msra.mxu0 0.0
      %2634 = vmatprep.subr.mxu0 0.0
      %2635 = vmatpush1.msra.mxu0 0.0
      %2636 = vmatprep.subr.mxu0 0.0
      %2637 = vmatpush1.msra.mxu0 0.0
      %2638 = vmatprep.subr.mxu0 0.0
      %2639 = vmatpush1.msra.mxu0 0.0
      %2640 = vmatprep.subr.mxu0 0.0
      %2641 = vmatpush1.msra.mxu0 0.0
      %2642 = vmatprep.subr.mxu0 0.0
      %2643 = vmatpush1.msra.mxu0 0.0
      %2644 = vmatprep.subr.mxu0 0.0
      %2645 = vmatpush1.msra.mxu0 0.0
      %2646 = vmatprep.subr.mxu0 0.0
      %2647 = vmatpush1.msra.mxu0 0.0
      %2648 = vmatprep.subr.mxu0 0.0
      %2649 = vmatpush1.msra.mxu0 0.0
      %2650 = vmatprep.subr.mxu0 0.0
      %2651 = vmatpush1.msra.mxu0 0.0
      %2652 = vmatprep.subr.mxu0 0.0
      %2653 = vmatpush1.msra.mxu0 0.0
      %2654 = vmatprep.subr.mxu0 0.0
      %2655 = vmatpush1.msra.mxu0 0.0
      %2656 = vmatprep.subr.mxu0 0.0
      %2657 = vmatpush1.msra.mxu0 0.0
      %2658 = vmatprep.mubr.f32.mxu0 0.0
      %2659 = vmatmul.mubr.f32.gmra.mrb[0].mxu0 %v2590
      %v2660 = vpop.f32.mrb[0].mxu0
      %v2661 = vadd.f32 0.0, %v2660
      %v2662 = vpop.f32.mrb[0].mxu0
      %2663 = vdwg.mxu0
      %2664 = vrot.lane.b32.xlu0 %v1287, 96
      %v2665 = vpop.permute.xlu0 %2664
      %2666 = vrot.lane.b32.xlu0 %v1312, 96
      %v2667 = vpop.permute.xlu0 %2666
      %2668 = vrot.lane.b32.xlu0 %v1326, 96
      %v2669 = vpop.permute.xlu0 %2668
      %2670 = vrot.lane.b32.xlu0 %v1334, 96
      %v2671 = vpop.permute.xlu0 %2670
      %2672 = vrot.lane.b32.xlu0 %v1335, 96
      %v2673 = vpop.permute.xlu0 %2672
      %2674 = vrot.lane.b32.xlu0 %v1319, 96
      %v2675 = vpop.permute.xlu0 %2674
      %2676 = vrot.lane.b32.xlu0 %v1333, 96
      %v2677 = vpop.permute.xlu0 %2676
      %v2678 = vrot.slane %v2665, 1
      %v2679 = vrot.slane %v2667, 1
      %v2680 = vrot.slane %v2669, 1
      %v2681 = vrot.slane %v2671, 1
      %v2682 = vrot.slane %v2673, 1
      %v2683 = vrot.slane %v2675, 1
      %v2684 = vrot.slane %v2677, 1
      %v2685 = vcombine.low %v2678, %v2679
      %v2686 = vcombine.low %v2680, %v2681
      %v2687 = vcombine.low %v2682, %v2683
      %v2689 = vunpack.c.l.s4 1966171168
      %v2690 = vunpack.c.0.s8 %v2689
      %v2691 = vlaneseq
      %v2692 = vshrl.u32 %v2691, 7
      %v2693 = vsub.s32 %v2690, %v2692
      %v2694 = vrot.slane %v2685, %v2693
      %v2696 = vunpack.c.l.s4 1966171168
      %v2697 = vunpack.c.0.s8 %v2696
      %v2698 = vlaneseq
      %v2699 = vshrl.u32 %v2698, 7
      %v2700 = vsub.s32 %v2697, %v2699
      %v2701 = vrot.slane %v2686, %v2700
      %v2703 = vunpack.c.l.s4 1966171168
      %v2704 = vunpack.c.0.s8 %v2703
      %v2705 = vlaneseq
      %v2706 = vshrl.u32 %v2705, 7
      %v2707 = vsub.s32 %v2704, %v2706
      %v2708 = vrot.slane %v2687, %v2707
      %v2710 = vunpack.c.l.s4 1966171168
      %v2711 = vunpack.c.0.s8 %v2710
      %v2712 = vlaneseq
      %v2713 = vshrl.u32 %v2712, 7
      %v2714 = vsub.s32 %v2711, %v2713
      %v2715 = vrot.slane %v2684, %v2714
      %v2716 = vcombine.low %v2694, %v2701
      %v2717 = vcombine.low %v2708, %v2715
      %v2719 = vunpack.c.l.s4 1966171168
      %v2720 = vunpack.c.0.s8 %v2719
      %v2721 = vlaneseq
      %v2722 = vshrl.u32 %v2721, 7
      %v2723 = vsub.s32 %v2720, %v2722
      %v2724 = vrot.slane %v2716, %v2723
      %v2726 = vunpack.c.l.s4 1966171168
      %v2727 = vunpack.c.0.s8 %v2726
      %v2728 = vlaneseq
      %v2729 = vshrl.u32 %v2728, 7
      %v2730 = vsub.s32 %v2727, %v2729
      %v2731 = vrot.slane %v2717, %v2730
      %v2732 = vcombine.low %v2724, %v2731
      %v2734 = vsel %vm1665, %v2519, 0
      %v2736 = vsel %vm1669, %v2732, 0
      %2738 = vmatprep.subr.mxu0 0.0
      %2739 = vmatpush1.msra.mxu0 %v2736
      %2740 = vmatprep.subr.mxu0 0.0
      %2741 = vmatpush1.msra.mxu0 0.0
      %2742 = vmatprep.subr.mxu0 0.0
      %2743 = vmatpush1.msra.mxu0 0.0
      %2744 = vmatprep.subr.mxu0 0.0
      %2745 = vmatpush1.msra.mxu0 0.0
      %2746 = vmatprep.subr.mxu0 0.0
      %2747 = vmatpush1.msra.mxu0 0.0
      %2748 = vmatprep.subr.mxu0 0.0
      %2749 = vmatpush1.msra.mxu0 0.0
      %2750 = vmatprep.subr.mxu0 0.0
      %2751 = vmatpush1.msra.mxu0 0.0
      %2752 = vmatprep.subr.mxu0 0.0
      %2753 = vmatpush1.msra.mxu0 0.0
      %2754 = vmatprep.subr.mxu0 0.0
      %2755 = vmatpush1.msra.mxu0 0.0
      %2756 = vmatprep.subr.mxu0 0.0
      %2757 = vmatpush1.msra.mxu0 0.0
      %2758 = vmatprep.subr.mxu0 0.0
      %2759 = vmatpush1.msra.mxu0 0.0
      %2760 = vmatprep.subr.mxu0 0.0
      %2761 = vmatpush1.msra.mxu0 0.0
      %2762 = vmatprep.subr.mxu0 0.0
      %2763 = vmatpush1.msra.mxu0 0.0
      %2764 = vmatprep.subr.mxu0 0.0
      %2765 = vmatpush1.msra.mxu0 0.0
      %2766 = vmatprep.subr.mxu0 0.0
      %2767 = vmatpush1.msra.mxu0 0.0
      %2768 = vmatprep.subr.mxu0 0.0
      %2769 = vmatpush1.msra.mxu0 0.0
      %2770 = vmatprep.subr.mxu0 0.0
      %2771 = vmatpush1.msra.mxu0 0.0
      %2772 = vmatprep.subr.mxu0 0.0
      %2773 = vmatpush1.msra.mxu0 0.0
      %2774 = vmatprep.subr.mxu0 0.0
      %2775 = vmatpush1.msra.mxu0 0.0
      %2776 = vmatprep.subr.mxu0 0.0
      %2777 = vmatpush1.msra.mxu0 0.0
      %2778 = vmatprep.subr.mxu0 0.0
      %2779 = vmatpush1.msra.mxu0 0.0
      %2780 = vmatprep.subr.mxu0 0.0
      %2781 = vmatpush1.msra.mxu0 0.0
      %2782 = vmatprep.subr.mxu0 0.0
      %2783 = vmatpush1.msra.mxu0 0.0
      %2784 = vmatprep.subr.mxu0 0.0
      %2785 = vmatpush1.msra.mxu0 0.0
      %2786 = vmatprep.subr.mxu0 0.0
      %2787 = vmatpush1.msra.mxu0 0.0
      %2788 = vmatprep.subr.mxu0 0.0
      %2789 = vmatpush1.msra.mxu0 0.0
      %2790 = vmatprep.subr.mxu0 0.0
      %2791 = vmatpush1.msra.mxu0 0.0
      %2792 = vmatprep.subr.mxu0 0.0
      %2793 = vmatpush1.msra.mxu0 0.0
      %2794 = vmatprep.subr.mxu0 0.0
      %2795 = vmatpush1.msra.mxu0 0.0
      %2796 = vmatprep.subr.mxu0 0.0
      %2797 = vmatpush1.msra.mxu0 0.0
      %2798 = vmatprep.subr.mxu0 0.0
      %2799 = vmatpush1.msra.mxu0 0.0
      %2800 = vmatprep.subr.mxu0 0.0
      %2801 = vmatpush1.msra.mxu0 0.0
      %2802 = vmatprep.mubr.f32.mxu0 0.0
      %2803 = vmatmul.mubr.f32.gmra.mrb[0].mxu0 %v2734
      %v2804 = vpop.f32.mrb[0].mxu0
      %v2805 = vadd.f32 0.0, %v2804
      %v2806 = vpop.f32.mrb[0].mxu0
      %2807 = vdwg.mxu0
      %2808 = vrot.lane.b32.xlu0 %v1383, 80
      %v2809 = vpop.permute.xlu0 %2808
      %2810 = vrot.lane.b32.xlu0 %v1383, 16
      %v2811 = vpop.permute.xlu0 %2810
      %v2812 = vsel %vm1386, %v2809, 0
      %v2814 = vsel %vm1386, %v2811, 0
      %2816 = vmatprep.subr.mxu0 0.0
      %2817 = vmatpush1.xpose.msra.mxu0 %v2814
      %2818 = vmatprep.subr.mxu0 0.0
      %2819 = vmatpush1.xpose.msra.mxu0 0.0
      %2820 = vmatprep.subr.mxu0 0.0
      %2821 = vmatpush1.xpose.msra.mxu0 0.0
      %2822 = vmatprep.subr.mxu0 0.0
      %2823 = vmatpush1.xpose.msra.mxu0 0.0
      %2824 = vmatprep.subr.mxu0 0.0
      %2825 = vmatpush1.xpose.msra.mxu0 0.0
      %2826 = vmatprep.subr.mxu0 0.0
      %2827 = vmatpush1.xpose.msra.mxu0 0.0
      %2828 = vmatprep.subr.mxu0 0.0
      %2829 = vmatpush1.xpose.msra.mxu0 0.0
      %2830 = vmatprep.subr.mxu0 0.0
      %2831 = vmatpush1.xpose.msra.mxu0 0.0
      %2832 = vmatprep.subr.mxu0 0.0
      %2833 = vmatpush1.xpose.msra.mxu0 0.0
      %2834 = vmatprep.subr.mxu0 0.0
      %2835 = vmatpush1.xpose.msra.mxu0 0.0
      %2836 = vmatprep.subr.mxu0 0.0
      %2837 = vmatpush1.xpose.msra.mxu0 0.0
      %2838 = vmatprep.subr.mxu0 0.0
      %2839 = vmatpush1.xpose.msra.mxu0 0.0
      %2840 = vmatprep.subr.mxu0 0.0
      %2841 = vmatpush1.xpose.msra.mxu0 0.0
      %2842 = vmatprep.subr.mxu0 0.0
      %2843 = vmatpush1.xpose.msra.mxu0 0.0
      %2844 = vmatprep.subr.mxu0 0.0
      %2845 = vmatpush1.xpose.msra.mxu0 0.0
      %2846 = vmatprep.subr.mxu0 0.0
      %2847 = vmatpush1.xpose.msra.mxu0 0.0
      %2848 = vmatprep.subr.mxu0 0.0
      %2849 = vmatpush1.xpose.msra.mxu0 0.0
      %2850 = vmatprep.subr.mxu0 0.0
      %2851 = vmatpush1.xpose.msra.mxu0 0.0
      %2852 = vmatprep.subr.mxu0 0.0
      %2853 = vmatpush1.xpose.msra.mxu0 0.0
      %2854 = vmatprep.subr.mxu0 0.0
      %2855 = vmatpush1.xpose.msra.mxu0 0.0
      %2856 = vmatprep.subr.mxu0 0.0
      %2857 = vmatpush1.xpose.msra.mxu0 0.0
      %2858 = vmatprep.subr.mxu0 0.0
      %2859 = vmatpush1.xpose.msra.mxu0 0.0
      %2860 = vmatprep.subr.mxu0 0.0
      %2861 = vmatpush1.xpose.msra.mxu0 0.0
      %2862 = vmatprep.subr.mxu0 0.0
      %2863 = vmatpush1.xpose.msra.mxu0 0.0
      %2864 = vmatprep.subr.mxu0 0.0
      %2865 = vmatpush1.xpose.msra.mxu0 0.0
      %2866 = vmatprep.subr.mxu0 0.0
      %2867 = vmatpush1.xpose.msra.mxu0 0.0
      %2868 = vmatprep.subr.mxu0 0.0
      %2869 = vmatpush1.xpose.msra.mxu0 0.0
      %2870 = vmatprep.subr.mxu0 0.0
      %2871 = vmatpush1.xpose.msra.mxu0 0.0
      %2872 = vmatprep.subr.mxu0 0.0
      %2873 = vmatpush1.xpose.msra.mxu0 0.0
      %2874 = vmatprep.subr.mxu0 0.0
      %2875 = vmatpush1.xpose.msra.mxu0 0.0
      %2876 = vmatprep.subr.mxu0 0.0
      %2877 = vmatpush1.xpose.msra.mxu0 0.0
      %2878 = vmatprep.subr.mxu0 0.0
      %2879 = vmatpush1.xpose.msra.mxu0 0.0
      %2880 = vmatprep.mubr.f32.mxu0 0.0
      %2881 = vmatmul.mubr.f32.gmra.mrb[0].mxu0 %v2812
      %v2882 = vpop.f32.mrb[0].mxu0
      %v2883 = vadd.f32 0.0, %v2882
      %v2884 = vpop.f32.mrb[0].mxu0
      %2885 = vdwg.mxu0
      %2886 = vrot.lane.b32.xlu0 %v1508, 80
      %v2887 = vpop.permute.xlu0 %2886
      %2888 = vrot.lane.b32.xlu0 %v1508, 16
      %v2889 = vpop.permute.xlu0 %2888
      %v2890 = vsel %vm1386, %v2887, 0
      %v2892 = vsel %vm1386, %v2889, 0
      %2894 = vmatprep.subr.mxu0 0.0
      %2895 = vmatpush1.xpose.msra.mxu0 %v2892
      %2896 = vmatprep.subr.mxu0 0.0
      %2897 = vmatpush1.xpose.msra.mxu0 0.0
      %2898 = vmatprep.subr.mxu0 0.0
      %2899 = vmatpush1.xpose.msra.mxu0 0.0
      %2900 = vmatprep.subr.mxu0 0.0
      %2901 = vmatpush1.xpose.msra.mxu0 0.0
      %2902 = vmatprep.subr.mxu0 0.0
      %2903 = vmatpush1.xpose.msra.mxu0 0.0
      %2904 = vmatprep.subr.mxu0 0.0
      %2905 = vmatpush1.xpose.msra.mxu0 0.0
      %2906 = vmatprep.subr.mxu0 0.0
      %2907 = vmatpush1.xpose.msra.mxu0 0.0
      %2908 = vmatprep.subr.mxu0 0.0
      %2909 = vmatpush1.xpose.msra.mxu0 0.0
      %2910 = vmatprep.subr.mxu0 0.0
      %2911 = vmatpush1.xpose.msra.mxu0 0.0
      %2912 = vmatprep.subr.mxu0 0.0
      %2913 = vmatpush1.xpose.msra.mxu0 0.0
      %2914 = vmatprep.subr.mxu0 0.0
      %2915 = vmatpush1.xpose.msra.mxu0 0.0
      %2916 = vmatprep.subr.mxu0 0.0
      %2917 = vmatpush1.xpose.msra.mxu0 0.0
      %2918 = vmatprep.subr.mxu0 0.0
      %2919 = vmatpush1.xpose.msra.mxu0 0.0
      %2920 = vmatprep.subr.mxu0 0.0
      %2921 = vmatpush1.xpose.msra.mxu0 0.0
      %2922 = vmatprep.subr.mxu0 0.0
      %2923 = vmatpush1.xpose.msra.mxu0 0.0
      %2924 = vmatprep.subr.mxu0 0.0
      %2925 = vmatpush1.xpose.msra.mxu0 0.0
      %2926 = vmatprep.subr.mxu0 0.0
      %2927 = vmatpush1.xpose.msra.mxu0 0.0
      %2928 = vmatprep.subr.mxu0 0.0
      %2929 = vmatpush1.xpose.msra.mxu0 0.0
      %2930 = vmatprep.subr.mxu0 0.0
      %2931 = vmatpush1.xpose.msra.mxu0 0.0
      %2932 = vmatprep.subr.mxu0 0.0
      %2933 = vmatpush1.xpose.msra.mxu0 0.0
      %2934 = vmatprep.subr.mxu0 0.0
      %2935 = vmatpush1.xpose.msra.mxu0 0.0
      %2936 = vmatprep.subr.mxu0 0.0
      %2937 = vmatpush1.xpose.msra.mxu0 0.0
      %2938 = vmatprep.subr.mxu0 0.0
      %2939 = vmatpush1.xpose.msra.mxu0 0.0
      %2940 = vmatprep.subr.mxu0 0.0
      %2941 = vmatpush1.xpose.msra.mxu0 0.0
      %2942 = vmatprep.subr.mxu0 0.0
      %2943 = vmatpush1.xpose.msra.mxu0 0.0
      %2944 = vmatprep.subr.mxu0 0.0
      %2945 = vmatpush1.xpose.msra.mxu0 0.0
      %2946 = vmatprep.subr.mxu0 0.0
      %2947 = vmatpush1.xpose.msra.mxu0 0.0
      %2948 = vmatprep.subr.mxu0 0.0
      %2949 = vmatpush1.xpose.msra.mxu0 0.0
      %2950 = vmatprep.subr.mxu0 0.0
      %2951 = vmatpush1.xpose.msra.mxu0 0.0
      %2952 = vmatprep.subr.mxu0 0.0
      %2953 = vmatpush1.xpose.msra.mxu0 0.0
      %2954 = vmatprep.subr.mxu0 0.0
      %2955 = vmatpush1.xpose.msra.mxu0 0.0
      %2956 = vmatprep.subr.mxu0 0.0
      %2957 = vmatpush1.xpose.msra.mxu0 0.0
      %2958 = vmatprep.mubr.f32.mxu0 0.0
      %2959 = vmatmul.mubr.f32.gmra.mrb[0].mxu0 %v2890
      %v2960 = vpop.f32.mrb[0].mxu0
      %v2961 = vadd.f32 0.0, %v2960
      %v2962 = vpop.f32.mrb[0].mxu0
      %2963 = vdwg.mxu0
      %v2964 = vmul.f32 %v2883, 0.25
      %v2965 = vmul.f32 %v2961, 0.25
      %v2966 = vsel %vm1587, %v2964, -inf
      %2967 = vmax.xlane.f32.xlu0 %v2966
      %v2968 = vpop.xlane.xlu0 %2967
      %v2969 = vsel %vm1587, %v2965, -inf
      %2970 = vmax.xlane.f32.xlu0 %v2969
      %v2971 = vpop.xlane.xlu0 %2970
      %v2972 = vsub.f32 %v2964, %v2968
      %v2973 = vsub.f32 %v2965, %v2971
      %v2974 = vmul.f32 %v2972, 1.442695
      %v2975 = vpow.pop %v2974
      %v2976 = vmul.f32 %v2973, 1.442695
      %v2977 = vpow.pop %v2976
      %v2978 = vsel %vm1587, %v2975, 0.0
      %2979 = vadd.xlane.f32.xlu0 %v2978
      %v2980 = vpop.xlane.xlu0 %2979
      %v2981 = vsel %vm1587, %v2977, 0.0
      %2982 = vadd.xlane.f32.xlu0 %v2981
      %v2983 = vpop.xlane.xlu0 %2982
      %v2984 = vrcp.pop %v2980
      %v2985 = vrcp.pop %v2983
      %v2986 = vmul.f32 %v2975, %v2984
      %v2987 = vmul.f32 %v2977, %v2985
      %2988 = vrot.lane.b32.xlu0 %v1262, 80
      %v2989 = vpop.permute.xlu0 %2988
      %2990 = vrot.lane.b32.xlu0 %v1276, 80
      %v2991 = vpop.permute.xlu0 %2990
      %2992 = vrot.lane.b32.xlu0 %v1284, 80
      %v2993 = vpop.permute.xlu0 %2992
      %2994 = vrot.lane.b32.xlu0 %v1286, 80
      %v2995 = vpop.permute.xlu0 %2994
      %2996 = vrot.lane.b32.xlu0 %v1269, 80
      %v2997 = vpop.permute.xlu0 %2996
      %2998 = vrot.lane.b32.xlu0 %v1283, 80
      %v2999 = vpop.permute.xlu0 %2998
      %3000 = vrot.lane.b32.xlu0 %v1285, 80
      %v3001 = vpop.permute.xlu0 %3000
      %v3002 = vrot.slane %v2989, 1
      %v3003 = vrot.slane %v2991, 1
      %v3004 = vrot.slane %v2993, 1
      %v3005 = vrot.slane %v2995, 1
      %v3006 = vrot.slane %v2997, 1
      %v3007 = vrot.slane %v2999, 1
      %v3008 = vrot.slane %v3001, 1
      %v3009 = vcombine.low %v3002, %v3003
      %v3010 = vcombine.low %v3004, %v3005
      %v3011 = vcombine.low %v3006, %v3007
      %v3013 = vunpack.c.l.s4 1966171168
      %v3014 = vunpack.c.0.s8 %v3013
      %v3015 = vlaneseq
      %v3016 = vshrl.u32 %v3015, 7
      %v3017 = vsub.s32 %v3014, %v3016
      %v3018 = vrot.slane %v3009, %v3017
      %v3020 = vunpack.c.l.s4 1966171168
      %v3021 = vunpack.c.0.s8 %v3020
      %v3022 = vlaneseq
      %v3023 = vshrl.u32 %v3022, 7
      %v3024 = vsub.s32 %v3021, %v3023
      %v3025 = vrot.slane %v3010, %v3024
      %v3027 = vunpack.c.l.s4 1966171168
      %v3028 = vunpack.c.0.s8 %v3027
      %v3029 = vlaneseq
      %v3030 = vshrl.u32 %v3029, 7
      %v3031 = vsub.s32 %v3028, %v3030
      %v3032 = vrot.slane %v3011, %v3031
      %v3034 = vunpack.c.l.s4 1966171168
      %v3035 = vunpack.c.0.s8 %v3034
      %v3036 = vlaneseq
      %v3037 = vshrl.u32 %v3036, 7
      %v3038 = vsub.s32 %v3035, %v3037
      %v3039 = vrot.slane %v3008, %v3038
      %v3040 = vcombine.low %v3018, %v3025
      %v3041 = vcombine.low %v3032, %v3039
      %v3043 = vunpack.c.l.s4 1966171168
      %v3044 = vunpack.c.0.s8 %v3043
      %v3045 = vlaneseq
      %v3046 = vshrl.u32 %v3045, 7
      %v3047 = vsub.s32 %v3044, %v3046
      %v3048 = vrot.slane %v3040, %v3047
      %v3050 = vunpack.c.l.s4 1966171168
      %v3051 = vunpack.c.0.s8 %v3050
      %v3052 = vlaneseq
      %v3053 = vshrl.u32 %v3052, 7
      %v3054 = vsub.s32 %v3051, %v3053
      %v3055 = vrot.slane %v3041, %v3054
      %v3056 = vcombine.low %v3048, %v3055
      %v3058 = vsel %vm1665, %v2986, 0
      %v3060 = vsel %vm1669, %v3056, 0
      %3062 = vmatprep.subr.mxu0 0.0
      %3063 = vmatpush1.msra.mxu0 %v3060
      %3064 = vmatprep.subr.mxu0 0.0
      %3065 = vmatpush1.msra.mxu0 0.0
      %3066 = vmatprep.subr.mxu0 0.0
      %3067 = vmatpush1.msra.mxu0 0.0
      %3068 = vmatprep.subr.mxu0 0.0
      %3069 = vmatpush1.msra.mxu0 0.0
      %3070 = vmatprep.subr.mxu0 0.0
      %3071 = vmatpush1.msra.mxu0 0.0
      %3072 = vmatprep.subr.mxu0 0.0
      %3073 = vmatpush1.msra.mxu0 0.0
      %3074 = vmatprep.subr.mxu0 0.0
      %3075 = vmatpush1.msra.mxu0 0.0
      %3076 = vmatprep.subr.mxu0 0.0
      %3077 = vmatpush1.msra.mxu0 0.0
      %3078 = vmatprep.subr.mxu0 0.0
      %3079 = vmatpush1.msra.mxu0 0.0
      %3080 = vmatprep.subr.mxu0 0.0
      %3081 = vmatpush1.msra.mxu0 0.0
      %3082 = vmatprep.subr.mxu0 0.0
      %3083 = vmatpush1.msra.mxu0 0.0
      %3084 = vmatprep.subr.mxu0 0.0
      %3085 = vmatpush1.msra.mxu0 0.0
      %3086 = vmatprep.subr.mxu0 0.0
      %3087 = vmatpush1.msra.mxu0 0.0
      %3088 = vmatprep.subr.mxu0 0.0
      %3089 = vmatpush1.msra.mxu0 0.0
      %3090 = vmatprep.subr.mxu0 0.0
      %3091 = vmatpush1.msra.mxu0 0.0
      %3092 = vmatprep.subr.mxu0 0.0
      %3093 = vmatpush1.msra.mxu0 0.0
      %3094 = vmatprep.subr.mxu0 0.0
      %3095 = vmatpush1.msra.mxu0 0.0
      %3096 = vmatprep.subr.mxu0 0.0
      %3097 = vmatpush1.msra.mxu0 0.0
      %3098 = vmatprep.subr.mxu0 0.0
      %3099 = vmatpush1.msra.mxu0 0.0
      %3100 = vmatprep.subr.mxu0 0.0
      %3101 = vmatpush1.msra.mxu0 0.0
      %3102 = vmatprep.subr.mxu0 0.0
      %3103 = vmatpush1.msra.mxu0 0.0
      %3104 = vmatprep.subr.mxu0 0.0
      %3105 = vmatpush1.msra.mxu0 0.0
      %3106 = vmatprep.subr.mxu0 0.0
      %3107 = vmatpush1.msra.mxu0 0.0
      %3108 = vmatprep.subr.mxu0 0.0
      %3109 = vmatpush1.msra.mxu0 0.0
      %3110 = vmatprep.subr.mxu0 0.0
      %3111 = vmatpush1.msra.mxu0 0.0
      %3112 = vmatprep.subr.mxu0 0.0
      %3113 = vmatpush1.msra.mxu0 0.0
      %3114 = vmatprep.subr.mxu0 0.0
      %3115 = vmatpush1.msra.mxu0 0.0
      %3116 = vmatprep.subr.mxu0 0.0
      %3117 = vmatpush1.msra.mxu0 0.0
      %3118 = vmatprep.subr.mxu0 0.0
      %3119 = vmatpush1.msra.mxu0 0.0
      %3120 = vmatprep.subr.mxu0 0.0
      %3121 = vmatpush1.msra.mxu0 0.0
      %3122 = vmatprep.subr.mxu0 0.0
      %3123 = vmatpush1.msra.mxu0 0.0
      %3124 = vmatprep.subr.mxu0 0.0
      %3125 = vmatpush1.msra.mxu0 0.0
      %3126 = vmatprep.mubr.f32.mxu0 0.0
      %3127 = vmatmul.mubr.f32.gmra.mrb[0].mxu0 %v3058
      %v3128 = vpop.f32.mrb[0].mxu0
      %v3129 = vadd.f32 0.0, %v3128
      %v3130 = vpop.f32.mrb[0].mxu0
      %3131 = vdwg.mxu0
      %3132 = vrot.lane.b32.xlu0 %v1287, 80
      %v3133 = vpop.permute.xlu0 %3132
      %3134 = vrot.lane.b32.xlu0 %v1312, 80
      %v3135 = vpop.permute.xlu0 %3134
      %3136 = vrot.lane.b32.xlu0 %v1326, 80
      %v3137 = vpop.permute.xlu0 %3136
      %3138 = vrot.lane.b32.xlu0 %v1334, 80
      %v3139 = vpop.permute.xlu0 %3138
      %3140 = vrot.lane.b32.xlu0 %v1335, 80
      %v3141 = vpop.permute.xlu0 %3140
      %3142 = vrot.lane.b32.xlu0 %v1319, 80
      %v3143 = vpop.permute.xlu0 %3142
      %3144 = vrot.lane.b32.xlu0 %v1333, 80
      %v3145 = vpop.permute.xlu0 %3144
      %v3146 = vrot.slane %v3133, 1
      %v3147 = vrot.slane %v3135, 1
      %v3148 = vrot.slane %v3137, 1
      %v3149 = vrot.slane %v3139, 1
      %v3150 = vrot.slane %v3141, 1
      %v3151 = vrot.slane %v3143, 1
      %v3152 = vrot.slane %v3145, 1
      %v3153 = vcombine.low %v3146, %v3147
      %v3154 = vcombine.low %v3148, %v3149
      %v3155 = vcombine.low %v3150, %v3151
      %v3157 = vunpack.c.l.s4 1966171168
      %v3158 = vunpack.c.0.s8 %v3157
      %v3159 = vlaneseq
      %v3160 = vshrl.u32 %v3159, 7
      %v3161 = vsub.s32 %v3158, %v3160
      %v3162 = vrot.slane %v3153, %v3161
      %v3164 = vunpack.c.l.s4 1966171168
      %v3165 = vunpack.c.0.s8 %v3164
      %v3166 = vlaneseq
      %v3167 = vshrl.u32 %v3166, 7
      %v3168 = vsub.s32 %v3165, %v3167
      %v3169 = vrot.slane %v3154, %v3168
      %v3171 = vunpack.c.l.s4 1966171168
      %v3172 = vunpack.c.0.s8 %v3171
      %v3173 = vlaneseq
      %v3174 = vshrl.u32 %v3173, 7
      %v3175 = vsub.s32 %v3172, %v3174
      %v3176 = vrot.slane %v3155, %v3175
      %v3178 = vunpack.c.l.s4 1966171168
      %v3179 = vunpack.c.0.s8 %v3178
      %v3180 = vlaneseq
      %v3181 = vshrl.u32 %v3180, 7
      %v3182 = vsub.s32 %v3179, %v3181
      %v3183 = vrot.slane %v3152, %v3182
      %v3184 = vcombine.low %v3162, %v3169
      %v3185 = vcombine.low %v3176, %v3183
      %v3187 = vunpack.c.l.s4 1966171168
      %v3188 = vunpack.c.0.s8 %v3187
      %v3189 = vlaneseq
      %v3190 = vshrl.u32 %v3189, 7
      %v3191 = vsub.s32 %v3188, %v3190
      %v3192 = vrot.slane %v3184, %v3191
      %v3194 = vunpack.c.l.s4 1966171168
      %v3195 = vunpack.c.0.s8 %v3194
      %v3196 = vlaneseq
      %v3197 = vshrl.u32 %v3196, 7
      %v3198 = vsub.s32 %v3195, %v3197
      %v3199 = vrot.slane %v3185, %v3198
      %v3200 = vcombine.low %v3192, %v3199
      %v3202 = vsel %vm1665, %v2987, 0
      %v3204 = vsel %vm1669, %v3200, 0
      %3206 = vmatprep.subr.mxu0 0.0
      %3207 = vmatpush1.msra.mxu0 %v3204
      %3208 = vmatprep.subr.mxu0 0.0
      %3209 = vmatpush1.msra.mxu0 0.0
      %3210 = vmatprep.subr.mxu0 0.0
      %3211 = vmatpush1.msra.mxu0 0.0
      %3212 = vmatprep.subr.mxu0 0.0
      %3213 = vmatpush1.msra.mxu0 0.0
      %3214 = vmatprep.subr.mxu0 0.0
      %3215 = vmatpush1.msra.mxu0 0.0
      %3216 = vmatprep.subr.mxu0 0.0
      %3217 = vmatpush1.msra.mxu0 0.0
      %3218 = vmatprep.subr.mxu0 0.0
      %3219 = vmatpush1.msra.mxu0 0.0
      %3220 = vmatprep.subr.mxu0 0.0
      %3221 = vmatpush1.msra.mxu0 0.0
      %3222 = vmatprep.subr.mxu0 0.0
      %3223 = vmatpush1.msra.mxu0 0.0
      %3224 = vmatprep.subr.mxu0 0.0
      %3225 = vmatpush1.msra.mxu0 0.0
      %3226 = vmatprep.subr.mxu0 0.0
      %3227 = vmatpush1.msra.mxu0 0.0
      %3228 = vmatprep.subr.mxu0 0.0
      %3229 = vmatpush1.msra.mxu0 0.0
      %3230 = vmatprep.subr.mxu0 0.0
      %3231 = vmatpush1.msra.mxu0 0.0
      %3232 = vmatprep.subr.mxu0 0.0
      %3233 = vmatpush1.msra.mxu0 0.0
      %3234 = vmatprep.subr.mxu0 0.0
      %3235 = vmatpush1.msra.mxu0 0.0
      %3236 = vmatprep.subr.mxu0 0.0
      %3237 = vmatpush1.msra.mxu0 0.0
      %3238 = vmatprep.subr.mxu0 0.0
      %3239 = vmatpush1.msra.mxu0 0.0
      %3240 = vmatprep.subr.mxu0 0.0
      %3241 = vmatpush1.msra.mxu0 0.0
      %3242 = vmatprep.subr.mxu0 0.0
      %3243 = vmatpush1.msra.mxu0 0.0
      %3244 = vmatprep.subr.mxu0 0.0
      %3245 = vmatpush1.msra.mxu0 0.0
      %3246 = vmatprep.subr.mxu0 0.0
      %3247 = vmatpush1.msra.mxu0 0.0
      %3248 = vmatprep.subr.mxu0 0.0
      %3249 = vmatpush1.msra.mxu0 0.0
      %3250 = vmatprep.subr.mxu0 0.0
      %3251 = vmatpush1.msra.mxu0 0.0
      %3252 = vmatprep.subr.mxu0 0.0
      %3253 = vmatpush1.msra.mxu0 0.0
      %3254 = vmatprep.subr.mxu0 0.0
      %3255 = vmatpush1.msra.mxu0 0.0
      %3256 = vmatprep.subr.mxu0 0.0
      %3257 = vmatpush1.msra.mxu0 0.0
      %3258 = vmatprep.subr.mxu0 0.0
      %3259 = vmatpush1.msra.mxu0 0.0
      %3260 = vmatprep.subr.mxu0 0.0
      %3261 = vmatpush1.msra.mxu0 0.0
      %3262 = vmatprep.subr.mxu0 0.0
      %3263 = vmatpush1.msra.mxu0 0.0
      %3264 = vmatprep.subr.mxu0 0.0
      %3265 = vmatpush1.msra.mxu0 0.0
      %3266 = vmatprep.subr.mxu0 0.0
      %3267 = vmatpush1.msra.mxu0 0.0
      %3268 = vmatprep.subr.mxu0 0.0
      %3269 = vmatpush1.msra.mxu0 0.0
      %3270 = vmatprep.mubr.f32.mxu0 0.0
      %3271 = vmatmul.mubr.f32.gmra.mrb[0].mxu0 %v3202
      %v3272 = vpop.f32.mrb[0].mxu0
      %v3273 = vadd.f32 0.0, %v3272
      %v3274 = vpop.f32.mrb[0].mxu0
      %3275 = vdwg.mxu0
      %3278 = vrot.lane.b32.xlu0 %v2193, 16
      %v3279 = vpop.permute.xlu0 %3278
      %3280 = vrot.lane.b32.xlu0 %v2337, 16
      %v3281 = vpop.permute.xlu0 %3280
      %3286 = vrot.lane.b32.xlu0 %v2661, 32
      %v3287 = vpop.permute.xlu0 %3286
      %3288 = vrot.lane.b32.xlu0 %v2805, 32
      %v3289 = vpop.permute.xlu0 %3288
      %3294 = vrot.lane.b32.xlu0 %v3129, 48
      %v3295 = vpop.permute.xlu0 %3294
      %3296 = vrot.lane.b32.xlu0 %v3273, 48
      %v3297 = vpop.permute.xlu0 %3296
      %v3300 = vsel %vm1386, %v1739, %v3279
      %v3301 = vsel %vm1386, %v1869, %v3281
      %vm3302 = vcmask 261120
      %v3303 = vsel %vm3302, %v3300, %v3287
      %v3304 = vsel %vm3302, %v3301, %v3289
      %vm3305 = vcmask 392192
      %v3306 = vsel %vm3305, %v3303, %v3295
      %v3307 = vsel %vm3305, %v3304, %v3297
      %v3310 = vcombine.high %v3306, %v3306
      %v3312 = vunpack.c.l.s4 1966171168
      %v3313 = vunpack.c.0.s8 %v3312
      %v3314 = vlaneseq
      %v3315 = vshrl.u32 %v3314, 7
      %v3316 = vsub.s32 %v3313, %v3315
      %v3317 = vrot.slane %v3306, %v3316
      %v3319 = vunpack.c.l.s4 1966171168
      %v3320 = vunpack.c.0.s8 %v3319
      %v3321 = vlaneseq
      %v3322 = vshrl.u32 %v3321, 7
      %v3323 = vsub.s32 %v3320, %v3322
      %v3324 = vrot.slane %v3310, %v3323
      %v3325 = vcombine.high %v3317, %v3317
      %v3326 = vcombine.high %v3324, %v3324
      %v3328 = vunpack.c.l.s4 1966171168
      %v3329 = vunpack.c.0.s8 %v3328
      %v3330 = vlaneseq
      %v3331 = vshrl.u32 %v3330, 7
      %v3332 = vsub.s32 %v3329, %v3331
      %v3333 = vrot.slane %v3317, %v3332
      %v3335 = vunpack.c.l.s4 1966171168
      %v3336 = vunpack.c.0.s8 %v3335
      %v3337 = vlaneseq
      %v3338 = vshrl.u32 %v3337, 7
      %v3339 = vsub.s32 %v3336, %v3338
      %v3340 = vrot.slane %v3324, %v3339
      %v3342 = vunpack.c.l.s4 1966171168
      %v3343 = vunpack.c.0.s8 %v3342
      %v3344 = vlaneseq
      %v3345 = vshrl.u32 %v3344, 7
      %v3346 = vsub.s32 %v3343, %v3345
      %v3347 = vrot.slane %v3325, %v3346
      %v3349 = vunpack.c.l.s4 1966171168
      %v3350 = vunpack.c.0.s8 %v3349
      %v3351 = vlaneseq
      %v3352 = vshrl.u32 %v3351, 7
      %v3353 = vsub.s32 %v3350, %v3352
      %v3354 = vrot.slane %v3326, %v3353
      %v3355 = vcombine.high %v3333, %v3333
      %v3356 = vcombine.high %v3340, %v3340
      %v3357 = vcombine.high %v3347, %v3347
      %v3358 = vcombine.high %v3307, %v3307
      %v3360 = vunpack.c.l.s4 1966171168
      %v3361 = vunpack.c.0.s8 %v3360
      %v3362 = vlaneseq
      %v3363 = vshrl.u32 %v3362, 7
      %v3364 = vsub.s32 %v3361, %v3363
      %v3365 = vrot.slane %v3307, %v3364
      %v3367 = vunpack.c.l.s4 1966171168
      %v3368 = vunpack.c.0.s8 %v3367
      %v3369 = vlaneseq
      %v3370 = vshrl.u32 %v3369, 7
      %v3371 = vsub.s32 %v3368, %v3370
      %v3372 = vrot.slane %v3358, %v3371
      %v3373 = vcombine.high %v3365, %v3365
      %v3374 = vcombine.high %v3372, %v3372
      %v3376 = vunpack.c.l.s4 1966171168
      %v3377 = vunpack.c.0.s8 %v3376
      %v3378 = vlaneseq
      %v3379 = vshrl.u32 %v3378, 7
      %v3380 = vsub.s32 %v3377, %v3379
      %v3381 = vrot.slane %v3365, %v3380
      %v3383 = vunpack.c.l.s4 1966171168
      %v3384 = vunpack.c.0.s8 %v3383
      %v3385 = vlaneseq
      %v3386 = vshrl.u32 %v3385, 7
      %v3387 = vsub.s32 %v3384, %v3386
      %v3388 = vrot.slane %v3372, %v3387
      %v3390 = vunpack.c.l.s4 1966171168
      %v3391 = vunpack.c.0.s8 %v3390
      %v3392 = vlaneseq
      %v3393 = vshrl.u32 %v3392, 7
      %v3394 = vsub.s32 %v3391, %v3393
      %v3395 = vrot.slane %v3373, %v3394
      %v3397 = vunpack.c.l.s4 1966171168
      %v3398 = vunpack.c.0.s8 %v3397
      %v3399 = vlaneseq
      %v3400 = vshrl.u32 %v3399, 7
      %v3401 = vsub.s32 %v3398, %v3400
      %v3402 = vrot.slane %v3374, %v3401
      %v3403 = vcombine.high %v3381, %v3381
      %v3404 = vcombine.high %v3388, %v3388
      %v3405 = vcombine.high %v3395, %v3395
      %v3406 = vcombine.low %v3333, %v3347
      %v3407 = vcombine.low %v3355, %v3357
      %v3408 = vcombine.low %v3340, %v3354
      %v3409 = vcombine.low %v3356, %v3381
      %v3411 = vunpack.c.l.s4 1966171168
      %v3412 = vunpack.c.0.s8 %v3411
      %v3413 = vlaneseq
      %v3414 = vshrl.u32 %v3413, 7
      %v3415 = vsub.s32 %v3412, %v3414
      %v3416 = vrot.slane %v3406, %v3415
      %v3418 = vunpack.c.l.s4 1966171168
      %v3419 = vunpack.c.0.s8 %v3418
      %v3420 = vlaneseq
      %v3421 = vshrl.u32 %v3420, 7
      %v3422 = vsub.s32 %v3419, %v3421
      %v3423 = vrot.slane %v3407, %v3422
      %v3425 = vunpack.c.l.s4 1966171168
      %v3426 = vunpack.c.0.s8 %v3425
      %v3427 = vlaneseq
      %v3428 = vshrl.u32 %v3427, 7
      %v3429 = vsub.s32 %v3426, %v3428
      %v3430 = vrot.slane %v3408, %v3429
      %v3432 = vunpack.c.l.s4 1966171168
      %v3433 = vunpack.c.0.s8 %v3432
      %v3434 = vlaneseq
      %v3435 = vshrl.u32 %v3434, 7
      %v3436 = vsub.s32 %v3433, %v3435
      %v3437 = vrot.slane %v3409, %v3436
      %v3438 = vcombine.low %v3416, %v3423
      %v3439 = vcombine.low %v3430, %v3437
      %v3441 = vunpack.c.l.s4 1966171168
      %v3442 = vunpack.c.0.s8 %v3441
      %v3443 = vlaneseq
      %v3444 = vshrl.u32 %v3443, 7
      %v3445 = vsub.s32 %v3442, %v3444
      %v3446 = vrot.slane %v3438, %v3445
      %v3448 = vunpack.c.l.s4 1966171168
      %v3449 = vunpack.c.0.s8 %v3448
      %v3450 = vlaneseq
      %v3451 = vshrl.u32 %v3450, 7
      %v3452 = vsub.s32 %v3449, %v3451
      %v3453 = vrot.slane %v3439, %v3452
      %v3454 = vcombine.low %v3446, %v3453
      %v3455 = vcombine.low %v3395, %v3403
      %v3456 = vcombine.low %v3405, %v3388
      %v3457 = vcombine.low %v3402, %v3404
      %v3459 = vunpack.c.l.s4 1966171168
      %v3460 = vunpack.c.0.s8 %v3459
      %v3461 = vlaneseq
      %v3462 = vshrl.u32 %v3461, 7
      %v3463 = vsub.s32 %v3460, %v3462
      %v3464 = vrot.slane %v3455, %v3463
      %v3466 = vunpack.c.l.s4 1966171168
      %v3467 = vunpack.c.0.s8 %v3466
      %v3468 = vlaneseq
      %v3469 = vshrl.u32 %v3468, 7
      %v3470 = vsub.s32 %v3467, %v3469
      %v3471 = vrot.slane %v3456, %v3470
      %v3473 = vunpack.c.l.s4 1966171168
      %v3474 = vunpack.c.0.s8 %v3473
      %v3475 = vlaneseq
      %v3476 = vshrl.u32 %v3475, 7
      %v3477 = vsub.s32 %v3474, %v3476
      %v3478 = vrot.slane %v3457, %v3477
      %v3479 = vcombine.low %v3464, %v3471
      %v3481 = vunpack.c.l.s4 1966171168
      %v3482 = vunpack.c.0.s8 %v3481
      %v3483 = vlaneseq
      %v3484 = vshrl.u32 %v3483, 7
      %v3485 = vsub.s32 %v3482, %v3484
      %v3486 = vrot.slane %v3479, %v3485
      %v3488 = vunpack.c.l.s4 1966171168
      %v3489 = vunpack.c.0.s8 %v3488
      %v3490 = vlaneseq
      %v3491 = vshrl.u32 %v3490, 7
      %v3492 = vsub.s32 %v3489, %v3491
      %v3493 = vrot.slane %v3478, %v3492
      %v3494 = vcombine.low %v3486, %v3493
      %v3497 = vpack.c.bf16 %v3494, %v3454
      %v3499 = vlaneseq
      %v3500 = vshrl.u32 %v3499, 7
      %v3501 = vsub.s32 0, %v3500
      %v3502 = vrot.slane %v857, %v3501
      %v3512 = vunpack.c.l.b16 %v849
      %v3513 = vunpack.c.l.b16 %v850
      %v3514 = vunpack.c.l.b16 %v851
      %v3515 = vunpack.c.l.b16 %v852
      %v3516 = vunpack.c.l.b16 %v853
      %v3517 = vunpack.c.l.b16 %v854
      %v3518 = vunpack.c.l.b16 %v855
      %v3519 = vunpack.c.l.b16 %v856
      %v3520 = vpack.c.b16 %v3513, %v3512
      %v3521 = vpack.c.b16 %v3515, %v3514
      %v3522 = vpack.c.b16 %v3517, %v3516
      %v3523 = vpack.c.b16 %v3519, %v3518
      %v3529 = vsel %vm1187, %v3497, 0
      %3531 = vmatprep.subr.bf16.mxu0 0
      %3532 = vmatpush1.bf16.msra.mxu0 %v3520
      %3533 = vmatprep.subr.bf16.mxu0 0
      %3534 = vmatpush1.bf16.msra.mxu0 %v3521
      %3535 = vmatprep.subr.bf16.mxu0 0
      %3536 = vmatpush1.bf16.msra.mxu0 %v3522
      %3537 = vmatprep.subr.bf16.mxu0 0
      %3538 = vmatpush1.bf16.msra.mxu0 %v3523
      %3539 = vmatprep.subr.bf16.mxu0 0
      %3540 = vmatpush1.bf16.msra.mxu0 0
      %3541 = vmatprep.subr.bf16.mxu0 0
      %3542 = vmatpush1.bf16.msra.mxu0 0
      %3543 = vmatprep.subr.bf16.mxu0 0
      %3544 = vmatpush1.bf16.msra.mxu0 0
      %3545 = vmatprep.subr.bf16.mxu0 0
      %3546 = vmatpush1.bf16.msra.mxu0 0
      %3547 = vmatprep.subr.bf16.mxu0 0
      %3548 = vmatpush1.bf16.msra.mxu0 0
      %3549 = vmatprep.subr.bf16.mxu0 0
      %3550 = vmatpush1.bf16.msra.mxu0 0
      %3551 = vmatprep.subr.bf16.mxu0 0
      %3552 = vmatpush1.bf16.msra.mxu0 0
      %3553 = vmatprep.subr.bf16.mxu0 0
      %3554 = vmatpush1.bf16.msra.mxu0 0
      %3555 = vmatprep.subr.bf16.mxu0 0
      %3556 = vmatpush1.bf16.msra.mxu0 0
      %3557 = vmatprep.subr.bf16.mxu0 0
      %3558 = vmatpush1.bf16.msra.mxu0 0
      %3559 = vmatprep.subr.bf16.mxu0 0
      %3560 = vmatpush1.bf16.msra.mxu0 0
      %3561 = vmatprep.subr.bf16.mxu0 0
      %3562 = vmatpush1.bf16.msra.mxu0 0
      %3563 = vmatprep.mubr.bf16.mxu0 0
      %3564 = vmatmul.mubr.bf16.gmra.mrb[0].mxu0 %v3529
      %v3565 = vpop.f32.mrb[0].mxu0
      %v3566 = vadd.f32 %v3502, %v3565
      %v3567 = vpop.f32.mrb[0].mxu0
      %v3568 = vpop.f32.mrb[0].mxu0
      %v3569 = vadd.f32 %v3502, %v3568
      %v3570 = vpop.f32.mrb[0].mxu0
      %3571 = vdwg.mxu0
      %v3574 = vcombine.high %v3566, %v3566
      %v3576 = vunpack.c.l.s4 1966171168
      %v3577 = vunpack.c.0.s8 %v3576
      %v3578 = vlaneseq
      %v3579 = vshrl.u32 %v3578, 7
      %v3580 = vsub.s32 %v3577, %v3579
      %v3581 = vrot.slane %v3566, %v3580
      %v3583 = vunpack.c.l.s4 1966171168
      %v3584 = vunpack.c.0.s8 %v3583
      %v3585 = vlaneseq
      %v3586 = vshrl.u32 %v3585, 7
      %v3587 = vsub.s32 %v3584, %v3586
      %v3588 = vrot.slane %v3574, %v3587
      %v3589 = vcombine.high %v3581, %v3581
      %v3590 = vcombine.high %v3588, %v3588
      %v3592 = vunpack.c.l.s4 1966171168
      %v3593 = vunpack.c.0.s8 %v3592
      %v3594 = vlaneseq
      %v3595 = vshrl.u32 %v3594, 7
      %v3596 = vsub.s32 %v3593, %v3595
      %v3597 = vrot.slane %v3581, %v3596
      %v3599 = vunpack.c.l.s4 1966171168
      %v3600 = vunpack.c.0.s8 %v3599
      %v3601 = vlaneseq
      %v3602 = vshrl.u32 %v3601, 7
      %v3603 = vsub.s32 %v3600, %v3602
      %v3604 = vrot.slane %v3588, %v3603
      %v3606 = vunpack.c.l.s4 1966171168
      %v3607 = vunpack.c.0.s8 %v3606
      %v3608 = vlaneseq
      %v3609 = vshrl.u32 %v3608, 7
      %v3610 = vsub.s32 %v3607, %v3609
      %v3611 = vrot.slane %v3589, %v3610
      %v3613 = vunpack.c.l.s4 1966171168
      %v3614 = vunpack.c.0.s8 %v3613
      %v3615 = vlaneseq
      %v3616 = vshrl.u32 %v3615, 7
      %v3617 = vsub.s32 %v3614, %v3616
      %v3618 = vrot.slane %v3590, %v3617
      %v3619 = vcombine.high %v3597, %v3597
      %v3620 = vcombine.high %v3604, %v3604
      %v3621 = vcombine.high %v3611, %v3611
      %v3622 = vcombine.high %v3618, %v3618
      %v3623 = vcombine.high %v3569, %v3569
      %v3625 = vunpack.c.l.s4 1966171168
      %v3626 = vunpack.c.0.s8 %v3625
      %v3627 = vlaneseq
      %v3628 = vshrl.u32 %v3627, 7
      %v3629 = vsub.s32 %v3626, %v3628
      %v3630 = vrot.slane %v3569, %v3629
      %v3632 = vunpack.c.l.s4 1966171168
      %v3633 = vunpack.c.0.s8 %v3632
      %v3634 = vlaneseq
      %v3635 = vshrl.u32 %v3634, 7
      %v3636 = vsub.s32 %v3633, %v3635
      %v3637 = vrot.slane %v3623, %v3636
      %v3638 = vcombine.high %v3630, %v3630
      %v3639 = vcombine.high %v3637, %v3637
      %v3641 = vunpack.c.l.s4 1966171168
      %v3642 = vunpack.c.0.s8 %v3641
      %v3643 = vlaneseq
      %v3644 = vshrl.u32 %v3643, 7
      %v3645 = vsub.s32 %v3642, %v3644
      %v3646 = vrot.slane %v3630, %v3645
      %v3648 = vunpack.c.l.s4 1966171168
      %v3649 = vunpack.c.0.s8 %v3648
      %v3650 = vlaneseq
      %v3651 = vshrl.u32 %v3650, 7
      %v3652 = vsub.s32 %v3649, %v3651
      %v3653 = vrot.slane %v3637, %v3652
      %v3655 = vunpack.c.l.s4 1966171168
      %v3656 = vunpack.c.0.s8 %v3655
      %v3657 = vlaneseq
      %v3658 = vshrl.u32 %v3657, 7
      %v3659 = vsub.s32 %v3656, %v3658
      %v3660 = vrot.slane %v3638, %v3659
      %v3662 = vunpack.c.l.s4 1966171168
      %v3663 = vunpack.c.0.s8 %v3662
      %v3664 = vlaneseq
      %v3665 = vshrl.u32 %v3664, 7
      %v3666 = vsub.s32 %v3663, %v3665
      %v3667 = vrot.slane %v3639, %v3666
      %v3668 = vcombine.high %v3646, %v3646
      %v3669 = vcombine.high %v3660, %v3660
      %v3670 = vcombine.low %v3597, %v3611
      %v3671 = vcombine.low %v3619, %v3621
      %v3672 = vcombine.low %v3604, %v3618
      %v3674 = vunpack.c.l.s4 1966171168
      %v3675 = vunpack.c.0.s8 %v3674
      %v3676 = vlaneseq
      %v3677 = vshrl.u32 %v3676, 7
      %v3678 = vsub.s32 %v3675, %v3677
      %v3679 = vrot.slane %v3670, %v3678
      %v3681 = vunpack.c.l.s4 1966171168
      %v3682 = vunpack.c.0.s8 %v3681
      %v3683 = vlaneseq
      %v3684 = vshrl.u32 %v3683, 7
      %v3685 = vsub.s32 %v3682, %v3684
      %v3686 = vrot.slane %v3671, %v3685
      %v3688 = vunpack.c.l.s4 1966171168
      %v3689 = vunpack.c.0.s8 %v3688
      %v3690 = vlaneseq
      %v3691 = vshrl.u32 %v3690, 7
      %v3692 = vsub.s32 %v3689, %v3691
      %v3693 = vrot.slane %v3672, %v3692
      %v3695 = vunpack.c.l.s4 1966171168
      %v3696 = vunpack.c.0.s8 %v3695
      %v3697 = vlaneseq
      %v3698 = vshrl.u32 %v3697, 7
      %v3699 = vsub.s32 %v3696, %v3698
      %v3700 = vrot.slane %v3620, %v3699
      %v3701 = vcombine.low %v3679, %v3686
      %v3702 = vcombine.low %v3693, %v3700
      %v3704 = vunpack.c.l.s4 1966171168
      %v3705 = vunpack.c.0.s8 %v3704
      %v3706 = vlaneseq
      %v3707 = vshrl.u32 %v3706, 7
      %v3708 = vsub.s32 %v3705, %v3707
      %v3709 = vrot.slane %v3701, %v3708
      %v3711 = vunpack.c.l.s4 1966171168
      %v3712 = vunpack.c.0.s8 %v3711
      %v3713 = vlaneseq
      %v3714 = vshrl.u32 %v3713, 7
      %v3715 = vsub.s32 %v3712, %v3714
      %v3716 = vrot.slane %v3702, %v3715
      %v3717 = vcombine.low %v3709, %v3716
      %v3718 = vcombine.low %v3622, %v3646
      %v3719 = vcombine.low %v3660, %v3668
      %v3720 = vcombine.low %v3669, %v3653
      %v3722 = vunpack.c.l.s4 1966171168
      %v3723 = vunpack.c.0.s8 %v3722
      %v3724 = vlaneseq
      %v3725 = vshrl.u32 %v3724, 7
      %v3726 = vsub.s32 %v3723, %v3725
      %v3727 = vrot.slane %v3718, %v3726
      %v3729 = vunpack.c.l.s4 1966171168
      %v3730 = vunpack.c.0.s8 %v3729
      %v3731 = vlaneseq
      %v3732 = vshrl.u32 %v3731, 7
      %v3733 = vsub.s32 %v3730, %v3732
      %v3734 = vrot.slane %v3719, %v3733
      %v3736 = vunpack.c.l.s4 1966171168
      %v3737 = vunpack.c.0.s8 %v3736
      %v3738 = vlaneseq
      %v3739 = vshrl.u32 %v3738, 7
      %v3740 = vsub.s32 %v3737, %v3739
      %v3741 = vrot.slane %v3720, %v3740
      %v3743 = vunpack.c.l.s4 1966171168
      %v3744 = vunpack.c.0.s8 %v3743
      %v3745 = vlaneseq
      %v3746 = vshrl.u32 %v3745, 7
      %v3747 = vsub.s32 %v3744, %v3746
      %v3748 = vrot.slane %v3667, %v3747
      %v3749 = vcombine.low %v3727, %v3734
      %v3750 = vcombine.low %v3741, %v3748
      %v3752 = vunpack.c.l.s4 1966171168
      %v3753 = vunpack.c.0.s8 %v3752
      %v3754 = vlaneseq
      %v3755 = vshrl.u32 %v3754, 7
      %v3756 = vsub.s32 %v3753, %v3755
      %v3757 = vrot.slane %v3749, %v3756
      %v3759 = vunpack.c.l.s4 1966171168
      %v3760 = vunpack.c.0.s8 %v3759
      %v3761 = vlaneseq
      %v3762 = vshrl.u32 %v3761, 7
      %v3763 = vsub.s32 %v3760, %v3762
      %v3764 = vrot.slane %v3750, %v3763
      %v3765 = vcombine.low %v3757, %v3764
      %v3768 = vadd.f32 %v836, %v3717
      %v3769 = vadd.f32 %v837, %v3765
      %v3770 = vsel %vm902, %v3768, 0.0
      %3771 = vadd.xlane.f32.xlu0 %v3770
      %v3772 = vpop.xlane.xlu0 %3771
      %v3773 = vsel %vm902, %v3769, 0.0
      %3774 = vadd.xlane.f32.xlu0 %v3773
      %v3775 = vpop.xlane.xlu0 %3774
      %v3776 = vmul.f32 %v3772, %v909
      %v3777 = vmul.f32 %v3775, %v909
      %v3778 = vsub.f32 %v3768, %v3776
      %v3779 = vsub.f32 %v3769, %v3777
      %v3780 = vmul.f32 %v3778, %v3778
      %v3781 = vmul.f32 %v3779, %v3779
      %v3782 = vsel %vm902, %v3780, 0.0
      %3783 = vadd.xlane.f32.xlu0 %v3782
      %v3784 = vpop.xlane.xlu0 %3783
      %v3785 = vsel %vm902, %v3781, 0.0
      %3786 = vadd.xlane.f32.xlu0 %v3785
      %v3787 = vpop.xlane.xlu0 %3786
      %v3788 = vmul.f32 %v3784, %v909
      %v3789 = vmul.f32 %v3787, %v909
      %v3790 = vadd.f32 %v3788, 1e-05
      %v3791 = vadd.f32 %v3789, 1e-05
      %v3792 = vrsqrt.pop %v3790
      %v3793 = vrsqrt.pop %v3791
      %v3794 = vmul.f32 %v3778, %v3792
      %v3795 = vmul.f32 %v3779, %v3793
      %v3797 = vlaneseq
      %v3798 = vshrl.u32 %v3797, 7
      %v3799 = vsub.s32 0, %v3798
      %v3800 = vrot.slane %v858, %v3799
      %v3802 = vmul.f32 %v3794, %v3800
      %v3803 = vmul.f32 %v3795, %v3800
      %v3805 = vlaneseq
      %v3806 = vshrl.u32 %v3805, 7
      %v3807 = vsub.s32 0, %v3806
      %v3808 = vrot.slane %v859, %v3807
      %v3810 = vadd.f32 %v3802, %v3808
      %v3811 = vadd.f32 %v3803, %v3808
      %v3814 = vcombine.high %v3810, %v3810
      %v3816 = vunpack.c.l.s4 1966171168
      %v3817 = vunpack.c.0.s8 %v3816
      %v3818 = vlaneseq
      %v3819 = vshrl.u32 %v3818, 7
      %v3820 = vsub.s32 %v3817, %v3819
      %v3821 = vrot.slane %v3810, %v3820
      %v3823 = vunpack.c.l.s4 1966171168
      %v3824 = vunpack.c.0.s8 %v3823
      %v3825 = vlaneseq
      %v3826 = vshrl.u32 %v3825, 7
      %v3827 = vsub.s32 %v3824, %v3826
      %v3828 = vrot.slane %v3814, %v3827
      %v3829 = vcombine.high %v3821, %v3821
      %v3830 = vcombine.high %v3828, %v3828
      %v3832 = vunpack.c.l.s4 1966171168
      %v3833 = vunpack.c.0.s8 %v3832
      %v3834 = vlaneseq
      %v3835 = vshrl.u32 %v3834, 7
      %v3836 = vsub.s32 %v3833, %v3835
      %v3837 = vrot.slane %v3821, %v3836
      %v3839 = vunpack.c.l.s4 1966171168
      %v3840 = vunpack.c.0.s8 %v3839
      %v3841 = vlaneseq
      %v3842 = vshrl.u32 %v3841, 7
      %v3843 = vsub.s32 %v3840, %v3842
      %v3844 = vrot.slane %v3828, %v3843
      %v3846 = vunpack.c.l.s4 1966171168
      %v3847 = vunpack.c.0.s8 %v3846
      %v3848 = vlaneseq
      %v3849 = vshrl.u32 %v3848, 7
      %v3850 = vsub.s32 %v3847, %v3849
      %v3851 = vrot.slane %v3829, %v3850
      %v3853 = vunpack.c.l.s4 1966171168
      %v3854 = vunpack.c.0.s8 %v3853
      %v3855 = vlaneseq
      %v3856 = vshrl.u32 %v3855, 7
      %v3857 = vsub.s32 %v3854, %v3856
      %v3858 = vrot.slane %v3830, %v3857
      %v3859 = vcombine.high %v3837, %v3837
      %v3860 = vcombine.high %v3844, %v3844
      %v3861 = vcombine.high %v3851, %v3851
      %v3862 = vcombine.high %v3811, %v3811
      %v3864 = vunpack.c.l.s4 1966171168
      %v3865 = vunpack.c.0.s8 %v3864
      %v3866 = vlaneseq
      %v3867 = vshrl.u32 %v3866, 7
      %v3868 = vsub.s32 %v3865, %v3867
      %v3869 = vrot.slane %v3811, %v3868
      %v3871 = vunpack.c.l.s4 1966171168
      %v3872 = vunpack.c.0.s8 %v3871
      %v3873 = vlaneseq
      %v3874 = vshrl.u32 %v3873, 7
      %v3875 = vsub.s32 %v3872, %v3874
      %v3876 = vrot.slane %v3862, %v3875
      %v3877 = vcombine.high %v3869, %v3869
      %v3878 = vcombine.high %v3876, %v3876
      %v3880 = vunpack.c.l.s4 1966171168
      %v3881 = vunpack.c.0.s8 %v3880
      %v3882 = vlaneseq
      %v3883 = vshrl.u32 %v3882, 7
      %v3884 = vsub.s32 %v3881, %v3883
      %v3885 = vrot.slane %v3869, %v3884
      %v3887 = vunpack.c.l.s4 1966171168
      %v3888 = vunpack.c.0.s8 %v3887
      %v3889 = vlaneseq
      %v3890 = vshrl.u32 %v3889, 7
      %v3891 = vsub.s32 %v3888, %v3890
      %v3892 = vrot.slane %v3876, %v3891
      %v3894 = vunpack.c.l.s4 1966171168
      %v3895 = vunpack.c.0.s8 %v3894
      %v3896 = vlaneseq
      %v3897 = vshrl.u32 %v3896, 7
      %v3898 = vsub.s32 %v3895, %v3897
      %v3899 = vrot.slane %v3877, %v3898
      %v3901 = vunpack.c.l.s4 1966171168
      %v3902 = vunpack.c.0.s8 %v3901
      %v3903 = vlaneseq
      %v3904 = vshrl.u32 %v3903, 7
      %v3905 = vsub.s32 %v3902, %v3904
      %v3906 = vrot.slane %v3878, %v3905
      %v3907 = vcombine.high %v3885, %v3885
      %v3908 = vcombine.high %v3892, %v3892
      %v3909 = vcombine.high %v3899, %v3899
      %v3910 = vcombine.low %v3837, %v3851
      %v3911 = vcombine.low %v3859, %v3861
      %v3912 = vcombine.low %v3844, %v3858
      %v3913 = vcombine.low %v3860, %v3885
      %v3915 = vunpack.c.l.s4 1966171168
      %v3916 = vunpack.c.0.s8 %v3915
      %v3917 = vlaneseq
      %v3918 = vshrl.u32 %v3917, 7
      %v3919 = vsub.s32 %v3916, %v3918
      %v3920 = vrot.slane %v3910, %v3919
      %v3922 = vunpack.c.l.s4 1966171168
      %v3923 = vunpack.c.0.s8 %v3922
      %v3924 = vlaneseq
      %v3925 = vshrl.u32 %v3924, 7
      %v3926 = vsub.s32 %v3923, %v3925
      %v3927 = vrot.slane %v3911, %v3926
      %v3929 = vunpack.c.l.s4 1966171168
      %v3930 = vunpack.c.0.s8 %v3929
      %v3931 = vlaneseq
      %v3932 = vshrl.u32 %v3931, 7
      %v3933 = vsub.s32 %v3930, %v3932
      %v3934 = vrot.slane %v3912, %v3933
      %v3936 = vunpack.c.l.s4 1966171168
      %v3937 = vunpack.c.0.s8 %v3936
      %v3938 = vlaneseq
      %v3939 = vshrl.u32 %v3938, 7
      %v3940 = vsub.s32 %v3937, %v3939
      %v3941 = vrot.slane %v3913, %v3940
      %v3942 = vcombine.low %v3920, %v3927
      %v3943 = vcombine.low %v3934, %v3941
      %v3945 = vunpack.c.l.s4 1966171168
      %v3946 = vunpack.c.0.s8 %v3945
      %v3947 = vlaneseq
      %v3948 = vshrl.u32 %v3947, 7
      %v3949 = vsub.s32 %v3946, %v3948
      %v3950 = vrot.slane %v3942, %v3949
      %v3952 = vunpack.c.l.s4 1966171168
      %v3953 = vunpack.c.0.s8 %v3952
      %v3954 = vlaneseq
      %v3955 = vshrl.u32 %v3954, 7
      %v3956 = vsub.s32 %v3953, %v3955
      %v3957 = vrot.slane %v3943, %v3956
      %v3958 = vcombine.low %v3950, %v3957
      %v3959 = vcombine.low %v3899, %v3907
      %v3960 = vcombine.low %v3909, %v3892
      %v3961 = vcombine.low %v3906, %v3908
      %v3963 = vunpack.c.l.s4 1966171168
      %v3964 = vunpack.c.0.s8 %v3963
      %v3965 = vlaneseq
      %v3966 = vshrl.u32 %v3965, 7
      %v3967 = vsub.s32 %v3964, %v3966
      %v3968 = vrot.slane %v3959, %v3967
      %v3970 = vunpack.c.l.s4 1966171168
      %v3971 = vunpack.c.0.s8 %v3970
      %v3972 = vlaneseq
      %v3973 = vshrl.u32 %v3972, 7
      %v3974 = vsub.s32 %v3971, %v3973
      %v3975 = vrot.slane %v3960, %v3974
      %v3977 = vunpack.c.l.s4 1966171168
      %v3978 = vunpack.c.0.s8 %v3977
      %v3979 = vlaneseq
      %v3980 = vshrl.u32 %v3979, 7
      %v3981 = vsub.s32 %v3978, %v3980
      %v3982 = vrot.slane %v3961, %v3981
      %v3983 = vcombine.low %v3968, %v3975
      %v3985 = vunpack.c.l.s4 1966171168
      %v3986 = vunpack.c.0.s8 %v3985
      %v3987 = vlaneseq
      %v3988 = vshrl.u32 %v3987, 7
      %v3989 = vsub.s32 %v3986, %v3988
      %v3990 = vrot.slane %v3983, %v3989
      %v3992 = vunpack.c.l.s4 1966171168
      %v3993 = vunpack.c.0.s8 %v3992
      %v3994 = vlaneseq
      %v3995 = vshrl.u32 %v3994, 7
      %v3996 = vsub.s32 %v3993, %v3995
      %v3997 = vrot.slane %v3982, %v3996
      %v3998 = vcombine.low %v3990, %v3997
      %v4001 = vpack.c.bf16 %v3998, %v3958
      %v4003 = vlaneseq
      %v4004 = vshrl.u32 %v4003, 7
      %v4005 = vsub.s32 0, %v4004
      %v4006 = vrot.slane %v868, %v4005
      %v4007 = vlaneseq
      %v4008 = vshrl.u32 %v4007, 7
      %v4009 = vsub.s32 1, %v4008
      %v4010 = vrot.slane %v868, %v4009
      %v4021 = vunpack.c.l.b16 %v860
      %v4022 = vunpack.c.h.b16 %v860
      %v4023 = vunpack.c.l.b16 %v861
      %v4024 = vunpack.c.h.b16 %v861
      %v4025 = vunpack.c.l.b16 %v862
      %v4026 = vunpack.c.h.b16 %v862
      %v4027 = vunpack.c.l.b16 %v863
      %v4028 = vunpack.c.h.b16 %v863
      %v4029 = vunpack.c.l.b16 %v864
      %v4030 = vunpack.c.h.b16 %v864
      %v4031 = vunpack.c.l.b16 %v865
      %v4032 = vunpack.c.h.b16 %v865
      %v4033 = vunpack.c.l.b16 %v866
      %v4034 = vunpack.c.h.b16 %v866
      %v4035 = vunpack.c.l.b16 %v867
      %v4036 = vunpack.c.h.b16 %v867
      %v4037 = vpack.c.b16 %v4023, %v4021
      %v4038 = vpack.c.b16 %v4024, %v4022
      %v4039 = vpack.c.b16 %v4027, %v4025
      %v4040 = vpack.c.b16 %v4028, %v4026
      %v4041 = vpack.c.b16 %v4031, %v4029
      %v4042 = vpack.c.b16 %v4032, %v4030
      %v4043 = vpack.c.b16 %v4035, %v4033
      %v4044 = vpack.c.b16 %v4036, %v4034
      %v4054 = vsel %vm1187, %v4001, 0
      %4056 = vmatprep.subr.bf16.mxu0 %v4038
      %4057 = vmatpush1.bf16.msra.mxu0 %v4037
      %4058 = vmatprep.subr.bf16.mxu0 %v4040
      %4059 = vmatpush1.bf16.msra.mxu0 %v4039
      %4060 = vmatprep.subr.bf16.mxu0 %v4042
      %4061 = vmatpush1.bf16.msra.mxu0 %v4041
      %4062 = vmatprep.subr.bf16.mxu0 %v4044
      %4063 = vmatpush1.bf16.msra.mxu0 %v4043
      %4064 = vmatprep.subr.bf16.mxu0 0
      %4065 = vmatpush1.bf16.msra.mxu0 0
      %4066 = vmatprep.subr.bf16.mxu0 0
      %4067 = vmatpush1.bf16.msra.mxu0 0
      %4068 = vmatprep.subr.bf16.mxu0 0
      %4069 = vmatpush1.bf16.msra.mxu0 0
      %4070 = vmatprep.subr.bf16.mxu0 0
      %4071 = vmatpush1.bf16.msra.mxu0 0
      %4072 = vmatprep.subr.bf16.mxu0 0
      %4073 = vmatpush1.bf16.msra.mxu0 0
      %4074 = vmatprep.subr.bf16.mxu0 0
      %4075 = vmatpush1.bf16.msra.mxu0 0
      %4076 = vmatprep.subr.bf16.mxu0 0
      %4077 = vmatpush1.bf16.msra.mxu0 0
      %4078 = vmatprep.subr.bf16.mxu0 0
      %4079 = vmatpush1.bf16.msra.mxu0 0
      %4080 = vmatprep.subr.bf16.mxu0 0
      %4081 = vmatpush1.bf16.msra.mxu0 0
      %4082 = vmatprep.subr.bf16.mxu0 0
      %4083 = vmatpush1.bf16.msra.mxu0 0
      %4084 = vmatprep.subr.bf16.mxu0 0
      %4085 = vmatpush1.bf16.msra.mxu0 0
      %4086 = vmatprep.subr.bf16.mxu0 0
      %4087 = vmatpush1.bf16.msra.mxu0 0
      %4088 = vmatprep.mubr.bf16.mxu0 0
      %4089 = vmatmul.mubr.bf16.gmra.mrb[0].mxu0 %v4054
      %v4090 = vpop.f32.mrb[0].mxu0
      %v4091 = vadd.f32 %v4006, %v4090
      %v4092 = vpop.f32.mrb[0].mxu0
      %v4093 = vadd.f32 %v4010, %v4092
      %v4094 = vpop.f32.mrb[0].mxu0
      %v4095 = vadd.f32 %v4006, %v4094
      %v4096 = vpop.f32.mrb[0].mxu0
      %v4097 = vadd.f32 %v4010, %v4096
      %4098 = vdwg.mxu0
      %v4099 = vmul.f32 %v4091, 1.702
      %v4100 = vmul.f32 %v4093, 1.702
      %v4101 = vmul.f32 %v4095, 1.702
      %v4102 = vmul.f32 %v4097, 1.702
      %v4103 = vxor.u32 %v4099, 2147483648
      %v4104 = vxor.u32 %v4100, 2147483648
      %v4105 = vxor.u32 %v4101, 2147483648
      %v4106 = vxor.u32 %v4102, 2147483648
      %v4107 = vmul.f32 %v4103, 1.442695
      %v4108 = vpow.pop %v4107
      %v4109 = vmul.f32 %v4104, 1.442695
      %v4110 = vpow.pop %v4109
      %v4111 = vmul.f32 %v4105, 1.442695
      %v4112 = vpow.pop %v4111
      %v4113 = vmul.f32 %v4106, 1.442695
      %v4114 = vpow.pop %v4113
      %v4115 = vadd.f32 %v4108, 1.0
      %v4116 = vadd.f32 %v4110, 1.0
      %v4117 = vadd.f32 %v4112, 1.0
      %v4118 = vadd.f32 %v4114, 1.0
      %v4119 = vrcp.pop %v4115
      %v4120 = vmul.f32 1.0, %v4119
      %v4121 = vrcp.pop %v4116
      %v4122 = vmul.f32 1.0, %v4121
      %v4123 = vrcp.pop %v4117
      %v4124 = vmul.f32 1.0, %v4123
      %v4125 = vrcp.pop %v4118
      %v4126 = vmul.f32 1.0, %v4125
      %v4127 = vmul.f32 %v4091, %v4120
      %v4128 = vmul.f32 %v4093, %v4122
      %v4129 = vmul.f32 %v4095, %v4124
      %v4130 = vmul.f32 %v4097, %v4126
      %v4131 = vpack.c.bf16 %v4129, %v4127
      %v4132 = vpack.c.bf16 %v4130, %v4128
      %v4134 = vlaneseq
      %v4135 = vshrl.u32 %v4134, 7
      %v4136 = vsub.s32 0, %v4135
      %v4137 = vrot.slane %v901, %v4136
      %v4171 = vunpack.c.l.b16 %v869
      %v4172 = vunpack.c.l.b16 %v870
      %v4173 = vunpack.c.l.b16 %v871
      %v4174 = vunpack.c.l.b16 %v872
      %v4175 = vunpack.c.l.b16 %v873
      %v4176 = vunpack.c.l.b16 %v874
      %v4177 = vunpack.c.l.b16 %v875
      %v4178 = vunpack.c.l.b16 %v876
      %v4179 = vunpack.c.l.b16 %v877
      %v4180 = vunpack.c.l.b16 %v878
      %v4181 = vunpack.c.l.b16 %v879
      %v4182 = vunpack.c.l.b16 %v880
      %v4183 = vunpack.c.l.b16 %v881
      %v4184 = vunpack.c.l.b16 %v882
      %v4185 = vunpack.c.l.b16 %v883
      %v4186 = vunpack.c.l.b16 %v884
      %v4187 = vunpack.c.l.b16 %v885
      %v4188 = vunpack.c.l.b16 %v886
      %v4189 = vunpack.c.l.b16 %v887
      %v4190 = vunpack.c.l.b16 %v888
      %v4191 = vunpack.c.l.b16 %v889
      %v4192 = vunpack.c.l.b16 %v890
      %v4193 = vunpack.c.l.b16 %v891
      %v4194 = vunpack.c.l.b16 %v892
      %v4195 = vunpack.c.l.b16 %v893
      %v4196 = vunpack.c.l.b16 %v894
      %v4197 = vunpack.c.l.b16 %v895
      %v4198 = vunpack.c.l.b16 %v896
      %v4199 = vunpack.c.l.b16 %v897
      %v4200 = vunpack.c.l.b16 %v898
      %v4201 = vunpack.c.l.b16 %v899
      %v4202 = vunpack.c.l.b16 %v900
      %v4203 = vpack.c.b16 %v4172, %v4171
      %v4204 = vpack.c.b16 %v4174, %v4173
      %v4205 = vpack.c.b16 %v4176, %v4175
      %v4206 = vpack.c.b16 %v4178, %v4177
      %v4207 = vpack.c.b16 %v4180, %v4179
      %v4208 = vpack.c.b16 %v4182, %v4181
      %v4209 = vpack.c.b16 %v4184, %v4183
      %v4210 = vpack.c.b16 %v4186, %v4185
      %v4211 = vpack.c.b16 %v4188, %v4187
      %v4212 = vpack.c.b16 %v4190, %v4189
      %v4213 = vpack.c.b16 %v4192, %v4191
      %v4214 = vpack.c.b16 %v4194, %v4193
      %v4215 = vpack.c.b16 %v4196, %v4195
      %v4216 = vpack.c.b16 %v4198, %v4197
      %v4217 = vpack.c.b16 %v4200, %v4199
      %v4218 = vpack.c.b16 %v4202, %v4201
      %4235 = vmatprep.subr.bf16.mxu0 0
      %4236 = vmatpush1.bf16.msra.mxu0 %v4203
      %4237 = vmatprep.subr.bf16.mxu0 0
      %4238 = vmatpush1.bf16.msra.mxu0 %v4204
      %4239 = vmatprep.subr.bf16.mxu0 0
      %4240 = vmatpush1.bf16.msra.mxu0 %v4205
      %4241 = vmatprep.subr.bf16.mxu0 0
      %4242 = vmatpush1.bf16.msra.mxu0 %v4206
      %4243 = vmatprep.subr.bf16.mxu0 0
      %4244 = vmatpush1.bf16.msra.mxu0 %v4207
      %4245 = vmatprep.subr.bf16.mxu0 0
      %4246 = vmatpush1.bf16.msra.mxu0 %v4208
      %4247 = vmatprep.subr.bf16.mxu0 0
      %4248 = vmatpush1.bf16.msra.mxu0 %v4209
      %4249 = vmatprep.subr.bf16.mxu0 0
      %4250 = vmatpush1.bf16.msra.mxu0 %v4210
      %4251 = vmatprep.subr.bf16.mxu0 0
      %4252 = vmatpush1.bf16.msra.mxu0 %v4211
      %4253 = vmatprep.subr.bf16.mxu0 0
      %4254 = vmatpush1.bf16.msra.mxu0 %v4212
      %4255 = vmatprep.subr.bf16.mxu0 0
      %4256 = vmatpush1.bf16.msra.mxu0 %v4213
      %4257 = vmatprep.subr.bf16.mxu0 0
      %4258 = vmatpush1.bf16.msra.mxu0 %v4214
      %4259 = vmatprep.subr.bf16.mxu0 0
      %4260 = vmatpush1.bf16.msra.mxu0 %v4215
      %4261 = vmatprep.subr.bf16.mxu0 0
      %4262 = vmatpush1.bf16.msra.mxu0 %v4216
      %4263 = vmatprep.subr.bf16.mxu0 0
      %4264 = vmatpush1.bf16.msra.mxu0 %v4217
      %4265 = vmatprep.subr.bf16.mxu0 0
      %4266 = vmatpush1.bf16.msra.mxu0 %v4218
      %4267 = vmatprep.mubr.bf16.mxu0 %v4132
      %4268 = vmatmul.mubr.bf16.gmra.mrb[0].mxu0 %v4131
      %v4269 = vpop.f32.mrb[0].mxu0
      %v4270 = vadd.f32 %v4137, %v4269
      %v4271 = vpop.f32.mrb[0].mxu0
      %v4272 = vpop.f32.mrb[0].mxu0
      %v4273 = vadd.f32 %v4137, %v4272
      %v4274 = vpop.f32.mrb[0].mxu0
      %4275 = vdwg.mxu0
      %v4278 = vcombine.high %v4270, %v4270
      %v4280 = vunpack.c.l.s4 1966171168
      %v4281 = vunpack.c.0.s8 %v4280
      %v4282 = vlaneseq
      %v4283 = vshrl.u32 %v4282, 7
      %v4284 = vsub.s32 %v4281, %v4283
      %v4285 = vrot.slane %v4270, %v4284
      %v4287 = vunpack.c.l.s4 1966171168
      %v4288 = vunpack.c.0.s8 %v4287
      %v4289 = vlaneseq
      %v4290 = vshrl.u32 %v4289, 7
      %v4291 = vsub.s32 %v4288, %v4290
      %v4292 = vrot.slane %v4278, %v4291
      %v4293 = vcombine.high %v4285, %v4285
      %v4294 = vcombine.high %v4292, %v4292
      %v4296 = vunpack.c.l.s4 1966171168
      %v4297 = vunpack.c.0.s8 %v4296
      %v4298 = vlaneseq
      %v4299 = vshrl.u32 %v4298, 7
      %v4300 = vsub.s32 %v4297, %v4299
      %v4301 = vrot.slane %v4285, %v4300
      %v4303 = vunpack.c.l.s4 1966171168
      %v4304 = vunpack.c.0.s8 %v4303
      %v4305 = vlaneseq
      %v4306 = vshrl.u32 %v4305, 7
      %v4307 = vsub.s32 %v4304, %v4306
      %v4308 = vrot.slane %v4292, %v4307
      %v4310 = vunpack.c.l.s4 1966171168
      %v4311 = vunpack.c.0.s8 %v4310
      %v4312 = vlaneseq
      %v4313 = vshrl.u32 %v4312, 7
      %v4314 = vsub.s32 %v4311, %v4313
      %v4315 = vrot.slane %v4293, %v4314
      %v4317 = vunpack.c.l.s4 1966171168
      %v4318 = vunpack.c.0.s8 %v4317
      %v4319 = vlaneseq
      %v4320 = vshrl.u32 %v4319, 7
      %v4321 = vsub.s32 %v4318, %v4320
      %v4322 = vrot.slane %v4294, %v4321
      %v4323 = vcombine.high %v4301, %v4301
      %v4324 = vcombine.high %v4308, %v4308
      %v4325 = vcombine.high %v4315, %v4315
      %v4326 = vcombine.high %v4322, %v4322
      %v4327 = vcombine.high %v4273, %v4273
      %v4329 = vunpack.c.l.s4 1966171168
      %v4330 = vunpack.c.0.s8 %v4329
      %v4331 = vlaneseq
      %v4332 = vshrl.u32 %v4331, 7
      %v4333 = vsub.s32 %v4330, %v4332
      %v4334 = vrot.slane %v4273, %v4333
      %v4336 = vunpack.c.l.s4 1966171168
      %v4337 = vunpack.c.0.s8 %v4336
      %v4338 = vlaneseq
      %v4339 = vshrl.u32 %v4338, 7
      %v4340 = vsub.s32 %v4337, %v4339
      %v4341 = vrot.slane %v4327, %v4340
      %v4342 = vcombine.high %v4334, %v4334
      %v4343 = vcombine.high %v4341, %v4341
      %v4345 = vunpack.c.l.s4 1966171168
      %v4346 = vunpack.c.0.s8 %v4345
      %v4347 = vlaneseq
      %v4348 = vshrl.u32 %v4347, 7
      %v4349 = vsub.s32 %v4346, %v4348
      %v4350 = vrot.slane %v4334, %v4349
      %v4352 = vunpack.c.l.s4 1966171168
      %v4353 = vunpack.c.0.s8 %v4352
      %v4354 = vlaneseq
      %v4355 = vshrl.u32 %v4354, 7
      %v4356 = vsub.s32 %v4353, %v4355
      %v4357 = vrot.slane %v4341, %v4356
      %v4359 = vunpack.c.l.s4 1966171168
      %v4360 = vunpack.c.0.s8 %v4359
      %v4361 = vlaneseq
      %v4362 = vshrl.u32 %v4361, 7
      %v4363 = vsub.s32 %v4360, %v4362
      %v4364 = vrot.slane %v4342, %v4363
      %v4366 = vunpack.c.l.s4 1966171168
      %v4367 = vunpack.c.0.s8 %v4366
      %v4368 = vlaneseq
      %v4369 = vshrl.u32 %v4368, 7
      %v4370 = vsub.s32 %v4367, %v4369
      %v4371 = vrot.slane %v4343, %v4370
      %v4372 = vcombine.high %v4350, %v4350
      %v4373 = vcombine.high %v4364, %v4364
      %v4374 = vcombine.low %v4301, %v4315
      %v4375 = vcombine.low %v4323, %v4325
      %v4376 = vcombine.low %v4308, %v4322
      %v4378 = vunpack.c.l.s4 1966171168
      %v4379 = vunpack.c.0.s8 %v4378
      %v4380 = vlaneseq
      %v4381 = vshrl.u32 %v4380, 7
      %v4382 = vsub.s32 %v4379, %v4381
      %v4383 = vrot.slane %v4374, %v4382
      %v4385 = vunpack.c.l.s4 1966171168
      %v4386 = vunpack.c.0.s8 %v4385
      %v4387 = vlaneseq
      %v4388 = vshrl.u32 %v4387, 7
      %v4389 = vsub.s32 %v4386, %v4388
      %v4390 = vrot.slane %v4375, %v4389
      %v4392 = vunpack.c.l.s4 1966171168
      %v4393 = vunpack.c.0.s8 %v4392
      %v4394 = vlaneseq
      %v4395 = vshrl.u32 %v4394, 7
      %v4396 = vsub.s32 %v4393, %v4395
      %v4397 = vrot.slane %v4376, %v4396
      %v4399 = vunpack.c.l.s4 1966171168
      %v4400 = vunpack.c.0.s8 %v4399
      %v4401 = vlaneseq
      %v4402 = vshrl.u32 %v4401, 7
      %v4403 = vsub.s32 %v4400, %v4402
      %v4404 = vrot.slane %v4324, %v4403
      %v4405 = vcombine.low %v4383, %v4390
      %v4406 = vcombine.low %v4397, %v4404
      %v4408 = vunpack.c.l.s4 1966171168
      %v4409 = vunpack.c.0.s8 %v4408
      %v4410 = vlaneseq
      %v4411 = vshrl.u32 %v4410, 7
      %v4412 = vsub.s32 %v4409, %v4411
      %v4413 = vrot.slane %v4405, %v4412
      %v4415 = vunpack.c.l.s4 1966171168
      %v4416 = vunpack.c.0.s8 %v4415
      %v4417 = vlaneseq
      %v4418 = vshrl.u32 %v4417, 7
      %v4419 = vsub.s32 %v4416, %v4418
      %v4420 = vrot.slane %v4406, %v4419
      %v4421 = vcombine.low %v4413, %v4420
      %v4422 = vcombine.low %v4326, %v4350
      %v4423 = vcombine.low %v4364, %v4372
      %v4424 = vcombine.low %v4373, %v4357
      %v4426 = vunpack.c.l.s4 1966171168
      %v4427 = vunpack.c.0.s8 %v4426
      %v4428 = vlaneseq
      %v4429 = vshrl.u32 %v4428, 7
      %v4430 = vsub.s32 %v4427, %v4429
      %v4431 = vrot.slane %v4422, %v4430
      %v4433 = vunpack.c.l.s4 1966171168
      %v4434 = vunpack.c.0.s8 %v4433
      %v4435 = vlaneseq
      %v4436 = vshrl.u32 %v4435, 7
      %v4437 = vsub.s32 %v4434, %v4436
      %v4438 = vrot.slane %v4423, %v4437
      %v4440 = vunpack.c.l.s4 1966171168
      %v4441 = vunpack.c.0.s8 %v4440
      %v4442 = vlaneseq
      %v4443 = vshrl.u32 %v4442, 7
      %v4444 = vsub.s32 %v4441, %v4443
      %v4445 = vrot.slane %v4424, %v4444
      %v4447 = vunpack.c.l.s4 1966171168
      %v4448 = vunpack.c.0.s8 %v4447
      %v4449 = vlaneseq
      %v4450 = vshrl.u32 %v4449, 7
      %v4451 = vsub.s32 %v4448, %v4450
      %v4452 = vrot.slane %v4371, %v4451
      %v4453 = vcombine.low %v4431, %v4438
      %v4454 = vcombine.low %v4445, %v4452
      %v4456 = vunpack.c.l.s4 1966171168
      %v4457 = vunpack.c.0.s8 %v4456
      %v4458 = vlaneseq
      %v4459 = vshrl.u32 %v4458, 7
      %v4460 = vsub.s32 %v4457, %v4459
      %v4461 = vrot.slane %v4453, %v4460
      %v4463 = vunpack.c.l.s4 1966171168
      %v4464 = vunpack.c.0.s8 %v4463
      %v4465 = vlaneseq
      %v4466 = vshrl.u32 %v4465, 7
      %v4467 = vsub.s32 %v4464, %v4466
      %v4468 = vrot.slane %v4454, %v4467
      %v4469 = vcombine.low %v4461, %v4468
      %v4472 = vadd.f32 %v3768, %v4421
      %v4473 = vadd.f32 %v3769, %v4469
      %4474 = vst.msk [vmem:[#allocation2] sm:$0x7f] %vm902, %v4472
      %4475 = vst.msk [vmem:[#allocation2 + $0x8] sm:$0x7f] %vm902, %v4473
      %p4476 = scmp.eq.s32.totalorder %s30, 1
      // Predicated region
      $region105: #{forward.10} parent=95 // pred_check
        %p4477 = pneg %p4476
      $region106: #{forward.10} parent=95 // pred_check_branch
        %4479 = sbr.rel (%p4477) target = $region108
      $region107: #{forward.10} parent=95 // pred_region
        %v4480 = vld [vmem:[#allocation2] sm:$0x1]
        %v4481 = vld [vmem:[#allocation2 + $0x8] sm:$0x1]
        %v4482 = vld [vmem:[%s16] sm:$0x1]
        %v4483 = vld [vmem:[%s17] sm:$0x1]
        %v4486 = vrot.slane %v4481, 7
        %vm4487 = vcmask 1041409
        %v4488 = vsel %vm4487, %v4486, %v4480
        %vm4490 = vcmask 517120
        %v4491 = vsel %vm4490, %v4488, 0.0
        %4492 = vadd.xlane.f32.xlu0 %v4491
        %v4493 = vpop.xlane.xlu0 %4492
        %v4494 = vmul.f32 %v4493, %v909
        %v4496 = vrot.slane %v4494, 1
        %v4499 = vsub.f32 %v4480, %v4494
        %v4500 = vsub.f32 %v4481, %v4496
        %v4501 = vmul.f32 %v4499, %v4499
        %v4502 = vmul.f32 %v4500, %v4500
        %v4505 = vrot.slane %v4502, 7
        %v4506 = vsel %vm4487, %v4505, %v4501
        %v4508 = vsel %vm4490, %v4506, 0.0
        %4509 = vadd.xlane.f32.xlu0 %v4508
        %v4510 = vpop.xlane.xlu0 %4509
        %v4511 = vmul.f32 %v4510, %v909
        %v4512 = vadd.f32 %v4511, 1e-05
        %v4513 = vrsqrt.pop %v4512
        %v4515 = vrot.slane %v4513, 1
        %v4518 = vmul.f32 %v4499, %v4513
        %v4519 = vmul.f32 %v4500, %v4515
        %v4521 = vlaneseq
        %v4522 = vshrl.u32 %v4521, 7
        %v4523 = vsub.s32 0, %v4522
        %v4524 = vrot.slane %v4482, %v4523
        %v4526 = vmul.f32 %v4518, %v4524
        %v4527 = vmul.f32 %v4519, %v4524
        %v4529 = vlaneseq
        %v4530 = vshrl.u32 %v4529, 7
        %v4531 = vsub.s32 0, %v4530
        %v4532 = vrot.slane %v4483, %v4531
        %v4534 = vadd.f32 %v4526, %v4532
        %v4535 = vadd.f32 %v4527, %v4532
        %v4536 = vld [vmem:[%s18] sm:$0xff]
        %v4537 = vld [vmem:[%s18 + $0x8] sm:$0xff]
        %v4538 = vld [vmem:[%s18 + $0x10] sm:$0xff]
        %v4539 = vld [vmem:[%s18 + $0x18] sm:$0xff]
        %v4540 = vld [vmem:[%s18 + $0x20] sm:$0xff]
        %v4541 = vld [vmem:[%s18 + $0x28] sm:$0xff]
        %v4542 = vld [vmem:[%s18 + $0x30] sm:$0xff]
        %v4543 = vld [vmem:[%s18 + $0x38] sm:$0xff]
        %v4546 = vrot.slane %v4535, 7
        %v4547 = vsel %vm4487, %v4546, %v4534
        %v4548 = vsel %vm1187, %v4547, 0
        %4550 = vmatprep.subr.mxu0 0.0
        %4551 = vmatpush1.msra.mxu0 %v4536
        %4552 = vmatprep.subr.mxu0 0.0
        %4553 = vmatpush1.msra.mxu0 %v4537
        %4554 = vmatprep.subr.mxu0 0.0
        %4555 = vmatpush1.msra.mxu0 %v4538
        %4556 = vmatprep.subr.mxu0 0.0
        %4557 = vmatpush1.msra.mxu0 %v4539
        %4558 = vmatprep.subr.mxu0 0.0
        %4559 = vmatpush1.msra.mxu0 %v4540
        %4560 = vmatprep.subr.mxu0 0.0
        %4561 = vmatpush1.msra.mxu0 %v4541
        %4562 = vmatprep.subr.mxu0 0.0
        %4563 = vmatpush1.msra.mxu0 %v4542
        %4564 = vmatprep.subr.mxu0 0.0
        %4565 = vmatpush1.msra.mxu0 %v4543
        %4566 = vmatprep.subr.mxu0 0.0
        %4567 = vmatpush1.msra.mxu0 0.0
        %4568 = vmatprep.subr.mxu0 0.0
        %4569 = vmatpush1.msra.mxu0 0.0
        %4570 = vmatprep.subr.mxu0 0.0
        %4571 = vmatpush1.msra.mxu0 0.0
        %4572 = vmatprep.subr.mxu0 0.0
        %4573 = vmatpush1.msra.mxu0 0.0
        %4574 = vmatprep.subr.mxu0 0.0
        %4575 = vmatpush1.msra.mxu0 0.0
        %4576 = vmatprep.subr.mxu0 0.0
        %4577 = vmatpush1.msra.mxu0 0.0
        %4578 = vmatprep.subr.mxu0 0.0
        %4579 = vmatpush1.msra.mxu0 0.0
        %4580 = vmatprep.subr.mxu0 0.0
        %4581 = vmatpush1.msra.mxu0 0.0
        %4582 = vmatprep.subr.mxu0 0.0
        %4583 = vmatpush1.msra.mxu0 0.0
        %4584 = vmatprep.subr.mxu0 0.0
        %4585 = vmatpush1.msra.mxu0 0.0
        %4586 = vmatprep.subr.mxu0 0.0
        %4587 = vmatpush1.msra.mxu0 0.0
        %4588 = vmatprep.subr.mxu0 0.0
        %4589 = vmatpush1.msra.mxu0 0.0
        %4590 = vmatprep.subr.mxu0 0.0
        %4591 = vmatpush1.msra.mxu0 0.0
        %4592 = vmatprep.subr.mxu0 0.0
        %4593 = vmatpush1.msra.mxu0 0.0
        %4594 = vmatprep.subr.mxu0 0.0
        %4595 = vmatpush1.msra.mxu0 0.0
        %4596 = vmatprep.subr.mxu0 0.0
        %4597 = vmatpush1.msra.mxu0 0.0
        %4598 = vmatprep.subr.mxu0 0.0
        %4599 = vmatpush1.msra.mxu0 0.0
        %4600 = vmatprep.subr.mxu0 0.0
        %4601 = vmatpush1.msra.mxu0 0.0
        %4602 = vmatprep.subr.mxu0 0.0
        %4603 = vmatpush1.msra.mxu0 0.0
        %4604 = vmatprep.subr.mxu0 0.0
        %4605 = vmatpush1.msra.mxu0 0.0
        %4606 = vmatprep.subr.mxu0 0.0
        %4607 = vmatpush1.msra.mxu0 0.0
        %4608 = vmatprep.subr.mxu0 0.0
        %4609 = vmatpush1.msra.mxu0 0.0
        %4610 = vmatprep.subr.mxu0 0.0
        %4611 = vmatpush1.msra.mxu0 0.0
        %4612 = vmatprep.subr.mxu0 0.0
        %4613 = vmatpush1.msra.mxu0 0.0
        %4614 = vmatprep.mubr.f32.mxu0 0.0
        %4615 = vmatmul.mubr.f32.gmra.mrb[0].mxu0 %v4548
        %v4616 = vpop.f32.mrb[0].mxu0
        %v4617 = vadd.f32 0.0, %v4616
        %v4618 = vpop.f32.mrb[0].mxu0
        %4619 = vdwg.mxu0
        %vm4620 = vcmask 123904
        %4621 = vst.msk [vmem:[%s19] sm:$0x3] %vm4620, %v4617
      $region108: #{forward.10} parent=95 // pred_fallthru
        _
      // Predicated region
      $region109: #{forward.10} parent=95 // pred_check
        %p4622 = pneg %p502
      $region110: #{forward.10} parent=95 // pred_check_branch
        %4624 = sbr.rel (%p4622) target = $region112
      $region111: #{forward.10} parent=95 // pred_region
        _
      $region112: #{forward.10} parent=95 // pred_fallthru
        _
      // Predicated region
      $region113: #{forward.10} parent=95 // pred_check
        %p4625 = pneg %p502
      $region114: #{forward.10} parent=95 // pred_check_branch
        %4627 = sbr.rel (%p4625) target = $region116
      $region115: #{forward.10} parent=95 // pred_region
        _
      $region116: #{forward.10} parent=95 // pred_fallthru
        _
    $region96: #{forward.10} parent=5 // pred_fallthru
      _
    %p4628 = scmp.le.s32.totalorder 2, %s25
    // Predicated region
    $region117: #{forward.10} parent=5 // pred_check
      %p4629 = pneg %p4628
    $region118: #{forward.10} parent=5 // pred_check_branch
      %4631 = sbr.rel (%p4629) target = $region120
    $region119: #{forward.10} parent=5 // pred_region
      %s4632 = ssub.s32 %s25, 2
    $region120: #{forward.10} parent=5 // pred_fallthru
      _
  $region6: #{forward.10} parent=0 // loop_footer
    %s29 = sadd.s32 1, %s25
  $region7: #{forward.10} parent=0 // loop_footer_branch
    %24 = sbr.rel target = $region3
  $region8: #{forward.10} parent=0 // loop_exit
    _

</llo_original>
